<compile_context>
chip_gen: v7x
topology: tpu7x:2x2x1
jax: 0.10.0
libtpu: 0.0.40
codegen_flags: <defaults>
</compile_context>

<pallas_src>
import jax
import jax.numpy as jnp
from jax.experimental import pallas as pl
from jax.experimental.pallas import tpu as pltpu


def _round_up(x, m):
    return ((x + m - 1) // m) * m


def _pad_to(a, shape):
    return jnp.pad(a, [(0, s - d) for d, s in zip(a.shape, shape)])


def _make_kernel(*, K, L, B, Cp, Csp, dils, need, halo_total, tile_rows,
                 compute_dtype, precision):
    n_sc = halo_total + tile_rows        # rows in one activation window
    off0 = halo_total - need[0]          # window row where layer-0 writes start

    def kernel(win_ref, wfg_ref, bfg_ref, wcomb_ref, bcomb_ref, out_ref, x_sc):
        i = pl.program_id(0)
        skip_acc = jnp.zeros((tile_rows, Csp), jnp.float32)

        for l in range(L):               # statically unrolled layer stack
            dil = dils[l]
            nd = need[l]                 # left context still needed AFTER layer l
            cw = tile_rows + nd          # rows (re)computed at this layer
            woff = halo_total - nd       # window row of the compute-slab start
            soff = woff - off0           # same, in scratch coordinates

            # ---- dilated causal conv (filter|gate fused): K accumulating
            # matmuls straight from the resident activations (no im2col). ----
            fg = jnp.zeros((cw, 2 * Cp), jnp.float32)
            for j in range(K):
                start_w = woff - (K - 1 - j) * B * dil     # static tap start
                if l == 0:
                    tap = win_ref[0, pl.ds(start_w, cw), :]
                else:
                    tap = x_sc[pl.ds(start_w - off0, cw), :]
                fg = fg + jnp.dot(tap.astype(compute_dtype), wfg_ref[l, j],
                                  preferred_element_type=jnp.float32,
                                  precision=precision)
            fg = fg + bfg_ref[l]
            f = jnp.tanh(fg[:, :Cp])
            g = jax.nn.sigmoid(fg[:, Cp:])
            fx = (f * g).astype(compute_dtype)

            # ---- fused 1x1 convs: wcomb = [wres | wres@wskip] -> [res|skip] -
            comb = jnp.dot(fx, wcomb_ref[l],
                           preferred_element_type=jnp.float32,
                           precision=precision) + bcomb_ref[l]
            fx_res = comb[:, :Cp]
            skip_acc = skip_acc + comb[cw - tile_rows:, Cp:]   # output rows

            if l < L - 1:
                # Residual (Euclidean mobius_add) for the rows the next layers
                # still need.  Rows that fall before timestep 0 are re-zeroed
                # so the next layer's taps see zero causal padding.
                if l == 0:
                    x_old = win_ref[0, pl.ds(woff, cw), :]
                else:
                    x_old = x_sc[pl.ds(soff, cw), :]
                new_x = fx_res + x_old
                pad_thr = nd - i * tile_rows   # rows with local idx < thr are padding
                row_id = jax.lax.broadcasted_iota(jnp.int32, (cw, 1), 0)
                new_x = jnp.where(row_id >= pad_thr, new_x, 0.0)
                x_sc[pl.ds(soff, cw), :] = new_x

        out_ref[...] = (skip_acc * (1.0 / L)).astype(out_ref.dtype)

    return kernel


def temporal_casual_conv(x, layer_params, *, kernel_size, tile_t=None,
                         use_bf16=False, vmem_limit_bytes=48 * 1024 * 1024):
    """TemporalCasualConv forward (Euclidean manifold) via one fused kernel.

    x: (T, B, C) float32 (seq, batch, channels).  Returns (T, B, Cs) float32.
    tile_t=None -> single T tile (no halo recompute; best on 1-TC v5e/v6e).
    tile_t=k    -> ~T/k tiles on the 'parallel' axis (e.g. 2 tiles for v7x).
    """
    T, B, C = x.shape
    L = len(layer_params)
    Cs = layer_params[0]['wskip'].shape[-1]
    K = 2 * kernel_size - 1
    Cp = _round_up(C, 128)                     # lane-dense channels
    Csp = _round_up(Cs, 128)
    dils = [kernel_size ** l for l in range(L)]

    # Per-layer halo: rows of left context still needed AFTER layer l,
    # rounded to sublane multiples so every compute-slab start is 8-aligned.
    need = [0] * L
    for l in range(L - 1, 0, -1):
        need[l - 1] = _round_up(need[l] + (K - 1) * B * dils[l], 8)
    halo_total = _round_up(need[0] + (K - 1) * B * dils[0], 8)

    # ---- T*B-row tiling ----------------------------------------------------
    rows = T * B
    if tile_t is None:
        tile_rows = rows
    else:
        tile_rows = min(max(1, tile_t) * B, rows)
    if tile_rows < rows:
        tile_rows = _round_up(tile_rows, 8)
    num_tiles = -(-rows // tile_rows)
    rows_pad = num_tiles * tile_rows
    n_sc = halo_total + tile_rows

    # ---- pack & pad weights (one-time layout prep) -------------------------
    hp = jax.lax.Precision.HIGHEST
    wdt = jnp.bfloat16 if use_bf16 else jnp.float32
    precision = None if use_bf16 else hp
    wfg_l, bfg_l, wcomb_l, bcomb_l = [], [], [], []
    for p in layer_params:
        wf = _pad_to(p['wf'], (K, Cp, Cp))
        wg = _pad_to(p['wg'], (K, Cp, Cp))
        wfg_l.append(jnp.concatenate([wf, wg], axis=-1))             # (K,Cp,2Cp)
        bfg_l.append(jnp.concatenate([_pad_to(p['bf'], (1, Cp)),
                                      _pad_to(p['bg'], (1, Cp))], axis=-1))
        wres = _pad_to(p['wres'], (Cp, Cp))
        wskip = _pad_to(p['wskip'], (Cp, Csp))
        bres = _pad_to(p['bres'], (1, Cp))
        bskip = _pad_to(p['bskip'], (1, Csp))
        wcomb_l.append(jnp.concatenate(
            [wres, jnp.dot(wres, wskip, precision=hp)], axis=-1))    # (Cp,Cp+Csp)
        bcomb_l.append(jnp.concatenate(
            [bres, jnp.dot(bres, wskip, precision=hp) + bskip], axis=-1))
    wfg_s = jnp.stack(wfg_l).astype(wdt)                  # (L, K, Cp, 2Cp)
    bfg_s = jnp.stack(bfg_l).astype(jnp.float32)          # (L, 1, 2Cp)
    wcomb_s = jnp.stack(wcomb_l).astype(wdt)              # (L, Cp, Cp+Csp)
    bcomb_s = jnp.stack(bcomb_l).astype(jnp.float32)      # (L, 1, Cp+Csp)

    # ---- activations: channel pad, causal front pad, per-tile windows ------
    x_flat = _pad_to(x.astype(jnp.float32).reshape(rows, C), (rows, Cp))
    x_flat = jnp.pad(x_flat, ((halo_total, rows_pad - rows), (0, 0)))
    windows = jnp.stack([x_flat[i * tile_rows:i * tile_rows + n_sc]
                         for i in range(num_tiles)])      # (num_tiles, n_sc, Cp)

    kernel = _make_kernel(K=K, L=L, B=B, Cp=Cp, Csp=Csp, dils=dils, need=need,
                          halo_total=halo_total, tile_rows=tile_rows,
                          compute_dtype=wdt, precision=precision)

    out_flat = pl.pallas_call(
        kernel,
        out_shape=jax.ShapeDtypeStruct((rows_pad, Csp), jnp.float32),
        grid_spec=pltpu.PrefetchScalarGridSpec(
            num_scalar_prefetch=0,
            grid=(num_tiles,),
            in_specs=[
                # per-tile activation window: auto double-buffered / prefetched
                pl.BlockSpec((1, n_sc, Cp), lambda i: (i, 0, 0)),
                # weights: constant index_map -> fetched once, VMEM-resident
                pl.BlockSpec((L, K, Cp, 2 * Cp), lambda i: (0, 0, 0, 0)),
                pl.BlockSpec((L, 1, 2 * Cp), lambda i: (0, 0, 0)),
                pl.BlockSpec((L, Cp, Cp + Csp), lambda i: (0, 0, 0)),
                pl.BlockSpec((L, 1, Cp + Csp), lambda i: (0, 0, 0)),
            ],
            out_specs=pl.BlockSpec((tile_rows, Csp), lambda i: (i, 0)),
            scratch_shapes=[
                # residual activations carried across the unrolled layers
                pltpu.VMEM((tile_rows + need[0], Cp), jnp.float32),
            ],
        ),
        compiler_params=pltpu.CompilerParams(
            dimension_semantics=("parallel",),
            vmem_limit_bytes=vmem_limit_bytes,   # safe on 64 MiB/TC v7x too
        ),
    )(windows, wfg_s, bfg_s, wcomb_s, bcomb_s)

    return out_flat[:rows].reshape(T, B, Csp)[:, :, :Cs]


def init_params(key, depth, C, Cs, K):
    params = []
    for l in range(depth):
        ks = jax.random.split(jax.random.fold_in(key, l), 6)
        scale = 1.0 / jnp.sqrt(jnp.float32(C))
        params.append(dict(
            wf=jax.random.normal(ks[0], (K, C, C), jnp.float32) * scale,
            bf=jnp.zeros((1, C), jnp.float32),
            wg=jax.random.normal(ks[1], (K, C, C), jnp.float32) * scale,
            bg=jnp.zeros((1, C), jnp.float32),
            wres=jax.random.normal(ks[2], (C, C), jnp.float32) * scale,
            bres=jax.random.normal(ks[3], (1, C), jnp.float32) * 0.01,
            wskip=jax.random.normal(ks[4], (C, Cs), jnp.float32) * scale,
            bskip=jax.random.normal(ks[5], (1, Cs), jnp.float32) * 0.01,
        ))
    return params


def reference(x, layer_params, *, kernel_size):
    """Pure-JAX reference of the same forward (for correctness check)."""
    T = x.shape[0]
    K = 2 * kernel_size - 1
    hp = jax.lax.Precision.HIGHEST
    skips = []
    for l, p in enumerate(layer_params):
        dil = kernel_size ** l
        pad = (K - 1) * dil
        x_pad = jnp.pad(x, ((pad, 0), (0, 0), (0, 0)))
        conv_f = sum(jnp.einsum('tbc,cd->tbd', x_pad[j * dil:j * dil + T],
                                p['wf'][j], precision=hp)
                     for j in range(K)) + p['bf']
        conv_g = sum(jnp.einsum('tbc,cd->tbd', x_pad[j * dil:j * dil + T],
                                p['wg'][j], precision=hp)
                     for j in range(K)) + p['bg']
        fx = jnp.tanh(conv_f) * jax.nn.sigmoid(conv_g)
        fx_res = jnp.einsum('tbc,cd->tbd', fx, p['wres'], precision=hp) + p['bres']
        skips.append(jnp.einsum('tbc,cd->tbd', fx_res, p['wskip'],
                                precision=hp) + p['bskip'])
        x = fx_res + x
    return jnp.mean(jnp.stack(skips, 0), axis=0)


if __name__ == "__main__":
    # small shapes: seq T=8, batch B=2, nout (= residual_size = skip_size) = 32,
    # casual_conv_depth = 2, casual_conv_kernel_size = 2  (effective K = 3)
    T, B, C = 8, 2, 32
    depth, ksize = 2, 2
    K = 2 * ksize - 1

    key = jax.random.PRNGKey(0)
    kx, kp = jax.random.split(key)
    x = jax.random.normal(kx, (T, B, C), jnp.float32)
    params = init_params(kp, depth, C, C, K)

    ref = reference(x, params, kernel_size=ksize)

    # f32 path, 2 T tiles (exercises halo recompute + window pipelining path).
    out = jax.block_until_ready(
        temporal_casual_conv(x, params, kernel_size=ksize, tile_t=4,
                             use_bf16=False))
    assert out.shape == (T, B, C)
    err = float(jnp.max(jnp.abs(out - ref)))
    assert err < 5e-4, f"f32 multi-tile mismatch vs ref: {err}"

    # f32 path, single tile (default: fewest tiles => zero halo recompute).
    out1 = jax.block_until_ready(
        temporal_casual_conv(x, params, kernel_size=ksize, use_bf16=False))
    err1 = float(jnp.max(jnp.abs(out1 - ref)))
    assert err1 < 5e-4, f"f32 single-tile mismatch vs ref: {err1}"

    # bf16 MXU-operand path (f32 accumulation); loose tolerance vs f32 ref.
    out_bf16 = jax.block_until_ready(
        temporal_casual_conv(x, params, kernel_size=ksize, tile_t=4,
                             use_bf16=True))
    assert float(jnp.max(jnp.abs(out_bf16 - ref))) < 0.25, "bf16 mismatch vs ref"

    print("KERNEL_OK")
</pallas_src>

<mosaic_0001>
module attributes {stable_mosaic.version = 11 : i64} {
  func.func @kernel(%arg0: i32, %arg1: memref<1x24x128xf32, #tpu.memory_space<vmem>>, %arg2: memref<2x3x128x256xf32, #tpu.memory_space<vmem>>, %arg3: memref<2x1x256xf32, #tpu.memory_space<vmem>>, %arg4: memref<2x128x256xf32, #tpu.memory_space<vmem>>, %arg5: memref<2x1x256xf32, #tpu.memory_space<vmem>>, %arg6: memref<8x128xf32, #tpu.memory_space<vmem>>, %arg7: memref<16x128xf32, #tpu.memory_space<vmem>>) attributes {dimension_semantics = [#tpu.dimension_semantics<parallel>], iteration_bounds = array<i64: 2>, scalar_prefetch = 0 : i64, scratch_operands = 1 : i64, tpu.core_type = #tpu.core_type<tc>, window_params = [{transform_indices = @transform_0, window_bounds = array<i64: 1, 24, 128>}, {pipeline_mode = #tpu.pipeline_mode<synchronous>, transform_indices = @transform_1, window_bounds = array<i64: 2, 3, 128, 256>}, {pipeline_mode = #tpu.pipeline_mode<synchronous>, transform_indices = @transform_2, window_bounds = array<i64: 2, 1, 256>}, {pipeline_mode = #tpu.pipeline_mode<synchronous>, transform_indices = @transform_3, window_bounds = array<i64: 2, 128, 256>}, {pipeline_mode = #tpu.pipeline_mode<synchronous>, transform_indices = @transform_4, window_bounds = array<i64: 2, 1, 256>}, {transform_indices = @transform_5, window_bounds = array<i64: 8, 128>}]} {
    %cst = arith.constant 0.000000e+00 : f32
    %0 = vector.broadcast %cst : f32 to vector<8x128xf32>
    %cst_0 = arith.constant 0.000000e+00 : f32
    %1 = vector.broadcast %cst_0 : f32 to vector<16x256xf32>
    %c0 = arith.constant 0 : index
    %c4 = arith.constant 4 : index
    %c0_1 = arith.constant 0 : index
    %2 = vector.load %arg1[%c0, %c4, %c0_1] : memref<1x24x128xf32, #tpu.memory_space<vmem>>, vector<1x16x128xf32>
    %3 = vector.shape_cast %2 : vector<1x16x128xf32> to vector<16x128xf32>
    %c0_2 = arith.constant 0 : index
    %c0_3 = arith.constant 0 : index
    %c0_4 = arith.constant 0 : index
    %c0_5 = arith.constant 0 : index
    %4 = vector.load %arg2[%c0_2, %c0_3, %c0_4, %c0_5] : memref<2x3x128x256xf32, #tpu.memory_space<vmem>>, vector<1x1x128x256xf32>
    %5 = vector.shape_cast %4 : vector<1x1x128x256xf32> to vector<128x256xf32>
    %cst_6 = arith.constant dense<0.000000e+00> : vector<16x256xf32>
    %6 = tpu.matmul %3, %5, %cst_6 {dimension_numbers = #tpu.dot_dimension_numbers<[1], [0], [0], [1], [0, 0, 1, 1], [], []>, precision = #tpu.contract_precision<fp32>} : vector<16x128xf32>, vector<128x256xf32>, vector<16x256xf32> -> vector<16x256xf32>
    %7 = arith.addf %1, %6 : vector<16x256xf32>
    %c0_7 = arith.constant 0 : index
    %c6 = arith.constant 6 : index
    %c0_8 = arith.constant 0 : index
    %8 = vector.load %arg1[%c0_7, %c6, %c0_8] : memref<1x24x128xf32, #tpu.memory_space<vmem>>, vector<1x16x128xf32>
    %9 = vector.shape_cast %8 : vector<1x16x128xf32> to vector<16x128xf32>
    %c0_9 = arith.constant 0 : index
    %c1 = arith.constant 1 : index
    %c0_10 = arith.constant 0 : index
    %c0_11 = arith.constant 0 : index
    %10 = vector.load %arg2[%c0_9, %c1, %c0_10, %c0_11] : memref<2x3x128x256xf32, #tpu.memory_space<vmem>>, vector<1x1x128x256xf32>
    %11 = vector.shape_cast %10 : vector<1x1x128x256xf32> to vector<128x256xf32>
    %cst_12 = arith.constant dense<0.000000e+00> : vector<16x256xf32>
    %12 = tpu.matmul %9, %11, %cst_12 {dimension_numbers = #tpu.dot_dimension_numbers<[1], [0], [0], [1], [0, 0, 1, 1], [], []>, precision = #tpu.contract_precision<fp32>} : vector<16x128xf32>, vector<128x256xf32>, vector<16x256xf32> -> vector<16x256xf32>
    %13 = arith.addf %7, %12 : vector<16x256xf32>
    %c0_13 = arith.constant 0 : index
    %c8 = arith.constant 8 : index
    %c0_14 = arith.constant 0 : index
    %14 = vector.load %arg1[%c0_13, %c8, %c0_14] : memref<1x24x128xf32, #tpu.memory_space<vmem>>, vector<1x16x128xf32>
    %15 = vector.shape_cast %14 : vector<1x16x128xf32> to vector<16x128xf32>
    %c0_15 = arith.constant 0 : index
    %c2 = arith.constant 2 : index
    %c0_16 = arith.constant 0 : index
    %c0_17 = arith.constant 0 : index
    %16 = vector.load %arg2[%c0_15, %c2, %c0_16, %c0_17] : memref<2x3x128x256xf32, #tpu.memory_space<vmem>>, vector<1x1x128x256xf32>
    %17 = vector.shape_cast %16 : vector<1x1x128x256xf32> to vector<128x256xf32>
    %cst_18 = arith.constant dense<0.000000e+00> : vector<16x256xf32>
    %18 = tpu.matmul %15, %17, %cst_18 {dimension_numbers = #tpu.dot_dimension_numbers<[1], [0], [0], [1], [0, 0, 1, 1], [], []>, precision = #tpu.contract_precision<fp32>} : vector<16x128xf32>, vector<128x256xf32>, vector<16x256xf32> -> vector<16x256xf32>
    %19 = arith.addf %13, %18 : vector<16x256xf32>
    %c0_19 = arith.constant 0 : index
    %c0_20 = arith.constant 0 : index
    %c0_21 = arith.constant 0 : index
    %20 = vector.load %arg3[%c0_19, %c0_20, %c0_21] : memref<2x1x256xf32, #tpu.memory_space<vmem>>, vector<1x1x256xf32>
    %21 = vector.shape_cast %20 : vector<1x1x256xf32> to vector<1x256xf32>
    %22 = vector.broadcast %21 : vector<1x256xf32> to vector<16x256xf32>
    %23 = arith.addf %19, %22 : vector<16x256xf32>
    %24 = vector.extract_strided_slice %23 {offsets = [0, 0], sizes = [16, 128], strides = [1, 1]} : vector<16x256xf32> to vector<16x128xf32>
    %25 = math.tanh %24 : vector<16x128xf32>
    %26 = vector.extract_strided_slice %23 {offsets = [0, 128], sizes = [16, 128], strides = [1, 1]} : vector<16x256xf32> to vector<16x128xf32>
    %27 = arith.negf %26 : vector<16x128xf32>
    %28 = math.exp %27 : vector<16x128xf32>
    %cst_22 = arith.constant 1.000000e+00 : f32
    %29 = vector.broadcast %cst_22 : f32 to vector<16x128xf32>
    %30 = arith.addf %29, %28 : vector<16x128xf32>
    %31 = arith.divf %29, %30 : vector<16x128xf32>
    %32 = arith.mulf %25, %31 : vector<16x128xf32>
    %c0_23 = arith.constant 0 : index
    %c0_24 = arith.constant 0 : index
    %c0_25 = arith.constant 0 : index
    %33 = vector.load %arg4[%c0_23, %c0_24, %c0_25] : memref<2x128x256xf32, #tpu.memory_space<vmem>>, vector<1x128x256xf32>
    %34 = vector.shape_cast %33 : vector<1x128x256xf32> to vector<128x256xf32>
    %cst_26 = arith.constant dense<0.000000e+00> : vector<16x256xf32>
    %35 = tpu.matmul %32, %34, %cst_26 {dimension_numbers = #tpu.dot_dimension_numbers<[1], [0], [0], [1], [0, 0, 1, 1], [], []>, precision = #tpu.contract_precision<fp32>} : vector<16x128xf32>, vector<128x256xf32>, vector<16x256xf32> -> vector<16x256xf32>
    %c0_27 = arith.constant 0 : index
    %c0_28 = arith.constant 0 : index
    %c0_29 = arith.constant 0 : index
    %36 = vector.load %arg5[%c0_27, %c0_28, %c0_29] : memref<2x1x256xf32, #tpu.memory_space<vmem>>, vector<1x1x256xf32>
    %37 = vector.shape_cast %36 : vector<1x1x256xf32> to vector<1x256xf32>
    %38 = vector.broadcast %37 : vector<1x256xf32> to vector<16x256xf32>
    %39 = arith.addf %35, %38 : vector<16x256xf32>
    %40 = vector.extract_strided_slice %39 {offsets = [0, 0], sizes = [16, 128], strides = [1, 1]} : vector<16x256xf32> to vector<16x128xf32>
    %41 = vector.extract_strided_slice %39 {offsets = [8, 128], sizes = [8, 128], strides = [1, 1]} : vector<16x256xf32> to vector<8x128xf32>
    %42 = arith.addf %0, %41 : vector<8x128xf32>
    %c0_30 = arith.constant 0 : index
    %c8_31 = arith.constant 8 : index
    %c0_32 = arith.constant 0 : index
    %43 = vector.load %arg1[%c0_30, %c8_31, %c0_32] : memref<1x24x128xf32, #tpu.memory_space<vmem>>, vector<1x16x128xf32>
    %44 = vector.shape_cast %43 : vector<1x16x128xf32> to vector<16x128xf32>
    %45 = arith.addf %40, %44 : vector<16x128xf32>
    %c8_i32 = arith.constant 8 : i32
    %46 = arith.muli %arg0, %c8_i32 : i32
    %c8_i32_33 = arith.constant 8 : i32
    %47 = arith.subi %c8_i32_33, %46 : i32
    %48 = tpu.iota {dimensions = array<i32: 0>} : vector<16x1xi32>
    %49 = vector.broadcast %47 : i32 to vector<16x1xi32>
    %50 = arith.cmpi sge, %48, %49 : vector<16x1xi32>
    %cst_34 = arith.constant 0.000000e+00 : f32
    %51 = vector.shape_cast %50 : vector<16x1xi1> to vector<16x1xi1>
    %52 = vector.broadcast %51 : vector<16x1xi1> to vector<16x128xi1>
    %53 = vector.broadcast %cst_34 : f32 to vector<16x128xf32>
    %54 = arith.select %52, %45, %53 : vector<16x128xi1>, vector<16x128xf32>
    %c0_35 = arith.constant 0 : index
    %c0_36 = arith.constant 0 : index
    %55 = vector.load %arg7[%c0_35, %c0_36] : memref<16x128xf32, #tpu.memory_space<vmem>>, vector<16x128xf32>
    tpu.vector_store %arg7[%c0_35, %c0_36], %54 {strides = array<i32>} : memref<16x128xf32, #tpu.memory_space<vmem>>, vector<16x128xf32>,
    %cst_37 = arith.constant 0.000000e+00 : f32
    %56 = vector.broadcast %cst_37 : f32 to vector<8x256xf32>
    %c0_38 = arith.constant 0 : index
    %c0_39 = arith.constant 0 : index
    %57 = vector.load %arg7[%c0_38, %c0_39] : memref<16x128xf32, #tpu.memory_space<vmem>>, vector<8x128xf32>
    %c1_40 = arith.constant 1 : index
    %c0_41 = arith.constant 0 : index
    %c0_42 = arith.constant 0 : index
    %c0_43 = arith.constant 0 : index
    %58 = vector.load %arg2[%c1_40, %c0_41, %c0_42, %c0_43] : memref<2x3x128x256xf32, #tpu.memory_space<vmem>>, vector<1x1x128x256xf32>
    %59 = vector.shape_cast %58 : vector<1x1x128x256xf32> to vector<128x256xf32>
    %cst_44 = arith.constant dense<0.000000e+00> : vector<8x256xf32>
    %60 = tpu.matmul %57, %59, %cst_44 {dimension_numbers = #tpu.dot_dimension_numbers<[1], [0], [0], [1], [0, 0, 1, 1], [], []>, precision = #tpu.contract_precision<fp32>} : vector<8x128xf32>, vector<128x256xf32>, vector<8x256xf32> -> vector<8x256xf32>
    %61 = arith.addf %56, %60 : vector<8x256xf32>
    %c4_45 = arith.constant 4 : index
    %c0_46 = arith.constant 0 : index
    %62 = vector.load %arg7[%c4_45, %c0_46] : memref<16x128xf32, #tpu.memory_space<vmem>>, vector<8x128xf32>
    %c1_47 = arith.constant 1 : index
    %c1_48 = arith.constant 1 : index
    %c0_49 = arith.constant 0 : index
    %c0_50 = arith.constant 0 : index
    %63 = vector.load %arg2[%c1_47, %c1_48, %c0_49, %c0_50] : memref<2x3x128x256xf32, #tpu.memory_space<vmem>>, vector<1x1x128x256xf32>
    %64 = vector.shape_cast %63 : vector<1x1x128x256xf32> to vector<128x256xf32>
    %cst_51 = arith.constant dense<0.000000e+00> : vector<8x256xf32>
    %65 = tpu.matmul %62, %64, %cst_51 {dimension_numbers = #tpu.dot_dimension_numbers<[1], [0], [0], [1], [0, 0, 1, 1], [], []>, precision = #tpu.contract_precision<fp32>} : vector<8x128xf32>, vector<128x256xf32>, vector<8x256xf32> -> vector<8x256xf32>
    %66 = arith.addf %61, %65 : vector<8x256xf32>
    %c8_52 = arith.constant 8 : index
    %c0_53 = arith.constant 0 : index
    %67 = vector.load %arg7[%c8_52, %c0_53] : memref<16x128xf32, #tpu.memory_space<vmem>>, vector<8x128xf32>
    %c1_54 = arith.constant 1 : index
    %c2_55 = arith.constant 2 : index
    %c0_56 = arith.constant 0 : index
    %c0_57 = arith.constant 0 : index
    %68 = vector.load %arg2[%c1_54, %c2_55, %c0_56, %c0_57] : memref<2x3x128x256xf32, #tpu.memory_space<vmem>>, vector<1x1x128x256xf32>
    %69 = vector.shape_cast %68 : vector<1x1x128x256xf32> to vector<128x256xf32>
    %cst_58 = arith.constant dense<0.000000e+00> : vector<8x256xf32>
    %70 = tpu.matmul %67, %69, %cst_58 {dimension_numbers = #tpu.dot_dimension_numbers<[1], [0], [0], [1], [0, 0, 1, 1], [], []>, precision = #tpu.contract_precision<fp32>} : vector<8x128xf32>, vector<128x256xf32>, vector<8x256xf32> -> vector<8x256xf32>
    %71 = arith.addf %66, %70 : vector<8x256xf32>
    %c1_59 = arith.constant 1 : index
    %c0_60 = arith.constant 0 : index
    %c0_61 = arith.constant 0 : index
    %72 = vector.load %arg3[%c1_59, %c0_60, %c0_61] : memref<2x1x256xf32, #tpu.memory_space<vmem>>, vector<1x1x256xf32>
    %73 = vector.shape_cast %72 : vector<1x1x256xf32> to vector<1x256xf32>
    %74 = vector.broadcast %73 : vector<1x256xf32> to vector<8x256xf32>
    %75 = arith.addf %71, %74 : vector<8x256xf32>
    %76 = vector.extract_strided_slice %75 {offsets = [0, 0], sizes = [8, 128], strides = [1, 1]} : vector<8x256xf32> to vector<8x128xf32>
    %77 = math.tanh %76 : vector<8x128xf32>
    %78 = vector.extract_strided_slice %75 {offsets = [0, 128], sizes = [8, 128], strides = [1, 1]} : vector<8x256xf32> to vector<8x128xf32>
    %79 = arith.negf %78 : vector<8x128xf32>
    %80 = math.exp %79 : vector<8x128xf32>
    %cst_62 = arith.constant 1.000000e+00 : f32
    %81 = vector.broadcast %cst_62 : f32 to vector<8x128xf32>
    %82 = arith.addf %81, %80 : vector<8x128xf32>
    %83 = arith.divf %81, %82 : vector<8x128xf32>
    %84 = arith.mulf %77, %83 : vector<8x128xf32>
    %c1_63 = arith.constant 1 : index
    %c0_64 = arith.constant 0 : index
    %c0_65 = arith.constant 0 : index
    %85 = vector.load %arg4[%c1_63, %c0_64, %c0_65] : memref<2x128x256xf32, #tpu.memory_space<vmem>>, vector<1x128x256xf32>
    %86 = vector.shape_cast %85 : vector<1x128x256xf32> to vector<128x256xf32>
    %cst_66 = arith.constant dense<0.000000e+00> : vector<8x256xf32>
    %87 = tpu.matmul %84, %86, %cst_66 {dimension_numbers = #tpu.dot_dimension_numbers<[1], [0], [0], [1], [0, 0, 1, 1], [], []>, precision = #tpu.contract_precision<fp32>} : vector<8x128xf32>, vector<128x256xf32>, vector<8x256xf32> -> vector<8x256xf32>
    %c1_67 = arith.constant 1 : index
    %c0_68 = arith.constant 0 : index
    %c0_69 = arith.constant 0 : index
    %88 = vector.load %arg5[%c1_67, %c0_68, %c0_69] : memref<2x1x256xf32, #tpu.memory_space<vmem>>, vector<1x1x256xf32>
    %89 = vector.shape_cast %88 : vector<1x1x256xf32> to vector<1x256xf32>
    %90 = vector.broadcast %89 : vector<1x256xf32> to vector<8x256xf32>
    %91 = arith.addf %87, %90 : vector<8x256xf32>
    %92 = vector.extract_strided_slice %91 {offsets = [0, 128], sizes = [8, 128], strides = [1, 1]} : vector<8x256xf32> to vector<8x128xf32>
    %93 = arith.addf %42, %92 : vector<8x128xf32>
    %cst_70 = arith.constant 5.000000e-01 : f32
    %94 = vector.broadcast %cst_70 : f32 to vector<8x128xf32>
    %95 = arith.mulf %93, %94 : vector<8x128xf32>
    %c0_71 = arith.constant 0 : index
    %c0_72 = arith.constant 0 : index
    %96 = vector.load %arg6[%c0_71, %c0_72] : memref<8x128xf32, #tpu.memory_space<vmem>>, vector<8x128xf32>
    tpu.vector_store %arg6[%c0_71, %c0_72], %95 {strides = array<i32>} : memref<8x128xf32, #tpu.memory_space<vmem>>, vector<8x128xf32>,
    return
  }
  func.func @transform_0(%arg0: i32) -> (i32, i32, i32) {
    %c0_i32 = arith.constant 0 : i32
    %c0_i32_0 = arith.constant 0 : i32
    %c0_i32_1 = arith.constant 0 : i32
    return %arg0, %c0_i32, %c0_i32_0 : i32, i32, i32
  }
  func.func @transform_1(%arg0: i32) -> (i32, i32, i32, i32) {
    %c0_i32 = arith.constant 0 : i32
    %c0_i32_0 = arith.constant 0 : i32
    %c0_i32_1 = arith.constant 0 : i32
    %c0_i32_2 = arith.constant 0 : i32
    %c0_i32_3 = arith.constant 0 : i32
    return %c0_i32, %c0_i32_0, %c0_i32_1, %c0_i32_2 : i32, i32, i32, i32
  }
  func.func @transform_2(%arg0: i32) -> (i32, i32, i32) {
    %c0_i32 = arith.constant 0 : i32
    %c0_i32_0 = arith.constant 0 : i32
    %c0_i32_1 = arith.constant 0 : i32
    %c0_i32_2 = arith.constant 0 : i32
    return %c0_i32, %c0_i32_0, %c0_i32_1 : i32, i32, i32
  }
  func.func @transform_3(%arg0: i32) -> (i32, i32, i32) {
    %c0_i32 = arith.constant 0 : i32
    %c0_i32_0 = arith.constant 0 : i32
    %c0_i32_1 = arith.constant 0 : i32
    %c0_i32_2 = arith.constant 0 : i32
    return %c0_i32, %c0_i32_0, %c0_i32_1 : i32, i32, i32
  }
  func.func @transform_4(%arg0: i32) -> (i32, i32, i32) {
    %c0_i32 = arith.constant 0 : i32
    %c0_i32_0 = arith.constant 0 : i32
    %c0_i32_1 = arith.constant 0 : i32
    %c0_i32_2 = arith.constant 0 : i32
    return %c0_i32, %c0_i32_0, %c0_i32_1 : i32, i32, i32
  }
  func.func @transform_5(%arg0: i32) -> (i32, i32) {
    %c0_i32 = arith.constant 0 : i32
    %c0_i32_0 = arith.constant 0 : i32
    return %arg0, %c0_i32 : i32, i32
  }
}

</mosaic_0001>

<llo_original>
// kernel: tpu_custom_call.1
$region0: #{tpu_custom_call.1}
  #allocation0 [shape = 'u32[]', space=smem, size = 0x4, offset = 0x4, fixed_abs, tag = 'smem constant byte address 0x4 - core index']
  #allocation1 [shape = 'u32[144,128]{1,0:T(1,128)}', space=vmem, size = 0x12000, scoped, tag = 'internal scratch']
  #allocation2 [shape = 'f32[16,128]{1,0:T(8,128)}', space=vmem, size = 0x2000, scoped, tag = 'scratch operand']
  %s0 = inlined_call_operand.hbm [shape: f32[2,24,128], index: 0, kind: input, shape index: {}]
  %s1 = inlined_call_operand.hbm [shape: f32[2,3,128,256], index: 1, kind: input, shape index: {}]
  %s2 = inlined_call_operand.vmem [shape: f32[2,1,256], index: 2, kind: input, shape index: {}]
  %s3 = inlined_call_operand.hbm [shape: f32[2,128,256], index: 3, kind: input, shape index: {}]
  %s4 = inlined_call_operand.vmem [shape: f32[2,1,256], index: 4, kind: input, shape index: {}]
  %s5 = inlined_call_operand.hbm [shape: f32[16,128], index: 5, kind: output, shape index: {}]
  %s6 = sld [smem:[#allocation0]]
  $region65: #{tpu_custom_call.1} parent=0
    _
  %s8 = ssub.s32 1, %s6
  %s9 = scalar_select 0, %s8, %s6
  $region1: #{tpu_custom_call.1} parent=0
    #allocation3 [shape = 'u8[24576]{0}', space=vmem, size = 0x6000, scoped, tag = 'input window, operand 0']
    #allocation4 [shape = 's32[2]{0}', space=sflag, size = 0x8, scoped, tag = 'scoped memory for tpu_custom_call.1']
    #allocation5 [shape = 's32[2]{0}', space=sflag, size = 0x8, scoped, tag = 'scoped memory for tpu_custom_call.1']
    #allocation6 [shape = 'u8[786432]{0}', space=vmem, size = 0xc0000, scoped, tag = 'input window, operand 1, single buffered']
    #allocation7 [shape = 's32[1]{0}', space=sflag, size = 0x4, scoped, tag = 'scoped memory for tpu_custom_call.1']
    #allocation8 [shape = 'u8[262144]{0}', space=vmem, size = 0x40000, scoped, tag = 'input window, operand 3, single buffered']
    #allocation9 [shape = 'u8[8192]{0}', space=vmem, size = 0x2000, scoped, tag = 'output window, operand 0']
    %10 = vsyncpa [#allocation4], 0
    %s11 = scalar_lea.sflag [#allocation4], 1
    %12 = vsyncpa %s11, 0
    %13 = vsyncpa [#allocation7], 0
    %14 = vsyncpa [#allocation5], 0
    %s15 = scalar_lea.sflag [#allocation5], 1
    %16 = vsyncpa %s15, 0
    loop: start=0, step=1, limit=4
    $region2: #{tpu_custom_call.1} parent=1 // loop_pre_header
      _
    $region3: #{tpu_custom_call.1} parent=1 // loop_header
      %s18 = sphi 0, %s22
      %p19 = scmp.ge.s32.totalorder %s18, 4
      %s28 = sphi 0, %s30
      %s31 = sphi 0, %s28
      %s32 = sphi 0, %s31
      %s48 = sphi 0, %s32
      %s52 = sphi 0, %s52
      %s54 = sphi 0, %s52
      %s55 = sphi 0, %s54
      %s69 = sphi 0, %s55
      %s73 = sphi 0, %s73
      %s75 = sphi 0, %s73
      %s76 = sphi 0, %s75
      %s90 = sphi 0, %s76
      %s94 = sphi 0, %s94
      %s96 = sphi 0, %s94
      %s97 = sphi 0, %s96
      %s111 = sphi 0, %s97
      %s115 = sphi 0, %s115
      %s117 = sphi 0, %s115
      %s118 = sphi 0, %s117
      %s132 = sphi 0, %s118
      %s138 = sphi 0, %s140
      %s141 = sphi 0, %s138
      %s142 = sphi 0, %s141
      %s158 = sphi 0, %s142
    $region4: #{tpu_custom_call.1} parent=1 // loop_header_branch
      %21 = sbr.rel (%p19) target = $region8
    $region5: #{tpu_custom_call.1} parent=1 // loop_body
      %s23 = ssub.s32 %s18, 1
      %s24 = ssub.s32 %s18, 2
      %s25 = sadd.s32 %s18, 1
      %s26 = ssub.s32 %s18, %s25
      %p27 = scmp.eq.s32.totalorder %s26, 0
      %s29 = sadd.s32 %s28, 1
      %s30 = scalar_select %p27, %s28, %s29
      %p33 = pneg %p27
      %p34 = scmp.eq.s32.totalorder %s18, 1
      %p35 = por %p33, %p34
      %p36 = scmp.ne.s32.totalorder %s28, %s31
      %p37 = scmp.eq.s32.totalorder %s18, 0
      %p38 = por %p36, %p37
      %p39 = scmp.ne.s32.totalorder %s28, %s31
      %p40 = scmp.eq.s32.totalorder %s23, 1
      %p41 = por %p39, %p40
      %p42 = scmp.ne.s32.totalorder %s31, %s32
      %p43 = scmp.eq.s32.totalorder %s23, 0
      %p44 = por %p42, %p43
      %p45 = scmp.ne.s32.totalorder %s31, %s32
      %p46 = scmp.eq.s32.totalorder %s24, 1
      %p47 = por %p45, %p46
      %p49 = scmp.ne.s32.totalorder %s32, %s48
      %p50 = scmp.eq.s32.totalorder %s24, 0
      %p51 = por %p49, %p50
      %s53 = sadd.s32 %s52, 1
      %p56 = scmp.eq.s32.totalorder %s18, 1
      %p57 = scmp.ne.s32.totalorder %s52, %s54
      %p58 = scmp.eq.s32.totalorder %s18, 0
      %p59 = por %p57, %p58
      %p60 = scmp.ne.s32.totalorder %s52, %s54
      %p61 = scmp.eq.s32.totalorder %s23, 1
      %p62 = por %p60, %p61
      %p63 = scmp.ne.s32.totalorder %s54, %s55
      %p64 = scmp.eq.s32.totalorder %s23, 0
      %p65 = por %p63, %p64
      %p66 = scmp.ne.s32.totalorder %s54, %s55
      %p67 = scmp.eq.s32.totalorder %s24, 1
      %p68 = por %p66, %p67
      %p70 = scmp.ne.s32.totalorder %s55, %s69
      %p71 = scmp.eq.s32.totalorder %s24, 0
      %p72 = por %p70, %p71
      %s74 = sadd.s32 %s73, 1
      %p77 = scmp.eq.s32.totalorder %s18, 1
      %p78 = scmp.ne.s32.totalorder %s73, %s75
      %p79 = scmp.eq.s32.totalorder %s18, 0
      %p80 = por %p78, %p79
      %p81 = scmp.ne.s32.totalorder %s73, %s75
      %p82 = scmp.eq.s32.totalorder %s23, 1
      %p83 = por %p81, %p82
      %p84 = scmp.ne.s32.totalorder %s75, %s76
      %p85 = scmp.eq.s32.totalorder %s23, 0
      %p86 = por %p84, %p85
      %p87 = scmp.ne.s32.totalorder %s75, %s76
      %p88 = scmp.eq.s32.totalorder %s24, 1
      %p89 = por %p87, %p88
      %p91 = scmp.ne.s32.totalorder %s76, %s90
      %p92 = scmp.eq.s32.totalorder %s24, 0
      %p93 = por %p91, %p92
      %s95 = sadd.s32 %s94, 1
      %p98 = scmp.eq.s32.totalorder %s18, 1
      %p99 = scmp.ne.s32.totalorder %s94, %s96
      %p100 = scmp.eq.s32.totalorder %s18, 0
      %p101 = por %p99, %p100
      %p102 = scmp.ne.s32.totalorder %s94, %s96
      %p103 = scmp.eq.s32.totalorder %s23, 1
      %p104 = por %p102, %p103
      %p105 = scmp.ne.s32.totalorder %s96, %s97
      %p106 = scmp.eq.s32.totalorder %s23, 0
      %p107 = por %p105, %p106
      %p108 = scmp.ne.s32.totalorder %s96, %s97
      %p109 = scmp.eq.s32.totalorder %s24, 1
      %p110 = por %p108, %p109
      %p112 = scmp.ne.s32.totalorder %s97, %s111
      %p113 = scmp.eq.s32.totalorder %s24, 0
      %p114 = por %p112, %p113
      %s116 = sadd.s32 %s115, 1
      %p119 = scmp.eq.s32.totalorder %s18, 1
      %p120 = scmp.ne.s32.totalorder %s115, %s117
      %p121 = scmp.eq.s32.totalorder %s18, 0
      %p122 = por %p120, %p121
      %p123 = scmp.ne.s32.totalorder %s115, %s117
      %p124 = scmp.eq.s32.totalorder %s23, 1
      %p125 = por %p123, %p124
      %p126 = scmp.ne.s32.totalorder %s117, %s118
      %p127 = scmp.eq.s32.totalorder %s23, 0
      %p128 = por %p126, %p127
      %p129 = scmp.ne.s32.totalorder %s117, %s118
      %p130 = scmp.eq.s32.totalorder %s24, 1
      %p131 = por %p129, %p130
      %p133 = scmp.ne.s32.totalorder %s118, %s132
      %p134 = scmp.eq.s32.totalorder %s24, 0
      %p135 = por %p133, %p134
      %s136 = ssub.s32 %s18, %s25
      %p137 = scmp.eq.s32.totalorder %s136, 0
      %s139 = sadd.s32 %s138, 1
      %s140 = scalar_select %p137, %s138, %s139
      %p143 = pneg %p137
      %p144 = scmp.eq.s32.totalorder %s18, 1
      %p145 = por %p143, %p144
      %p146 = scmp.ne.s32.totalorder %s138, %s141
      %p147 = scmp.eq.s32.totalorder %s18, 0
      %p148 = por %p146, %p147
      %p149 = scmp.ne.s32.totalorder %s138, %s141
      %p150 = scmp.eq.s32.totalorder %s23, 1
      %p151 = por %p149, %p150
      %p152 = scmp.ne.s32.totalorder %s141, %s142
      %p153 = scmp.eq.s32.totalorder %s23, 0
      %p154 = por %p152, %p153
      %p155 = scmp.ne.s32.totalorder %s141, %s142
      %p156 = scmp.eq.s32.totalorder %s24, 1
      %p157 = por %p155, %p156
      %p159 = scmp.ne.s32.totalorder %s142, %s158
      %p160 = scmp.eq.s32.totalorder %s24, 0
      %p161 = por %p159, %p160
      %p162 = scmp.le.s32.totalorder 1, %s18
      %p163 = scmp.lt.s32.totalorder %s18, 3
      %p164 = pnand %p162, %p163
      %p165 = pneg %p164
      // Predicated region
      $region9: #{tpu_custom_call.1} parent=5 // pred_check
        _
      $region10: #{tpu_custom_call.1} parent=5 // pred_check_branch
        %167 = sbr.rel (%p164) target = $region12
      $region11: #{tpu_custom_call.1} parent=5 // pred_region
        %s168 = ssub.s32 %s18, 1
        // Predicated region
        $region13: #{tpu_custom_call.1} parent=11 // pred_check
          %p169 = pneg %p65
        $region14: #{tpu_custom_call.1} parent=11 // pred_check_branch
          %171 = sbr.rel (%p169) target = $region16
        $region15: #{tpu_custom_call.1} parent=11 // pred_region
          %s173 = ssub.s32 24576, 24576
          %174 = vsyncadd [#allocation7], %s173
          %s175 = sshll.u32 [#allocation6], 4
          %s176 = int_to_ptr.vmem [resolvable:$true] %s175
          %181 = dma.hbm_to_vmem [thread:$0]  %s1, 24576, %s176, [#allocation7], 256, 256, 16
        $region16: #{tpu_custom_call.1} parent=11 // pred_fallthru
          _
        // Predicated region
        $region17: #{tpu_custom_call.1} parent=11 // pred_check
          %p182 = pneg %p86
        $region18: #{tpu_custom_call.1} parent=11 // pred_check_branch
          %184 = sbr.rel (%p182) target = $region20
        $region19: #{tpu_custom_call.1} parent=11 // pred_region
          _
        $region20: #{tpu_custom_call.1} parent=11 // pred_fallthru
          _
        // Predicated region
        $region21: #{tpu_custom_call.1} parent=11 // pred_check
          %p185 = pneg %p107
        $region22: #{tpu_custom_call.1} parent=11 // pred_check_branch
          %187 = sbr.rel (%p185) target = $region24
        $region23: #{tpu_custom_call.1} parent=11 // pred_region
          %s189 = ssub.s32 8192, 8192
          %190 = vsyncadd [#allocation7], %s189
          %s191 = sshll.u32 [#allocation8], 4
          %s192 = int_to_ptr.vmem [resolvable:$true] %s191
          %197 = dma.hbm_to_vmem [thread:$0]  %s3, 8192, %s192, [#allocation7], 256, 256, 16
        $region24: #{tpu_custom_call.1} parent=11 // pred_fallthru
          _
        // Predicated region
        $region25: #{tpu_custom_call.1} parent=11 // pred_check
          %p198 = pneg %p128
        $region26: #{tpu_custom_call.1} parent=11 // pred_check_branch
          %200 = sbr.rel (%p198) target = $region28
        $region27: #{tpu_custom_call.1} parent=11 // pred_region
          _
        $region28: #{tpu_custom_call.1} parent=11 // pred_fallthru
          _
      $region12: #{tpu_custom_call.1} parent=5 // pred_fallthru
        _
      %p201 = scmp.lt.s32.totalorder %s18, 2
      // Predicated region
      $region29: #{tpu_custom_call.1} parent=5 // pred_check
        %p202 = pneg %p201
      $region30: #{tpu_custom_call.1} parent=5 // pred_check_branch
        %204 = sbr.rel (%p202) target = $region32
      $region31: #{tpu_custom_call.1} parent=5 // pred_region
        // Predicated region
        $region33: #{tpu_custom_call.1} parent=31 // pred_check
          %p205 = pneg %p38
        $region34: #{tpu_custom_call.1} parent=31 // pred_check_branch
          %207 = sbr.rel (%p205) target = $region36
        $region35: #{tpu_custom_call.1} parent=31 // pred_region
          %s208 = sand.u32 %s28, 1
          %s209 = scalar_lea.sflag [#allocation4], %s208
          %s210 = sand.u32 %s28, 1
          %s211 = smul.addr %s210, 24
          %s212 = scalar_lea.vmem [#allocation3], %s211
          %s214 = ssub.s32 384, 384
          %215 = vsyncadd %s209, %s214
          %s216 = smul.addr %s18, 3
          %s217 = smul.addr %s216, 128
          %s218 = scalar_lea.hbm %s0, %s217
          %s219 = sshll.u32 %s212, 4
          %s220 = int_to_ptr.vmem [resolvable:$true] %s219
          %225 = dma.hbm_to_vmem [thread:$0]  %s218, 384, %s220, %s209, 128, 128, 8
        $region36: #{tpu_custom_call.1} parent=31 // pred_fallthru
          _
      $region32: #{tpu_custom_call.1} parent=5 // pred_fallthru
        _
      %p226 = scmp.le.s32.totalorder 1, %s18
      %p227 = scmp.lt.s32.totalorder %s18, 3
      %p228 = pnand %p226, %p227
      %p229 = pneg %p228
      // Predicated region
      $region37: #{tpu_custom_call.1} parent=5 // pred_check
        _
      $region38: #{tpu_custom_call.1} parent=5 // pred_check_branch
        %231 = sbr.rel (%p228) target = $region40
      $region39: #{tpu_custom_call.1} parent=5 // pred_region
        %s232 = ssub.s32 %s18, 1
        %s233 = sand.u32 %s31, 1
        %s234 = scalar_lea.sflag [#allocation4], %s233
        %s235 = sand.u32 %s31, 1
        %s236 = smul.addr %s235, 24
        %s237 = scalar_lea.vmem [#allocation3], %s236
        // Predicated region
        $region41: #{tpu_custom_call.1} parent=39 // pred_check
          %p238 = pneg %p44
        $region42: #{tpu_custom_call.1} parent=39 // pred_check_branch
          %240 = sbr.rel (%p238) target = $region44
        $region43: #{tpu_custom_call.1} parent=39 // pred_region
          %241 = dma.done %s234, 384
        $region44: #{tpu_custom_call.1} parent=39 // pred_fallthru
          _
        // Predicated region
        $region45: #{tpu_custom_call.1} parent=39 // pred_check
          %p242 = pneg %p65
        $region46: #{tpu_custom_call.1} parent=39 // pred_check_branch
          %244 = sbr.rel (%p242) target = $region48
        $region47: #{tpu_custom_call.1} parent=39 // pred_region
          %245 = dma.done [#allocation7], 24576
        $region48: #{tpu_custom_call.1} parent=39 // pred_fallthru
          _
        // Predicated region
        $region49: #{tpu_custom_call.1} parent=39 // pred_check
          %p246 = pneg %p107
        $region50: #{tpu_custom_call.1} parent=39 // pred_check_branch
          %248 = sbr.rel (%p246) target = $region52
        $region51: #{tpu_custom_call.1} parent=39 // pred_region
          %249 = dma.done [#allocation7], 8192
        $region52: #{tpu_custom_call.1} parent=39 // pred_fallthru
          _
        %s250 = sand.u32 %s31, 1
        %s251 = scalar_lea.sflag [#allocation4], %s250
        %s252 = sand.u32 %s31, 1
        %s253 = smul.addr %s252, 24
        %s254 = scalar_lea.vmem [#allocation3], %s253
        %p255 = pneg %p44
        %p256 = pneg %p41
        %p257 = pneg %p65
        %p258 = pneg %p62
        %p259 = pneg %p86
        %p260 = pneg %p83
        %p261 = pneg %p107
        %p262 = pneg %p104
        %p263 = pneg %p128
        %p264 = pneg %p125
        %p265 = pneg %p154
        %p266 = pneg %p151
        %s267 = sand.u32 %s141, 1
        %s268 = scalar_lea.sflag [#allocation5], %s267
        %s269 = sand.u32 %s141, 1
        %s270 = smul.addr %s269, 8
        %s271 = scalar_lea.vmem [#allocation9], %s270
        %v272 = vld [vmem:[%s237 + $0x4] sm:$0xff]
        %v273 = vld [vmem:[%s237 + $0xc] sm:$0xff]
        %v274 = vld [vmem:[#allocation6] sm:$0xff]
        %v275 = vld [vmem:[#allocation6 + $0x8] sm:$0xff]
        %v276 = vld [vmem:[#allocation6 + $0x10] sm:$0xff]
        %v277 = vld [vmem:[#allocation6 + $0x18] sm:$0xff]
        %v278 = vld [vmem:[#allocation6 + $0x20] sm:$0xff]
        %v279 = vld [vmem:[#allocation6 + $0x28] sm:$0xff]
        %v280 = vld [vmem:[#allocation6 + $0x30] sm:$0xff]
        %v281 = vld [vmem:[#allocation6 + $0x38] sm:$0xff]
        %v282 = vld [vmem:[#allocation6 + $0x40] sm:$0xff]
        %v283 = vld [vmem:[#allocation6 + $0x48] sm:$0xff]
        %v284 = vld [vmem:[#allocation6 + $0x50] sm:$0xff]
        %v285 = vld [vmem:[#allocation6 + $0x58] sm:$0xff]
        %v286 = vld [vmem:[#allocation6 + $0x60] sm:$0xff]
        %v287 = vld [vmem:[#allocation6 + $0x68] sm:$0xff]
        %v288 = vld [vmem:[#allocation6 + $0x70] sm:$0xff]
        %v289 = vld [vmem:[#allocation6 + $0x78] sm:$0xff]
        %v290 = vld [vmem:[#allocation6 + $0x80] sm:$0xff]
        %v291 = vld [vmem:[#allocation6 + $0x88] sm:$0xff]
        %v292 = vld [vmem:[#allocation6 + $0x90] sm:$0xff]
        %v293 = vld [vmem:[#allocation6 + $0x98] sm:$0xff]
        %v294 = vld [vmem:[#allocation6 + $0xa0] sm:$0xff]
        %v295 = vld [vmem:[#allocation6 + $0xa8] sm:$0xff]
        %v296 = vld [vmem:[#allocation6 + $0xb0] sm:$0xff]
        %v297 = vld [vmem:[#allocation6 + $0xb8] sm:$0xff]
        %v298 = vld [vmem:[#allocation6 + $0xc0] sm:$0xff]
        %v299 = vld [vmem:[#allocation6 + $0xc8] sm:$0xff]
        %v300 = vld [vmem:[#allocation6 + $0xd0] sm:$0xff]
        %v301 = vld [vmem:[#allocation6 + $0xd8] sm:$0xff]
        %v302 = vld [vmem:[#allocation6 + $0xe0] sm:$0xff]
        %v303 = vld [vmem:[#allocation6 + $0xe8] sm:$0xff]
        %v304 = vld [vmem:[#allocation6 + $0xf0] sm:$0xff]
        %v305 = vld [vmem:[#allocation6 + $0xf8] sm:$0xff]
        %v306 = vld [vmem:[%s237 + $0x6] sm:$0xff]
        %v307 = vld [vmem:[%s237 + $0xe] sm:$0xff]
        %s308 = scalar_lea.vmem [#allocation6], 256
        %v309 = vld [vmem:[%s308] sm:$0xff]
        %v310 = vld [vmem:[%s308 + $0x8] sm:$0xff]
        %v311 = vld [vmem:[%s308 + $0x10] sm:$0xff]
        %v312 = vld [vmem:[%s308 + $0x18] sm:$0xff]
        %v313 = vld [vmem:[%s308 + $0x20] sm:$0xff]
        %v314 = vld [vmem:[%s308 + $0x28] sm:$0xff]
        %v315 = vld [vmem:[%s308 + $0x30] sm:$0xff]
        %v316 = vld [vmem:[%s308 + $0x38] sm:$0xff]
        %v317 = vld [vmem:[%s308 + $0x40] sm:$0xff]
        %v318 = vld [vmem:[%s308 + $0x48] sm:$0xff]
        %v319 = vld [vmem:[%s308 + $0x50] sm:$0xff]
        %v320 = vld [vmem:[%s308 + $0x58] sm:$0xff]
        %v321 = vld [vmem:[%s308 + $0x60] sm:$0xff]
        %v322 = vld [vmem:[%s308 + $0x68] sm:$0xff]
        %v323 = vld [vmem:[%s308 + $0x70] sm:$0xff]
        %v324 = vld [vmem:[%s308 + $0x78] sm:$0xff]
        %v325 = vld [vmem:[%s308 + $0x80] sm:$0xff]
        %v326 = vld [vmem:[%s308 + $0x88] sm:$0xff]
        %v327 = vld [vmem:[%s308 + $0x90] sm:$0xff]
        %v328 = vld [vmem:[%s308 + $0x98] sm:$0xff]
        %v329 = vld [vmem:[%s308 + $0xa0] sm:$0xff]
        %v330 = vld [vmem:[%s308 + $0xa8] sm:$0xff]
        %v331 = vld [vmem:[%s308 + $0xb0] sm:$0xff]
        %v332 = vld [vmem:[%s308 + $0xb8] sm:$0xff]
        %v333 = vld [vmem:[%s308 + $0xc0] sm:$0xff]
        %v334 = vld [vmem:[%s308 + $0xc8] sm:$0xff]
        %v335 = vld [vmem:[%s308 + $0xd0] sm:$0xff]
        %v336 = vld [vmem:[%s308 + $0xd8] sm:$0xff]
        %v337 = vld [vmem:[%s308 + $0xe0] sm:$0xff]
        %v338 = vld [vmem:[%s308 + $0xe8] sm:$0xff]
        %v339 = vld [vmem:[%s308 + $0xf0] sm:$0xff]
        %v340 = vld [vmem:[%s308 + $0xf8] sm:$0xff]
        %v341 = vand.u32 %v310, 4294901760
        %342 = vmatprep.subr.mxu0 %v341
        %v343 = vand.u32 %v309, 4294901760
        %344 = vmatpush1.msra.mxu0 %v343
        %v345 = vand.u32 %v312, 4294901760
        %346 = vmatprep.subr.mxu0 %v345
        %v347 = vand.u32 %v311, 4294901760
        %348 = vmatpush1.msra.mxu0 %v347
        %v349 = vand.u32 %v314, 4294901760
        %350 = vmatprep.subr.mxu0 %v349
        %v351 = vand.u32 %v313, 4294901760
        %352 = vmatpush1.msra.mxu0 %v351
        %v353 = vand.u32 %v316, 4294901760
        %354 = vmatprep.subr.mxu0 %v353
        %v355 = vand.u32 %v315, 4294901760
        %356 = vmatpush1.msra.mxu0 %v355
        %v357 = vand.u32 %v318, 4294901760
        %358 = vmatprep.subr.mxu0 %v357
        %v359 = vand.u32 %v317, 4294901760
        %360 = vmatpush1.msra.mxu0 %v359
        %v361 = vand.u32 %v320, 4294901760
        %362 = vmatprep.subr.mxu0 %v361
        %v363 = vand.u32 %v319, 4294901760
        %364 = vmatpush1.msra.mxu0 %v363
        %v365 = vand.u32 %v322, 4294901760
        %366 = vmatprep.subr.mxu0 %v365
        %v367 = vand.u32 %v321, 4294901760
        %368 = vmatpush1.msra.mxu0 %v367
        %v369 = vand.u32 %v324, 4294901760
        %370 = vmatprep.subr.mxu0 %v369
        %v371 = vand.u32 %v323, 4294901760
        %372 = vmatpush1.msra.mxu0 %v371
        %v373 = vand.u32 %v326, 4294901760
        %374 = vmatprep.subr.mxu0 %v373
        %v375 = vand.u32 %v325, 4294901760
        %376 = vmatpush1.msra.mxu0 %v375
        %v377 = vand.u32 %v328, 4294901760
        %378 = vmatprep.subr.mxu0 %v377
        %v379 = vand.u32 %v327, 4294901760
        %380 = vmatpush1.msra.mxu0 %v379
        %v381 = vand.u32 %v330, 4294901760
        %382 = vmatprep.subr.mxu0 %v381
        %v383 = vand.u32 %v329, 4294901760
        %384 = vmatpush1.msra.mxu0 %v383
        %v385 = vand.u32 %v332, 4294901760
        %386 = vmatprep.subr.mxu0 %v385
        %v387 = vand.u32 %v331, 4294901760
        %388 = vmatpush1.msra.mxu0 %v387
        %v389 = vand.u32 %v334, 4294901760
        %390 = vmatprep.subr.mxu0 %v389
        %v391 = vand.u32 %v333, 4294901760
        %392 = vmatpush1.msra.mxu0 %v391
        %v393 = vand.u32 %v336, 4294901760
        %394 = vmatprep.subr.mxu0 %v393
        %v395 = vand.u32 %v335, 4294901760
        %396 = vmatpush1.msra.mxu0 %v395
        %v397 = vand.u32 %v338, 4294901760
        %398 = vmatprep.subr.mxu0 %v397
        %v399 = vand.u32 %v337, 4294901760
        %400 = vmatpush1.msra.mxu0 %v399
        %v401 = vand.u32 %v340, 4294901760
        %402 = vmatprep.subr.mxu0 %v401
        %v403 = vand.u32 %v339, 4294901760
        %404 = vmatpush1.msra.mxu0 %v403
        %405 = vmatprep.subr.mxu0 0.0
        %406 = vmatpush1.msra.mxu0 0.0
        %407 = vmatprep.subr.mxu0 0.0
        %408 = vmatpush1.msra.mxu0 0.0
        %409 = vmatprep.subr.mxu0 0.0
        %410 = vmatpush1.msra.mxu0 0.0
        %411 = vmatprep.subr.mxu0 0.0
        %412 = vmatpush1.msra.mxu0 0.0
        %413 = vmatprep.subr.mxu0 0.0
        %414 = vmatpush1.msra.mxu0 0.0
        %415 = vmatprep.subr.mxu0 0.0
        %416 = vmatpush1.msra.mxu0 0.0
        %417 = vmatprep.subr.mxu0 0.0
        %418 = vmatpush1.msra.mxu0 0.0
        %419 = vmatprep.subr.mxu0 0.0
        %420 = vmatpush1.msra.mxu0 0.0
        %421 = vmatprep.subr.mxu0 0.0
        %422 = vmatpush1.msra.mxu0 0.0
        %423 = vmatprep.subr.mxu0 0.0
        %424 = vmatpush1.msra.mxu0 0.0
        %425 = vmatprep.subr.mxu0 0.0
        %426 = vmatpush1.msra.mxu0 0.0
        %427 = vmatprep.subr.mxu0 0.0
        %428 = vmatpush1.msra.mxu0 0.0
        %429 = vmatprep.subr.mxu0 0.0
        %430 = vmatpush1.msra.mxu0 0.0
        %431 = vmatprep.subr.mxu0 0.0
        %432 = vmatpush1.msra.mxu0 0.0
        %433 = vmatprep.subr.mxu0 0.0
        %434 = vmatpush1.msra.mxu0 0.0
        %435 = vmatprep.subr.mxu0 0.0
        %436 = vmatpush1.msra.mxu0 0.0
        %437 = vmatprep.mubr.f32.mxu0 0.0
        %v438 = vand.u32 %v306, 4294901760
        %v439 = vsub.f32 %v306, %v438
        %v440 = vand.u32 %v439, 4294901760
        %v441 = vsub.f32 %v439, %v440
        %v442 = vand.u32 %v441, 4294901760
        %443 = vmatmul.mubr.f32.gmra.mrb[0].mxu0 %v442
        %v444 = vpop.f32.mrb[0].mxu0
        %v445 = vadd.f32 0.0, %v444
        %v446 = vpop.f32.mrb[0].mxu0
        %v447 = vadd.f32 0.0, %v446
        %448 = vmatprep.mubr.f32.mxu0 0.0
        %v449 = vand.u32 %v307, 4294901760
        %v450 = vsub.f32 %v307, %v449
        %v451 = vand.u32 %v450, 4294901760
        %v452 = vsub.f32 %v450, %v451
        %v453 = vand.u32 %v452, 4294901760
        %454 = vmatmul.mubr.f32.gmra.mrb[0].mxu0 %v453
        %v455 = vpop.f32.mrb[0].mxu0
        %v456 = vadd.f32 0.0, %v455
        %v457 = vpop.f32.mrb[0].mxu0
        %v458 = vadd.f32 0.0, %v457
        %459 = vdwg.mxu0
        %v460 = vand.u32 %v310, 4294901760
        %v461 = vsub.f32 %v310, %v460
        %v462 = vand.u32 %v461, 4294901760
        %v463 = vsub.f32 %v461, %v462
        %v464 = vand.u32 %v463, 4294901760
        %465 = vmatprep.subr.mxu0 %v464
        %v466 = vand.u32 %v309, 4294901760
        %v467 = vsub.f32 %v309, %v466
        %v468 = vand.u32 %v467, 4294901760
        %v469 = vsub.f32 %v467, %v468
        %v470 = vand.u32 %v469, 4294901760
        %471 = vmatpush1.msra.mxu0 %v470
        %v472 = vand.u32 %v312, 4294901760
        %v473 = vsub.f32 %v312, %v472
        %v474 = vand.u32 %v473, 4294901760
        %v475 = vsub.f32 %v473, %v474
        %v476 = vand.u32 %v475, 4294901760
        %477 = vmatprep.subr.mxu0 %v476
        %v478 = vand.u32 %v311, 4294901760
        %v479 = vsub.f32 %v311, %v478
        %v480 = vand.u32 %v479, 4294901760
        %v481 = vsub.f32 %v479, %v480
        %v482 = vand.u32 %v481, 4294901760
        %483 = vmatpush1.msra.mxu0 %v482
        %v484 = vand.u32 %v314, 4294901760
        %v485 = vsub.f32 %v314, %v484
        %v486 = vand.u32 %v485, 4294901760
        %v487 = vsub.f32 %v485, %v486
        %v488 = vand.u32 %v487, 4294901760
        %489 = vmatprep.subr.mxu0 %v488
        %v490 = vand.u32 %v313, 4294901760
        %v491 = vsub.f32 %v313, %v490
        %v492 = vand.u32 %v491, 4294901760
        %v493 = vsub.f32 %v491, %v492
        %v494 = vand.u32 %v493, 4294901760
        %495 = vmatpush1.msra.mxu0 %v494
        %v496 = vand.u32 %v316, 4294901760
        %v497 = vsub.f32 %v316, %v496
        %v498 = vand.u32 %v497, 4294901760
        %v499 = vsub.f32 %v497, %v498
        %v500 = vand.u32 %v499, 4294901760
        %501 = vmatprep.subr.mxu0 %v500
        %v502 = vand.u32 %v315, 4294901760
        %v503 = vsub.f32 %v315, %v502
        %v504 = vand.u32 %v503, 4294901760
        %v505 = vsub.f32 %v503, %v504
        %v506 = vand.u32 %v505, 4294901760
        %507 = vmatpush1.msra.mxu0 %v506
        %v508 = vand.u32 %v318, 4294901760
        %v509 = vsub.f32 %v318, %v508
        %v510 = vand.u32 %v509, 4294901760
        %v511 = vsub.f32 %v509, %v510
        %v512 = vand.u32 %v511, 4294901760
        %513 = vmatprep.subr.mxu0 %v512
        %v514 = vand.u32 %v317, 4294901760
        %v515 = vsub.f32 %v317, %v514
        %v516 = vand.u32 %v515, 4294901760
        %v517 = vsub.f32 %v515, %v516
        %v518 = vand.u32 %v517, 4294901760
        %519 = vmatpush1.msra.mxu0 %v518
        %v520 = vand.u32 %v320, 4294901760
        %v521 = vsub.f32 %v320, %v520
        %v522 = vand.u32 %v521, 4294901760
        %v523 = vsub.f32 %v521, %v522
        %v524 = vand.u32 %v523, 4294901760
        %525 = vmatprep.subr.mxu0 %v524
        %v526 = vand.u32 %v319, 4294901760
        %v527 = vsub.f32 %v319, %v526
        %v528 = vand.u32 %v527, 4294901760
        %v529 = vsub.f32 %v527, %v528
        %v530 = vand.u32 %v529, 4294901760
        %531 = vmatpush1.msra.mxu0 %v530
        %v532 = vand.u32 %v322, 4294901760
        %v533 = vsub.f32 %v322, %v532
        %v534 = vand.u32 %v533, 4294901760
        %v535 = vsub.f32 %v533, %v534
        %v536 = vand.u32 %v535, 4294901760
        %537 = vmatprep.subr.mxu0 %v536
        %v538 = vand.u32 %v321, 4294901760
        %v539 = vsub.f32 %v321, %v538
        %v540 = vand.u32 %v539, 4294901760
        %v541 = vsub.f32 %v539, %v540
        %v542 = vand.u32 %v541, 4294901760
        %543 = vmatpush1.msra.mxu0 %v542
        %v544 = vand.u32 %v324, 4294901760
        %v545 = vsub.f32 %v324, %v544
        %v546 = vand.u32 %v545, 4294901760
        %v547 = vsub.f32 %v545, %v546
        %v548 = vand.u32 %v547, 4294901760
        %549 = vmatprep.subr.mxu0 %v548
        %v550 = vand.u32 %v323, 4294901760
        %v551 = vsub.f32 %v323, %v550
        %v552 = vand.u32 %v551, 4294901760
        %v553 = vsub.f32 %v551, %v552
        %v554 = vand.u32 %v553, 4294901760
        %555 = vmatpush1.msra.mxu0 %v554
        %v556 = vand.u32 %v326, 4294901760
        %v557 = vsub.f32 %v326, %v556
        %v558 = vand.u32 %v557, 4294901760
        %v559 = vsub.f32 %v557, %v558
        %v560 = vand.u32 %v559, 4294901760
        %561 = vmatprep.subr.mxu0 %v560
        %v562 = vand.u32 %v325, 4294901760
        %v563 = vsub.f32 %v325, %v562
        %v564 = vand.u32 %v563, 4294901760
        %v565 = vsub.f32 %v563, %v564
        %v566 = vand.u32 %v565, 4294901760
        %567 = vmatpush1.msra.mxu0 %v566
        %v568 = vand.u32 %v328, 4294901760
        %v569 = vsub.f32 %v328, %v568
        %v570 = vand.u32 %v569, 4294901760
        %v571 = vsub.f32 %v569, %v570
        %v572 = vand.u32 %v571, 4294901760
        %573 = vmatprep.subr.mxu0 %v572
        %v574 = vand.u32 %v327, 4294901760
        %v575 = vsub.f32 %v327, %v574
        %v576 = vand.u32 %v575, 4294901760
        %v577 = vsub.f32 %v575, %v576
        %v578 = vand.u32 %v577, 4294901760
        %579 = vmatpush1.msra.mxu0 %v578
        %v580 = vand.u32 %v330, 4294901760
        %v581 = vsub.f32 %v330, %v580
        %v582 = vand.u32 %v581, 4294901760
        %v583 = vsub.f32 %v581, %v582
        %v584 = vand.u32 %v583, 4294901760
        %585 = vmatprep.subr.mxu0 %v584
        %v586 = vand.u32 %v329, 4294901760
        %v587 = vsub.f32 %v329, %v586
        %v588 = vand.u32 %v587, 4294901760
        %v589 = vsub.f32 %v587, %v588
        %v590 = vand.u32 %v589, 4294901760
        %591 = vmatpush1.msra.mxu0 %v590
        %v592 = vand.u32 %v332, 4294901760
        %v593 = vsub.f32 %v332, %v592
        %v594 = vand.u32 %v593, 4294901760
        %v595 = vsub.f32 %v593, %v594
        %v596 = vand.u32 %v595, 4294901760
        %597 = vmatprep.subr.mxu0 %v596
        %v598 = vand.u32 %v331, 4294901760
        %v599 = vsub.f32 %v331, %v598
        %v600 = vand.u32 %v599, 4294901760
        %v601 = vsub.f32 %v599, %v600
        %v602 = vand.u32 %v601, 4294901760
        %603 = vmatpush1.msra.mxu0 %v602
        %v604 = vand.u32 %v334, 4294901760
        %v605 = vsub.f32 %v334, %v604
        %v606 = vand.u32 %v605, 4294901760
        %v607 = vsub.f32 %v605, %v606
        %v608 = vand.u32 %v607, 4294901760
        %609 = vmatprep.subr.mxu0 %v608
        %v610 = vand.u32 %v333, 4294901760
        %v611 = vsub.f32 %v333, %v610
        %v612 = vand.u32 %v611, 4294901760
        %v613 = vsub.f32 %v611, %v612
        %v614 = vand.u32 %v613, 4294901760
        %615 = vmatpush1.msra.mxu0 %v614
        %v616 = vand.u32 %v336, 4294901760
        %v617 = vsub.f32 %v336, %v616
        %v618 = vand.u32 %v617, 4294901760
        %v619 = vsub.f32 %v617, %v618
        %v620 = vand.u32 %v619, 4294901760
        %621 = vmatprep.subr.mxu0 %v620
        %v622 = vand.u32 %v335, 4294901760
        %v623 = vsub.f32 %v335, %v622
        %v624 = vand.u32 %v623, 4294901760
        %v625 = vsub.f32 %v623, %v624
        %v626 = vand.u32 %v625, 4294901760
        %627 = vmatpush1.msra.mxu0 %v626
        %v628 = vand.u32 %v338, 4294901760
        %v629 = vsub.f32 %v338, %v628
        %v630 = vand.u32 %v629, 4294901760
        %v631 = vsub.f32 %v629, %v630
        %v632 = vand.u32 %v631, 4294901760
        %633 = vmatprep.subr.mxu0 %v632
        %v634 = vand.u32 %v337, 4294901760
        %v635 = vsub.f32 %v337, %v634
        %v636 = vand.u32 %v635, 4294901760
        %v637 = vsub.f32 %v635, %v636
        %v638 = vand.u32 %v637, 4294901760
        %639 = vmatpush1.msra.mxu0 %v638
        %v640 = vand.u32 %v340, 4294901760
        %v641 = vsub.f32 %v340, %v640
        %v642 = vand.u32 %v641, 4294901760
        %v643 = vsub.f32 %v641, %v642
        %v644 = vand.u32 %v643, 4294901760
        %645 = vmatprep.subr.mxu0 %v644
        %v646 = vand.u32 %v339, 4294901760
        %v647 = vsub.f32 %v339, %v646
        %v648 = vand.u32 %v647, 4294901760
        %v649 = vsub.f32 %v647, %v648
        %v650 = vand.u32 %v649, 4294901760
        %651 = vmatpush1.msra.mxu0 %v650
        %652 = vmatprep.subr.mxu0 0.0
        %653 = vmatpush1.msra.mxu0 0.0
        %654 = vmatprep.subr.mxu0 0.0
        %655 = vmatpush1.msra.mxu0 0.0
        %656 = vmatprep.subr.mxu0 0.0
        %657 = vmatpush1.msra.mxu0 0.0
        %658 = vmatprep.subr.mxu0 0.0
        %659 = vmatpush1.msra.mxu0 0.0
        %660 = vmatprep.subr.mxu0 0.0
        %661 = vmatpush1.msra.mxu0 0.0
        %662 = vmatprep.subr.mxu0 0.0
        %663 = vmatpush1.msra.mxu0 0.0
        %664 = vmatprep.subr.mxu0 0.0
        %665 = vmatpush1.msra.mxu0 0.0
        %666 = vmatprep.subr.mxu0 0.0
        %667 = vmatpush1.msra.mxu0 0.0
        %668 = vmatprep.subr.mxu0 0.0
        %669 = vmatpush1.msra.mxu0 0.0
        %670 = vmatprep.subr.mxu0 0.0
        %671 = vmatpush1.msra.mxu0 0.0
        %672 = vmatprep.subr.mxu0 0.0
        %673 = vmatpush1.msra.mxu0 0.0
        %674 = vmatprep.subr.mxu0 0.0
        %675 = vmatpush1.msra.mxu0 0.0
        %676 = vmatprep.subr.mxu0 0.0
        %677 = vmatpush1.msra.mxu0 0.0
        %678 = vmatprep.subr.mxu0 0.0
        %679 = vmatpush1.msra.mxu0 0.0
        %680 = vmatprep.subr.mxu0 0.0
        %681 = vmatpush1.msra.mxu0 0.0
        %682 = vmatprep.subr.mxu0 0.0
        %683 = vmatpush1.msra.mxu0 0.0
        %684 = vmatprep.mubr.f32.mxu0 0.0
        %v685 = vand.u32 %v306, 4294901760
        %686 = vmatmul.mubr.f32.gmra.mrb[0].mxu0 %v685
        %v687 = vpop.f32.mrb[0].mxu0
        %v688 = vadd.f32 %v445, %v687
        %v689 = vpop.f32.mrb[0].mxu0
        %v690 = vadd.f32 %v447, %v689
        %691 = vmatprep.mubr.f32.mxu0 0.0
        %v692 = vand.u32 %v307, 4294901760
        %693 = vmatmul.mubr.f32.gmra.mrb[0].mxu0 %v692
        %v694 = vpop.f32.mrb[0].mxu0
        %v695 = vadd.f32 %v456, %v694
        %v696 = vpop.f32.mrb[0].mxu0
        %v697 = vadd.f32 %v458, %v696
        %698 = vdwg.mxu0
        %v699 = vand.u32 %v310, 4294901760
        %v700 = vsub.f32 %v310, %v699
        %701 = vmatprep.subr.mxu0 %v700
        %v702 = vand.u32 %v309, 4294901760
        %v703 = vsub.f32 %v309, %v702
        %704 = vmatpush1.msra.mxu0 %v703
        %v705 = vand.u32 %v312, 4294901760
        %v706 = vsub.f32 %v312, %v705
        %707 = vmatprep.subr.mxu0 %v706
        %v708 = vand.u32 %v311, 4294901760
        %v709 = vsub.f32 %v311, %v708
        %710 = vmatpush1.msra.mxu0 %v709
        %v711 = vand.u32 %v314, 4294901760
        %v712 = vsub.f32 %v314, %v711
        %713 = vmatprep.subr.mxu0 %v712
        %v714 = vand.u32 %v313, 4294901760
        %v715 = vsub.f32 %v313, %v714
        %716 = vmatpush1.msra.mxu0 %v715
        %v717 = vand.u32 %v316, 4294901760
        %v718 = vsub.f32 %v316, %v717
        %719 = vmatprep.subr.mxu0 %v718
        %v720 = vand.u32 %v315, 4294901760
        %v721 = vsub.f32 %v315, %v720
        %722 = vmatpush1.msra.mxu0 %v721
        %v723 = vand.u32 %v318, 4294901760
        %v724 = vsub.f32 %v318, %v723
        %725 = vmatprep.subr.mxu0 %v724
        %v726 = vand.u32 %v317, 4294901760
        %v727 = vsub.f32 %v317, %v726
        %728 = vmatpush1.msra.mxu0 %v727
        %v729 = vand.u32 %v320, 4294901760
        %v730 = vsub.f32 %v320, %v729
        %731 = vmatprep.subr.mxu0 %v730
        %v732 = vand.u32 %v319, 4294901760
        %v733 = vsub.f32 %v319, %v732
        %734 = vmatpush1.msra.mxu0 %v733
        %v735 = vand.u32 %v322, 4294901760
        %v736 = vsub.f32 %v322, %v735
        %737 = vmatprep.subr.mxu0 %v736
        %v738 = vand.u32 %v321, 4294901760
        %v739 = vsub.f32 %v321, %v738
        %740 = vmatpush1.msra.mxu0 %v739
        %v741 = vand.u32 %v324, 4294901760
        %v742 = vsub.f32 %v324, %v741
        %743 = vmatprep.subr.mxu0 %v742
        %v744 = vand.u32 %v323, 4294901760
        %v745 = vsub.f32 %v323, %v744
        %746 = vmatpush1.msra.mxu0 %v745
        %v747 = vand.u32 %v326, 4294901760
        %v748 = vsub.f32 %v326, %v747
        %749 = vmatprep.subr.mxu0 %v748
        %v750 = vand.u32 %v325, 4294901760
        %v751 = vsub.f32 %v325, %v750
        %752 = vmatpush1.msra.mxu0 %v751
        %v753 = vand.u32 %v328, 4294901760
        %v754 = vsub.f32 %v328, %v753
        %755 = vmatprep.subr.mxu0 %v754
        %v756 = vand.u32 %v327, 4294901760
        %v757 = vsub.f32 %v327, %v756
        %758 = vmatpush1.msra.mxu0 %v757
        %v759 = vand.u32 %v330, 4294901760
        %v760 = vsub.f32 %v330, %v759
        %761 = vmatprep.subr.mxu0 %v760
        %v762 = vand.u32 %v329, 4294901760
        %v763 = vsub.f32 %v329, %v762
        %764 = vmatpush1.msra.mxu0 %v763
        %v765 = vand.u32 %v332, 4294901760
        %v766 = vsub.f32 %v332, %v765
        %767 = vmatprep.subr.mxu0 %v766
        %v768 = vand.u32 %v331, 4294901760
        %v769 = vsub.f32 %v331, %v768
        %770 = vmatpush1.msra.mxu0 %v769
        %v771 = vand.u32 %v334, 4294901760
        %v772 = vsub.f32 %v334, %v771
        %773 = vmatprep.subr.mxu0 %v772
        %v774 = vand.u32 %v333, 4294901760
        %v775 = vsub.f32 %v333, %v774
        %776 = vmatpush1.msra.mxu0 %v775
        %v777 = vand.u32 %v336, 4294901760
        %v778 = vsub.f32 %v336, %v777
        %779 = vmatprep.subr.mxu0 %v778
        %v780 = vand.u32 %v335, 4294901760
        %v781 = vsub.f32 %v335, %v780
        %782 = vmatpush1.msra.mxu0 %v781
        %v783 = vand.u32 %v338, 4294901760
        %v784 = vsub.f32 %v338, %v783
        %785 = vmatprep.subr.mxu0 %v784
        %v786 = vand.u32 %v337, 4294901760
        %v787 = vsub.f32 %v337, %v786
        %788 = vmatpush1.msra.mxu0 %v787
        %v789 = vand.u32 %v340, 4294901760
        %v790 = vsub.f32 %v340, %v789
        %791 = vmatprep.subr.mxu0 %v790
        %v792 = vand.u32 %v339, 4294901760
        %v793 = vsub.f32 %v339, %v792
        %794 = vmatpush1.msra.mxu0 %v793
        %795 = vmatprep.subr.mxu0 0.0
        %796 = vmatpush1.msra.mxu0 0.0
        %797 = vmatprep.subr.mxu0 0.0
        %798 = vmatpush1.msra.mxu0 0.0
        %799 = vmatprep.subr.mxu0 0.0
        %800 = vmatpush1.msra.mxu0 0.0
        %801 = vmatprep.subr.mxu0 0.0
        %802 = vmatpush1.msra.mxu0 0.0
        %803 = vmatprep.subr.mxu0 0.0
        %804 = vmatpush1.msra.mxu0 0.0
        %805 = vmatprep.subr.mxu0 0.0
        %806 = vmatpush1.msra.mxu0 0.0
        %807 = vmatprep.subr.mxu0 0.0
        %808 = vmatpush1.msra.mxu0 0.0
        %809 = vmatprep.subr.mxu0 0.0
        %810 = vmatpush1.msra.mxu0 0.0
        %811 = vmatprep.subr.mxu0 0.0
        %812 = vmatpush1.msra.mxu0 0.0
        %813 = vmatprep.subr.mxu0 0.0
        %814 = vmatpush1.msra.mxu0 0.0
        %815 = vmatprep.subr.mxu0 0.0
        %816 = vmatpush1.msra.mxu0 0.0
        %817 = vmatprep.subr.mxu0 0.0
        %818 = vmatpush1.msra.mxu0 0.0
        %819 = vmatprep.subr.mxu0 0.0
        %820 = vmatpush1.msra.mxu0 0.0
        %821 = vmatprep.subr.mxu0 0.0
        %822 = vmatpush1.msra.mxu0 0.0
        %823 = vmatprep.subr.mxu0 0.0
        %824 = vmatpush1.msra.mxu0 0.0
        %825 = vmatprep.subr.mxu0 0.0
        %826 = vmatpush1.msra.mxu0 0.0
        %827 = vmatprep.mubr.f32.mxu0 0.0
        %v828 = vand.u32 %v306, 4294901760
        %v829 = vsub.f32 %v306, %v828
        %830 = vmatmul.mubr.f32.gmra.mrb[0].mxu0 %v829
        %v831 = vpop.f32.mrb[0].mxu0
        %v832 = vadd.f32 %v688, %v831
        %v833 = vpop.f32.mrb[0].mxu0
        %v834 = vadd.f32 %v690, %v833
        %835 = vmatprep.mubr.f32.mxu0 0.0
        %v836 = vand.u32 %v307, 4294901760
        %v837 = vsub.f32 %v307, %v836
        %838 = vmatmul.mubr.f32.gmra.mrb[0].mxu0 %v837
        %v839 = vpop.f32.mrb[0].mxu0
        %v840 = vadd.f32 %v695, %v839
        %v841 = vpop.f32.mrb[0].mxu0
        %v842 = vadd.f32 %v697, %v841
        %843 = vdwg.mxu0
        %v844 = vand.u32 %v310, 4294901760
        %845 = vmatprep.subr.mxu0 %v844
        %v846 = vand.u32 %v309, 4294901760
        %847 = vmatpush1.msra.mxu0 %v846
        %v848 = vand.u32 %v312, 4294901760
        %849 = vmatprep.subr.mxu0 %v848
        %v850 = vand.u32 %v311, 4294901760
        %851 = vmatpush1.msra.mxu0 %v850
        %v852 = vand.u32 %v314, 4294901760
        %853 = vmatprep.subr.mxu0 %v852
        %v854 = vand.u32 %v313, 4294901760
        %855 = vmatpush1.msra.mxu0 %v854
        %v856 = vand.u32 %v316, 4294901760
        %857 = vmatprep.subr.mxu0 %v856
        %v858 = vand.u32 %v315, 4294901760
        %859 = vmatpush1.msra.mxu0 %v858
        %v860 = vand.u32 %v318, 4294901760
        %861 = vmatprep.subr.mxu0 %v860
        %v862 = vand.u32 %v317, 4294901760
        %863 = vmatpush1.msra.mxu0 %v862
        %v864 = vand.u32 %v320, 4294901760
        %865 = vmatprep.subr.mxu0 %v864
        %v866 = vand.u32 %v319, 4294901760
        %867 = vmatpush1.msra.mxu0 %v866
        %v868 = vand.u32 %v322, 4294901760
        %869 = vmatprep.subr.mxu0 %v868
        %v870 = vand.u32 %v321, 4294901760
        %871 = vmatpush1.msra.mxu0 %v870
        %v872 = vand.u32 %v324, 4294901760
        %873 = vmatprep.subr.mxu0 %v872
        %v874 = vand.u32 %v323, 4294901760
        %875 = vmatpush1.msra.mxu0 %v874
        %v876 = vand.u32 %v326, 4294901760
        %877 = vmatprep.subr.mxu0 %v876
        %v878 = vand.u32 %v325, 4294901760
        %879 = vmatpush1.msra.mxu0 %v878
        %v880 = vand.u32 %v328, 4294901760
        %881 = vmatprep.subr.mxu0 %v880
        %v882 = vand.u32 %v327, 4294901760
        %883 = vmatpush1.msra.mxu0 %v882
        %v884 = vand.u32 %v330, 4294901760
        %885 = vmatprep.subr.mxu0 %v884
        %v886 = vand.u32 %v329, 4294901760
        %887 = vmatpush1.msra.mxu0 %v886
        %v888 = vand.u32 %v332, 4294901760
        %889 = vmatprep.subr.mxu0 %v888
        %v890 = vand.u32 %v331, 4294901760
        %891 = vmatpush1.msra.mxu0 %v890
        %v892 = vand.u32 %v334, 4294901760
        %893 = vmatprep.subr.mxu0 %v892
        %v894 = vand.u32 %v333, 4294901760
        %895 = vmatpush1.msra.mxu0 %v894
        %v896 = vand.u32 %v336, 4294901760
        %897 = vmatprep.subr.mxu0 %v896
        %v898 = vand.u32 %v335, 4294901760
        %899 = vmatpush1.msra.mxu0 %v898
        %v900 = vand.u32 %v338, 4294901760
        %901 = vmatprep.subr.mxu0 %v900
        %v902 = vand.u32 %v337, 4294901760
        %903 = vmatpush1.msra.mxu0 %v902
        %v904 = vand.u32 %v340, 4294901760
        %905 = vmatprep.subr.mxu0 %v904
        %v906 = vand.u32 %v339, 4294901760
        %907 = vmatpush1.msra.mxu0 %v906
        %908 = vmatprep.subr.mxu0 0.0
        %909 = vmatpush1.msra.mxu0 0.0
        %910 = vmatprep.subr.mxu0 0.0
        %911 = vmatpush1.msra.mxu0 0.0
        %912 = vmatprep.subr.mxu0 0.0
        %913 = vmatpush1.msra.mxu0 0.0
        %914 = vmatprep.subr.mxu0 0.0
        %915 = vmatpush1.msra.mxu0 0.0
        %916 = vmatprep.subr.mxu0 0.0
        %917 = vmatpush1.msra.mxu0 0.0
        %918 = vmatprep.subr.mxu0 0.0
        %919 = vmatpush1.msra.mxu0 0.0
        %920 = vmatprep.subr.mxu0 0.0
        %921 = vmatpush1.msra.mxu0 0.0
        %922 = vmatprep.subr.mxu0 0.0
        %923 = vmatpush1.msra.mxu0 0.0
        %924 = vmatprep.subr.mxu0 0.0
        %925 = vmatpush1.msra.mxu0 0.0
        %926 = vmatprep.subr.mxu0 0.0
        %927 = vmatpush1.msra.mxu0 0.0
        %928 = vmatprep.subr.mxu0 0.0
        %929 = vmatpush1.msra.mxu0 0.0
        %930 = vmatprep.subr.mxu0 0.0
        %931 = vmatpush1.msra.mxu0 0.0
        %932 = vmatprep.subr.mxu0 0.0
        %933 = vmatpush1.msra.mxu0 0.0
        %934 = vmatprep.subr.mxu0 0.0
        %935 = vmatpush1.msra.mxu0 0.0
        %936 = vmatprep.subr.mxu0 0.0
        %937 = vmatpush1.msra.mxu0 0.0
        %938 = vmatprep.subr.mxu0 0.0
        %939 = vmatpush1.msra.mxu0 0.0
        %940 = vmatprep.mubr.f32.mxu0 0.0
        %v941 = vand.u32 %v306, 4294901760
        %v942 = vsub.f32 %v306, %v941
        %v943 = vand.u32 %v942, 4294901760
        %944 = vmatmul.mubr.f32.gmra.mrb[0].mxu0 %v943
        %v945 = vpop.f32.mrb[0].mxu0
        %v946 = vadd.f32 %v832, %v945
        %v947 = vpop.f32.mrb[0].mxu0
        %v948 = vadd.f32 %v834, %v947
        %949 = vmatprep.mubr.f32.mxu0 0.0
        %v950 = vand.u32 %v307, 4294901760
        %v951 = vsub.f32 %v307, %v950
        %v952 = vand.u32 %v951, 4294901760
        %953 = vmatmul.mubr.f32.gmra.mrb[0].mxu0 %v952
        %v954 = vpop.f32.mrb[0].mxu0
        %v955 = vadd.f32 %v840, %v954
        %v956 = vpop.f32.mrb[0].mxu0
        %v957 = vadd.f32 %v842, %v956
        %958 = vdwg.mxu0
        %v959 = vand.u32 %v310, 4294901760
        %v960 = vsub.f32 %v310, %v959
        %v961 = vand.u32 %v960, 4294901760
        %962 = vmatprep.subr.mxu0 %v961
        %v963 = vand.u32 %v309, 4294901760
        %v964 = vsub.f32 %v309, %v963
        %v965 = vand.u32 %v964, 4294901760
        %966 = vmatpush1.msra.mxu0 %v965
        %v967 = vand.u32 %v312, 4294901760
        %v968 = vsub.f32 %v312, %v967
        %v969 = vand.u32 %v968, 4294901760
        %970 = vmatprep.subr.mxu0 %v969
        %v971 = vand.u32 %v311, 4294901760
        %v972 = vsub.f32 %v311, %v971
        %v973 = vand.u32 %v972, 4294901760
        %974 = vmatpush1.msra.mxu0 %v973
        %v975 = vand.u32 %v314, 4294901760
        %v976 = vsub.f32 %v314, %v975
        %v977 = vand.u32 %v976, 4294901760
        %978 = vmatprep.subr.mxu0 %v977
        %v979 = vand.u32 %v313, 4294901760
        %v980 = vsub.f32 %v313, %v979
        %v981 = vand.u32 %v980, 4294901760
        %982 = vmatpush1.msra.mxu0 %v981
        %v983 = vand.u32 %v316, 4294901760
        %v984 = vsub.f32 %v316, %v983
        %v985 = vand.u32 %v984, 4294901760
        %986 = vmatprep.subr.mxu0 %v985
        %v987 = vand.u32 %v315, 4294901760
        %v988 = vsub.f32 %v315, %v987
        %v989 = vand.u32 %v988, 4294901760
        %990 = vmatpush1.msra.mxu0 %v989
        %v991 = vand.u32 %v318, 4294901760
        %v992 = vsub.f32 %v318, %v991
        %v993 = vand.u32 %v992, 4294901760
        %994 = vmatprep.subr.mxu0 %v993
        %v995 = vand.u32 %v317, 4294901760
        %v996 = vsub.f32 %v317, %v995
        %v997 = vand.u32 %v996, 4294901760
        %998 = vmatpush1.msra.mxu0 %v997
        %v999 = vand.u32 %v320, 4294901760
        %v1000 = vsub.f32 %v320, %v999
        %v1001 = vand.u32 %v1000, 4294901760
        %1002 = vmatprep.subr.mxu0 %v1001
        %v1003 = vand.u32 %v319, 4294901760
        %v1004 = vsub.f32 %v319, %v1003
        %v1005 = vand.u32 %v1004, 4294901760
        %1006 = vmatpush1.msra.mxu0 %v1005
        %v1007 = vand.u32 %v322, 4294901760
        %v1008 = vsub.f32 %v322, %v1007
        %v1009 = vand.u32 %v1008, 4294901760
        %1010 = vmatprep.subr.mxu0 %v1009
        %v1011 = vand.u32 %v321, 4294901760
        %v1012 = vsub.f32 %v321, %v1011
        %v1013 = vand.u32 %v1012, 4294901760
        %1014 = vmatpush1.msra.mxu0 %v1013
        %v1015 = vand.u32 %v324, 4294901760
        %v1016 = vsub.f32 %v324, %v1015
        %v1017 = vand.u32 %v1016, 4294901760
        %1018 = vmatprep.subr.mxu0 %v1017
        %v1019 = vand.u32 %v323, 4294901760
        %v1020 = vsub.f32 %v323, %v1019
        %v1021 = vand.u32 %v1020, 4294901760
        %1022 = vmatpush1.msra.mxu0 %v1021
        %v1023 = vand.u32 %v326, 4294901760
        %v1024 = vsub.f32 %v326, %v1023
        %v1025 = vand.u32 %v1024, 4294901760
        %1026 = vmatprep.subr.mxu0 %v1025
        %v1027 = vand.u32 %v325, 4294901760
        %v1028 = vsub.f32 %v325, %v1027
        %v1029 = vand.u32 %v1028, 4294901760
        %1030 = vmatpush1.msra.mxu0 %v1029
        %v1031 = vand.u32 %v328, 4294901760
        %v1032 = vsub.f32 %v328, %v1031
        %v1033 = vand.u32 %v1032, 4294901760
        %1034 = vmatprep.subr.mxu0 %v1033
        %v1035 = vand.u32 %v327, 4294901760
        %v1036 = vsub.f32 %v327, %v1035
        %v1037 = vand.u32 %v1036, 4294901760
        %1038 = vmatpush1.msra.mxu0 %v1037
        %v1039 = vand.u32 %v330, 4294901760
        %v1040 = vsub.f32 %v330, %v1039
        %v1041 = vand.u32 %v1040, 4294901760
        %1042 = vmatprep.subr.mxu0 %v1041
        %v1043 = vand.u32 %v329, 4294901760
        %v1044 = vsub.f32 %v329, %v1043
        %v1045 = vand.u32 %v1044, 4294901760
        %1046 = vmatpush1.msra.mxu0 %v1045
        %v1047 = vand.u32 %v332, 4294901760
        %v1048 = vsub.f32 %v332, %v1047
        %v1049 = vand.u32 %v1048, 4294901760
        %1050 = vmatprep.subr.mxu0 %v1049
        %v1051 = vand.u32 %v331, 4294901760
        %v1052 = vsub.f32 %v331, %v1051
        %v1053 = vand.u32 %v1052, 4294901760
        %1054 = vmatpush1.msra.mxu0 %v1053
        %v1055 = vand.u32 %v334, 4294901760
        %v1056 = vsub.f32 %v334, %v1055
        %v1057 = vand.u32 %v1056, 4294901760
        %1058 = vmatprep.subr.mxu0 %v1057
        %v1059 = vand.u32 %v333, 4294901760
        %v1060 = vsub.f32 %v333, %v1059
        %v1061 = vand.u32 %v1060, 4294901760
        %1062 = vmatpush1.msra.mxu0 %v1061
        %v1063 = vand.u32 %v336, 4294901760
        %v1064 = vsub.f32 %v336, %v1063
        %v1065 = vand.u32 %v1064, 4294901760
        %1066 = vmatprep.subr.mxu0 %v1065
        %v1067 = vand.u32 %v335, 4294901760
        %v1068 = vsub.f32 %v335, %v1067
        %v1069 = vand.u32 %v1068, 4294901760
        %1070 = vmatpush1.msra.mxu0 %v1069
        %v1071 = vand.u32 %v338, 4294901760
        %v1072 = vsub.f32 %v338, %v1071
        %v1073 = vand.u32 %v1072, 4294901760
        %1074 = vmatprep.subr.mxu0 %v1073
        %v1075 = vand.u32 %v337, 4294901760
        %v1076 = vsub.f32 %v337, %v1075
        %v1077 = vand.u32 %v1076, 4294901760
        %1078 = vmatpush1.msra.mxu0 %v1077
        %v1079 = vand.u32 %v340, 4294901760
        %v1080 = vsub.f32 %v340, %v1079
        %v1081 = vand.u32 %v1080, 4294901760
        %1082 = vmatprep.subr.mxu0 %v1081
        %v1083 = vand.u32 %v339, 4294901760
        %v1084 = vsub.f32 %v339, %v1083
        %v1085 = vand.u32 %v1084, 4294901760
        %1086 = vmatpush1.msra.mxu0 %v1085
        %1087 = vmatprep.subr.mxu0 0.0
        %1088 = vmatpush1.msra.mxu0 0.0
        %1089 = vmatprep.subr.mxu0 0.0
        %1090 = vmatpush1.msra.mxu0 0.0
        %1091 = vmatprep.subr.mxu0 0.0
        %1092 = vmatpush1.msra.mxu0 0.0
        %1093 = vmatprep.subr.mxu0 0.0
        %1094 = vmatpush1.msra.mxu0 0.0
        %1095 = vmatprep.subr.mxu0 0.0
        %1096 = vmatpush1.msra.mxu0 0.0
        %1097 = vmatprep.subr.mxu0 0.0
        %1098 = vmatpush1.msra.mxu0 0.0
        %1099 = vmatprep.subr.mxu0 0.0
        %1100 = vmatpush1.msra.mxu0 0.0
        %1101 = vmatprep.subr.mxu0 0.0
        %1102 = vmatpush1.msra.mxu0 0.0
        %1103 = vmatprep.subr.mxu0 0.0
        %1104 = vmatpush1.msra.mxu0 0.0
        %1105 = vmatprep.subr.mxu0 0.0
        %1106 = vmatpush1.msra.mxu0 0.0
        %1107 = vmatprep.subr.mxu0 0.0
        %1108 = vmatpush1.msra.mxu0 0.0
        %1109 = vmatprep.subr.mxu0 0.0
        %1110 = vmatpush1.msra.mxu0 0.0
        %1111 = vmatprep.subr.mxu0 0.0
        %1112 = vmatpush1.msra.mxu0 0.0
        %1113 = vmatprep.subr.mxu0 0.0
        %1114 = vmatpush1.msra.mxu0 0.0
        %1115 = vmatprep.subr.mxu0 0.0
        %1116 = vmatpush1.msra.mxu0 0.0
        %1117 = vmatprep.subr.mxu0 0.0
        %1118 = vmatpush1.msra.mxu0 0.0
        %1119 = vmatprep.mubr.f32.mxu0 0.0
        %v1120 = vand.u32 %v306, 4294901760
        %1121 = vmatmul.mubr.f32.gmra.mrb[0].mxu0 %v1120
        %v1122 = vpop.f32.mrb[0].mxu0
        %v1123 = vadd.f32 %v946, %v1122
        %v1124 = vpop.f32.mrb[0].mxu0
        %v1125 = vadd.f32 %v948, %v1124
        %1126 = vmatprep.mubr.f32.mxu0 0.0
        %v1127 = vand.u32 %v307, 4294901760
        %1128 = vmatmul.mubr.f32.gmra.mrb[0].mxu0 %v1127
        %v1129 = vpop.f32.mrb[0].mxu0
        %v1130 = vadd.f32 %v955, %v1129
        %v1131 = vpop.f32.mrb[0].mxu0
        %v1132 = vadd.f32 %v957, %v1131
        %1133 = vdwg.mxu0
        %v1134 = vand.u32 %v310, 4294901760
        %1135 = vmatprep.subr.mxu0 %v1134
        %v1136 = vand.u32 %v309, 4294901760
        %1137 = vmatpush1.msra.mxu0 %v1136
        %v1138 = vand.u32 %v312, 4294901760
        %1139 = vmatprep.subr.mxu0 %v1138
        %v1140 = vand.u32 %v311, 4294901760
        %1141 = vmatpush1.msra.mxu0 %v1140
        %v1142 = vand.u32 %v314, 4294901760
        %1143 = vmatprep.subr.mxu0 %v1142
        %v1144 = vand.u32 %v313, 4294901760
        %1145 = vmatpush1.msra.mxu0 %v1144
        %v1146 = vand.u32 %v316, 4294901760
        %1147 = vmatprep.subr.mxu0 %v1146
        %v1148 = vand.u32 %v315, 4294901760
        %1149 = vmatpush1.msra.mxu0 %v1148
        %v1150 = vand.u32 %v318, 4294901760
        %1151 = vmatprep.subr.mxu0 %v1150
        %v1152 = vand.u32 %v317, 4294901760
        %1153 = vmatpush1.msra.mxu0 %v1152
        %v1154 = vand.u32 %v320, 4294901760
        %1155 = vmatprep.subr.mxu0 %v1154
        %v1156 = vand.u32 %v319, 4294901760
        %1157 = vmatpush1.msra.mxu0 %v1156
        %v1158 = vand.u32 %v322, 4294901760
        %1159 = vmatprep.subr.mxu0 %v1158
        %v1160 = vand.u32 %v321, 4294901760
        %1161 = vmatpush1.msra.mxu0 %v1160
        %v1162 = vand.u32 %v324, 4294901760
        %1163 = vmatprep.subr.mxu0 %v1162
        %v1164 = vand.u32 %v323, 4294901760
        %1165 = vmatpush1.msra.mxu0 %v1164
        %v1166 = vand.u32 %v326, 4294901760
        %1167 = vmatprep.subr.mxu0 %v1166
        %v1168 = vand.u32 %v325, 4294901760
        %1169 = vmatpush1.msra.mxu0 %v1168
        %v1170 = vand.u32 %v328, 4294901760
        %1171 = vmatprep.subr.mxu0 %v1170
        %v1172 = vand.u32 %v327, 4294901760
        %1173 = vmatpush1.msra.mxu0 %v1172
        %v1174 = vand.u32 %v330, 4294901760
        %1175 = vmatprep.subr.mxu0 %v1174
        %v1176 = vand.u32 %v329, 4294901760
        %1177 = vmatpush1.msra.mxu0 %v1176
        %v1178 = vand.u32 %v332, 4294901760
        %1179 = vmatprep.subr.mxu0 %v1178
        %v1180 = vand.u32 %v331, 4294901760
        %1181 = vmatpush1.msra.mxu0 %v1180
        %v1182 = vand.u32 %v334, 4294901760
        %1183 = vmatprep.subr.mxu0 %v1182
        %v1184 = vand.u32 %v333, 4294901760
        %1185 = vmatpush1.msra.mxu0 %v1184
        %v1186 = vand.u32 %v336, 4294901760
        %1187 = vmatprep.subr.mxu0 %v1186
        %v1188 = vand.u32 %v335, 4294901760
        %1189 = vmatpush1.msra.mxu0 %v1188
        %v1190 = vand.u32 %v338, 4294901760
        %1191 = vmatprep.subr.mxu0 %v1190
        %v1192 = vand.u32 %v337, 4294901760
        %1193 = vmatpush1.msra.mxu0 %v1192
        %v1194 = vand.u32 %v340, 4294901760
        %1195 = vmatprep.subr.mxu0 %v1194
        %v1196 = vand.u32 %v339, 4294901760
        %1197 = vmatpush1.msra.mxu0 %v1196
        %1198 = vmatprep.subr.mxu0 0.0
        %1199 = vmatpush1.msra.mxu0 0.0
        %1200 = vmatprep.subr.mxu0 0.0
        %1201 = vmatpush1.msra.mxu0 0.0
        %1202 = vmatprep.subr.mxu0 0.0
        %1203 = vmatpush1.msra.mxu0 0.0
        %1204 = vmatprep.subr.mxu0 0.0
        %1205 = vmatpush1.msra.mxu0 0.0
        %1206 = vmatprep.subr.mxu0 0.0
        %1207 = vmatpush1.msra.mxu0 0.0
        %1208 = vmatprep.subr.mxu0 0.0
        %1209 = vmatpush1.msra.mxu0 0.0
        %1210 = vmatprep.subr.mxu0 0.0
        %1211 = vmatpush1.msra.mxu0 0.0
        %1212 = vmatprep.subr.mxu0 0.0
        %1213 = vmatpush1.msra.mxu0 0.0
        %1214 = vmatprep.subr.mxu0 0.0
        %1215 = vmatpush1.msra.mxu0 0.0
        %1216 = vmatprep.subr.mxu0 0.0
        %1217 = vmatpush1.msra.mxu0 0.0
        %1218 = vmatprep.subr.mxu0 0.0
        %1219 = vmatpush1.msra.mxu0 0.0
        %1220 = vmatprep.subr.mxu0 0.0
        %1221 = vmatpush1.msra.mxu0 0.0
        %1222 = vmatprep.subr.mxu0 0.0
        %1223 = vmatpush1.msra.mxu0 0.0
        %1224 = vmatprep.subr.mxu0 0.0
        %1225 = vmatpush1.msra.mxu0 0.0
        %1226 = vmatprep.subr.mxu0 0.0
        %1227 = vmatpush1.msra.mxu0 0.0
        %1228 = vmatprep.subr.mxu0 0.0
        %1229 = vmatpush1.msra.mxu0 0.0
        %1230 = vmatprep.mubr.f32.mxu0 0.0
        %v1231 = vand.u32 %v306, 4294901760
        %1232 = vmatmul.mubr.f32.gmra.mrb[0].mxu0 %v1231
        %v1233 = vpop.f32.mrb[0].mxu0
        %v1234 = vadd.f32 %v1123, %v1233
        %v1235 = vpop.f32.mrb[0].mxu0
        %v1236 = vadd.f32 %v1125, %v1235
        %1237 = vmatprep.mubr.f32.mxu0 0.0
        %v1238 = vand.u32 %v307, 4294901760
        %1239 = vmatmul.mubr.f32.gmra.mrb[0].mxu0 %v1238
        %v1240 = vpop.f32.mrb[0].mxu0
        %v1241 = vadd.f32 %v1130, %v1240
        %v1242 = vpop.f32.mrb[0].mxu0
        %v1243 = vadd.f32 %v1132, %v1242
        %1244 = vdwg.mxu0
        %v1245 = vand.u32 %v275, 4294901760
        %1246 = vmatprep.subr.mxu0 %v1245
        %v1247 = vand.u32 %v274, 4294901760
        %1248 = vmatpush1.msra.mxu0 %v1247
        %v1249 = vand.u32 %v277, 4294901760
        %1250 = vmatprep.subr.mxu0 %v1249
        %v1251 = vand.u32 %v276, 4294901760
        %1252 = vmatpush1.msra.mxu0 %v1251
        %v1253 = vand.u32 %v279, 4294901760
        %1254 = vmatprep.subr.mxu0 %v1253
        %v1255 = vand.u32 %v278, 4294901760
        %1256 = vmatpush1.msra.mxu0 %v1255
        %v1257 = vand.u32 %v281, 4294901760
        %1258 = vmatprep.subr.mxu0 %v1257
        %v1259 = vand.u32 %v280, 4294901760
        %1260 = vmatpush1.msra.mxu0 %v1259
        %v1261 = vand.u32 %v283, 4294901760
        %1262 = vmatprep.subr.mxu0 %v1261
        %v1263 = vand.u32 %v282, 4294901760
        %1264 = vmatpush1.msra.mxu0 %v1263
        %v1265 = vand.u32 %v285, 4294901760
        %1266 = vmatprep.subr.mxu0 %v1265
        %v1267 = vand.u32 %v284, 4294901760
        %1268 = vmatpush1.msra.mxu0 %v1267
        %v1269 = vand.u32 %v287, 4294901760
        %1270 = vmatprep.subr.mxu0 %v1269
        %v1271 = vand.u32 %v286, 4294901760
        %1272 = vmatpush1.msra.mxu0 %v1271
        %v1273 = vand.u32 %v289, 4294901760
        %1274 = vmatprep.subr.mxu0 %v1273
        %v1275 = vand.u32 %v288, 4294901760
        %1276 = vmatpush1.msra.mxu0 %v1275
        %v1277 = vand.u32 %v291, 4294901760
        %1278 = vmatprep.subr.mxu0 %v1277
        %v1279 = vand.u32 %v290, 4294901760
        %1280 = vmatpush1.msra.mxu0 %v1279
        %v1281 = vand.u32 %v293, 4294901760
        %1282 = vmatprep.subr.mxu0 %v1281
        %v1283 = vand.u32 %v292, 4294901760
        %1284 = vmatpush1.msra.mxu0 %v1283
        %v1285 = vand.u32 %v295, 4294901760
        %1286 = vmatprep.subr.mxu0 %v1285
        %v1287 = vand.u32 %v294, 4294901760
        %1288 = vmatpush1.msra.mxu0 %v1287
        %v1289 = vand.u32 %v297, 4294901760
        %1290 = vmatprep.subr.mxu0 %v1289
        %v1291 = vand.u32 %v296, 4294901760
        %1292 = vmatpush1.msra.mxu0 %v1291
        %v1293 = vand.u32 %v299, 4294901760
        %1294 = vmatprep.subr.mxu0 %v1293
        %v1295 = vand.u32 %v298, 4294901760
        %1296 = vmatpush1.msra.mxu0 %v1295
        %v1297 = vand.u32 %v301, 4294901760
        %1298 = vmatprep.subr.mxu0 %v1297
        %v1299 = vand.u32 %v300, 4294901760
        %1300 = vmatpush1.msra.mxu0 %v1299
        %v1301 = vand.u32 %v303, 4294901760
        %1302 = vmatprep.subr.mxu0 %v1301
        %v1303 = vand.u32 %v302, 4294901760
        %1304 = vmatpush1.msra.mxu0 %v1303
        %v1305 = vand.u32 %v305, 4294901760
        %1306 = vmatprep.subr.mxu0 %v1305
        %v1307 = vand.u32 %v304, 4294901760
        %1308 = vmatpush1.msra.mxu0 %v1307
        %1309 = vmatprep.subr.mxu0 0.0
        %1310 = vmatpush1.msra.mxu0 0.0
        %1311 = vmatprep.subr.mxu0 0.0
        %1312 = vmatpush1.msra.mxu0 0.0
        %1313 = vmatprep.subr.mxu0 0.0
        %1314 = vmatpush1.msra.mxu0 0.0
        %1315 = vmatprep.subr.mxu0 0.0
        %1316 = vmatpush1.msra.mxu0 0.0
        %1317 = vmatprep.subr.mxu0 0.0
        %1318 = vmatpush1.msra.mxu0 0.0
        %1319 = vmatprep.subr.mxu0 0.0
        %1320 = vmatpush1.msra.mxu0 0.0
        %1321 = vmatprep.subr.mxu0 0.0
        %1322 = vmatpush1.msra.mxu0 0.0
        %1323 = vmatprep.subr.mxu0 0.0
        %1324 = vmatpush1.msra.mxu0 0.0
        %1325 = vmatprep.subr.mxu0 0.0
        %1326 = vmatpush1.msra.mxu0 0.0
        %1327 = vmatprep.subr.mxu0 0.0
        %1328 = vmatpush1.msra.mxu0 0.0
        %1329 = vmatprep.subr.mxu0 0.0
        %1330 = vmatpush1.msra.mxu0 0.0
        %1331 = vmatprep.subr.mxu0 0.0
        %1332 = vmatpush1.msra.mxu0 0.0
        %1333 = vmatprep.subr.mxu0 0.0
        %1334 = vmatpush1.msra.mxu0 0.0
        %1335 = vmatprep.subr.mxu0 0.0
        %1336 = vmatpush1.msra.mxu0 0.0
        %1337 = vmatprep.subr.mxu0 0.0
        %1338 = vmatpush1.msra.mxu0 0.0
        %1339 = vmatprep.subr.mxu0 0.0
        %1340 = vmatpush1.msra.mxu0 0.0
        %1341 = vmatprep.mubr.f32.mxu0 0.0
        %v1342 = vand.u32 %v272, 4294901760
        %v1343 = vsub.f32 %v272, %v1342
        %v1344 = vand.u32 %v1343, 4294901760
        %v1345 = vsub.f32 %v1343, %v1344
        %v1346 = vand.u32 %v1345, 4294901760
        %1347 = vmatmul.mubr.f32.gmra.mrb[0].mxu0 %v1346
        %v1348 = vpop.f32.mrb[0].mxu0
        %v1349 = vadd.f32 %v1234, %v1348
        %v1350 = vpop.f32.mrb[0].mxu0
        %v1351 = vadd.f32 %v1236, %v1350
        %1352 = vmatprep.mubr.f32.mxu0 0.0
        %v1353 = vand.u32 %v273, 4294901760
        %v1354 = vsub.f32 %v273, %v1353
        %v1355 = vand.u32 %v1354, 4294901760
        %v1356 = vsub.f32 %v1354, %v1355
        %v1357 = vand.u32 %v1356, 4294901760
        %1358 = vmatmul.mubr.f32.gmra.mrb[0].mxu0 %v1357
        %v1359 = vpop.f32.mrb[0].mxu0
        %v1360 = vadd.f32 %v1241, %v1359
        %v1361 = vpop.f32.mrb[0].mxu0
        %v1362 = vadd.f32 %v1243, %v1361
        %1363 = vdwg.mxu0
        %v1364 = vand.u32 %v275, 4294901760
        %v1365 = vsub.f32 %v275, %v1364
        %v1366 = vand.u32 %v1365, 4294901760
        %v1367 = vsub.f32 %v1365, %v1366
        %v1368 = vand.u32 %v1367, 4294901760
        %1369 = vmatprep.subr.mxu0 %v1368
        %v1370 = vand.u32 %v274, 4294901760
        %v1371 = vsub.f32 %v274, %v1370
        %v1372 = vand.u32 %v1371, 4294901760
        %v1373 = vsub.f32 %v1371, %v1372
        %v1374 = vand.u32 %v1373, 4294901760
        %1375 = vmatpush1.msra.mxu0 %v1374
        %v1376 = vand.u32 %v277, 4294901760
        %v1377 = vsub.f32 %v277, %v1376
        %v1378 = vand.u32 %v1377, 4294901760
        %v1379 = vsub.f32 %v1377, %v1378
        %v1380 = vand.u32 %v1379, 4294901760
        %1381 = vmatprep.subr.mxu0 %v1380
        %v1382 = vand.u32 %v276, 4294901760
        %v1383 = vsub.f32 %v276, %v1382
        %v1384 = vand.u32 %v1383, 4294901760
        %v1385 = vsub.f32 %v1383, %v1384
        %v1386 = vand.u32 %v1385, 4294901760
        %1387 = vmatpush1.msra.mxu0 %v1386
        %v1388 = vand.u32 %v279, 4294901760
        %v1389 = vsub.f32 %v279, %v1388
        %v1390 = vand.u32 %v1389, 4294901760
        %v1391 = vsub.f32 %v1389, %v1390
        %v1392 = vand.u32 %v1391, 4294901760
        %1393 = vmatprep.subr.mxu0 %v1392
        %v1394 = vand.u32 %v278, 4294901760
        %v1395 = vsub.f32 %v278, %v1394
        %v1396 = vand.u32 %v1395, 4294901760
        %v1397 = vsub.f32 %v1395, %v1396
        %v1398 = vand.u32 %v1397, 4294901760
        %1399 = vmatpush1.msra.mxu0 %v1398
        %v1400 = vand.u32 %v281, 4294901760
        %v1401 = vsub.f32 %v281, %v1400
        %v1402 = vand.u32 %v1401, 4294901760
        %v1403 = vsub.f32 %v1401, %v1402
        %v1404 = vand.u32 %v1403, 4294901760
        %1405 = vmatprep.subr.mxu0 %v1404
        %v1406 = vand.u32 %v280, 4294901760
        %v1407 = vsub.f32 %v280, %v1406
        %v1408 = vand.u32 %v1407, 4294901760
        %v1409 = vsub.f32 %v1407, %v1408
        %v1410 = vand.u32 %v1409, 4294901760
        %1411 = vmatpush1.msra.mxu0 %v1410
        %v1412 = vand.u32 %v283, 4294901760
        %v1413 = vsub.f32 %v283, %v1412
        %v1414 = vand.u32 %v1413, 4294901760
        %v1415 = vsub.f32 %v1413, %v1414
        %v1416 = vand.u32 %v1415, 4294901760
        %1417 = vmatprep.subr.mxu0 %v1416
        %v1418 = vand.u32 %v282, 4294901760
        %v1419 = vsub.f32 %v282, %v1418
        %v1420 = vand.u32 %v1419, 4294901760
        %v1421 = vsub.f32 %v1419, %v1420
        %v1422 = vand.u32 %v1421, 4294901760
        %1423 = vmatpush1.msra.mxu0 %v1422
        %v1424 = vand.u32 %v285, 4294901760
        %v1425 = vsub.f32 %v285, %v1424
        %v1426 = vand.u32 %v1425, 4294901760
        %v1427 = vsub.f32 %v1425, %v1426
        %v1428 = vand.u32 %v1427, 4294901760
        %1429 = vmatprep.subr.mxu0 %v1428
        %v1430 = vand.u32 %v284, 4294901760
        %v1431 = vsub.f32 %v284, %v1430
        %v1432 = vand.u32 %v1431, 4294901760
        %v1433 = vsub.f32 %v1431, %v1432
        %v1434 = vand.u32 %v1433, 4294901760
        %1435 = vmatpush1.msra.mxu0 %v1434
        %v1436 = vand.u32 %v287, 4294901760
        %v1437 = vsub.f32 %v287, %v1436
        %v1438 = vand.u32 %v1437, 4294901760
        %v1439 = vsub.f32 %v1437, %v1438
        %v1440 = vand.u32 %v1439, 4294901760
        %1441 = vmatprep.subr.mxu0 %v1440
        %v1442 = vand.u32 %v286, 4294901760
        %v1443 = vsub.f32 %v286, %v1442
        %v1444 = vand.u32 %v1443, 4294901760
        %v1445 = vsub.f32 %v1443, %v1444
        %v1446 = vand.u32 %v1445, 4294901760
        %1447 = vmatpush1.msra.mxu0 %v1446
        %v1448 = vand.u32 %v289, 4294901760
        %v1449 = vsub.f32 %v289, %v1448
        %v1450 = vand.u32 %v1449, 4294901760
        %v1451 = vsub.f32 %v1449, %v1450
        %v1452 = vand.u32 %v1451, 4294901760
        %1453 = vmatprep.subr.mxu0 %v1452
        %v1454 = vand.u32 %v288, 4294901760
        %v1455 = vsub.f32 %v288, %v1454
        %v1456 = vand.u32 %v1455, 4294901760
        %v1457 = vsub.f32 %v1455, %v1456
        %v1458 = vand.u32 %v1457, 4294901760
        %1459 = vmatpush1.msra.mxu0 %v1458
        %v1460 = vand.u32 %v291, 4294901760
        %v1461 = vsub.f32 %v291, %v1460
        %v1462 = vand.u32 %v1461, 4294901760
        %v1463 = vsub.f32 %v1461, %v1462
        %v1464 = vand.u32 %v1463, 4294901760
        %1465 = vmatprep.subr.mxu0 %v1464
        %v1466 = vand.u32 %v290, 4294901760
        %v1467 = vsub.f32 %v290, %v1466
        %v1468 = vand.u32 %v1467, 4294901760
        %v1469 = vsub.f32 %v1467, %v1468
        %v1470 = vand.u32 %v1469, 4294901760
        %1471 = vmatpush1.msra.mxu0 %v1470
        %v1472 = vand.u32 %v293, 4294901760
        %v1473 = vsub.f32 %v293, %v1472
        %v1474 = vand.u32 %v1473, 4294901760
        %v1475 = vsub.f32 %v1473, %v1474
        %v1476 = vand.u32 %v1475, 4294901760
        %1477 = vmatprep.subr.mxu0 %v1476
        %v1478 = vand.u32 %v292, 4294901760
        %v1479 = vsub.f32 %v292, %v1478
        %v1480 = vand.u32 %v1479, 4294901760
        %v1481 = vsub.f32 %v1479, %v1480
        %v1482 = vand.u32 %v1481, 4294901760
        %1483 = vmatpush1.msra.mxu0 %v1482
        %v1484 = vand.u32 %v295, 4294901760
        %v1485 = vsub.f32 %v295, %v1484
        %v1486 = vand.u32 %v1485, 4294901760
        %v1487 = vsub.f32 %v1485, %v1486
        %v1488 = vand.u32 %v1487, 4294901760
        %1489 = vmatprep.subr.mxu0 %v1488
        %v1490 = vand.u32 %v294, 4294901760
        %v1491 = vsub.f32 %v294, %v1490
        %v1492 = vand.u32 %v1491, 4294901760
        %v1493 = vsub.f32 %v1491, %v1492
        %v1494 = vand.u32 %v1493, 4294901760
        %1495 = vmatpush1.msra.mxu0 %v1494
        %v1496 = vand.u32 %v297, 4294901760
        %v1497 = vsub.f32 %v297, %v1496
        %v1498 = vand.u32 %v1497, 4294901760
        %v1499 = vsub.f32 %v1497, %v1498
        %v1500 = vand.u32 %v1499, 4294901760
        %1501 = vmatprep.subr.mxu0 %v1500
        %v1502 = vand.u32 %v296, 4294901760
        %v1503 = vsub.f32 %v296, %v1502
        %v1504 = vand.u32 %v1503, 4294901760
        %v1505 = vsub.f32 %v1503, %v1504
        %v1506 = vand.u32 %v1505, 4294901760
        %1507 = vmatpush1.msra.mxu0 %v1506
        %v1508 = vand.u32 %v299, 4294901760
        %v1509 = vsub.f32 %v299, %v1508
        %v1510 = vand.u32 %v1509, 4294901760
        %v1511 = vsub.f32 %v1509, %v1510
        %v1512 = vand.u32 %v1511, 4294901760
        %1513 = vmatprep.subr.mxu0 %v1512
        %v1514 = vand.u32 %v298, 4294901760
        %v1515 = vsub.f32 %v298, %v1514
        %v1516 = vand.u32 %v1515, 4294901760
        %v1517 = vsub.f32 %v1515, %v1516
        %v1518 = vand.u32 %v1517, 4294901760
        %1519 = vmatpush1.msra.mxu0 %v1518
        %v1520 = vand.u32 %v301, 4294901760
        %v1521 = vsub.f32 %v301, %v1520
        %v1522 = vand.u32 %v1521, 4294901760
        %v1523 = vsub.f32 %v1521, %v1522
        %v1524 = vand.u32 %v1523, 4294901760
        %1525 = vmatprep.subr.mxu0 %v1524
        %v1526 = vand.u32 %v300, 4294901760
        %v1527 = vsub.f32 %v300, %v1526
        %v1528 = vand.u32 %v1527, 4294901760
        %v1529 = vsub.f32 %v1527, %v1528
        %v1530 = vand.u32 %v1529, 4294901760
        %1531 = vmatpush1.msra.mxu0 %v1530
        %v1532 = vand.u32 %v303, 4294901760
        %v1533 = vsub.f32 %v303, %v1532
        %v1534 = vand.u32 %v1533, 4294901760
        %v1535 = vsub.f32 %v1533, %v1534
        %v1536 = vand.u32 %v1535, 4294901760
        %1537 = vmatprep.subr.mxu0 %v1536
        %v1538 = vand.u32 %v302, 4294901760
        %v1539 = vsub.f32 %v302, %v1538
        %v1540 = vand.u32 %v1539, 4294901760
        %v1541 = vsub.f32 %v1539, %v1540
        %v1542 = vand.u32 %v1541, 4294901760
        %1543 = vmatpush1.msra.mxu0 %v1542
        %v1544 = vand.u32 %v305, 4294901760
        %v1545 = vsub.f32 %v305, %v1544
        %v1546 = vand.u32 %v1545, 4294901760
        %v1547 = vsub.f32 %v1545, %v1546
        %v1548 = vand.u32 %v1547, 4294901760
        %1549 = vmatprep.subr.mxu0 %v1548
        %v1550 = vand.u32 %v304, 4294901760
        %v1551 = vsub.f32 %v304, %v1550
        %v1552 = vand.u32 %v1551, 4294901760
        %v1553 = vsub.f32 %v1551, %v1552
        %v1554 = vand.u32 %v1553, 4294901760
        %1555 = vmatpush1.msra.mxu0 %v1554
        %1556 = vmatprep.subr.mxu0 0.0
        %1557 = vmatpush1.msra.mxu0 0.0
        %1558 = vmatprep.subr.mxu0 0.0
        %1559 = vmatpush1.msra.mxu0 0.0
        %1560 = vmatprep.subr.mxu0 0.0
        %1561 = vmatpush1.msra.mxu0 0.0
        %1562 = vmatprep.subr.mxu0 0.0
        %1563 = vmatpush1.msra.mxu0 0.0
        %1564 = vmatprep.subr.mxu0 0.0
        %1565 = vmatpush1.msra.mxu0 0.0
        %1566 = vmatprep.subr.mxu0 0.0
        %1567 = vmatpush1.msra.mxu0 0.0
        %1568 = vmatprep.subr.mxu0 0.0
        %1569 = vmatpush1.msra.mxu0 0.0
        %1570 = vmatprep.subr.mxu0 0.0
        %1571 = vmatpush1.msra.mxu0 0.0
        %1572 = vmatprep.subr.mxu0 0.0
        %1573 = vmatpush1.msra.mxu0 0.0
        %1574 = vmatprep.subr.mxu0 0.0
        %1575 = vmatpush1.msra.mxu0 0.0
        %1576 = vmatprep.subr.mxu0 0.0
        %1577 = vmatpush1.msra.mxu0 0.0
        %1578 = vmatprep.subr.mxu0 0.0
        %1579 = vmatpush1.msra.mxu0 0.0
        %1580 = vmatprep.subr.mxu0 0.0
        %1581 = vmatpush1.msra.mxu0 0.0
        %1582 = vmatprep.subr.mxu0 0.0
        %1583 = vmatpush1.msra.mxu0 0.0
        %1584 = vmatprep.subr.mxu0 0.0
        %1585 = vmatpush1.msra.mxu0 0.0
        %1586 = vmatprep.subr.mxu0 0.0
        %1587 = vmatpush1.msra.mxu0 0.0
        %1588 = vmatprep.mubr.f32.mxu0 0.0
        %v1589 = vand.u32 %v272, 4294901760
        %1590 = vmatmul.mubr.f32.gmra.mrb[0].mxu0 %v1589
        %v1591 = vpop.f32.mrb[0].mxu0
        %v1592 = vadd.f32 %v1349, %v1591
        %v1593 = vpop.f32.mrb[0].mxu0
        %v1594 = vadd.f32 %v1351, %v1593
        %1595 = vmatprep.mubr.f32.mxu0 0.0
        %v1596 = vand.u32 %v273, 4294901760
        %1597 = vmatmul.mubr.f32.gmra.mrb[0].mxu0 %v1596
        %v1598 = vpop.f32.mrb[0].mxu0
        %v1599 = vadd.f32 %v1360, %v1598
        %v1600 = vpop.f32.mrb[0].mxu0
        %v1601 = vadd.f32 %v1362, %v1600
        %1602 = vdwg.mxu0
        %v1603 = vand.u32 %v275, 4294901760
        %v1604 = vsub.f32 %v275, %v1603
        %1605 = vmatprep.subr.mxu0 %v1604
        %v1606 = vand.u32 %v274, 4294901760
        %v1607 = vsub.f32 %v274, %v1606
        %1608 = vmatpush1.msra.mxu0 %v1607
        %v1609 = vand.u32 %v277, 4294901760
        %v1610 = vsub.f32 %v277, %v1609
        %1611 = vmatprep.subr.mxu0 %v1610
        %v1612 = vand.u32 %v276, 4294901760
        %v1613 = vsub.f32 %v276, %v1612
        %1614 = vmatpush1.msra.mxu0 %v1613
        %v1615 = vand.u32 %v279, 4294901760
        %v1616 = vsub.f32 %v279, %v1615
        %1617 = vmatprep.subr.mxu0 %v1616
        %v1618 = vand.u32 %v278, 4294901760
        %v1619 = vsub.f32 %v278, %v1618
        %1620 = vmatpush1.msra.mxu0 %v1619
        %v1621 = vand.u32 %v281, 4294901760
        %v1622 = vsub.f32 %v281, %v1621
        %1623 = vmatprep.subr.mxu0 %v1622
        %v1624 = vand.u32 %v280, 4294901760
        %v1625 = vsub.f32 %v280, %v1624
        %1626 = vmatpush1.msra.mxu0 %v1625
        %v1627 = vand.u32 %v283, 4294901760
        %v1628 = vsub.f32 %v283, %v1627
        %1629 = vmatprep.subr.mxu0 %v1628
        %v1630 = vand.u32 %v282, 4294901760
        %v1631 = vsub.f32 %v282, %v1630
        %1632 = vmatpush1.msra.mxu0 %v1631
        %v1633 = vand.u32 %v285, 4294901760
        %v1634 = vsub.f32 %v285, %v1633
        %1635 = vmatprep.subr.mxu0 %v1634
        %v1636 = vand.u32 %v284, 4294901760
        %v1637 = vsub.f32 %v284, %v1636
        %1638 = vmatpush1.msra.mxu0 %v1637
        %v1639 = vand.u32 %v287, 4294901760
        %v1640 = vsub.f32 %v287, %v1639
        %1641 = vmatprep.subr.mxu0 %v1640
        %v1642 = vand.u32 %v286, 4294901760
        %v1643 = vsub.f32 %v286, %v1642
        %1644 = vmatpush1.msra.mxu0 %v1643
        %v1645 = vand.u32 %v289, 4294901760
        %v1646 = vsub.f32 %v289, %v1645
        %1647 = vmatprep.subr.mxu0 %v1646
        %v1648 = vand.u32 %v288, 4294901760
        %v1649 = vsub.f32 %v288, %v1648
        %1650 = vmatpush1.msra.mxu0 %v1649
        %v1651 = vand.u32 %v291, 4294901760
        %v1652 = vsub.f32 %v291, %v1651
        %1653 = vmatprep.subr.mxu0 %v1652
        %v1654 = vand.u32 %v290, 4294901760
        %v1655 = vsub.f32 %v290, %v1654
        %1656 = vmatpush1.msra.mxu0 %v1655
        %v1657 = vand.u32 %v293, 4294901760
        %v1658 = vsub.f32 %v293, %v1657
        %1659 = vmatprep.subr.mxu0 %v1658
        %v1660 = vand.u32 %v292, 4294901760
        %v1661 = vsub.f32 %v292, %v1660
        %1662 = vmatpush1.msra.mxu0 %v1661
        %v1663 = vand.u32 %v295, 4294901760
        %v1664 = vsub.f32 %v295, %v1663
        %1665 = vmatprep.subr.mxu0 %v1664
        %v1666 = vand.u32 %v294, 4294901760
        %v1667 = vsub.f32 %v294, %v1666
        %1668 = vmatpush1.msra.mxu0 %v1667
        %v1669 = vand.u32 %v297, 4294901760
        %v1670 = vsub.f32 %v297, %v1669
        %1671 = vmatprep.subr.mxu0 %v1670
        %v1672 = vand.u32 %v296, 4294901760
        %v1673 = vsub.f32 %v296, %v1672
        %1674 = vmatpush1.msra.mxu0 %v1673
        %v1675 = vand.u32 %v299, 4294901760
        %v1676 = vsub.f32 %v299, %v1675
        %1677 = vmatprep.subr.mxu0 %v1676
        %v1678 = vand.u32 %v298, 4294901760
        %v1679 = vsub.f32 %v298, %v1678
        %1680 = vmatpush1.msra.mxu0 %v1679
        %v1681 = vand.u32 %v301, 4294901760
        %v1682 = vsub.f32 %v301, %v1681
        %1683 = vmatprep.subr.mxu0 %v1682
        %v1684 = vand.u32 %v300, 4294901760
        %v1685 = vsub.f32 %v300, %v1684
        %1686 = vmatpush1.msra.mxu0 %v1685
        %v1687 = vand.u32 %v303, 4294901760
        %v1688 = vsub.f32 %v303, %v1687
        %1689 = vmatprep.subr.mxu0 %v1688
        %v1690 = vand.u32 %v302, 4294901760
        %v1691 = vsub.f32 %v302, %v1690
        %1692 = vmatpush1.msra.mxu0 %v1691
        %v1693 = vand.u32 %v305, 4294901760
        %v1694 = vsub.f32 %v305, %v1693
        %1695 = vmatprep.subr.mxu0 %v1694
        %v1696 = vand.u32 %v304, 4294901760
        %v1697 = vsub.f32 %v304, %v1696
        %1698 = vmatpush1.msra.mxu0 %v1697
        %1699 = vmatprep.subr.mxu0 0.0
        %1700 = vmatpush1.msra.mxu0 0.0
        %1701 = vmatprep.subr.mxu0 0.0
        %1702 = vmatpush1.msra.mxu0 0.0
        %1703 = vmatprep.subr.mxu0 0.0
        %1704 = vmatpush1.msra.mxu0 0.0
        %1705 = vmatprep.subr.mxu0 0.0
        %1706 = vmatpush1.msra.mxu0 0.0
        %1707 = vmatprep.subr.mxu0 0.0
        %1708 = vmatpush1.msra.mxu0 0.0
        %1709 = vmatprep.subr.mxu0 0.0
        %1710 = vmatpush1.msra.mxu0 0.0
        %1711 = vmatprep.subr.mxu0 0.0
        %1712 = vmatpush1.msra.mxu0 0.0
        %1713 = vmatprep.subr.mxu0 0.0
        %1714 = vmatpush1.msra.mxu0 0.0
        %1715 = vmatprep.subr.mxu0 0.0
        %1716 = vmatpush1.msra.mxu0 0.0
        %1717 = vmatprep.subr.mxu0 0.0
        %1718 = vmatpush1.msra.mxu0 0.0
        %1719 = vmatprep.subr.mxu0 0.0
        %1720 = vmatpush1.msra.mxu0 0.0
        %1721 = vmatprep.subr.mxu0 0.0
        %1722 = vmatpush1.msra.mxu0 0.0
        %1723 = vmatprep.subr.mxu0 0.0
        %1724 = vmatpush1.msra.mxu0 0.0
        %1725 = vmatprep.subr.mxu0 0.0
        %1726 = vmatpush1.msra.mxu0 0.0
        %1727 = vmatprep.subr.mxu0 0.0
        %1728 = vmatpush1.msra.mxu0 0.0
        %1729 = vmatprep.subr.mxu0 0.0
        %1730 = vmatpush1.msra.mxu0 0.0
        %1731 = vmatprep.mubr.f32.mxu0 0.0
        %v1732 = vand.u32 %v272, 4294901760
        %v1733 = vsub.f32 %v272, %v1732
        %1734 = vmatmul.mubr.f32.gmra.mrb[0].mxu0 %v1733
        %v1735 = vpop.f32.mrb[0].mxu0
        %v1736 = vadd.f32 %v1592, %v1735
        %v1737 = vpop.f32.mrb[0].mxu0
        %v1738 = vadd.f32 %v1594, %v1737
        %1739 = vmatprep.mubr.f32.mxu0 0.0
        %v1740 = vand.u32 %v273, 4294901760
        %v1741 = vsub.f32 %v273, %v1740
        %1742 = vmatmul.mubr.f32.gmra.mrb[0].mxu0 %v1741
        %v1743 = vpop.f32.mrb[0].mxu0
        %v1744 = vadd.f32 %v1599, %v1743
        %v1745 = vpop.f32.mrb[0].mxu0
        %v1746 = vadd.f32 %v1601, %v1745
        %1747 = vdwg.mxu0
        %v1748 = vand.u32 %v275, 4294901760
        %1749 = vmatprep.subr.mxu0 %v1748
        %v1750 = vand.u32 %v274, 4294901760
        %1751 = vmatpush1.msra.mxu0 %v1750
        %v1752 = vand.u32 %v277, 4294901760
        %1753 = vmatprep.subr.mxu0 %v1752
        %v1754 = vand.u32 %v276, 4294901760
        %1755 = vmatpush1.msra.mxu0 %v1754
        %v1756 = vand.u32 %v279, 4294901760
        %1757 = vmatprep.subr.mxu0 %v1756
        %v1758 = vand.u32 %v278, 4294901760
        %1759 = vmatpush1.msra.mxu0 %v1758
        %v1760 = vand.u32 %v281, 4294901760
        %1761 = vmatprep.subr.mxu0 %v1760
        %v1762 = vand.u32 %v280, 4294901760
        %1763 = vmatpush1.msra.mxu0 %v1762
        %v1764 = vand.u32 %v283, 4294901760
        %1765 = vmatprep.subr.mxu0 %v1764
        %v1766 = vand.u32 %v282, 4294901760
        %1767 = vmatpush1.msra.mxu0 %v1766
        %v1768 = vand.u32 %v285, 4294901760
        %1769 = vmatprep.subr.mxu0 %v1768
        %v1770 = vand.u32 %v284, 4294901760
        %1771 = vmatpush1.msra.mxu0 %v1770
        %v1772 = vand.u32 %v287, 4294901760
        %1773 = vmatprep.subr.mxu0 %v1772
        %v1774 = vand.u32 %v286, 4294901760
        %1775 = vmatpush1.msra.mxu0 %v1774
        %v1776 = vand.u32 %v289, 4294901760
        %1777 = vmatprep.subr.mxu0 %v1776
        %v1778 = vand.u32 %v288, 4294901760
        %1779 = vmatpush1.msra.mxu0 %v1778
        %v1780 = vand.u32 %v291, 4294901760
        %1781 = vmatprep.subr.mxu0 %v1780
        %v1782 = vand.u32 %v290, 4294901760
        %1783 = vmatpush1.msra.mxu0 %v1782
        %v1784 = vand.u32 %v293, 4294901760
        %1785 = vmatprep.subr.mxu0 %v1784
        %v1786 = vand.u32 %v292, 4294901760
        %1787 = vmatpush1.msra.mxu0 %v1786
        %v1788 = vand.u32 %v295, 4294901760
        %1789 = vmatprep.subr.mxu0 %v1788
        %v1790 = vand.u32 %v294, 4294901760
        %1791 = vmatpush1.msra.mxu0 %v1790
        %v1792 = vand.u32 %v297, 4294901760
        %1793 = vmatprep.subr.mxu0 %v1792
        %v1794 = vand.u32 %v296, 4294901760
        %1795 = vmatpush1.msra.mxu0 %v1794
        %v1796 = vand.u32 %v299, 4294901760
        %1797 = vmatprep.subr.mxu0 %v1796
        %v1798 = vand.u32 %v298, 4294901760
        %1799 = vmatpush1.msra.mxu0 %v1798
        %v1800 = vand.u32 %v301, 4294901760
        %1801 = vmatprep.subr.mxu0 %v1800
        %v1802 = vand.u32 %v300, 4294901760
        %1803 = vmatpush1.msra.mxu0 %v1802
        %v1804 = vand.u32 %v303, 4294901760
        %1805 = vmatprep.subr.mxu0 %v1804
        %v1806 = vand.u32 %v302, 4294901760
        %1807 = vmatpush1.msra.mxu0 %v1806
        %v1808 = vand.u32 %v305, 4294901760
        %1809 = vmatprep.subr.mxu0 %v1808
        %v1810 = vand.u32 %v304, 4294901760
        %1811 = vmatpush1.msra.mxu0 %v1810
        %1812 = vmatprep.subr.mxu0 0.0
        %1813 = vmatpush1.msra.mxu0 0.0
        %1814 = vmatprep.subr.mxu0 0.0
        %1815 = vmatpush1.msra.mxu0 0.0
        %1816 = vmatprep.subr.mxu0 0.0
        %1817 = vmatpush1.msra.mxu0 0.0
        %1818 = vmatprep.subr.mxu0 0.0
        %1819 = vmatpush1.msra.mxu0 0.0
        %1820 = vmatprep.subr.mxu0 0.0
        %1821 = vmatpush1.msra.mxu0 0.0
        %1822 = vmatprep.subr.mxu0 0.0
        %1823 = vmatpush1.msra.mxu0 0.0
        %1824 = vmatprep.subr.mxu0 0.0
        %1825 = vmatpush1.msra.mxu0 0.0
        %1826 = vmatprep.subr.mxu0 0.0
        %1827 = vmatpush1.msra.mxu0 0.0
        %1828 = vmatprep.subr.mxu0 0.0
        %1829 = vmatpush1.msra.mxu0 0.0
        %1830 = vmatprep.subr.mxu0 0.0
        %1831 = vmatpush1.msra.mxu0 0.0
        %1832 = vmatprep.subr.mxu0 0.0
        %1833 = vmatpush1.msra.mxu0 0.0
        %1834 = vmatprep.subr.mxu0 0.0
        %1835 = vmatpush1.msra.mxu0 0.0
        %1836 = vmatprep.subr.mxu0 0.0
        %1837 = vmatpush1.msra.mxu0 0.0
        %1838 = vmatprep.subr.mxu0 0.0
        %1839 = vmatpush1.msra.mxu0 0.0
        %1840 = vmatprep.subr.mxu0 0.0
        %1841 = vmatpush1.msra.mxu0 0.0
        %1842 = vmatprep.subr.mxu0 0.0
        %1843 = vmatpush1.msra.mxu0 0.0
        %1844 = vmatprep.mubr.f32.mxu0 0.0
        %v1845 = vand.u32 %v272, 4294901760
        %v1846 = vsub.f32 %v272, %v1845
        %v1847 = vand.u32 %v1846, 4294901760
        %1848 = vmatmul.mubr.f32.gmra.mrb[0].mxu0 %v1847
        %v1849 = vpop.f32.mrb[0].mxu0
        %v1850 = vadd.f32 %v1736, %v1849
        %v1851 = vpop.f32.mrb[0].mxu0
        %v1852 = vadd.f32 %v1738, %v1851
        %1853 = vmatprep.mubr.f32.mxu0 0.0
        %v1854 = vand.u32 %v273, 4294901760
        %v1855 = vsub.f32 %v273, %v1854
        %v1856 = vand.u32 %v1855, 4294901760
        %1857 = vmatmul.mubr.f32.gmra.mrb[0].mxu0 %v1856
        %v1858 = vpop.f32.mrb[0].mxu0
        %v1859 = vadd.f32 %v1744, %v1858
        %v1860 = vpop.f32.mrb[0].mxu0
        %v1861 = vadd.f32 %v1746, %v1860
        %1862 = vdwg.mxu0
        %v1863 = vand.u32 %v275, 4294901760
        %v1864 = vsub.f32 %v275, %v1863
        %v1865 = vand.u32 %v1864, 4294901760
        %1866 = vmatprep.subr.mxu0 %v1865
        %v1867 = vand.u32 %v274, 4294901760
        %v1868 = vsub.f32 %v274, %v1867
        %v1869 = vand.u32 %v1868, 4294901760
        %1870 = vmatpush1.msra.mxu0 %v1869
        %v1871 = vand.u32 %v277, 4294901760
        %v1872 = vsub.f32 %v277, %v1871
        %v1873 = vand.u32 %v1872, 4294901760
        %1874 = vmatprep.subr.mxu0 %v1873
        %v1875 = vand.u32 %v276, 4294901760
        %v1876 = vsub.f32 %v276, %v1875
        %v1877 = vand.u32 %v1876, 4294901760
        %1878 = vmatpush1.msra.mxu0 %v1877
        %v1879 = vand.u32 %v279, 4294901760
        %v1880 = vsub.f32 %v279, %v1879
        %v1881 = vand.u32 %v1880, 4294901760
        %1882 = vmatprep.subr.mxu0 %v1881
        %v1883 = vand.u32 %v278, 4294901760
        %v1884 = vsub.f32 %v278, %v1883
        %v1885 = vand.u32 %v1884, 4294901760
        %1886 = vmatpush1.msra.mxu0 %v1885
        %v1887 = vand.u32 %v281, 4294901760
        %v1888 = vsub.f32 %v281, %v1887
        %v1889 = vand.u32 %v1888, 4294901760
        %1890 = vmatprep.subr.mxu0 %v1889
        %v1891 = vand.u32 %v280, 4294901760
        %v1892 = vsub.f32 %v280, %v1891
        %v1893 = vand.u32 %v1892, 4294901760
        %1894 = vmatpush1.msra.mxu0 %v1893
        %v1895 = vand.u32 %v283, 4294901760
        %v1896 = vsub.f32 %v283, %v1895
        %v1897 = vand.u32 %v1896, 4294901760
        %1898 = vmatprep.subr.mxu0 %v1897
        %v1899 = vand.u32 %v282, 4294901760
        %v1900 = vsub.f32 %v282, %v1899
        %v1901 = vand.u32 %v1900, 4294901760
        %1902 = vmatpush1.msra.mxu0 %v1901
        %v1903 = vand.u32 %v285, 4294901760
        %v1904 = vsub.f32 %v285, %v1903
        %v1905 = vand.u32 %v1904, 4294901760
        %1906 = vmatprep.subr.mxu0 %v1905
        %v1907 = vand.u32 %v284, 4294901760
        %v1908 = vsub.f32 %v284, %v1907
        %v1909 = vand.u32 %v1908, 4294901760
        %1910 = vmatpush1.msra.mxu0 %v1909
        %v1911 = vand.u32 %v287, 4294901760
        %v1912 = vsub.f32 %v287, %v1911
        %v1913 = vand.u32 %v1912, 4294901760
        %1914 = vmatprep.subr.mxu0 %v1913
        %v1915 = vand.u32 %v286, 4294901760
        %v1916 = vsub.f32 %v286, %v1915
        %v1917 = vand.u32 %v1916, 4294901760
        %1918 = vmatpush1.msra.mxu0 %v1917
        %v1919 = vand.u32 %v289, 4294901760
        %v1920 = vsub.f32 %v289, %v1919
        %v1921 = vand.u32 %v1920, 4294901760
        %1922 = vmatprep.subr.mxu0 %v1921
        %v1923 = vand.u32 %v288, 4294901760
        %v1924 = vsub.f32 %v288, %v1923
        %v1925 = vand.u32 %v1924, 4294901760
        %1926 = vmatpush1.msra.mxu0 %v1925
        %v1927 = vand.u32 %v291, 4294901760
        %v1928 = vsub.f32 %v291, %v1927
        %v1929 = vand.u32 %v1928, 4294901760
        %1930 = vmatprep.subr.mxu0 %v1929
        %v1931 = vand.u32 %v290, 4294901760
        %v1932 = vsub.f32 %v290, %v1931
        %v1933 = vand.u32 %v1932, 4294901760
        %1934 = vmatpush1.msra.mxu0 %v1933
        %v1935 = vand.u32 %v293, 4294901760
        %v1936 = vsub.f32 %v293, %v1935
        %v1937 = vand.u32 %v1936, 4294901760
        %1938 = vmatprep.subr.mxu0 %v1937
        %v1939 = vand.u32 %v292, 4294901760
        %v1940 = vsub.f32 %v292, %v1939
        %v1941 = vand.u32 %v1940, 4294901760
        %1942 = vmatpush1.msra.mxu0 %v1941
        %v1943 = vand.u32 %v295, 4294901760
        %v1944 = vsub.f32 %v295, %v1943
        %v1945 = vand.u32 %v1944, 4294901760
        %1946 = vmatprep.subr.mxu0 %v1945
        %v1947 = vand.u32 %v294, 4294901760
        %v1948 = vsub.f32 %v294, %v1947
        %v1949 = vand.u32 %v1948, 4294901760
        %1950 = vmatpush1.msra.mxu0 %v1949
        %v1951 = vand.u32 %v297, 4294901760
        %v1952 = vsub.f32 %v297, %v1951
        %v1953 = vand.u32 %v1952, 4294901760
        %1954 = vmatprep.subr.mxu0 %v1953
        %v1955 = vand.u32 %v296, 4294901760
        %v1956 = vsub.f32 %v296, %v1955
        %v1957 = vand.u32 %v1956, 4294901760
        %1958 = vmatpush1.msra.mxu0 %v1957
        %v1959 = vand.u32 %v299, 4294901760
        %v1960 = vsub.f32 %v299, %v1959
        %v1961 = vand.u32 %v1960, 4294901760
        %1962 = vmatprep.subr.mxu0 %v1961
        %v1963 = vand.u32 %v298, 4294901760
        %v1964 = vsub.f32 %v298, %v1963
        %v1965 = vand.u32 %v1964, 4294901760
        %1966 = vmatpush1.msra.mxu0 %v1965
        %v1967 = vand.u32 %v301, 4294901760
        %v1968 = vsub.f32 %v301, %v1967
        %v1969 = vand.u32 %v1968, 4294901760
        %1970 = vmatprep.subr.mxu0 %v1969
        %v1971 = vand.u32 %v300, 4294901760
        %v1972 = vsub.f32 %v300, %v1971
        %v1973 = vand.u32 %v1972, 4294901760
        %1974 = vmatpush1.msra.mxu0 %v1973
        %v1975 = vand.u32 %v303, 4294901760
        %v1976 = vsub.f32 %v303, %v1975
        %v1977 = vand.u32 %v1976, 4294901760
        %1978 = vmatprep.subr.mxu0 %v1977
        %v1979 = vand.u32 %v302, 4294901760
        %v1980 = vsub.f32 %v302, %v1979
        %v1981 = vand.u32 %v1980, 4294901760
        %1982 = vmatpush1.msra.mxu0 %v1981
        %v1983 = vand.u32 %v305, 4294901760
        %v1984 = vsub.f32 %v305, %v1983
        %v1985 = vand.u32 %v1984, 4294901760
        %1986 = vmatprep.subr.mxu0 %v1985
        %v1987 = vand.u32 %v304, 4294901760
        %v1988 = vsub.f32 %v304, %v1987
        %v1989 = vand.u32 %v1988, 4294901760
        %1990 = vmatpush1.msra.mxu0 %v1989
        %1991 = vmatprep.subr.mxu0 0.0
        %1992 = vmatpush1.msra.mxu0 0.0
        %1993 = vmatprep.subr.mxu0 0.0
        %1994 = vmatpush1.msra.mxu0 0.0
        %1995 = vmatprep.subr.mxu0 0.0
        %1996 = vmatpush1.msra.mxu0 0.0
        %1997 = vmatprep.subr.mxu0 0.0
        %1998 = vmatpush1.msra.mxu0 0.0
        %1999 = vmatprep.subr.mxu0 0.0
        %2000 = vmatpush1.msra.mxu0 0.0
        %2001 = vmatprep.subr.mxu0 0.0
        %2002 = vmatpush1.msra.mxu0 0.0
        %2003 = vmatprep.subr.mxu0 0.0
        %2004 = vmatpush1.msra.mxu0 0.0
        %2005 = vmatprep.subr.mxu0 0.0
        %2006 = vmatpush1.msra.mxu0 0.0
        %2007 = vmatprep.subr.mxu0 0.0
        %2008 = vmatpush1.msra.mxu0 0.0
        %2009 = vmatprep.subr.mxu0 0.0
        %2010 = vmatpush1.msra.mxu0 0.0
        %2011 = vmatprep.subr.mxu0 0.0
        %2012 = vmatpush1.msra.mxu0 0.0
        %2013 = vmatprep.subr.mxu0 0.0
        %2014 = vmatpush1.msra.mxu0 0.0
        %2015 = vmatprep.subr.mxu0 0.0
        %2016 = vmatpush1.msra.mxu0 0.0
        %2017 = vmatprep.subr.mxu0 0.0
        %2018 = vmatpush1.msra.mxu0 0.0
        %2019 = vmatprep.subr.mxu0 0.0
        %2020 = vmatpush1.msra.mxu0 0.0
        %2021 = vmatprep.subr.mxu0 0.0
        %2022 = vmatpush1.msra.mxu0 0.0
        %2023 = vmatprep.mubr.f32.mxu0 0.0
        %v2024 = vand.u32 %v272, 4294901760
        %2025 = vmatmul.mubr.f32.gmra.mrb[0].mxu0 %v2024
        %v2026 = vpop.f32.mrb[0].mxu0
        %v2027 = vadd.f32 %v1850, %v2026
        %v2028 = vpop.f32.mrb[0].mxu0
        %v2029 = vadd.f32 %v1852, %v2028
        %2030 = vmatprep.mubr.f32.mxu0 0.0
        %v2031 = vand.u32 %v273, 4294901760
        %2032 = vmatmul.mubr.f32.gmra.mrb[0].mxu0 %v2031
        %v2033 = vpop.f32.mrb[0].mxu0
        %v2034 = vadd.f32 %v1859, %v2033
        %v2035 = vpop.f32.mrb[0].mxu0
        %v2036 = vadd.f32 %v1861, %v2035
        %2037 = vdwg.mxu0
        %v2038 = vand.u32 %v275, 4294901760
        %2039 = vmatprep.subr.mxu0 %v2038
        %v2040 = vand.u32 %v274, 4294901760
        %2041 = vmatpush1.msra.mxu0 %v2040
        %v2042 = vand.u32 %v277, 4294901760
        %2043 = vmatprep.subr.mxu0 %v2042
        %v2044 = vand.u32 %v276, 4294901760
        %2045 = vmatpush1.msra.mxu0 %v2044
        %v2046 = vand.u32 %v279, 4294901760
        %2047 = vmatprep.subr.mxu0 %v2046
        %v2048 = vand.u32 %v278, 4294901760
        %2049 = vmatpush1.msra.mxu0 %v2048
        %v2050 = vand.u32 %v281, 4294901760
        %2051 = vmatprep.subr.mxu0 %v2050
        %v2052 = vand.u32 %v280, 4294901760
        %2053 = vmatpush1.msra.mxu0 %v2052
        %v2054 = vand.u32 %v283, 4294901760
        %2055 = vmatprep.subr.mxu0 %v2054
        %v2056 = vand.u32 %v282, 4294901760
        %2057 = vmatpush1.msra.mxu0 %v2056
        %v2058 = vand.u32 %v285, 4294901760
        %2059 = vmatprep.subr.mxu0 %v2058
        %v2060 = vand.u32 %v284, 4294901760
        %2061 = vmatpush1.msra.mxu0 %v2060
        %v2062 = vand.u32 %v287, 4294901760
        %2063 = vmatprep.subr.mxu0 %v2062
        %v2064 = vand.u32 %v286, 4294901760
        %2065 = vmatpush1.msra.mxu0 %v2064
        %v2066 = vand.u32 %v289, 4294901760
        %2067 = vmatprep.subr.mxu0 %v2066
        %v2068 = vand.u32 %v288, 4294901760
        %2069 = vmatpush1.msra.mxu0 %v2068
        %v2070 = vand.u32 %v291, 4294901760
        %2071 = vmatprep.subr.mxu0 %v2070
        %v2072 = vand.u32 %v290, 4294901760
        %2073 = vmatpush1.msra.mxu0 %v2072
        %v2074 = vand.u32 %v293, 4294901760
        %2075 = vmatprep.subr.mxu0 %v2074
        %v2076 = vand.u32 %v292, 4294901760
        %2077 = vmatpush1.msra.mxu0 %v2076
        %v2078 = vand.u32 %v295, 4294901760
        %2079 = vmatprep.subr.mxu0 %v2078
        %v2080 = vand.u32 %v294, 4294901760
        %2081 = vmatpush1.msra.mxu0 %v2080
        %v2082 = vand.u32 %v297, 4294901760
        %2083 = vmatprep.subr.mxu0 %v2082
        %v2084 = vand.u32 %v296, 4294901760
        %2085 = vmatpush1.msra.mxu0 %v2084
        %v2086 = vand.u32 %v299, 4294901760
        %2087 = vmatprep.subr.mxu0 %v2086
        %v2088 = vand.u32 %v298, 4294901760
        %2089 = vmatpush1.msra.mxu0 %v2088
        %v2090 = vand.u32 %v301, 4294901760
        %2091 = vmatprep.subr.mxu0 %v2090
        %v2092 = vand.u32 %v300, 4294901760
        %2093 = vmatpush1.msra.mxu0 %v2092
        %v2094 = vand.u32 %v303, 4294901760
        %2095 = vmatprep.subr.mxu0 %v2094
        %v2096 = vand.u32 %v302, 4294901760
        %2097 = vmatpush1.msra.mxu0 %v2096
        %v2098 = vand.u32 %v305, 4294901760
        %2099 = vmatprep.subr.mxu0 %v2098
        %v2100 = vand.u32 %v304, 4294901760
        %2101 = vmatpush1.msra.mxu0 %v2100
        %2102 = vmatprep.subr.mxu0 0.0
        %2103 = vmatpush1.msra.mxu0 0.0
        %2104 = vmatprep.subr.mxu0 0.0
        %2105 = vmatpush1.msra.mxu0 0.0
        %2106 = vmatprep.subr.mxu0 0.0
        %2107 = vmatpush1.msra.mxu0 0.0
        %2108 = vmatprep.subr.mxu0 0.0
        %2109 = vmatpush1.msra.mxu0 0.0
        %2110 = vmatprep.subr.mxu0 0.0
        %2111 = vmatpush1.msra.mxu0 0.0
        %2112 = vmatprep.subr.mxu0 0.0
        %2113 = vmatpush1.msra.mxu0 0.0
        %2114 = vmatprep.subr.mxu0 0.0
        %2115 = vmatpush1.msra.mxu0 0.0
        %2116 = vmatprep.subr.mxu0 0.0
        %2117 = vmatpush1.msra.mxu0 0.0
        %2118 = vmatprep.subr.mxu0 0.0
        %2119 = vmatpush1.msra.mxu0 0.0
        %2120 = vmatprep.subr.mxu0 0.0
        %2121 = vmatpush1.msra.mxu0 0.0
        %2122 = vmatprep.subr.mxu0 0.0
        %2123 = vmatpush1.msra.mxu0 0.0
        %2124 = vmatprep.subr.mxu0 0.0
        %2125 = vmatpush1.msra.mxu0 0.0
        %2126 = vmatprep.subr.mxu0 0.0
        %2127 = vmatpush1.msra.mxu0 0.0
        %2128 = vmatprep.subr.mxu0 0.0
        %2129 = vmatpush1.msra.mxu0 0.0
        %2130 = vmatprep.subr.mxu0 0.0
        %2131 = vmatpush1.msra.mxu0 0.0
        %2132 = vmatprep.subr.mxu0 0.0
        %2133 = vmatpush1.msra.mxu0 0.0
        %2134 = vmatprep.mubr.f32.mxu0 0.0
        %v2135 = vand.u32 %v272, 4294901760
        %2136 = vmatmul.mubr.f32.gmra.mrb[0].mxu0 %v2135
        %v2137 = vpop.f32.mrb[0].mxu0
        %v2138 = vadd.f32 %v2027, %v2137
        %v2139 = vpop.f32.mrb[0].mxu0
        %v2140 = vadd.f32 %v2029, %v2139
        %2141 = vmatprep.mubr.f32.mxu0 0.0
        %v2142 = vand.u32 %v273, 4294901760
        %2143 = vmatmul.mubr.f32.gmra.mrb[0].mxu0 %v2142
        %v2144 = vpop.f32.mrb[0].mxu0
        %v2145 = vadd.f32 %v2034, %v2144
        %v2146 = vpop.f32.mrb[0].mxu0
        %v2147 = vadd.f32 %v2036, %v2146
        %2148 = vdwg.mxu0
        %v2149 = vld [vmem:[%s237 + $0x8] sm:$0xff]
        %v2150 = vld [vmem:[%s237 + $0x10] sm:$0xff]
        %s2151 = scalar_lea.vmem [#allocation6], 512
        %v2152 = vld [vmem:[%s2151] sm:$0xff]
        %v2153 = vld [vmem:[%s2151 + $0x8] sm:$0xff]
        %v2154 = vld [vmem:[%s2151 + $0x10] sm:$0xff]
        %v2155 = vld [vmem:[%s2151 + $0x18] sm:$0xff]
        %v2156 = vld [vmem:[%s2151 + $0x20] sm:$0xff]
        %v2157 = vld [vmem:[%s2151 + $0x28] sm:$0xff]
        %v2158 = vld [vmem:[%s2151 + $0x30] sm:$0xff]
        %v2159 = vld [vmem:[%s2151 + $0x38] sm:$0xff]
        %v2160 = vld [vmem:[%s2151 + $0x40] sm:$0xff]
        %v2161 = vld [vmem:[%s2151 + $0x48] sm:$0xff]
        %v2162 = vld [vmem:[%s2151 + $0x50] sm:$0xff]
        %v2163 = vld [vmem:[%s2151 + $0x58] sm:$0xff]
        %v2164 = vld [vmem:[%s2151 + $0x60] sm:$0xff]
        %v2165 = vld [vmem:[%s2151 + $0x68] sm:$0xff]
        %v2166 = vld [vmem:[%s2151 + $0x70] sm:$0xff]
        %v2167 = vld [vmem:[%s2151 + $0x78] sm:$0xff]
        %v2168 = vld [vmem:[%s2151 + $0x80] sm:$0xff]
        %v2169 = vld [vmem:[%s2151 + $0x88] sm:$0xff]
        %v2170 = vld [vmem:[%s2151 + $0x90] sm:$0xff]
        %v2171 = vld [vmem:[%s2151 + $0x98] sm:$0xff]
        %v2172 = vld [vmem:[%s2151 + $0xa0] sm:$0xff]
        %v2173 = vld [vmem:[%s2151 + $0xa8] sm:$0xff]
        %v2174 = vld [vmem:[%s2151 + $0xb0] sm:$0xff]
        %v2175 = vld [vmem:[%s2151 + $0xb8] sm:$0xff]
        %v2176 = vld [vmem:[%s2151 + $0xc0] sm:$0xff]
        %v2177 = vld [vmem:[%s2151 + $0xc8] sm:$0xff]
        %v2178 = vld [vmem:[%s2151 + $0xd0] sm:$0xff]
        %v2179 = vld [vmem:[%s2151 + $0xd8] sm:$0xff]
        %v2180 = vld [vmem:[%s2151 + $0xe0] sm:$0xff]
        %v2181 = vld [vmem:[%s2151 + $0xe8] sm:$0xff]
        %v2182 = vld [vmem:[%s2151 + $0xf0] sm:$0xff]
        %v2183 = vld [vmem:[%s2151 + $0xf8] sm:$0xff]
        %v2184 = vand.u32 %v2153, 4294901760
        %2185 = vmatprep.subr.mxu0 %v2184
        %v2186 = vand.u32 %v2152, 4294901760
        %2187 = vmatpush1.msra.mxu0 %v2186
        %v2188 = vand.u32 %v2155, 4294901760
        %2189 = vmatprep.subr.mxu0 %v2188
        %v2190 = vand.u32 %v2154, 4294901760
        %2191 = vmatpush1.msra.mxu0 %v2190
        %v2192 = vand.u32 %v2157, 4294901760
        %2193 = vmatprep.subr.mxu0 %v2192
        %v2194 = vand.u32 %v2156, 4294901760
        %2195 = vmatpush1.msra.mxu0 %v2194
        %v2196 = vand.u32 %v2159, 4294901760
        %2197 = vmatprep.subr.mxu0 %v2196
        %v2198 = vand.u32 %v2158, 4294901760
        %2199 = vmatpush1.msra.mxu0 %v2198
        %v2200 = vand.u32 %v2161, 4294901760
        %2201 = vmatprep.subr.mxu0 %v2200
        %v2202 = vand.u32 %v2160, 4294901760
        %2203 = vmatpush1.msra.mxu0 %v2202
        %v2204 = vand.u32 %v2163, 4294901760
        %2205 = vmatprep.subr.mxu0 %v2204
        %v2206 = vand.u32 %v2162, 4294901760
        %2207 = vmatpush1.msra.mxu0 %v2206
        %v2208 = vand.u32 %v2165, 4294901760
        %2209 = vmatprep.subr.mxu0 %v2208
        %v2210 = vand.u32 %v2164, 4294901760
        %2211 = vmatpush1.msra.mxu0 %v2210
        %v2212 = vand.u32 %v2167, 4294901760
        %2213 = vmatprep.subr.mxu0 %v2212
        %v2214 = vand.u32 %v2166, 4294901760
        %2215 = vmatpush1.msra.mxu0 %v2214
        %v2216 = vand.u32 %v2169, 4294901760
        %2217 = vmatprep.subr.mxu0 %v2216
        %v2218 = vand.u32 %v2168, 4294901760
        %2219 = vmatpush1.msra.mxu0 %v2218
        %v2220 = vand.u32 %v2171, 4294901760
        %2221 = vmatprep.subr.mxu0 %v2220
        %v2222 = vand.u32 %v2170, 4294901760
        %2223 = vmatpush1.msra.mxu0 %v2222
        %v2224 = vand.u32 %v2173, 4294901760
        %2225 = vmatprep.subr.mxu0 %v2224
        %v2226 = vand.u32 %v2172, 4294901760
        %2227 = vmatpush1.msra.mxu0 %v2226
        %v2228 = vand.u32 %v2175, 4294901760
        %2229 = vmatprep.subr.mxu0 %v2228
        %v2230 = vand.u32 %v2174, 4294901760
        %2231 = vmatpush1.msra.mxu0 %v2230
        %v2232 = vand.u32 %v2177, 4294901760
        %2233 = vmatprep.subr.mxu0 %v2232
        %v2234 = vand.u32 %v2176, 4294901760
        %2235 = vmatpush1.msra.mxu0 %v2234
        %v2236 = vand.u32 %v2179, 4294901760
        %2237 = vmatprep.subr.mxu0 %v2236
        %v2238 = vand.u32 %v2178, 4294901760
        %2239 = vmatpush1.msra.mxu0 %v2238
        %v2240 = vand.u32 %v2181, 4294901760
        %2241 = vmatprep.subr.mxu0 %v2240
        %v2242 = vand.u32 %v2180, 4294901760
        %2243 = vmatpush1.msra.mxu0 %v2242
        %v2244 = vand.u32 %v2183, 4294901760
        %2245 = vmatprep.subr.mxu0 %v2244
        %v2246 = vand.u32 %v2182, 4294901760
        %2247 = vmatpush1.msra.mxu0 %v2246
        %2248 = vmatprep.subr.mxu0 0.0
        %2249 = vmatpush1.msra.mxu0 0.0
        %2250 = vmatprep.subr.mxu0 0.0
        %2251 = vmatpush1.msra.mxu0 0.0
        %2252 = vmatprep.subr.mxu0 0.0
        %2253 = vmatpush1.msra.mxu0 0.0
        %2254 = vmatprep.subr.mxu0 0.0
        %2255 = vmatpush1.msra.mxu0 0.0
        %2256 = vmatprep.subr.mxu0 0.0
        %2257 = vmatpush1.msra.mxu0 0.0
        %2258 = vmatprep.subr.mxu0 0.0
        %2259 = vmatpush1.msra.mxu0 0.0
        %2260 = vmatprep.subr.mxu0 0.0
        %2261 = vmatpush1.msra.mxu0 0.0
        %2262 = vmatprep.subr.mxu0 0.0
        %2263 = vmatpush1.msra.mxu0 0.0
        %2264 = vmatprep.subr.mxu0 0.0
        %2265 = vmatpush1.msra.mxu0 0.0
        %2266 = vmatprep.subr.mxu0 0.0
        %2267 = vmatpush1.msra.mxu0 0.0
        %2268 = vmatprep.subr.mxu0 0.0
        %2269 = vmatpush1.msra.mxu0 0.0
        %2270 = vmatprep.subr.mxu0 0.0
        %2271 = vmatpush1.msra.mxu0 0.0
        %2272 = vmatprep.subr.mxu0 0.0
        %2273 = vmatpush1.msra.mxu0 0.0
        %2274 = vmatprep.subr.mxu0 0.0
        %2275 = vmatpush1.msra.mxu0 0.0
        %2276 = vmatprep.subr.mxu0 0.0
        %2277 = vmatpush1.msra.mxu0 0.0
        %2278 = vmatprep.subr.mxu0 0.0
        %2279 = vmatpush1.msra.mxu0 0.0
        %2280 = vmatprep.mubr.f32.mxu0 0.0
        %v2281 = vand.u32 %v2149, 4294901760
        %v2282 = vsub.f32 %v2149, %v2281
        %v2283 = vand.u32 %v2282, 4294901760
        %v2284 = vsub.f32 %v2282, %v2283
        %v2285 = vand.u32 %v2284, 4294901760
        %2286 = vmatmul.mubr.f32.gmra.mrb[0].mxu0 %v2285
        %v2287 = vpop.f32.mrb[0].mxu0
        %v2288 = vadd.f32 0.0, %v2287
        %v2289 = vpop.f32.mrb[0].mxu0
        %v2290 = vadd.f32 0.0, %v2289
        %2291 = vmatprep.mubr.f32.mxu0 0.0
        %v2292 = vand.u32 %v2150, 4294901760
        %v2293 = vsub.f32 %v2150, %v2292
        %v2294 = vand.u32 %v2293, 4294901760
        %v2295 = vsub.f32 %v2293, %v2294
        %v2296 = vand.u32 %v2295, 4294901760
        %2297 = vmatmul.mubr.f32.gmra.mrb[0].mxu0 %v2296
        %v2298 = vpop.f32.mrb[0].mxu0
        %v2299 = vadd.f32 0.0, %v2298
        %v2300 = vpop.f32.mrb[0].mxu0
        %v2301 = vadd.f32 0.0, %v2300
        %2302 = vdwg.mxu0
        %v2303 = vand.u32 %v2153, 4294901760
        %v2304 = vsub.f32 %v2153, %v2303
        %v2305 = vand.u32 %v2304, 4294901760
        %v2306 = vsub.f32 %v2304, %v2305
        %v2307 = vand.u32 %v2306, 4294901760
        %2308 = vmatprep.subr.mxu0 %v2307
        %v2309 = vand.u32 %v2152, 4294901760
        %v2310 = vsub.f32 %v2152, %v2309
        %v2311 = vand.u32 %v2310, 4294901760
        %v2312 = vsub.f32 %v2310, %v2311
        %v2313 = vand.u32 %v2312, 4294901760
        %2314 = vmatpush1.msra.mxu0 %v2313
        %v2315 = vand.u32 %v2155, 4294901760
        %v2316 = vsub.f32 %v2155, %v2315
        %v2317 = vand.u32 %v2316, 4294901760
        %v2318 = vsub.f32 %v2316, %v2317
        %v2319 = vand.u32 %v2318, 4294901760
        %2320 = vmatprep.subr.mxu0 %v2319
        %v2321 = vand.u32 %v2154, 4294901760
        %v2322 = vsub.f32 %v2154, %v2321
        %v2323 = vand.u32 %v2322, 4294901760
        %v2324 = vsub.f32 %v2322, %v2323
        %v2325 = vand.u32 %v2324, 4294901760
        %2326 = vmatpush1.msra.mxu0 %v2325
        %v2327 = vand.u32 %v2157, 4294901760
        %v2328 = vsub.f32 %v2157, %v2327
        %v2329 = vand.u32 %v2328, 4294901760
        %v2330 = vsub.f32 %v2328, %v2329
        %v2331 = vand.u32 %v2330, 4294901760
        %2332 = vmatprep.subr.mxu0 %v2331
        %v2333 = vand.u32 %v2156, 4294901760
        %v2334 = vsub.f32 %v2156, %v2333
        %v2335 = vand.u32 %v2334, 4294901760
        %v2336 = vsub.f32 %v2334, %v2335
        %v2337 = vand.u32 %v2336, 4294901760
        %2338 = vmatpush1.msra.mxu0 %v2337
        %v2339 = vand.u32 %v2159, 4294901760
        %v2340 = vsub.f32 %v2159, %v2339
        %v2341 = vand.u32 %v2340, 4294901760
        %v2342 = vsub.f32 %v2340, %v2341
        %v2343 = vand.u32 %v2342, 4294901760
        %2344 = vmatprep.subr.mxu0 %v2343
        %v2345 = vand.u32 %v2158, 4294901760
        %v2346 = vsub.f32 %v2158, %v2345
        %v2347 = vand.u32 %v2346, 4294901760
        %v2348 = vsub.f32 %v2346, %v2347
        %v2349 = vand.u32 %v2348, 4294901760
        %2350 = vmatpush1.msra.mxu0 %v2349
        %v2351 = vand.u32 %v2161, 4294901760
        %v2352 = vsub.f32 %v2161, %v2351
        %v2353 = vand.u32 %v2352, 4294901760
        %v2354 = vsub.f32 %v2352, %v2353
        %v2355 = vand.u32 %v2354, 4294901760
        %2356 = vmatprep.subr.mxu0 %v2355
        %v2357 = vand.u32 %v2160, 4294901760
        %v2358 = vsub.f32 %v2160, %v2357
        %v2359 = vand.u32 %v2358, 4294901760
        %v2360 = vsub.f32 %v2358, %v2359
        %v2361 = vand.u32 %v2360, 4294901760
        %2362 = vmatpush1.msra.mxu0 %v2361
        %v2363 = vand.u32 %v2163, 4294901760
        %v2364 = vsub.f32 %v2163, %v2363
        %v2365 = vand.u32 %v2364, 4294901760
        %v2366 = vsub.f32 %v2364, %v2365
        %v2367 = vand.u32 %v2366, 4294901760
        %2368 = vmatprep.subr.mxu0 %v2367
        %v2369 = vand.u32 %v2162, 4294901760
        %v2370 = vsub.f32 %v2162, %v2369
        %v2371 = vand.u32 %v2370, 4294901760
        %v2372 = vsub.f32 %v2370, %v2371
        %v2373 = vand.u32 %v2372, 4294901760
        %2374 = vmatpush1.msra.mxu0 %v2373
        %v2375 = vand.u32 %v2165, 4294901760
        %v2376 = vsub.f32 %v2165, %v2375
        %v2377 = vand.u32 %v2376, 4294901760
        %v2378 = vsub.f32 %v2376, %v2377
        %v2379 = vand.u32 %v2378, 4294901760
        %2380 = vmatprep.subr.mxu0 %v2379
        %v2381 = vand.u32 %v2164, 4294901760
        %v2382 = vsub.f32 %v2164, %v2381
        %v2383 = vand.u32 %v2382, 4294901760
        %v2384 = vsub.f32 %v2382, %v2383
        %v2385 = vand.u32 %v2384, 4294901760
        %2386 = vmatpush1.msra.mxu0 %v2385
        %v2387 = vand.u32 %v2167, 4294901760
        %v2388 = vsub.f32 %v2167, %v2387
        %v2389 = vand.u32 %v2388, 4294901760
        %v2390 = vsub.f32 %v2388, %v2389
        %v2391 = vand.u32 %v2390, 4294901760
        %2392 = vmatprep.subr.mxu0 %v2391
        %v2393 = vand.u32 %v2166, 4294901760
        %v2394 = vsub.f32 %v2166, %v2393
        %v2395 = vand.u32 %v2394, 4294901760
        %v2396 = vsub.f32 %v2394, %v2395
        %v2397 = vand.u32 %v2396, 4294901760
        %2398 = vmatpush1.msra.mxu0 %v2397
        %v2399 = vand.u32 %v2169, 4294901760
        %v2400 = vsub.f32 %v2169, %v2399
        %v2401 = vand.u32 %v2400, 4294901760
        %v2402 = vsub.f32 %v2400, %v2401
        %v2403 = vand.u32 %v2402, 4294901760
        %2404 = vmatprep.subr.mxu0 %v2403
        %v2405 = vand.u32 %v2168, 4294901760
        %v2406 = vsub.f32 %v2168, %v2405
        %v2407 = vand.u32 %v2406, 4294901760
        %v2408 = vsub.f32 %v2406, %v2407
        %v2409 = vand.u32 %v2408, 4294901760
        %2410 = vmatpush1.msra.mxu0 %v2409
        %v2411 = vand.u32 %v2171, 4294901760
        %v2412 = vsub.f32 %v2171, %v2411
        %v2413 = vand.u32 %v2412, 4294901760
        %v2414 = vsub.f32 %v2412, %v2413
        %v2415 = vand.u32 %v2414, 4294901760
        %2416 = vmatprep.subr.mxu0 %v2415
        %v2417 = vand.u32 %v2170, 4294901760
        %v2418 = vsub.f32 %v2170, %v2417
        %v2419 = vand.u32 %v2418, 4294901760
        %v2420 = vsub.f32 %v2418, %v2419
        %v2421 = vand.u32 %v2420, 4294901760
        %2422 = vmatpush1.msra.mxu0 %v2421
        %v2423 = vand.u32 %v2173, 4294901760
        %v2424 = vsub.f32 %v2173, %v2423
        %v2425 = vand.u32 %v2424, 4294901760
        %v2426 = vsub.f32 %v2424, %v2425
        %v2427 = vand.u32 %v2426, 4294901760
        %2428 = vmatprep.subr.mxu0 %v2427
        %v2429 = vand.u32 %v2172, 4294901760
        %v2430 = vsub.f32 %v2172, %v2429
        %v2431 = vand.u32 %v2430, 4294901760
        %v2432 = vsub.f32 %v2430, %v2431
        %v2433 = vand.u32 %v2432, 4294901760
        %2434 = vmatpush1.msra.mxu0 %v2433
        %v2435 = vand.u32 %v2175, 4294901760
        %v2436 = vsub.f32 %v2175, %v2435
        %v2437 = vand.u32 %v2436, 4294901760
        %v2438 = vsub.f32 %v2436, %v2437
        %v2439 = vand.u32 %v2438, 4294901760
        %2440 = vmatprep.subr.mxu0 %v2439
        %v2441 = vand.u32 %v2174, 4294901760
        %v2442 = vsub.f32 %v2174, %v2441
        %v2443 = vand.u32 %v2442, 4294901760
        %v2444 = vsub.f32 %v2442, %v2443
        %v2445 = vand.u32 %v2444, 4294901760
        %2446 = vmatpush1.msra.mxu0 %v2445
        %v2447 = vand.u32 %v2177, 4294901760
        %v2448 = vsub.f32 %v2177, %v2447
        %v2449 = vand.u32 %v2448, 4294901760
        %v2450 = vsub.f32 %v2448, %v2449
        %v2451 = vand.u32 %v2450, 4294901760
        %2452 = vmatprep.subr.mxu0 %v2451
        %v2453 = vand.u32 %v2176, 4294901760
        %v2454 = vsub.f32 %v2176, %v2453
        %v2455 = vand.u32 %v2454, 4294901760
        %v2456 = vsub.f32 %v2454, %v2455
        %v2457 = vand.u32 %v2456, 4294901760
        %2458 = vmatpush1.msra.mxu0 %v2457
        %v2459 = vand.u32 %v2179, 4294901760
        %v2460 = vsub.f32 %v2179, %v2459
        %v2461 = vand.u32 %v2460, 4294901760
        %v2462 = vsub.f32 %v2460, %v2461
        %v2463 = vand.u32 %v2462, 4294901760
        %2464 = vmatprep.subr.mxu0 %v2463
        %v2465 = vand.u32 %v2178, 4294901760
        %v2466 = vsub.f32 %v2178, %v2465
        %v2467 = vand.u32 %v2466, 4294901760
        %v2468 = vsub.f32 %v2466, %v2467
        %v2469 = vand.u32 %v2468, 4294901760
        %2470 = vmatpush1.msra.mxu0 %v2469
        %v2471 = vand.u32 %v2181, 4294901760
        %v2472 = vsub.f32 %v2181, %v2471
        %v2473 = vand.u32 %v2472, 4294901760
        %v2474 = vsub.f32 %v2472, %v2473
        %v2475 = vand.u32 %v2474, 4294901760
        %2476 = vmatprep.subr.mxu0 %v2475
        %v2477 = vand.u32 %v2180, 4294901760
        %v2478 = vsub.f32 %v2180, %v2477
        %v2479 = vand.u32 %v2478, 4294901760
        %v2480 = vsub.f32 %v2478, %v2479
        %v2481 = vand.u32 %v2480, 4294901760
        %2482 = vmatpush1.msra.mxu0 %v2481
        %v2483 = vand.u32 %v2183, 4294901760
        %v2484 = vsub.f32 %v2183, %v2483
        %v2485 = vand.u32 %v2484, 4294901760
        %v2486 = vsub.f32 %v2484, %v2485
        %v2487 = vand.u32 %v2486, 4294901760
        %2488 = vmatprep.subr.mxu0 %v2487
        %v2489 = vand.u32 %v2182, 4294901760
        %v2490 = vsub.f32 %v2182, %v2489
        %v2491 = vand.u32 %v2490, 4294901760
        %v2492 = vsub.f32 %v2490, %v2491
        %v2493 = vand.u32 %v2492, 4294901760
        %2494 = vmatpush1.msra.mxu0 %v2493
        %2495 = vmatprep.subr.mxu0 0.0
        %2496 = vmatpush1.msra.mxu0 0.0
        %2497 = vmatprep.subr.mxu0 0.0
        %2498 = vmatpush1.msra.mxu0 0.0
        %2499 = vmatprep.subr.mxu0 0.0
        %2500 = vmatpush1.msra.mxu0 0.0
        %2501 = vmatprep.subr.mxu0 0.0
        %2502 = vmatpush1.msra.mxu0 0.0
        %2503 = vmatprep.subr.mxu0 0.0
        %2504 = vmatpush1.msra.mxu0 0.0
        %2505 = vmatprep.subr.mxu0 0.0
        %2506 = vmatpush1.msra.mxu0 0.0
        %2507 = vmatprep.subr.mxu0 0.0
        %2508 = vmatpush1.msra.mxu0 0.0
        %2509 = vmatprep.subr.mxu0 0.0
        %2510 = vmatpush1.msra.mxu0 0.0
        %2511 = vmatprep.subr.mxu0 0.0
        %2512 = vmatpush1.msra.mxu0 0.0
        %2513 = vmatprep.subr.mxu0 0.0
        %2514 = vmatpush1.msra.mxu0 0.0
        %2515 = vmatprep.subr.mxu0 0.0
        %2516 = vmatpush1.msra.mxu0 0.0
        %2517 = vmatprep.subr.mxu0 0.0
        %2518 = vmatpush1.msra.mxu0 0.0
        %2519 = vmatprep.subr.mxu0 0.0
        %2520 = vmatpush1.msra.mxu0 0.0
        %2521 = vmatprep.subr.mxu0 0.0
        %2522 = vmatpush1.msra.mxu0 0.0
        %2523 = vmatprep.subr.mxu0 0.0
        %2524 = vmatpush1.msra.mxu0 0.0
        %2525 = vmatprep.subr.mxu0 0.0
        %2526 = vmatpush1.msra.mxu0 0.0
        %2527 = vmatprep.mubr.f32.mxu0 0.0
        %v2528 = vand.u32 %v2149, 4294901760
        %2529 = vmatmul.mubr.f32.gmra.mrb[0].mxu0 %v2528
        %v2530 = vpop.f32.mrb[0].mxu0
        %v2531 = vadd.f32 %v2288, %v2530
        %v2532 = vpop.f32.mrb[0].mxu0
        %v2533 = vadd.f32 %v2290, %v2532
        %2534 = vmatprep.mubr.f32.mxu0 0.0
        %v2535 = vand.u32 %v2150, 4294901760
        %2536 = vmatmul.mubr.f32.gmra.mrb[0].mxu0 %v2535
        %v2537 = vpop.f32.mrb[0].mxu0
        %v2538 = vadd.f32 %v2299, %v2537
        %v2539 = vpop.f32.mrb[0].mxu0
        %v2540 = vadd.f32 %v2301, %v2539
        %2541 = vdwg.mxu0
        %v2542 = vand.u32 %v2153, 4294901760
        %v2543 = vsub.f32 %v2153, %v2542
        %2544 = vmatprep.subr.mxu0 %v2543
        %v2545 = vand.u32 %v2152, 4294901760
        %v2546 = vsub.f32 %v2152, %v2545
        %2547 = vmatpush1.msra.mxu0 %v2546
        %v2548 = vand.u32 %v2155, 4294901760
        %v2549 = vsub.f32 %v2155, %v2548
        %2550 = vmatprep.subr.mxu0 %v2549
        %v2551 = vand.u32 %v2154, 4294901760
        %v2552 = vsub.f32 %v2154, %v2551
        %2553 = vmatpush1.msra.mxu0 %v2552
        %v2554 = vand.u32 %v2157, 4294901760
        %v2555 = vsub.f32 %v2157, %v2554
        %2556 = vmatprep.subr.mxu0 %v2555
        %v2557 = vand.u32 %v2156, 4294901760
        %v2558 = vsub.f32 %v2156, %v2557
        %2559 = vmatpush1.msra.mxu0 %v2558
        %v2560 = vand.u32 %v2159, 4294901760
        %v2561 = vsub.f32 %v2159, %v2560
        %2562 = vmatprep.subr.mxu0 %v2561
        %v2563 = vand.u32 %v2158, 4294901760
        %v2564 = vsub.f32 %v2158, %v2563
        %2565 = vmatpush1.msra.mxu0 %v2564
        %v2566 = vand.u32 %v2161, 4294901760
        %v2567 = vsub.f32 %v2161, %v2566
        %2568 = vmatprep.subr.mxu0 %v2567
        %v2569 = vand.u32 %v2160, 4294901760
        %v2570 = vsub.f32 %v2160, %v2569
        %2571 = vmatpush1.msra.mxu0 %v2570
        %v2572 = vand.u32 %v2163, 4294901760
        %v2573 = vsub.f32 %v2163, %v2572
        %2574 = vmatprep.subr.mxu0 %v2573
        %v2575 = vand.u32 %v2162, 4294901760
        %v2576 = vsub.f32 %v2162, %v2575
        %2577 = vmatpush1.msra.mxu0 %v2576
        %v2578 = vand.u32 %v2165, 4294901760
        %v2579 = vsub.f32 %v2165, %v2578
        %2580 = vmatprep.subr.mxu0 %v2579
        %v2581 = vand.u32 %v2164, 4294901760
        %v2582 = vsub.f32 %v2164, %v2581
        %2583 = vmatpush1.msra.mxu0 %v2582
        %v2584 = vand.u32 %v2167, 4294901760
        %v2585 = vsub.f32 %v2167, %v2584
        %2586 = vmatprep.subr.mxu0 %v2585
        %v2587 = vand.u32 %v2166, 4294901760
        %v2588 = vsub.f32 %v2166, %v2587
        %2589 = vmatpush1.msra.mxu0 %v2588
        %v2590 = vand.u32 %v2169, 4294901760
        %v2591 = vsub.f32 %v2169, %v2590
        %2592 = vmatprep.subr.mxu0 %v2591
        %v2593 = vand.u32 %v2168, 4294901760
        %v2594 = vsub.f32 %v2168, %v2593
        %2595 = vmatpush1.msra.mxu0 %v2594
        %v2596 = vand.u32 %v2171, 4294901760
        %v2597 = vsub.f32 %v2171, %v2596
        %2598 = vmatprep.subr.mxu0 %v2597
        %v2599 = vand.u32 %v2170, 4294901760
        %v2600 = vsub.f32 %v2170, %v2599
        %2601 = vmatpush1.msra.mxu0 %v2600
        %v2602 = vand.u32 %v2173, 4294901760
        %v2603 = vsub.f32 %v2173, %v2602
        %2604 = vmatprep.subr.mxu0 %v2603
        %v2605 = vand.u32 %v2172, 4294901760
        %v2606 = vsub.f32 %v2172, %v2605
        %2607 = vmatpush1.msra.mxu0 %v2606
        %v2608 = vand.u32 %v2175, 4294901760
        %v2609 = vsub.f32 %v2175, %v2608
        %2610 = vmatprep.subr.mxu0 %v2609
        %v2611 = vand.u32 %v2174, 4294901760
        %v2612 = vsub.f32 %v2174, %v2611
        %2613 = vmatpush1.msra.mxu0 %v2612
        %v2614 = vand.u32 %v2177, 4294901760
        %v2615 = vsub.f32 %v2177, %v2614
        %2616 = vmatprep.subr.mxu0 %v2615
        %v2617 = vand.u32 %v2176, 4294901760
        %v2618 = vsub.f32 %v2176, %v2617
        %2619 = vmatpush1.msra.mxu0 %v2618
        %v2620 = vand.u32 %v2179, 4294901760
        %v2621 = vsub.f32 %v2179, %v2620
        %2622 = vmatprep.subr.mxu0 %v2621
        %v2623 = vand.u32 %v2178, 4294901760
        %v2624 = vsub.f32 %v2178, %v2623
        %2625 = vmatpush1.msra.mxu0 %v2624
        %v2626 = vand.u32 %v2181, 4294901760
        %v2627 = vsub.f32 %v2181, %v2626
        %2628 = vmatprep.subr.mxu0 %v2627
        %v2629 = vand.u32 %v2180, 4294901760
        %v2630 = vsub.f32 %v2180, %v2629
        %2631 = vmatpush1.msra.mxu0 %v2630
        %v2632 = vand.u32 %v2183, 4294901760
        %v2633 = vsub.f32 %v2183, %v2632
        %2634 = vmatprep.subr.mxu0 %v2633
        %v2635 = vand.u32 %v2182, 4294901760
        %v2636 = vsub.f32 %v2182, %v2635
        %2637 = vmatpush1.msra.mxu0 %v2636
        %2638 = vmatprep.subr.mxu0 0.0
        %2639 = vmatpush1.msra.mxu0 0.0
        %2640 = vmatprep.subr.mxu0 0.0
        %2641 = vmatpush1.msra.mxu0 0.0
        %2642 = vmatprep.subr.mxu0 0.0
        %2643 = vmatpush1.msra.mxu0 0.0
        %2644 = vmatprep.subr.mxu0 0.0
        %2645 = vmatpush1.msra.mxu0 0.0
        %2646 = vmatprep.subr.mxu0 0.0
        %2647 = vmatpush1.msra.mxu0 0.0
        %2648 = vmatprep.subr.mxu0 0.0
        %2649 = vmatpush1.msra.mxu0 0.0
        %2650 = vmatprep.subr.mxu0 0.0
        %2651 = vmatpush1.msra.mxu0 0.0
        %2652 = vmatprep.subr.mxu0 0.0
        %2653 = vmatpush1.msra.mxu0 0.0
        %2654 = vmatprep.subr.mxu0 0.0
        %2655 = vmatpush1.msra.mxu0 0.0
        %2656 = vmatprep.subr.mxu0 0.0
        %2657 = vmatpush1.msra.mxu0 0.0
        %2658 = vmatprep.subr.mxu0 0.0
        %2659 = vmatpush1.msra.mxu0 0.0
        %2660 = vmatprep.subr.mxu0 0.0
        %2661 = vmatpush1.msra.mxu0 0.0
        %2662 = vmatprep.subr.mxu0 0.0
        %2663 = vmatpush1.msra.mxu0 0.0
        %2664 = vmatprep.subr.mxu0 0.0
        %2665 = vmatpush1.msra.mxu0 0.0
        %2666 = vmatprep.subr.mxu0 0.0
        %2667 = vmatpush1.msra.mxu0 0.0
        %2668 = vmatprep.subr.mxu0 0.0
        %2669 = vmatpush1.msra.mxu0 0.0
        %2670 = vmatprep.mubr.f32.mxu0 0.0
        %v2671 = vand.u32 %v2149, 4294901760
        %v2672 = vsub.f32 %v2149, %v2671
        %2673 = vmatmul.mubr.f32.gmra.mrb[0].mxu0 %v2672
        %v2674 = vpop.f32.mrb[0].mxu0
        %v2675 = vadd.f32 %v2531, %v2674
        %v2676 = vpop.f32.mrb[0].mxu0
        %v2677 = vadd.f32 %v2533, %v2676
        %2678 = vmatprep.mubr.f32.mxu0 0.0
        %v2679 = vand.u32 %v2150, 4294901760
        %v2680 = vsub.f32 %v2150, %v2679
        %2681 = vmatmul.mubr.f32.gmra.mrb[0].mxu0 %v2680
        %v2682 = vpop.f32.mrb[0].mxu0
        %v2683 = vadd.f32 %v2538, %v2682
        %v2684 = vpop.f32.mrb[0].mxu0
        %v2685 = vadd.f32 %v2540, %v2684
        %2686 = vdwg.mxu0
        %v2687 = vand.u32 %v2153, 4294901760
        %2688 = vmatprep.subr.mxu0 %v2687
        %v2689 = vand.u32 %v2152, 4294901760
        %2690 = vmatpush1.msra.mxu0 %v2689
        %v2691 = vand.u32 %v2155, 4294901760
        %2692 = vmatprep.subr.mxu0 %v2691
        %v2693 = vand.u32 %v2154, 4294901760
        %2694 = vmatpush1.msra.mxu0 %v2693
        %v2695 = vand.u32 %v2157, 4294901760
        %2696 = vmatprep.subr.mxu0 %v2695
        %v2697 = vand.u32 %v2156, 4294901760
        %2698 = vmatpush1.msra.mxu0 %v2697
        %v2699 = vand.u32 %v2159, 4294901760
        %2700 = vmatprep.subr.mxu0 %v2699
        %v2701 = vand.u32 %v2158, 4294901760
        %2702 = vmatpush1.msra.mxu0 %v2701
        %v2703 = vand.u32 %v2161, 4294901760
        %2704 = vmatprep.subr.mxu0 %v2703
        %v2705 = vand.u32 %v2160, 4294901760
        %2706 = vmatpush1.msra.mxu0 %v2705
        %v2707 = vand.u32 %v2163, 4294901760
        %2708 = vmatprep.subr.mxu0 %v2707
        %v2709 = vand.u32 %v2162, 4294901760
        %2710 = vmatpush1.msra.mxu0 %v2709
        %v2711 = vand.u32 %v2165, 4294901760
        %2712 = vmatprep.subr.mxu0 %v2711
        %v2713 = vand.u32 %v2164, 4294901760
        %2714 = vmatpush1.msra.mxu0 %v2713
        %v2715 = vand.u32 %v2167, 4294901760
        %2716 = vmatprep.subr.mxu0 %v2715
        %v2717 = vand.u32 %v2166, 4294901760
        %2718 = vmatpush1.msra.mxu0 %v2717
        %v2719 = vand.u32 %v2169, 4294901760
        %2720 = vmatprep.subr.mxu0 %v2719
        %v2721 = vand.u32 %v2168, 4294901760
        %2722 = vmatpush1.msra.mxu0 %v2721
        %v2723 = vand.u32 %v2171, 4294901760
        %2724 = vmatprep.subr.mxu0 %v2723
        %v2725 = vand.u32 %v2170, 4294901760
        %2726 = vmatpush1.msra.mxu0 %v2725
        %v2727 = vand.u32 %v2173, 4294901760
        %2728 = vmatprep.subr.mxu0 %v2727
        %v2729 = vand.u32 %v2172, 4294901760
        %2730 = vmatpush1.msra.mxu0 %v2729
        %v2731 = vand.u32 %v2175, 4294901760
        %2732 = vmatprep.subr.mxu0 %v2731
        %v2733 = vand.u32 %v2174, 4294901760
        %2734 = vmatpush1.msra.mxu0 %v2733
        %v2735 = vand.u32 %v2177, 4294901760
        %2736 = vmatprep.subr.mxu0 %v2735
        %v2737 = vand.u32 %v2176, 4294901760
        %2738 = vmatpush1.msra.mxu0 %v2737
        %v2739 = vand.u32 %v2179, 4294901760
        %2740 = vmatprep.subr.mxu0 %v2739
        %v2741 = vand.u32 %v2178, 4294901760
        %2742 = vmatpush1.msra.mxu0 %v2741
        %v2743 = vand.u32 %v2181, 4294901760
        %2744 = vmatprep.subr.mxu0 %v2743
        %v2745 = vand.u32 %v2180, 4294901760
        %2746 = vmatpush1.msra.mxu0 %v2745
        %v2747 = vand.u32 %v2183, 4294901760
        %2748 = vmatprep.subr.mxu0 %v2747
        %v2749 = vand.u32 %v2182, 4294901760
        %2750 = vmatpush1.msra.mxu0 %v2749
        %2751 = vmatprep.subr.mxu0 0.0
        %2752 = vmatpush1.msra.mxu0 0.0
        %2753 = vmatprep.subr.mxu0 0.0
        %2754 = vmatpush1.msra.mxu0 0.0
        %2755 = vmatprep.subr.mxu0 0.0
        %2756 = vmatpush1.msra.mxu0 0.0
        %2757 = vmatprep.subr.mxu0 0.0
        %2758 = vmatpush1.msra.mxu0 0.0
        %2759 = vmatprep.subr.mxu0 0.0
        %2760 = vmatpush1.msra.mxu0 0.0
        %2761 = vmatprep.subr.mxu0 0.0
        %2762 = vmatpush1.msra.mxu0 0.0
        %2763 = vmatprep.subr.mxu0 0.0
        %2764 = vmatpush1.msra.mxu0 0.0
        %2765 = vmatprep.subr.mxu0 0.0
        %2766 = vmatpush1.msra.mxu0 0.0
        %2767 = vmatprep.subr.mxu0 0.0
        %2768 = vmatpush1.msra.mxu0 0.0
        %2769 = vmatprep.subr.mxu0 0.0
        %2770 = vmatpush1.msra.mxu0 0.0
        %2771 = vmatprep.subr.mxu0 0.0
        %2772 = vmatpush1.msra.mxu0 0.0
        %2773 = vmatprep.subr.mxu0 0.0
        %2774 = vmatpush1.msra.mxu0 0.0
        %2775 = vmatprep.subr.mxu0 0.0
        %2776 = vmatpush1.msra.mxu0 0.0
        %2777 = vmatprep.subr.mxu0 0.0
        %2778 = vmatpush1.msra.mxu0 0.0
        %2779 = vmatprep.subr.mxu0 0.0
        %2780 = vmatpush1.msra.mxu0 0.0
        %2781 = vmatprep.subr.mxu0 0.0
        %2782 = vmatpush1.msra.mxu0 0.0
        %2783 = vmatprep.mubr.f32.mxu0 0.0
        %v2784 = vand.u32 %v2149, 4294901760
        %v2785 = vsub.f32 %v2149, %v2784
        %v2786 = vand.u32 %v2785, 4294901760
        %2787 = vmatmul.mubr.f32.gmra.mrb[0].mxu0 %v2786
        %v2788 = vpop.f32.mrb[0].mxu0
        %v2789 = vadd.f32 %v2675, %v2788
        %v2790 = vpop.f32.mrb[0].mxu0
        %v2791 = vadd.f32 %v2677, %v2790
        %2792 = vmatprep.mubr.f32.mxu0 0.0
        %v2793 = vand.u32 %v2150, 4294901760
        %v2794 = vsub.f32 %v2150, %v2793
        %v2795 = vand.u32 %v2794, 4294901760
        %2796 = vmatmul.mubr.f32.gmra.mrb[0].mxu0 %v2795
        %v2797 = vpop.f32.mrb[0].mxu0
        %v2798 = vadd.f32 %v2683, %v2797
        %v2799 = vpop.f32.mrb[0].mxu0
        %v2800 = vadd.f32 %v2685, %v2799
        %2801 = vdwg.mxu0
        %v2802 = vand.u32 %v2153, 4294901760
        %v2803 = vsub.f32 %v2153, %v2802
        %v2804 = vand.u32 %v2803, 4294901760
        %2805 = vmatprep.subr.mxu0 %v2804
        %v2806 = vand.u32 %v2152, 4294901760
        %v2807 = vsub.f32 %v2152, %v2806
        %v2808 = vand.u32 %v2807, 4294901760
        %2809 = vmatpush1.msra.mxu0 %v2808
        %v2810 = vand.u32 %v2155, 4294901760
        %v2811 = vsub.f32 %v2155, %v2810
        %v2812 = vand.u32 %v2811, 4294901760
        %2813 = vmatprep.subr.mxu0 %v2812
        %v2814 = vand.u32 %v2154, 4294901760
        %v2815 = vsub.f32 %v2154, %v2814
        %v2816 = vand.u32 %v2815, 4294901760
        %2817 = vmatpush1.msra.mxu0 %v2816
        %v2818 = vand.u32 %v2157, 4294901760
        %v2819 = vsub.f32 %v2157, %v2818
        %v2820 = vand.u32 %v2819, 4294901760
        %2821 = vmatprep.subr.mxu0 %v2820
        %v2822 = vand.u32 %v2156, 4294901760
        %v2823 = vsub.f32 %v2156, %v2822
        %v2824 = vand.u32 %v2823, 4294901760
        %2825 = vmatpush1.msra.mxu0 %v2824
        %v2826 = vand.u32 %v2159, 4294901760
        %v2827 = vsub.f32 %v2159, %v2826
        %v2828 = vand.u32 %v2827, 4294901760
        %2829 = vmatprep.subr.mxu0 %v2828
        %v2830 = vand.u32 %v2158, 4294901760
        %v2831 = vsub.f32 %v2158, %v2830
        %v2832 = vand.u32 %v2831, 4294901760
        %2833 = vmatpush1.msra.mxu0 %v2832
        %v2834 = vand.u32 %v2161, 4294901760
        %v2835 = vsub.f32 %v2161, %v2834
        %v2836 = vand.u32 %v2835, 4294901760
        %2837 = vmatprep.subr.mxu0 %v2836
        %v2838 = vand.u32 %v2160, 4294901760
        %v2839 = vsub.f32 %v2160, %v2838
        %v2840 = vand.u32 %v2839, 4294901760
        %2841 = vmatpush1.msra.mxu0 %v2840
        %v2842 = vand.u32 %v2163, 4294901760
        %v2843 = vsub.f32 %v2163, %v2842
        %v2844 = vand.u32 %v2843, 4294901760
        %2845 = vmatprep.subr.mxu0 %v2844
        %v2846 = vand.u32 %v2162, 4294901760
        %v2847 = vsub.f32 %v2162, %v2846
        %v2848 = vand.u32 %v2847, 4294901760
        %2849 = vmatpush1.msra.mxu0 %v2848
        %v2850 = vand.u32 %v2165, 4294901760
        %v2851 = vsub.f32 %v2165, %v2850
        %v2852 = vand.u32 %v2851, 4294901760
        %2853 = vmatprep.subr.mxu0 %v2852
        %v2854 = vand.u32 %v2164, 4294901760
        %v2855 = vsub.f32 %v2164, %v2854
        %v2856 = vand.u32 %v2855, 4294901760
        %2857 = vmatpush1.msra.mxu0 %v2856
        %v2858 = vand.u32 %v2167, 4294901760
        %v2859 = vsub.f32 %v2167, %v2858
        %v2860 = vand.u32 %v2859, 4294901760
        %2861 = vmatprep.subr.mxu0 %v2860
        %v2862 = vand.u32 %v2166, 4294901760
        %v2863 = vsub.f32 %v2166, %v2862
        %v2864 = vand.u32 %v2863, 4294901760
        %2865 = vmatpush1.msra.mxu0 %v2864
        %v2866 = vand.u32 %v2169, 4294901760
        %v2867 = vsub.f32 %v2169, %v2866
        %v2868 = vand.u32 %v2867, 4294901760
        %2869 = vmatprep.subr.mxu0 %v2868
        %v2870 = vand.u32 %v2168, 4294901760
        %v2871 = vsub.f32 %v2168, %v2870
        %v2872 = vand.u32 %v2871, 4294901760
        %2873 = vmatpush1.msra.mxu0 %v2872
        %v2874 = vand.u32 %v2171, 4294901760
        %v2875 = vsub.f32 %v2171, %v2874
        %v2876 = vand.u32 %v2875, 4294901760
        %2877 = vmatprep.subr.mxu0 %v2876
        %v2878 = vand.u32 %v2170, 4294901760
        %v2879 = vsub.f32 %v2170, %v2878
        %v2880 = vand.u32 %v2879, 4294901760
        %2881 = vmatpush1.msra.mxu0 %v2880
        %v2882 = vand.u32 %v2173, 4294901760
        %v2883 = vsub.f32 %v2173, %v2882
        %v2884 = vand.u32 %v2883, 4294901760
        %2885 = vmatprep.subr.mxu0 %v2884
        %v2886 = vand.u32 %v2172, 4294901760
        %v2887 = vsub.f32 %v2172, %v2886
        %v2888 = vand.u32 %v2887, 4294901760
        %2889 = vmatpush1.msra.mxu0 %v2888
        %v2890 = vand.u32 %v2175, 4294901760
        %v2891 = vsub.f32 %v2175, %v2890
        %v2892 = vand.u32 %v2891, 4294901760
        %2893 = vmatprep.subr.mxu0 %v2892
        %v2894 = vand.u32 %v2174, 4294901760
        %v2895 = vsub.f32 %v2174, %v2894
        %v2896 = vand.u32 %v2895, 4294901760
        %2897 = vmatpush1.msra.mxu0 %v2896
        %v2898 = vand.u32 %v2177, 4294901760
        %v2899 = vsub.f32 %v2177, %v2898
        %v2900 = vand.u32 %v2899, 4294901760
        %2901 = vmatprep.subr.mxu0 %v2900
        %v2902 = vand.u32 %v2176, 4294901760
        %v2903 = vsub.f32 %v2176, %v2902
        %v2904 = vand.u32 %v2903, 4294901760
        %2905 = vmatpush1.msra.mxu0 %v2904
        %v2906 = vand.u32 %v2179, 4294901760
        %v2907 = vsub.f32 %v2179, %v2906
        %v2908 = vand.u32 %v2907, 4294901760
        %2909 = vmatprep.subr.mxu0 %v2908
        %v2910 = vand.u32 %v2178, 4294901760
        %v2911 = vsub.f32 %v2178, %v2910
        %v2912 = vand.u32 %v2911, 4294901760
        %2913 = vmatpush1.msra.mxu0 %v2912
        %v2914 = vand.u32 %v2181, 4294901760
        %v2915 = vsub.f32 %v2181, %v2914
        %v2916 = vand.u32 %v2915, 4294901760
        %2917 = vmatprep.subr.mxu0 %v2916
        %v2918 = vand.u32 %v2180, 4294901760
        %v2919 = vsub.f32 %v2180, %v2918
        %v2920 = vand.u32 %v2919, 4294901760
        %2921 = vmatpush1.msra.mxu0 %v2920
        %v2922 = vand.u32 %v2183, 4294901760
        %v2923 = vsub.f32 %v2183, %v2922
        %v2924 = vand.u32 %v2923, 4294901760
        %2925 = vmatprep.subr.mxu0 %v2924
        %v2926 = vand.u32 %v2182, 4294901760
        %v2927 = vsub.f32 %v2182, %v2926
        %v2928 = vand.u32 %v2927, 4294901760
        %2929 = vmatpush1.msra.mxu0 %v2928
        %2930 = vmatprep.subr.mxu0 0.0
        %2931 = vmatpush1.msra.mxu0 0.0
        %2932 = vmatprep.subr.mxu0 0.0
        %2933 = vmatpush1.msra.mxu0 0.0
        %2934 = vmatprep.subr.mxu0 0.0
        %2935 = vmatpush1.msra.mxu0 0.0
        %2936 = vmatprep.subr.mxu0 0.0
        %2937 = vmatpush1.msra.mxu0 0.0
        %2938 = vmatprep.subr.mxu0 0.0
        %2939 = vmatpush1.msra.mxu0 0.0
        %2940 = vmatprep.subr.mxu0 0.0
        %2941 = vmatpush1.msra.mxu0 0.0
        %2942 = vmatprep.subr.mxu0 0.0
        %2943 = vmatpush1.msra.mxu0 0.0
        %2944 = vmatprep.subr.mxu0 0.0
        %2945 = vmatpush1.msra.mxu0 0.0
        %2946 = vmatprep.subr.mxu0 0.0
        %2947 = vmatpush1.msra.mxu0 0.0
        %2948 = vmatprep.subr.mxu0 0.0
        %2949 = vmatpush1.msra.mxu0 0.0
        %2950 = vmatprep.subr.mxu0 0.0
        %2951 = vmatpush1.msra.mxu0 0.0
        %2952 = vmatprep.subr.mxu0 0.0
        %2953 = vmatpush1.msra.mxu0 0.0
        %2954 = vmatprep.subr.mxu0 0.0
        %2955 = vmatpush1.msra.mxu0 0.0
        %2956 = vmatprep.subr.mxu0 0.0
        %2957 = vmatpush1.msra.mxu0 0.0
        %2958 = vmatprep.subr.mxu0 0.0
        %2959 = vmatpush1.msra.mxu0 0.0
        %2960 = vmatprep.subr.mxu0 0.0
        %2961 = vmatpush1.msra.mxu0 0.0
        %2962 = vmatprep.mubr.f32.mxu0 0.0
        %v2963 = vand.u32 %v2149, 4294901760
        %2964 = vmatmul.mubr.f32.gmra.mrb[0].mxu0 %v2963
        %v2965 = vpop.f32.mrb[0].mxu0
        %v2966 = vadd.f32 %v2789, %v2965
        %v2967 = vpop.f32.mrb[0].mxu0
        %v2968 = vadd.f32 %v2791, %v2967
        %2969 = vmatprep.mubr.f32.mxu0 0.0
        %v2970 = vand.u32 %v2150, 4294901760
        %2971 = vmatmul.mubr.f32.gmra.mrb[0].mxu0 %v2970
        %v2972 = vpop.f32.mrb[0].mxu0
        %v2973 = vadd.f32 %v2798, %v2972
        %v2974 = vpop.f32.mrb[0].mxu0
        %v2975 = vadd.f32 %v2800, %v2974
        %2976 = vdwg.mxu0
        %v2977 = vand.u32 %v2153, 4294901760
        %2978 = vmatprep.subr.mxu0 %v2977
        %v2979 = vand.u32 %v2152, 4294901760
        %2980 = vmatpush1.msra.mxu0 %v2979
        %v2981 = vand.u32 %v2155, 4294901760
        %2982 = vmatprep.subr.mxu0 %v2981
        %v2983 = vand.u32 %v2154, 4294901760
        %2984 = vmatpush1.msra.mxu0 %v2983
        %v2985 = vand.u32 %v2157, 4294901760
        %2986 = vmatprep.subr.mxu0 %v2985
        %v2987 = vand.u32 %v2156, 4294901760
        %2988 = vmatpush1.msra.mxu0 %v2987
        %v2989 = vand.u32 %v2159, 4294901760
        %2990 = vmatprep.subr.mxu0 %v2989
        %v2991 = vand.u32 %v2158, 4294901760
        %2992 = vmatpush1.msra.mxu0 %v2991
        %v2993 = vand.u32 %v2161, 4294901760
        %2994 = vmatprep.subr.mxu0 %v2993
        %v2995 = vand.u32 %v2160, 4294901760
        %2996 = vmatpush1.msra.mxu0 %v2995
        %v2997 = vand.u32 %v2163, 4294901760
        %2998 = vmatprep.subr.mxu0 %v2997
        %v2999 = vand.u32 %v2162, 4294901760
        %3000 = vmatpush1.msra.mxu0 %v2999
        %v3001 = vand.u32 %v2165, 4294901760
        %3002 = vmatprep.subr.mxu0 %v3001
        %v3003 = vand.u32 %v2164, 4294901760
        %3004 = vmatpush1.msra.mxu0 %v3003
        %v3005 = vand.u32 %v2167, 4294901760
        %3006 = vmatprep.subr.mxu0 %v3005
        %v3007 = vand.u32 %v2166, 4294901760
        %3008 = vmatpush1.msra.mxu0 %v3007
        %v3009 = vand.u32 %v2169, 4294901760
        %3010 = vmatprep.subr.mxu0 %v3009
        %v3011 = vand.u32 %v2168, 4294901760
        %3012 = vmatpush1.msra.mxu0 %v3011
        %v3013 = vand.u32 %v2171, 4294901760
        %3014 = vmatprep.subr.mxu0 %v3013
        %v3015 = vand.u32 %v2170, 4294901760
        %3016 = vmatpush1.msra.mxu0 %v3015
        %v3017 = vand.u32 %v2173, 4294901760
        %3018 = vmatprep.subr.mxu0 %v3017
        %v3019 = vand.u32 %v2172, 4294901760
        %3020 = vmatpush1.msra.mxu0 %v3019
        %v3021 = vand.u32 %v2175, 4294901760
        %3022 = vmatprep.subr.mxu0 %v3021
        %v3023 = vand.u32 %v2174, 4294901760
        %3024 = vmatpush1.msra.mxu0 %v3023
        %v3025 = vand.u32 %v2177, 4294901760
        %3026 = vmatprep.subr.mxu0 %v3025
        %v3027 = vand.u32 %v2176, 4294901760
        %3028 = vmatpush1.msra.mxu0 %v3027
        %v3029 = vand.u32 %v2179, 4294901760
        %3030 = vmatprep.subr.mxu0 %v3029
        %v3031 = vand.u32 %v2178, 4294901760
        %3032 = vmatpush1.msra.mxu0 %v3031
        %v3033 = vand.u32 %v2181, 4294901760
        %3034 = vmatprep.subr.mxu0 %v3033
        %v3035 = vand.u32 %v2180, 4294901760
        %3036 = vmatpush1.msra.mxu0 %v3035
        %v3037 = vand.u32 %v2183, 4294901760
        %3038 = vmatprep.subr.mxu0 %v3037
        %v3039 = vand.u32 %v2182, 4294901760
        %3040 = vmatpush1.msra.mxu0 %v3039
        %3041 = vmatprep.subr.mxu0 0.0
        %3042 = vmatpush1.msra.mxu0 0.0
        %3043 = vmatprep.subr.mxu0 0.0
        %3044 = vmatpush1.msra.mxu0 0.0
        %3045 = vmatprep.subr.mxu0 0.0
        %3046 = vmatpush1.msra.mxu0 0.0
        %3047 = vmatprep.subr.mxu0 0.0
        %3048 = vmatpush1.msra.mxu0 0.0
        %3049 = vmatprep.subr.mxu0 0.0
        %3050 = vmatpush1.msra.mxu0 0.0
        %3051 = vmatprep.subr.mxu0 0.0
        %3052 = vmatpush1.msra.mxu0 0.0
        %3053 = vmatprep.subr.mxu0 0.0
        %3054 = vmatpush1.msra.mxu0 0.0
        %3055 = vmatprep.subr.mxu0 0.0
        %3056 = vmatpush1.msra.mxu0 0.0
        %3057 = vmatprep.subr.mxu0 0.0
        %3058 = vmatpush1.msra.mxu0 0.0
        %3059 = vmatprep.subr.mxu0 0.0
        %3060 = vmatpush1.msra.mxu0 0.0
        %3061 = vmatprep.subr.mxu0 0.0
        %3062 = vmatpush1.msra.mxu0 0.0
        %3063 = vmatprep.subr.mxu0 0.0
        %3064 = vmatpush1.msra.mxu0 0.0
        %3065 = vmatprep.subr.mxu0 0.0
        %3066 = vmatpush1.msra.mxu0 0.0
        %3067 = vmatprep.subr.mxu0 0.0
        %3068 = vmatpush1.msra.mxu0 0.0
        %3069 = vmatprep.subr.mxu0 0.0
        %3070 = vmatpush1.msra.mxu0 0.0
        %3071 = vmatprep.subr.mxu0 0.0
        %3072 = vmatpush1.msra.mxu0 0.0
        %3073 = vmatprep.mubr.f32.mxu0 0.0
        %v3074 = vand.u32 %v2149, 4294901760
        %3075 = vmatmul.mubr.f32.gmra.mrb[0].mxu0 %v3074
        %v3076 = vpop.f32.mrb[0].mxu0
        %v3077 = vadd.f32 %v2966, %v3076
        %v3078 = vpop.f32.mrb[0].mxu0
        %v3079 = vadd.f32 %v2968, %v3078
        %3080 = vmatprep.mubr.f32.mxu0 0.0
        %v3081 = vand.u32 %v2150, 4294901760
        %3082 = vmatmul.mubr.f32.gmra.mrb[0].mxu0 %v3081
        %v3083 = vpop.f32.mrb[0].mxu0
        %v3084 = vadd.f32 %v2973, %v3083
        %v3085 = vpop.f32.mrb[0].mxu0
        %v3086 = vadd.f32 %v2975, %v3085
        %3087 = vdwg.mxu0
        %v3088 = vadd.f32 %v2138, %v3077
        %v3089 = vadd.f32 %v2140, %v3079
        %v3090 = vadd.f32 %v2145, %v3084
        %v3091 = vadd.f32 %v2147, %v3086
        %v3092 = vld [vmem:[%s2] sm:$0x3]
        %v3094 = vlaneseq
        %v3095 = vshrl.u32 %v3094, 7
        %v3096 = vsub.s32 0, %v3095
        %v3097 = vrot.slane %v3092, %v3096
        %v3098 = vlaneseq
        %v3099 = vshrl.u32 %v3098, 7
        %v3100 = vsub.s32 1, %v3099
        %v3101 = vrot.slane %v3092, %v3100
        %v3104 = vadd.f32 %v3088, %v3097
        %v3105 = vadd.f32 %v3089, %v3101
        %v3106 = vadd.f32 %v3090, %v3097
        %v3107 = vadd.f32 %v3091, %v3101
        %v3108 = vtanh.pop %v3104
        %v3109 = vtanh.pop %v3106
        %v3110 = vxor.u32 %v3105, 2147483648
        %v3111 = vxor.u32 %v3107, 2147483648
        %v3112 = vmul.f32 %v3110, 1.442695
        %v3113 = vpow.pop %v3112
        %v3114 = vmul.f32 %v3111, 1.442695
        %v3115 = vpow.pop %v3114
        %v3116 = vadd.f32 %v3113, 1.0
        %v3117 = vadd.f32 %v3115, 1.0
        %v3118 = vrcp.pop %v3116
        %v3119 = vmul.f32 1.0, %v3118
        %v3120 = vrcp.pop %v3117
        %v3121 = vmul.f32 1.0, %v3120
        %v3122 = vmul.f32 %v3108, %v3119
        %v3123 = vmul.f32 %v3109, %v3121
        %v3124 = vld [vmem:[#allocation8] sm:$0xff]
        %v3125 = vld [vmem:[#allocation8 + $0x8] sm:$0xff]
        %v3126 = vld [vmem:[#allocation8 + $0x10] sm:$0xff]
        %v3127 = vld [vmem:[#allocation8 + $0x18] sm:$0xff]
        %v3128 = vld [vmem:[#allocation8 + $0x20] sm:$0xff]
        %v3129 = vld [vmem:[#allocation8 + $0x28] sm:$0xff]
        %v3130 = vld [vmem:[#allocation8 + $0x30] sm:$0xff]
        %v3131 = vld [vmem:[#allocation8 + $0x38] sm:$0xff]
        %v3132 = vld [vmem:[#allocation8 + $0x40] sm:$0xff]
        %v3133 = vld [vmem:[#allocation8 + $0x48] sm:$0xff]
        %v3134 = vld [vmem:[#allocation8 + $0x50] sm:$0xff]
        %v3135 = vld [vmem:[#allocation8 + $0x58] sm:$0xff]
        %v3136 = vld [vmem:[#allocation8 + $0x60] sm:$0xff]
        %v3137 = vld [vmem:[#allocation8 + $0x68] sm:$0xff]
        %v3138 = vld [vmem:[#allocation8 + $0x70] sm:$0xff]
        %v3139 = vld [vmem:[#allocation8 + $0x78] sm:$0xff]
        %v3140 = vld [vmem:[#allocation8 + $0x80] sm:$0xff]
        %v3141 = vld [vmem:[#allocation8 + $0x88] sm:$0xff]
        %v3142 = vld [vmem:[#allocation8 + $0x90] sm:$0xff]
        %v3143 = vld [vmem:[#allocation8 + $0x98] sm:$0xff]
        %v3144 = vld [vmem:[#allocation8 + $0xa0] sm:$0xff]
        %v3145 = vld [vmem:[#allocation8 + $0xa8] sm:$0xff]
        %v3146 = vld [vmem:[#allocation8 + $0xb0] sm:$0xff]
        %v3147 = vld [vmem:[#allocation8 + $0xb8] sm:$0xff]
        %v3148 = vld [vmem:[#allocation8 + $0xc0] sm:$0xff]
        %v3149 = vld [vmem:[#allocation8 + $0xc8] sm:$0xff]
        %v3150 = vld [vmem:[#allocation8 + $0xd0] sm:$0xff]
        %v3151 = vld [vmem:[#allocation8 + $0xd8] sm:$0xff]
        %v3152 = vld [vmem:[#allocation8 + $0xe0] sm:$0xff]
        %v3153 = vld [vmem:[#allocation8 + $0xe8] sm:$0xff]
        %v3154 = vld [vmem:[#allocation8 + $0xf0] sm:$0xff]
        %v3155 = vld [vmem:[#allocation8 + $0xf8] sm:$0xff]
        %v3156 = vld [vmem:[%s4] sm:$0x3]
        %v3158 = vlaneseq
        %v3159 = vshrl.u32 %v3158, 7
        %v3160 = vsub.s32 0, %v3159
        %v3161 = vrot.slane %v3156, %v3160
        %v3162 = vlaneseq
        %v3163 = vshrl.u32 %v3162, 7
        %v3164 = vsub.s32 1, %v3163
        %v3165 = vrot.slane %v3156, %v3164
        %v3168 = vand.u32 %v3125, 4294901760
        %3169 = vmatprep.subr.mxu0 %v3168
        %v3170 = vand.u32 %v3124, 4294901760
        %3171 = vmatpush1.msra.mxu0 %v3170
        %v3172 = vand.u32 %v3127, 4294901760
        %3173 = vmatprep.subr.mxu0 %v3172
        %v3174 = vand.u32 %v3126, 4294901760
        %3175 = vmatpush1.msra.mxu0 %v3174
        %v3176 = vand.u32 %v3129, 4294901760
        %3177 = vmatprep.subr.mxu0 %v3176
        %v3178 = vand.u32 %v3128, 4294901760
        %3179 = vmatpush1.msra.mxu0 %v3178
        %v3180 = vand.u32 %v3131, 4294901760
        %3181 = vmatprep.subr.mxu0 %v3180
        %v3182 = vand.u32 %v3130, 4294901760
        %3183 = vmatpush1.msra.mxu0 %v3182
        %v3184 = vand.u32 %v3133, 4294901760
        %3185 = vmatprep.subr.mxu0 %v3184
        %v3186 = vand.u32 %v3132, 4294901760
        %3187 = vmatpush1.msra.mxu0 %v3186
        %v3188 = vand.u32 %v3135, 4294901760
        %3189 = vmatprep.subr.mxu0 %v3188
        %v3190 = vand.u32 %v3134, 4294901760
        %3191 = vmatpush1.msra.mxu0 %v3190
        %v3192 = vand.u32 %v3137, 4294901760
        %3193 = vmatprep.subr.mxu0 %v3192
        %v3194 = vand.u32 %v3136, 4294901760
        %3195 = vmatpush1.msra.mxu0 %v3194
        %v3196 = vand.u32 %v3139, 4294901760
        %3197 = vmatprep.subr.mxu0 %v3196
        %v3198 = vand.u32 %v3138, 4294901760
        %3199 = vmatpush1.msra.mxu0 %v3198
        %v3200 = vand.u32 %v3141, 4294901760
        %3201 = vmatprep.subr.mxu0 %v3200
        %v3202 = vand.u32 %v3140, 4294901760
        %3203 = vmatpush1.msra.mxu0 %v3202
        %v3204 = vand.u32 %v3143, 4294901760
        %3205 = vmatprep.subr.mxu0 %v3204
        %v3206 = vand.u32 %v3142, 4294901760
        %3207 = vmatpush1.msra.mxu0 %v3206
        %v3208 = vand.u32 %v3145, 4294901760
        %3209 = vmatprep.subr.mxu0 %v3208
        %v3210 = vand.u32 %v3144, 4294901760
        %3211 = vmatpush1.msra.mxu0 %v3210
        %v3212 = vand.u32 %v3147, 4294901760
        %3213 = vmatprep.subr.mxu0 %v3212
        %v3214 = vand.u32 %v3146, 4294901760
        %3215 = vmatpush1.msra.mxu0 %v3214
        %v3216 = vand.u32 %v3149, 4294901760
        %3217 = vmatprep.subr.mxu0 %v3216
        %v3218 = vand.u32 %v3148, 4294901760
        %3219 = vmatpush1.msra.mxu0 %v3218
        %v3220 = vand.u32 %v3151, 4294901760
        %3221 = vmatprep.subr.mxu0 %v3220
        %v3222 = vand.u32 %v3150, 4294901760
        %3223 = vmatpush1.msra.mxu0 %v3222
        %v3224 = vand.u32 %v3153, 4294901760
        %3225 = vmatprep.subr.mxu0 %v3224
        %v3226 = vand.u32 %v3152, 4294901760
        %3227 = vmatpush1.msra.mxu0 %v3226
        %v3228 = vand.u32 %v3155, 4294901760
        %3229 = vmatprep.subr.mxu0 %v3228
        %v3230 = vand.u32 %v3154, 4294901760
        %3231 = vmatpush1.msra.mxu0 %v3230
        %3232 = vmatprep.subr.mxu0 0.0
        %3233 = vmatpush1.msra.mxu0 0.0
        %3234 = vmatprep.subr.mxu0 0.0
        %3235 = vmatpush1.msra.mxu0 0.0
        %3236 = vmatprep.subr.mxu0 0.0
        %3237 = vmatpush1.msra.mxu0 0.0
        %3238 = vmatprep.subr.mxu0 0.0
        %3239 = vmatpush1.msra.mxu0 0.0
        %3240 = vmatprep.subr.mxu0 0.0
        %3241 = vmatpush1.msra.mxu0 0.0
        %3242 = vmatprep.subr.mxu0 0.0
        %3243 = vmatpush1.msra.mxu0 0.0
        %3244 = vmatprep.subr.mxu0 0.0
        %3245 = vmatpush1.msra.mxu0 0.0
        %3246 = vmatprep.subr.mxu0 0.0
        %3247 = vmatpush1.msra.mxu0 0.0
        %3248 = vmatprep.subr.mxu0 0.0
        %3249 = vmatpush1.msra.mxu0 0.0
        %3250 = vmatprep.subr.mxu0 0.0
        %3251 = vmatpush1.msra.mxu0 0.0
        %3252 = vmatprep.subr.mxu0 0.0
        %3253 = vmatpush1.msra.mxu0 0.0
        %3254 = vmatprep.subr.mxu0 0.0
        %3255 = vmatpush1.msra.mxu0 0.0
        %3256 = vmatprep.subr.mxu0 0.0
        %3257 = vmatpush1.msra.mxu0 0.0
        %3258 = vmatprep.subr.mxu0 0.0
        %3259 = vmatpush1.msra.mxu0 0.0
        %3260 = vmatprep.subr.mxu0 0.0
        %3261 = vmatpush1.msra.mxu0 0.0
        %3262 = vmatprep.subr.mxu0 0.0
        %3263 = vmatpush1.msra.mxu0 0.0
        %3264 = vmatprep.mubr.f32.mxu0 0.0
        %v3265 = vand.u32 %v3122, 4294901760
        %v3266 = vsub.f32 %v3122, %v3265
        %v3267 = vand.u32 %v3266, 4294901760
        %v3268 = vsub.f32 %v3266, %v3267
        %v3269 = vand.u32 %v3268, 4294901760
        %3270 = vmatmul.mubr.f32.gmra.mrb[0].mxu0 %v3269
        %v3271 = vpop.f32.mrb[0].mxu0
        %v3272 = vadd.f32 %v3161, %v3271
        %v3273 = vpop.f32.mrb[0].mxu0
        %3274 = vmatprep.mubr.f32.mxu0 0.0
        %v3275 = vand.u32 %v3123, 4294901760
        %v3276 = vsub.f32 %v3123, %v3275
        %v3277 = vand.u32 %v3276, 4294901760
        %v3278 = vsub.f32 %v3276, %v3277
        %v3279 = vand.u32 %v3278, 4294901760
        %3280 = vmatmul.mubr.f32.gmra.mrb[0].mxu0 %v3279
        %v3281 = vpop.f32.mrb[0].mxu0
        %v3282 = vadd.f32 %v3161, %v3281
        %v3283 = vpop.f32.mrb[0].mxu0
        %v3284 = vadd.f32 %v3165, %v3283
        %3285 = vdwg.mxu0
        %v3286 = vand.u32 %v3125, 4294901760
        %v3287 = vsub.f32 %v3125, %v3286
        %v3288 = vand.u32 %v3287, 4294901760
        %v3289 = vsub.f32 %v3287, %v3288
        %v3290 = vand.u32 %v3289, 4294901760
        %3291 = vmatprep.subr.mxu0 %v3290
        %v3292 = vand.u32 %v3124, 4294901760
        %v3293 = vsub.f32 %v3124, %v3292
        %v3294 = vand.u32 %v3293, 4294901760
        %v3295 = vsub.f32 %v3293, %v3294
        %v3296 = vand.u32 %v3295, 4294901760
        %3297 = vmatpush1.msra.mxu0 %v3296
        %v3298 = vand.u32 %v3127, 4294901760
        %v3299 = vsub.f32 %v3127, %v3298
        %v3300 = vand.u32 %v3299, 4294901760
        %v3301 = vsub.f32 %v3299, %v3300
        %v3302 = vand.u32 %v3301, 4294901760
        %3303 = vmatprep.subr.mxu0 %v3302
        %v3304 = vand.u32 %v3126, 4294901760
        %v3305 = vsub.f32 %v3126, %v3304
        %v3306 = vand.u32 %v3305, 4294901760
        %v3307 = vsub.f32 %v3305, %v3306
        %v3308 = vand.u32 %v3307, 4294901760
        %3309 = vmatpush1.msra.mxu0 %v3308
        %v3310 = vand.u32 %v3129, 4294901760
        %v3311 = vsub.f32 %v3129, %v3310
        %v3312 = vand.u32 %v3311, 4294901760
        %v3313 = vsub.f32 %v3311, %v3312
        %v3314 = vand.u32 %v3313, 4294901760
        %3315 = vmatprep.subr.mxu0 %v3314
        %v3316 = vand.u32 %v3128, 4294901760
        %v3317 = vsub.f32 %v3128, %v3316
        %v3318 = vand.u32 %v3317, 4294901760
        %v3319 = vsub.f32 %v3317, %v3318
        %v3320 = vand.u32 %v3319, 4294901760
        %3321 = vmatpush1.msra.mxu0 %v3320
        %v3322 = vand.u32 %v3131, 4294901760
        %v3323 = vsub.f32 %v3131, %v3322
        %v3324 = vand.u32 %v3323, 4294901760
        %v3325 = vsub.f32 %v3323, %v3324
        %v3326 = vand.u32 %v3325, 4294901760
        %3327 = vmatprep.subr.mxu0 %v3326
        %v3328 = vand.u32 %v3130, 4294901760
        %v3329 = vsub.f32 %v3130, %v3328
        %v3330 = vand.u32 %v3329, 4294901760
        %v3331 = vsub.f32 %v3329, %v3330
        %v3332 = vand.u32 %v3331, 4294901760
        %3333 = vmatpush1.msra.mxu0 %v3332
        %v3334 = vand.u32 %v3133, 4294901760
        %v3335 = vsub.f32 %v3133, %v3334
        %v3336 = vand.u32 %v3335, 4294901760
        %v3337 = vsub.f32 %v3335, %v3336
        %v3338 = vand.u32 %v3337, 4294901760
        %3339 = vmatprep.subr.mxu0 %v3338
        %v3340 = vand.u32 %v3132, 4294901760
        %v3341 = vsub.f32 %v3132, %v3340
        %v3342 = vand.u32 %v3341, 4294901760
        %v3343 = vsub.f32 %v3341, %v3342
        %v3344 = vand.u32 %v3343, 4294901760
        %3345 = vmatpush1.msra.mxu0 %v3344
        %v3346 = vand.u32 %v3135, 4294901760
        %v3347 = vsub.f32 %v3135, %v3346
        %v3348 = vand.u32 %v3347, 4294901760
        %v3349 = vsub.f32 %v3347, %v3348
        %v3350 = vand.u32 %v3349, 4294901760
        %3351 = vmatprep.subr.mxu0 %v3350
        %v3352 = vand.u32 %v3134, 4294901760
        %v3353 = vsub.f32 %v3134, %v3352
        %v3354 = vand.u32 %v3353, 4294901760
        %v3355 = vsub.f32 %v3353, %v3354
        %v3356 = vand.u32 %v3355, 4294901760
        %3357 = vmatpush1.msra.mxu0 %v3356
        %v3358 = vand.u32 %v3137, 4294901760
        %v3359 = vsub.f32 %v3137, %v3358
        %v3360 = vand.u32 %v3359, 4294901760
        %v3361 = vsub.f32 %v3359, %v3360
        %v3362 = vand.u32 %v3361, 4294901760
        %3363 = vmatprep.subr.mxu0 %v3362
        %v3364 = vand.u32 %v3136, 4294901760
        %v3365 = vsub.f32 %v3136, %v3364
        %v3366 = vand.u32 %v3365, 4294901760
        %v3367 = vsub.f32 %v3365, %v3366
        %v3368 = vand.u32 %v3367, 4294901760
        %3369 = vmatpush1.msra.mxu0 %v3368
        %v3370 = vand.u32 %v3139, 4294901760
        %v3371 = vsub.f32 %v3139, %v3370
        %v3372 = vand.u32 %v3371, 4294901760
        %v3373 = vsub.f32 %v3371, %v3372
        %v3374 = vand.u32 %v3373, 4294901760
        %3375 = vmatprep.subr.mxu0 %v3374
        %v3376 = vand.u32 %v3138, 4294901760
        %v3377 = vsub.f32 %v3138, %v3376
        %v3378 = vand.u32 %v3377, 4294901760
        %v3379 = vsub.f32 %v3377, %v3378
        %v3380 = vand.u32 %v3379, 4294901760
        %3381 = vmatpush1.msra.mxu0 %v3380
        %v3382 = vand.u32 %v3141, 4294901760
        %v3383 = vsub.f32 %v3141, %v3382
        %v3384 = vand.u32 %v3383, 4294901760
        %v3385 = vsub.f32 %v3383, %v3384
        %v3386 = vand.u32 %v3385, 4294901760
        %3387 = vmatprep.subr.mxu0 %v3386
        %v3388 = vand.u32 %v3140, 4294901760
        %v3389 = vsub.f32 %v3140, %v3388
        %v3390 = vand.u32 %v3389, 4294901760
        %v3391 = vsub.f32 %v3389, %v3390
        %v3392 = vand.u32 %v3391, 4294901760
        %3393 = vmatpush1.msra.mxu0 %v3392
        %v3394 = vand.u32 %v3143, 4294901760
        %v3395 = vsub.f32 %v3143, %v3394
        %v3396 = vand.u32 %v3395, 4294901760
        %v3397 = vsub.f32 %v3395, %v3396
        %v3398 = vand.u32 %v3397, 4294901760
        %3399 = vmatprep.subr.mxu0 %v3398
        %v3400 = vand.u32 %v3142, 4294901760
        %v3401 = vsub.f32 %v3142, %v3400
        %v3402 = vand.u32 %v3401, 4294901760
        %v3403 = vsub.f32 %v3401, %v3402
        %v3404 = vand.u32 %v3403, 4294901760
        %3405 = vmatpush1.msra.mxu0 %v3404
        %v3406 = vand.u32 %v3145, 4294901760
        %v3407 = vsub.f32 %v3145, %v3406
        %v3408 = vand.u32 %v3407, 4294901760
        %v3409 = vsub.f32 %v3407, %v3408
        %v3410 = vand.u32 %v3409, 4294901760
        %3411 = vmatprep.subr.mxu0 %v3410
        %v3412 = vand.u32 %v3144, 4294901760
        %v3413 = vsub.f32 %v3144, %v3412
        %v3414 = vand.u32 %v3413, 4294901760
        %v3415 = vsub.f32 %v3413, %v3414
        %v3416 = vand.u32 %v3415, 4294901760
        %3417 = vmatpush1.msra.mxu0 %v3416
        %v3418 = vand.u32 %v3147, 4294901760
        %v3419 = vsub.f32 %v3147, %v3418
        %v3420 = vand.u32 %v3419, 4294901760
        %v3421 = vsub.f32 %v3419, %v3420
        %v3422 = vand.u32 %v3421, 4294901760
        %3423 = vmatprep.subr.mxu0 %v3422
        %v3424 = vand.u32 %v3146, 4294901760
        %v3425 = vsub.f32 %v3146, %v3424
        %v3426 = vand.u32 %v3425, 4294901760
        %v3427 = vsub.f32 %v3425, %v3426
        %v3428 = vand.u32 %v3427, 4294901760
        %3429 = vmatpush1.msra.mxu0 %v3428
        %v3430 = vand.u32 %v3149, 4294901760
        %v3431 = vsub.f32 %v3149, %v3430
        %v3432 = vand.u32 %v3431, 4294901760
        %v3433 = vsub.f32 %v3431, %v3432
        %v3434 = vand.u32 %v3433, 4294901760
        %3435 = vmatprep.subr.mxu0 %v3434
        %v3436 = vand.u32 %v3148, 4294901760
        %v3437 = vsub.f32 %v3148, %v3436
        %v3438 = vand.u32 %v3437, 4294901760
        %v3439 = vsub.f32 %v3437, %v3438
        %v3440 = vand.u32 %v3439, 4294901760
        %3441 = vmatpush1.msra.mxu0 %v3440
        %v3442 = vand.u32 %v3151, 4294901760
        %v3443 = vsub.f32 %v3151, %v3442
        %v3444 = vand.u32 %v3443, 4294901760
        %v3445 = vsub.f32 %v3443, %v3444
        %v3446 = vand.u32 %v3445, 4294901760
        %3447 = vmatprep.subr.mxu0 %v3446
        %v3448 = vand.u32 %v3150, 4294901760
        %v3449 = vsub.f32 %v3150, %v3448
        %v3450 = vand.u32 %v3449, 4294901760
        %v3451 = vsub.f32 %v3449, %v3450
        %v3452 = vand.u32 %v3451, 4294901760
        %3453 = vmatpush1.msra.mxu0 %v3452
        %v3454 = vand.u32 %v3153, 4294901760
        %v3455 = vsub.f32 %v3153, %v3454
        %v3456 = vand.u32 %v3455, 4294901760
        %v3457 = vsub.f32 %v3455, %v3456
        %v3458 = vand.u32 %v3457, 4294901760
        %3459 = vmatprep.subr.mxu0 %v3458
        %v3460 = vand.u32 %v3152, 4294901760
        %v3461 = vsub.f32 %v3152, %v3460
        %v3462 = vand.u32 %v3461, 4294901760
        %v3463 = vsub.f32 %v3461, %v3462
        %v3464 = vand.u32 %v3463, 4294901760
        %3465 = vmatpush1.msra.mxu0 %v3464
        %v3466 = vand.u32 %v3155, 4294901760
        %v3467 = vsub.f32 %v3155, %v3466
        %v3468 = vand.u32 %v3467, 4294901760
        %v3469 = vsub.f32 %v3467, %v3468
        %v3470 = vand.u32 %v3469, 4294901760
        %3471 = vmatprep.subr.mxu0 %v3470
        %v3472 = vand.u32 %v3154, 4294901760
        %v3473 = vsub.f32 %v3154, %v3472
        %v3474 = vand.u32 %v3473, 4294901760
        %v3475 = vsub.f32 %v3473, %v3474
        %v3476 = vand.u32 %v3475, 4294901760
        %3477 = vmatpush1.msra.mxu0 %v3476
        %3478 = vmatprep.subr.mxu0 0.0
        %3479 = vmatpush1.msra.mxu0 0.0
        %3480 = vmatprep.subr.mxu0 0.0
        %3481 = vmatpush1.msra.mxu0 0.0
        %3482 = vmatprep.subr.mxu0 0.0
        %3483 = vmatpush1.msra.mxu0 0.0
        %3484 = vmatprep.subr.mxu0 0.0
        %3485 = vmatpush1.msra.mxu0 0.0
        %3486 = vmatprep.subr.mxu0 0.0
        %3487 = vmatpush1.msra.mxu0 0.0
        %3488 = vmatprep.subr.mxu0 0.0
        %3489 = vmatpush1.msra.mxu0 0.0
        %3490 = vmatprep.subr.mxu0 0.0
        %3491 = vmatpush1.msra.mxu0 0.0
        %3492 = vmatprep.subr.mxu0 0.0
        %3493 = vmatpush1.msra.mxu0 0.0
        %3494 = vmatprep.subr.mxu0 0.0
        %3495 = vmatpush1.msra.mxu0 0.0
        %3496 = vmatprep.subr.mxu0 0.0
        %3497 = vmatpush1.msra.mxu0 0.0
        %3498 = vmatprep.subr.mxu0 0.0
        %3499 = vmatpush1.msra.mxu0 0.0
        %3500 = vmatprep.subr.mxu0 0.0
        %3501 = vmatpush1.msra.mxu0 0.0
        %3502 = vmatprep.subr.mxu0 0.0
        %3503 = vmatpush1.msra.mxu0 0.0
        %3504 = vmatprep.subr.mxu0 0.0
        %3505 = vmatpush1.msra.mxu0 0.0
        %3506 = vmatprep.subr.mxu0 0.0
        %3507 = vmatpush1.msra.mxu0 0.0
        %3508 = vmatprep.subr.mxu0 0.0
        %3509 = vmatpush1.msra.mxu0 0.0
        %3510 = vmatprep.mubr.f32.mxu0 0.0
        %v3511 = vand.u32 %v3122, 4294901760
        %3512 = vmatmul.mubr.f32.gmra.mrb[0].mxu0 %v3511
        %v3513 = vpop.f32.mrb[0].mxu0
        %v3514 = vadd.f32 %v3272, %v3513
        %v3515 = vpop.f32.mrb[0].mxu0
        %3516 = vmatprep.mubr.f32.mxu0 0.0
        %v3517 = vand.u32 %v3123, 4294901760
        %3518 = vmatmul.mubr.f32.gmra.mrb[0].mxu0 %v3517
        %v3519 = vpop.f32.mrb[0].mxu0
        %v3520 = vadd.f32 %v3282, %v3519
        %v3521 = vpop.f32.mrb[0].mxu0
        %v3522 = vadd.f32 %v3284, %v3521
        %3523 = vdwg.mxu0
        %v3524 = vand.u32 %v3125, 4294901760
        %v3525 = vsub.f32 %v3125, %v3524
        %3526 = vmatprep.subr.mxu0 %v3525
        %v3527 = vand.u32 %v3124, 4294901760
        %v3528 = vsub.f32 %v3124, %v3527
        %3529 = vmatpush1.msra.mxu0 %v3528
        %v3530 = vand.u32 %v3127, 4294901760
        %v3531 = vsub.f32 %v3127, %v3530
        %3532 = vmatprep.subr.mxu0 %v3531
        %v3533 = vand.u32 %v3126, 4294901760
        %v3534 = vsub.f32 %v3126, %v3533
        %3535 = vmatpush1.msra.mxu0 %v3534
        %v3536 = vand.u32 %v3129, 4294901760
        %v3537 = vsub.f32 %v3129, %v3536
        %3538 = vmatprep.subr.mxu0 %v3537
        %v3539 = vand.u32 %v3128, 4294901760
        %v3540 = vsub.f32 %v3128, %v3539
        %3541 = vmatpush1.msra.mxu0 %v3540
        %v3542 = vand.u32 %v3131, 4294901760
        %v3543 = vsub.f32 %v3131, %v3542
        %3544 = vmatprep.subr.mxu0 %v3543
        %v3545 = vand.u32 %v3130, 4294901760
        %v3546 = vsub.f32 %v3130, %v3545
        %3547 = vmatpush1.msra.mxu0 %v3546
        %v3548 = vand.u32 %v3133, 4294901760
        %v3549 = vsub.f32 %v3133, %v3548
        %3550 = vmatprep.subr.mxu0 %v3549
        %v3551 = vand.u32 %v3132, 4294901760
        %v3552 = vsub.f32 %v3132, %v3551
        %3553 = vmatpush1.msra.mxu0 %v3552
        %v3554 = vand.u32 %v3135, 4294901760
        %v3555 = vsub.f32 %v3135, %v3554
        %3556 = vmatprep.subr.mxu0 %v3555
        %v3557 = vand.u32 %v3134, 4294901760
        %v3558 = vsub.f32 %v3134, %v3557
        %3559 = vmatpush1.msra.mxu0 %v3558
        %v3560 = vand.u32 %v3137, 4294901760
        %v3561 = vsub.f32 %v3137, %v3560
        %3562 = vmatprep.subr.mxu0 %v3561
        %v3563 = vand.u32 %v3136, 4294901760
        %v3564 = vsub.f32 %v3136, %v3563
        %3565 = vmatpush1.msra.mxu0 %v3564
        %v3566 = vand.u32 %v3139, 4294901760
        %v3567 = vsub.f32 %v3139, %v3566
        %3568 = vmatprep.subr.mxu0 %v3567
        %v3569 = vand.u32 %v3138, 4294901760
        %v3570 = vsub.f32 %v3138, %v3569
        %3571 = vmatpush1.msra.mxu0 %v3570
        %v3572 = vand.u32 %v3141, 4294901760
        %v3573 = vsub.f32 %v3141, %v3572
        %3574 = vmatprep.subr.mxu0 %v3573
        %v3575 = vand.u32 %v3140, 4294901760
        %v3576 = vsub.f32 %v3140, %v3575
        %3577 = vmatpush1.msra.mxu0 %v3576
        %v3578 = vand.u32 %v3143, 4294901760
        %v3579 = vsub.f32 %v3143, %v3578
        %3580 = vmatprep.subr.mxu0 %v3579
        %v3581 = vand.u32 %v3142, 4294901760
        %v3582 = vsub.f32 %v3142, %v3581
        %3583 = vmatpush1.msra.mxu0 %v3582
        %v3584 = vand.u32 %v3145, 4294901760
        %v3585 = vsub.f32 %v3145, %v3584
        %3586 = vmatprep.subr.mxu0 %v3585
        %v3587 = vand.u32 %v3144, 4294901760
        %v3588 = vsub.f32 %v3144, %v3587
        %3589 = vmatpush1.msra.mxu0 %v3588
        %v3590 = vand.u32 %v3147, 4294901760
        %v3591 = vsub.f32 %v3147, %v3590
        %3592 = vmatprep.subr.mxu0 %v3591
        %v3593 = vand.u32 %v3146, 4294901760
        %v3594 = vsub.f32 %v3146, %v3593
        %3595 = vmatpush1.msra.mxu0 %v3594
        %v3596 = vand.u32 %v3149, 4294901760
        %v3597 = vsub.f32 %v3149, %v3596
        %3598 = vmatprep.subr.mxu0 %v3597
        %v3599 = vand.u32 %v3148, 4294901760
        %v3600 = vsub.f32 %v3148, %v3599
        %3601 = vmatpush1.msra.mxu0 %v3600
        %v3602 = vand.u32 %v3151, 4294901760
        %v3603 = vsub.f32 %v3151, %v3602
        %3604 = vmatprep.subr.mxu0 %v3603
        %v3605 = vand.u32 %v3150, 4294901760
        %v3606 = vsub.f32 %v3150, %v3605
        %3607 = vmatpush1.msra.mxu0 %v3606
        %v3608 = vand.u32 %v3153, 4294901760
        %v3609 = vsub.f32 %v3153, %v3608
        %3610 = vmatprep.subr.mxu0 %v3609
        %v3611 = vand.u32 %v3152, 4294901760
        %v3612 = vsub.f32 %v3152, %v3611
        %3613 = vmatpush1.msra.mxu0 %v3612
        %v3614 = vand.u32 %v3155, 4294901760
        %v3615 = vsub.f32 %v3155, %v3614
        %3616 = vmatprep.subr.mxu0 %v3615
        %v3617 = vand.u32 %v3154, 4294901760
        %v3618 = vsub.f32 %v3154, %v3617
        %3619 = vmatpush1.msra.mxu0 %v3618
        %3620 = vmatprep.subr.mxu0 0.0
        %3621 = vmatpush1.msra.mxu0 0.0
        %3622 = vmatprep.subr.mxu0 0.0
        %3623 = vmatpush1.msra.mxu0 0.0
        %3624 = vmatprep.subr.mxu0 0.0
        %3625 = vmatpush1.msra.mxu0 0.0
        %3626 = vmatprep.subr.mxu0 0.0
        %3627 = vmatpush1.msra.mxu0 0.0
        %3628 = vmatprep.subr.mxu0 0.0
        %3629 = vmatpush1.msra.mxu0 0.0
        %3630 = vmatprep.subr.mxu0 0.0
        %3631 = vmatpush1.msra.mxu0 0.0
        %3632 = vmatprep.subr.mxu0 0.0
        %3633 = vmatpush1.msra.mxu0 0.0
        %3634 = vmatprep.subr.mxu0 0.0
        %3635 = vmatpush1.msra.mxu0 0.0
        %3636 = vmatprep.subr.mxu0 0.0
        %3637 = vmatpush1.msra.mxu0 0.0
        %3638 = vmatprep.subr.mxu0 0.0
        %3639 = vmatpush1.msra.mxu0 0.0
        %3640 = vmatprep.subr.mxu0 0.0
        %3641 = vmatpush1.msra.mxu0 0.0
        %3642 = vmatprep.subr.mxu0 0.0
        %3643 = vmatpush1.msra.mxu0 0.0
        %3644 = vmatprep.subr.mxu0 0.0
        %3645 = vmatpush1.msra.mxu0 0.0
        %3646 = vmatprep.subr.mxu0 0.0
        %3647 = vmatpush1.msra.mxu0 0.0
        %3648 = vmatprep.subr.mxu0 0.0
        %3649 = vmatpush1.msra.mxu0 0.0
        %3650 = vmatprep.subr.mxu0 0.0
        %3651 = vmatpush1.msra.mxu0 0.0
        %3652 = vmatprep.mubr.f32.mxu0 0.0
        %v3653 = vand.u32 %v3122, 4294901760
        %v3654 = vsub.f32 %v3122, %v3653
        %3655 = vmatmul.mubr.f32.gmra.mrb[0].mxu0 %v3654
        %v3656 = vpop.f32.mrb[0].mxu0
        %v3657 = vadd.f32 %v3514, %v3656
        %v3658 = vpop.f32.mrb[0].mxu0
        %3659 = vmatprep.mubr.f32.mxu0 0.0
        %v3660 = vand.u32 %v3123, 4294901760
        %v3661 = vsub.f32 %v3123, %v3660
        %3662 = vmatmul.mubr.f32.gmra.mrb[0].mxu0 %v3661
        %v3663 = vpop.f32.mrb[0].mxu0
        %v3664 = vadd.f32 %v3520, %v3663
        %v3665 = vpop.f32.mrb[0].mxu0
        %v3666 = vadd.f32 %v3522, %v3665
        %3667 = vdwg.mxu0
        %v3668 = vand.u32 %v3125, 4294901760
        %3669 = vmatprep.subr.mxu0 %v3668
        %v3670 = vand.u32 %v3124, 4294901760
        %3671 = vmatpush1.msra.mxu0 %v3670
        %v3672 = vand.u32 %v3127, 4294901760
        %3673 = vmatprep.subr.mxu0 %v3672
        %v3674 = vand.u32 %v3126, 4294901760
        %3675 = vmatpush1.msra.mxu0 %v3674
        %v3676 = vand.u32 %v3129, 4294901760
        %3677 = vmatprep.subr.mxu0 %v3676
        %v3678 = vand.u32 %v3128, 4294901760
        %3679 = vmatpush1.msra.mxu0 %v3678
        %v3680 = vand.u32 %v3131, 4294901760
        %3681 = vmatprep.subr.mxu0 %v3680
        %v3682 = vand.u32 %v3130, 4294901760
        %3683 = vmatpush1.msra.mxu0 %v3682
        %v3684 = vand.u32 %v3133, 4294901760
        %3685 = vmatprep.subr.mxu0 %v3684
        %v3686 = vand.u32 %v3132, 4294901760
        %3687 = vmatpush1.msra.mxu0 %v3686
        %v3688 = vand.u32 %v3135, 4294901760
        %3689 = vmatprep.subr.mxu0 %v3688
        %v3690 = vand.u32 %v3134, 4294901760
        %3691 = vmatpush1.msra.mxu0 %v3690
        %v3692 = vand.u32 %v3137, 4294901760
        %3693 = vmatprep.subr.mxu0 %v3692
        %v3694 = vand.u32 %v3136, 4294901760
        %3695 = vmatpush1.msra.mxu0 %v3694
        %v3696 = vand.u32 %v3139, 4294901760
        %3697 = vmatprep.subr.mxu0 %v3696
        %v3698 = vand.u32 %v3138, 4294901760
        %3699 = vmatpush1.msra.mxu0 %v3698
        %v3700 = vand.u32 %v3141, 4294901760
        %3701 = vmatprep.subr.mxu0 %v3700
        %v3702 = vand.u32 %v3140, 4294901760
        %3703 = vmatpush1.msra.mxu0 %v3702
        %v3704 = vand.u32 %v3143, 4294901760
        %3705 = vmatprep.subr.mxu0 %v3704
        %v3706 = vand.u32 %v3142, 4294901760
        %3707 = vmatpush1.msra.mxu0 %v3706
        %v3708 = vand.u32 %v3145, 4294901760
        %3709 = vmatprep.subr.mxu0 %v3708
        %v3710 = vand.u32 %v3144, 4294901760
        %3711 = vmatpush1.msra.mxu0 %v3710
        %v3712 = vand.u32 %v3147, 4294901760
        %3713 = vmatprep.subr.mxu0 %v3712
        %v3714 = vand.u32 %v3146, 4294901760
        %3715 = vmatpush1.msra.mxu0 %v3714
        %v3716 = vand.u32 %v3149, 4294901760
        %3717 = vmatprep.subr.mxu0 %v3716
        %v3718 = vand.u32 %v3148, 4294901760
        %3719 = vmatpush1.msra.mxu0 %v3718
        %v3720 = vand.u32 %v3151, 4294901760
        %3721 = vmatprep.subr.mxu0 %v3720
        %v3722 = vand.u32 %v3150, 4294901760
        %3723 = vmatpush1.msra.mxu0 %v3722
        %v3724 = vand.u32 %v3153, 4294901760
        %3725 = vmatprep.subr.mxu0 %v3724
        %v3726 = vand.u32 %v3152, 4294901760
        %3727 = vmatpush1.msra.mxu0 %v3726
        %v3728 = vand.u32 %v3155, 4294901760
        %3729 = vmatprep.subr.mxu0 %v3728
        %v3730 = vand.u32 %v3154, 4294901760
        %3731 = vmatpush1.msra.mxu0 %v3730
        %3732 = vmatprep.subr.mxu0 0.0
        %3733 = vmatpush1.msra.mxu0 0.0
        %3734 = vmatprep.subr.mxu0 0.0
        %3735 = vmatpush1.msra.mxu0 0.0
        %3736 = vmatprep.subr.mxu0 0.0
        %3737 = vmatpush1.msra.mxu0 0.0
        %3738 = vmatprep.subr.mxu0 0.0
        %3739 = vmatpush1.msra.mxu0 0.0
        %3740 = vmatprep.subr.mxu0 0.0
        %3741 = vmatpush1.msra.mxu0 0.0
        %3742 = vmatprep.subr.mxu0 0.0
        %3743 = vmatpush1.msra.mxu0 0.0
        %3744 = vmatprep.subr.mxu0 0.0
        %3745 = vmatpush1.msra.mxu0 0.0
        %3746 = vmatprep.subr.mxu0 0.0
        %3747 = vmatpush1.msra.mxu0 0.0
        %3748 = vmatprep.subr.mxu0 0.0
        %3749 = vmatpush1.msra.mxu0 0.0
        %3750 = vmatprep.subr.mxu0 0.0
        %3751 = vmatpush1.msra.mxu0 0.0
        %3752 = vmatprep.subr.mxu0 0.0
        %3753 = vmatpush1.msra.mxu0 0.0
        %3754 = vmatprep.subr.mxu0 0.0
        %3755 = vmatpush1.msra.mxu0 0.0
        %3756 = vmatprep.subr.mxu0 0.0
        %3757 = vmatpush1.msra.mxu0 0.0
        %3758 = vmatprep.subr.mxu0 0.0
        %3759 = vmatpush1.msra.mxu0 0.0
        %3760 = vmatprep.subr.mxu0 0.0
        %3761 = vmatpush1.msra.mxu0 0.0
        %3762 = vmatprep.subr.mxu0 0.0
        %3763 = vmatpush1.msra.mxu0 0.0
        %3764 = vmatprep.mubr.f32.mxu0 0.0
        %v3765 = vand.u32 %v3122, 4294901760
        %v3766 = vsub.f32 %v3122, %v3765
        %v3767 = vand.u32 %v3766, 4294901760
        %3768 = vmatmul.mubr.f32.gmra.mrb[0].mxu0 %v3767
        %v3769 = vpop.f32.mrb[0].mxu0
        %v3770 = vadd.f32 %v3657, %v3769
        %v3771 = vpop.f32.mrb[0].mxu0
        %3772 = vmatprep.mubr.f32.mxu0 0.0
        %v3773 = vand.u32 %v3123, 4294901760
        %v3774 = vsub.f32 %v3123, %v3773
        %v3775 = vand.u32 %v3774, 4294901760
        %3776 = vmatmul.mubr.f32.gmra.mrb[0].mxu0 %v3775
        %v3777 = vpop.f32.mrb[0].mxu0
        %v3778 = vadd.f32 %v3664, %v3777
        %v3779 = vpop.f32.mrb[0].mxu0
        %v3780 = vadd.f32 %v3666, %v3779
        %3781 = vdwg.mxu0
        %v3782 = vand.u32 %v3125, 4294901760
        %v3783 = vsub.f32 %v3125, %v3782
        %v3784 = vand.u32 %v3783, 4294901760
        %3785 = vmatprep.subr.mxu0 %v3784
        %v3786 = vand.u32 %v3124, 4294901760
        %v3787 = vsub.f32 %v3124, %v3786
        %v3788 = vand.u32 %v3787, 4294901760
        %3789 = vmatpush1.msra.mxu0 %v3788
        %v3790 = vand.u32 %v3127, 4294901760
        %v3791 = vsub.f32 %v3127, %v3790
        %v3792 = vand.u32 %v3791, 4294901760
        %3793 = vmatprep.subr.mxu0 %v3792
        %v3794 = vand.u32 %v3126, 4294901760
        %v3795 = vsub.f32 %v3126, %v3794
        %v3796 = vand.u32 %v3795, 4294901760
        %3797 = vmatpush1.msra.mxu0 %v3796
        %v3798 = vand.u32 %v3129, 4294901760
        %v3799 = vsub.f32 %v3129, %v3798
        %v3800 = vand.u32 %v3799, 4294901760
        %3801 = vmatprep.subr.mxu0 %v3800
        %v3802 = vand.u32 %v3128, 4294901760
        %v3803 = vsub.f32 %v3128, %v3802
        %v3804 = vand.u32 %v3803, 4294901760
        %3805 = vmatpush1.msra.mxu0 %v3804
        %v3806 = vand.u32 %v3131, 4294901760
        %v3807 = vsub.f32 %v3131, %v3806
        %v3808 = vand.u32 %v3807, 4294901760
        %3809 = vmatprep.subr.mxu0 %v3808
        %v3810 = vand.u32 %v3130, 4294901760
        %v3811 = vsub.f32 %v3130, %v3810
        %v3812 = vand.u32 %v3811, 4294901760
        %3813 = vmatpush1.msra.mxu0 %v3812
        %v3814 = vand.u32 %v3133, 4294901760
        %v3815 = vsub.f32 %v3133, %v3814
        %v3816 = vand.u32 %v3815, 4294901760
        %3817 = vmatprep.subr.mxu0 %v3816
        %v3818 = vand.u32 %v3132, 4294901760
        %v3819 = vsub.f32 %v3132, %v3818
        %v3820 = vand.u32 %v3819, 4294901760
        %3821 = vmatpush1.msra.mxu0 %v3820
        %v3822 = vand.u32 %v3135, 4294901760
        %v3823 = vsub.f32 %v3135, %v3822
        %v3824 = vand.u32 %v3823, 4294901760
        %3825 = vmatprep.subr.mxu0 %v3824
        %v3826 = vand.u32 %v3134, 4294901760
        %v3827 = vsub.f32 %v3134, %v3826
        %v3828 = vand.u32 %v3827, 4294901760
        %3829 = vmatpush1.msra.mxu0 %v3828
        %v3830 = vand.u32 %v3137, 4294901760
        %v3831 = vsub.f32 %v3137, %v3830
        %v3832 = vand.u32 %v3831, 4294901760
        %3833 = vmatprep.subr.mxu0 %v3832
        %v3834 = vand.u32 %v3136, 4294901760
        %v3835 = vsub.f32 %v3136, %v3834
        %v3836 = vand.u32 %v3835, 4294901760
        %3837 = vmatpush1.msra.mxu0 %v3836
        %v3838 = vand.u32 %v3139, 4294901760
        %v3839 = vsub.f32 %v3139, %v3838
        %v3840 = vand.u32 %v3839, 4294901760
        %3841 = vmatprep.subr.mxu0 %v3840
        %v3842 = vand.u32 %v3138, 4294901760
        %v3843 = vsub.f32 %v3138, %v3842
        %v3844 = vand.u32 %v3843, 4294901760
        %3845 = vmatpush1.msra.mxu0 %v3844
        %v3846 = vand.u32 %v3141, 4294901760
        %v3847 = vsub.f32 %v3141, %v3846
        %v3848 = vand.u32 %v3847, 4294901760
        %3849 = vmatprep.subr.mxu0 %v3848
        %v3850 = vand.u32 %v3140, 4294901760
        %v3851 = vsub.f32 %v3140, %v3850
        %v3852 = vand.u32 %v3851, 4294901760
        %3853 = vmatpush1.msra.mxu0 %v3852
        %v3854 = vand.u32 %v3143, 4294901760
        %v3855 = vsub.f32 %v3143, %v3854
        %v3856 = vand.u32 %v3855, 4294901760
        %3857 = vmatprep.subr.mxu0 %v3856
        %v3858 = vand.u32 %v3142, 4294901760
        %v3859 = vsub.f32 %v3142, %v3858
        %v3860 = vand.u32 %v3859, 4294901760
        %3861 = vmatpush1.msra.mxu0 %v3860
        %v3862 = vand.u32 %v3145, 4294901760
        %v3863 = vsub.f32 %v3145, %v3862
        %v3864 = vand.u32 %v3863, 4294901760
        %3865 = vmatprep.subr.mxu0 %v3864
        %v3866 = vand.u32 %v3144, 4294901760
        %v3867 = vsub.f32 %v3144, %v3866
        %v3868 = vand.u32 %v3867, 4294901760
        %3869 = vmatpush1.msra.mxu0 %v3868
        %v3870 = vand.u32 %v3147, 4294901760
        %v3871 = vsub.f32 %v3147, %v3870
        %v3872 = vand.u32 %v3871, 4294901760
        %3873 = vmatprep.subr.mxu0 %v3872
        %v3874 = vand.u32 %v3146, 4294901760
        %v3875 = vsub.f32 %v3146, %v3874
        %v3876 = vand.u32 %v3875, 4294901760
        %3877 = vmatpush1.msra.mxu0 %v3876
        %v3878 = vand.u32 %v3149, 4294901760
        %v3879 = vsub.f32 %v3149, %v3878
        %v3880 = vand.u32 %v3879, 4294901760
        %3881 = vmatprep.subr.mxu0 %v3880
        %v3882 = vand.u32 %v3148, 4294901760
        %v3883 = vsub.f32 %v3148, %v3882
        %v3884 = vand.u32 %v3883, 4294901760
        %3885 = vmatpush1.msra.mxu0 %v3884
        %v3886 = vand.u32 %v3151, 4294901760
        %v3887 = vsub.f32 %v3151, %v3886
        %v3888 = vand.u32 %v3887, 4294901760
        %3889 = vmatprep.subr.mxu0 %v3888
        %v3890 = vand.u32 %v3150, 4294901760
        %v3891 = vsub.f32 %v3150, %v3890
        %v3892 = vand.u32 %v3891, 4294901760
        %3893 = vmatpush1.msra.mxu0 %v3892
        %v3894 = vand.u32 %v3153, 4294901760
        %v3895 = vsub.f32 %v3153, %v3894
        %v3896 = vand.u32 %v3895, 4294901760
        %3897 = vmatprep.subr.mxu0 %v3896
        %v3898 = vand.u32 %v3152, 4294901760
        %v3899 = vsub.f32 %v3152, %v3898
        %v3900 = vand.u32 %v3899, 4294901760
        %3901 = vmatpush1.msra.mxu0 %v3900
        %v3902 = vand.u32 %v3155, 4294901760
        %v3903 = vsub.f32 %v3155, %v3902
        %v3904 = vand.u32 %v3903, 4294901760
        %3905 = vmatprep.subr.mxu0 %v3904
        %v3906 = vand.u32 %v3154, 4294901760
        %v3907 = vsub.f32 %v3154, %v3906
        %v3908 = vand.u32 %v3907, 4294901760
        %3909 = vmatpush1.msra.mxu0 %v3908
        %3910 = vmatprep.subr.mxu0 0.0
        %3911 = vmatpush1.msra.mxu0 0.0
        %3912 = vmatprep.subr.mxu0 0.0
        %3913 = vmatpush1.msra.mxu0 0.0
        %3914 = vmatprep.subr.mxu0 0.0
        %3915 = vmatpush1.msra.mxu0 0.0
        %3916 = vmatprep.subr.mxu0 0.0
        %3917 = vmatpush1.msra.mxu0 0.0
        %3918 = vmatprep.subr.mxu0 0.0
        %3919 = vmatpush1.msra.mxu0 0.0
        %3920 = vmatprep.subr.mxu0 0.0
        %3921 = vmatpush1.msra.mxu0 0.0
        %3922 = vmatprep.subr.mxu0 0.0
        %3923 = vmatpush1.msra.mxu0 0.0
        %3924 = vmatprep.subr.mxu0 0.0
        %3925 = vmatpush1.msra.mxu0 0.0
        %3926 = vmatprep.subr.mxu0 0.0
        %3927 = vmatpush1.msra.mxu0 0.0
        %3928 = vmatprep.subr.mxu0 0.0
        %3929 = vmatpush1.msra.mxu0 0.0
        %3930 = vmatprep.subr.mxu0 0.0
        %3931 = vmatpush1.msra.mxu0 0.0
        %3932 = vmatprep.subr.mxu0 0.0
        %3933 = vmatpush1.msra.mxu0 0.0
        %3934 = vmatprep.subr.mxu0 0.0
        %3935 = vmatpush1.msra.mxu0 0.0
        %3936 = vmatprep.subr.mxu0 0.0
        %3937 = vmatpush1.msra.mxu0 0.0
        %3938 = vmatprep.subr.mxu0 0.0
        %3939 = vmatpush1.msra.mxu0 0.0
        %3940 = vmatprep.subr.mxu0 0.0
        %3941 = vmatpush1.msra.mxu0 0.0
        %3942 = vmatprep.mubr.f32.mxu0 0.0
        %v3943 = vand.u32 %v3122, 4294901760
        %3944 = vmatmul.mubr.f32.gmra.mrb[0].mxu0 %v3943
        %v3945 = vpop.f32.mrb[0].mxu0
        %v3946 = vadd.f32 %v3770, %v3945
        %v3947 = vpop.f32.mrb[0].mxu0
        %3948 = vmatprep.mubr.f32.mxu0 0.0
        %v3949 = vand.u32 %v3123, 4294901760
        %3950 = vmatmul.mubr.f32.gmra.mrb[0].mxu0 %v3949
        %v3951 = vpop.f32.mrb[0].mxu0
        %v3952 = vadd.f32 %v3778, %v3951
        %v3953 = vpop.f32.mrb[0].mxu0
        %v3954 = vadd.f32 %v3780, %v3953
        %3955 = vdwg.mxu0
        %v3956 = vand.u32 %v3125, 4294901760
        %3957 = vmatprep.subr.mxu0 %v3956
        %v3958 = vand.u32 %v3124, 4294901760
        %3959 = vmatpush1.msra.mxu0 %v3958
        %v3960 = vand.u32 %v3127, 4294901760
        %3961 = vmatprep.subr.mxu0 %v3960
        %v3962 = vand.u32 %v3126, 4294901760
        %3963 = vmatpush1.msra.mxu0 %v3962
        %v3964 = vand.u32 %v3129, 4294901760
        %3965 = vmatprep.subr.mxu0 %v3964
        %v3966 = vand.u32 %v3128, 4294901760
        %3967 = vmatpush1.msra.mxu0 %v3966
        %v3968 = vand.u32 %v3131, 4294901760
        %3969 = vmatprep.subr.mxu0 %v3968
        %v3970 = vand.u32 %v3130, 4294901760
        %3971 = vmatpush1.msra.mxu0 %v3970
        %v3972 = vand.u32 %v3133, 4294901760
        %3973 = vmatprep.subr.mxu0 %v3972
        %v3974 = vand.u32 %v3132, 4294901760
        %3975 = vmatpush1.msra.mxu0 %v3974
        %v3976 = vand.u32 %v3135, 4294901760
        %3977 = vmatprep.subr.mxu0 %v3976
        %v3978 = vand.u32 %v3134, 4294901760
        %3979 = vmatpush1.msra.mxu0 %v3978
        %v3980 = vand.u32 %v3137, 4294901760
        %3981 = vmatprep.subr.mxu0 %v3980
        %v3982 = vand.u32 %v3136, 4294901760
        %3983 = vmatpush1.msra.mxu0 %v3982
        %v3984 = vand.u32 %v3139, 4294901760
        %3985 = vmatprep.subr.mxu0 %v3984
        %v3986 = vand.u32 %v3138, 4294901760
        %3987 = vmatpush1.msra.mxu0 %v3986
        %v3988 = vand.u32 %v3141, 4294901760
        %3989 = vmatprep.subr.mxu0 %v3988
        %v3990 = vand.u32 %v3140, 4294901760
        %3991 = vmatpush1.msra.mxu0 %v3990
        %v3992 = vand.u32 %v3143, 4294901760
        %3993 = vmatprep.subr.mxu0 %v3992
        %v3994 = vand.u32 %v3142, 4294901760
        %3995 = vmatpush1.msra.mxu0 %v3994
        %v3996 = vand.u32 %v3145, 4294901760
        %3997 = vmatprep.subr.mxu0 %v3996
        %v3998 = vand.u32 %v3144, 4294901760
        %3999 = vmatpush1.msra.mxu0 %v3998
        %v4000 = vand.u32 %v3147, 4294901760
        %4001 = vmatprep.subr.mxu0 %v4000
        %v4002 = vand.u32 %v3146, 4294901760
        %4003 = vmatpush1.msra.mxu0 %v4002
        %v4004 = vand.u32 %v3149, 4294901760
        %4005 = vmatprep.subr.mxu0 %v4004
        %v4006 = vand.u32 %v3148, 4294901760
        %4007 = vmatpush1.msra.mxu0 %v4006
        %v4008 = vand.u32 %v3151, 4294901760
        %4009 = vmatprep.subr.mxu0 %v4008
        %v4010 = vand.u32 %v3150, 4294901760
        %4011 = vmatpush1.msra.mxu0 %v4010
        %v4012 = vand.u32 %v3153, 4294901760
        %4013 = vmatprep.subr.mxu0 %v4012
        %v4014 = vand.u32 %v3152, 4294901760
        %4015 = vmatpush1.msra.mxu0 %v4014
        %v4016 = vand.u32 %v3155, 4294901760
        %4017 = vmatprep.subr.mxu0 %v4016
        %v4018 = vand.u32 %v3154, 4294901760
        %4019 = vmatpush1.msra.mxu0 %v4018
        %4020 = vmatprep.subr.mxu0 0.0
        %4021 = vmatpush1.msra.mxu0 0.0
        %4022 = vmatprep.subr.mxu0 0.0
        %4023 = vmatpush1.msra.mxu0 0.0
        %4024 = vmatprep.subr.mxu0 0.0
        %4025 = vmatpush1.msra.mxu0 0.0
        %4026 = vmatprep.subr.mxu0 0.0
        %4027 = vmatpush1.msra.mxu0 0.0
        %4028 = vmatprep.subr.mxu0 0.0
        %4029 = vmatpush1.msra.mxu0 0.0
        %4030 = vmatprep.subr.mxu0 0.0
        %4031 = vmatpush1.msra.mxu0 0.0
        %4032 = vmatprep.subr.mxu0 0.0
        %4033 = vmatpush1.msra.mxu0 0.0
        %4034 = vmatprep.subr.mxu0 0.0
        %4035 = vmatpush1.msra.mxu0 0.0
        %4036 = vmatprep.subr.mxu0 0.0
        %4037 = vmatpush1.msra.mxu0 0.0
        %4038 = vmatprep.subr.mxu0 0.0
        %4039 = vmatpush1.msra.mxu0 0.0
        %4040 = vmatprep.subr.mxu0 0.0
        %4041 = vmatpush1.msra.mxu0 0.0
        %4042 = vmatprep.subr.mxu0 0.0
        %4043 = vmatpush1.msra.mxu0 0.0
        %4044 = vmatprep.subr.mxu0 0.0
        %4045 = vmatpush1.msra.mxu0 0.0
        %4046 = vmatprep.subr.mxu0 0.0
        %4047 = vmatpush1.msra.mxu0 0.0
        %4048 = vmatprep.subr.mxu0 0.0
        %4049 = vmatpush1.msra.mxu0 0.0
        %4050 = vmatprep.subr.mxu0 0.0
        %4051 = vmatpush1.msra.mxu0 0.0
        %4052 = vmatprep.mubr.f32.mxu0 0.0
        %v4053 = vand.u32 %v3122, 4294901760
        %4054 = vmatmul.mubr.f32.gmra.mrb[0].mxu0 %v4053
        %v4055 = vpop.f32.mrb[0].mxu0
        %v4056 = vadd.f32 %v3946, %v4055
        %v4057 = vpop.f32.mrb[0].mxu0
        %4058 = vmatprep.mubr.f32.mxu0 0.0
        %v4059 = vand.u32 %v3123, 4294901760
        %4060 = vmatmul.mubr.f32.gmra.mrb[0].mxu0 %v4059
        %v4061 = vpop.f32.mrb[0].mxu0
        %v4062 = vadd.f32 %v3952, %v4061
        %v4063 = vpop.f32.mrb[0].mxu0
        %v4064 = vadd.f32 %v3954, %v4063
        %4065 = vdwg.mxu0
        %v4066 = vadd.f32 %v4064, 0.0
        %v4067 = vadd.f32 %v4056, %v2149
        %v4068 = vadd.f32 %v4062, %v2150
        %s4069 = smul.u32 %s23, 8
        %s4070 = ssub.s32 8, %s4069
        %v4071 = vlaneseq
        %v4072 = vshrl.u32 %v4071, 7
        %v4073 = vadd.s32 %v4072, 8
        %v4074 = vstv %s4070
        %vm4075 = vcmp.ge.s32.totalorder %v4072, %v4074
        %vm4076 = vcmp.ge.s32.totalorder %v4073, %v4074
        %v4077 = vsel %vm4075, 1, 0
        %v4078 = vsel %vm4076, 1, 0
        %vm4079 = vcmp.eq.s32.totalorder %v4077, 1
        %vm4080 = vcmp.eq.s32.totalorder %v4078, 1
        %v4081 = vsel %vm4079, %v4067, 0.0
        %v4082 = vsel %vm4080, %v4068, 0.0
        %4083 = vst [vmem:[#allocation2] sm:$0xff] %v4081
        %4084 = vst [vmem:[#allocation2 + $0x8] sm:$0xff] %v4082
        %v4085 = vld [vmem:[#allocation2] sm:$0xff]
        %s4086 = scalar_lea.vmem [#allocation6], 768
        %v4087 = vld [vmem:[%s4086] sm:$0xff]
        %v4088 = vld [vmem:[%s4086 + $0x8] sm:$0xff]
        %v4089 = vld [vmem:[%s4086 + $0x10] sm:$0xff]
        %v4090 = vld [vmem:[%s4086 + $0x18] sm:$0xff]
        %v4091 = vld [vmem:[%s4086 + $0x20] sm:$0xff]
        %v4092 = vld [vmem:[%s4086 + $0x28] sm:$0xff]
        %v4093 = vld [vmem:[%s4086 + $0x30] sm:$0xff]
        %v4094 = vld [vmem:[%s4086 + $0x38] sm:$0xff]
        %v4095 = vld [vmem:[%s4086 + $0x40] sm:$0xff]
        %v4096 = vld [vmem:[%s4086 + $0x48] sm:$0xff]
        %v4097 = vld [vmem:[%s4086 + $0x50] sm:$0xff]
        %v4098 = vld [vmem:[%s4086 + $0x58] sm:$0xff]
        %v4099 = vld [vmem:[%s4086 + $0x60] sm:$0xff]
        %v4100 = vld [vmem:[%s4086 + $0x68] sm:$0xff]
        %v4101 = vld [vmem:[%s4086 + $0x70] sm:$0xff]
        %v4102 = vld [vmem:[%s4086 + $0x78] sm:$0xff]
        %v4103 = vld [vmem:[%s4086 + $0x80] sm:$0xff]
        %v4104 = vld [vmem:[%s4086 + $0x88] sm:$0xff]
        %v4105 = vld [vmem:[%s4086 + $0x90] sm:$0xff]
        %v4106 = vld [vmem:[%s4086 + $0x98] sm:$0xff]
        %v4107 = vld [vmem:[%s4086 + $0xa0] sm:$0xff]
        %v4108 = vld [vmem:[%s4086 + $0xa8] sm:$0xff]
        %v4109 = vld [vmem:[%s4086 + $0xb0] sm:$0xff]
        %v4110 = vld [vmem:[%s4086 + $0xb8] sm:$0xff]
        %v4111 = vld [vmem:[%s4086 + $0xc0] sm:$0xff]
        %v4112 = vld [vmem:[%s4086 + $0xc8] sm:$0xff]
        %v4113 = vld [vmem:[%s4086 + $0xd0] sm:$0xff]
        %v4114 = vld [vmem:[%s4086 + $0xd8] sm:$0xff]
        %v4115 = vld [vmem:[%s4086 + $0xe0] sm:$0xff]
        %v4116 = vld [vmem:[%s4086 + $0xe8] sm:$0xff]
        %v4117 = vld [vmem:[%s4086 + $0xf0] sm:$0xff]
        %v4118 = vld [vmem:[%s4086 + $0xf8] sm:$0xff]
        %v4119 = vld [vmem:[#allocation2 + $0x4] sm:$0xff]
        %s4120 = scalar_lea.vmem [#allocation6], 1024
        %v4121 = vld [vmem:[%s4120] sm:$0xff]
        %v4122 = vld [vmem:[%s4120 + $0x8] sm:$0xff]
        %v4123 = vld [vmem:[%s4120 + $0x10] sm:$0xff]
        %v4124 = vld [vmem:[%s4120 + $0x18] sm:$0xff]
        %v4125 = vld [vmem:[%s4120 + $0x20] sm:$0xff]
        %v4126 = vld [vmem:[%s4120 + $0x28] sm:$0xff]
        %v4127 = vld [vmem:[%s4120 + $0x30] sm:$0xff]
        %v4128 = vld [vmem:[%s4120 + $0x38] sm:$0xff]
        %v4129 = vld [vmem:[%s4120 + $0x40] sm:$0xff]
        %v4130 = vld [vmem:[%s4120 + $0x48] sm:$0xff]
        %v4131 = vld [vmem:[%s4120 + $0x50] sm:$0xff]
        %v4132 = vld [vmem:[%s4120 + $0x58] sm:$0xff]
        %v4133 = vld [vmem:[%s4120 + $0x60] sm:$0xff]
        %v4134 = vld [vmem:[%s4120 + $0x68] sm:$0xff]
        %v4135 = vld [vmem:[%s4120 + $0x70] sm:$0xff]
        %v4136 = vld [vmem:[%s4120 + $0x78] sm:$0xff]
        %v4137 = vld [vmem:[%s4120 + $0x80] sm:$0xff]
        %v4138 = vld [vmem:[%s4120 + $0x88] sm:$0xff]
        %v4139 = vld [vmem:[%s4120 + $0x90] sm:$0xff]
        %v4140 = vld [vmem:[%s4120 + $0x98] sm:$0xff]
        %v4141 = vld [vmem:[%s4120 + $0xa0] sm:$0xff]
        %v4142 = vld [vmem:[%s4120 + $0xa8] sm:$0xff]
        %v4143 = vld [vmem:[%s4120 + $0xb0] sm:$0xff]
        %v4144 = vld [vmem:[%s4120 + $0xb8] sm:$0xff]
        %v4145 = vld [vmem:[%s4120 + $0xc0] sm:$0xff]
        %v4146 = vld [vmem:[%s4120 + $0xc8] sm:$0xff]
        %v4147 = vld [vmem:[%s4120 + $0xd0] sm:$0xff]
        %v4148 = vld [vmem:[%s4120 + $0xd8] sm:$0xff]
        %v4149 = vld [vmem:[%s4120 + $0xe0] sm:$0xff]
        %v4150 = vld [vmem:[%s4120 + $0xe8] sm:$0xff]
        %v4151 = vld [vmem:[%s4120 + $0xf0] sm:$0xff]
        %v4152 = vld [vmem:[%s4120 + $0xf8] sm:$0xff]
        %v4153 = vand.u32 %v4122, 4294901760
        %4154 = vmatprep.subr.mxu0 %v4153
        %v4155 = vand.u32 %v4121, 4294901760
        %4156 = vmatpush1.msra.mxu0 %v4155
        %v4157 = vand.u32 %v4124, 4294901760
        %4158 = vmatprep.subr.mxu0 %v4157
        %v4159 = vand.u32 %v4123, 4294901760
        %4160 = vmatpush1.msra.mxu0 %v4159
        %v4161 = vand.u32 %v4126, 4294901760
        %4162 = vmatprep.subr.mxu0 %v4161
        %v4163 = vand.u32 %v4125, 4294901760
        %4164 = vmatpush1.msra.mxu0 %v4163
        %v4165 = vand.u32 %v4128, 4294901760
        %4166 = vmatprep.subr.mxu0 %v4165
        %v4167 = vand.u32 %v4127, 4294901760
        %4168 = vmatpush1.msra.mxu0 %v4167
        %v4169 = vand.u32 %v4130, 4294901760
        %4170 = vmatprep.subr.mxu0 %v4169
        %v4171 = vand.u32 %v4129, 4294901760
        %4172 = vmatpush1.msra.mxu0 %v4171
        %v4173 = vand.u32 %v4132, 4294901760
        %4174 = vmatprep.subr.mxu0 %v4173
        %v4175 = vand.u32 %v4131, 4294901760
        %4176 = vmatpush1.msra.mxu0 %v4175
        %v4177 = vand.u32 %v4134, 4294901760
        %4178 = vmatprep.subr.mxu0 %v4177
        %v4179 = vand.u32 %v4133, 4294901760
        %4180 = vmatpush1.msra.mxu0 %v4179
        %v4181 = vand.u32 %v4136, 4294901760
        %4182 = vmatprep.subr.mxu0 %v4181
        %v4183 = vand.u32 %v4135, 4294901760
        %4184 = vmatpush1.msra.mxu0 %v4183
        %v4185 = vand.u32 %v4138, 4294901760
        %4186 = vmatprep.subr.mxu0 %v4185
        %v4187 = vand.u32 %v4137, 4294901760
        %4188 = vmatpush1.msra.mxu0 %v4187
        %v4189 = vand.u32 %v4140, 4294901760
        %4190 = vmatprep.subr.mxu0 %v4189
        %v4191 = vand.u32 %v4139, 4294901760
        %4192 = vmatpush1.msra.mxu0 %v4191
        %v4193 = vand.u32 %v4142, 4294901760
        %4194 = vmatprep.subr.mxu0 %v4193
        %v4195 = vand.u32 %v4141, 4294901760
        %4196 = vmatpush1.msra.mxu0 %v4195
        %v4197 = vand.u32 %v4144, 4294901760
        %4198 = vmatprep.subr.mxu0 %v4197
        %v4199 = vand.u32 %v4143, 4294901760
        %4200 = vmatpush1.msra.mxu0 %v4199
        %v4201 = vand.u32 %v4146, 4294901760
        %4202 = vmatprep.subr.mxu0 %v4201
        %v4203 = vand.u32 %v4145, 4294901760
        %4204 = vmatpush1.msra.mxu0 %v4203
        %v4205 = vand.u32 %v4148, 4294901760
        %4206 = vmatprep.subr.mxu0 %v4205
        %v4207 = vand.u32 %v4147, 4294901760
        %4208 = vmatpush1.msra.mxu0 %v4207
        %v4209 = vand.u32 %v4150, 4294901760
        %4210 = vmatprep.subr.mxu0 %v4209
        %v4211 = vand.u32 %v4149, 4294901760
        %4212 = vmatpush1.msra.mxu0 %v4211
        %v4213 = vand.u32 %v4152, 4294901760
        %4214 = vmatprep.subr.mxu0 %v4213
        %v4215 = vand.u32 %v4151, 4294901760
        %4216 = vmatpush1.msra.mxu0 %v4215
        %4217 = vmatprep.subr.mxu0 0.0
        %4218 = vmatpush1.msra.mxu0 0.0
        %4219 = vmatprep.subr.mxu0 0.0
        %4220 = vmatpush1.msra.mxu0 0.0
        %4221 = vmatprep.subr.mxu0 0.0
        %4222 = vmatpush1.msra.mxu0 0.0
        %4223 = vmatprep.subr.mxu0 0.0
        %4224 = vmatpush1.msra.mxu0 0.0
        %4225 = vmatprep.subr.mxu0 0.0
        %4226 = vmatpush1.msra.mxu0 0.0
        %4227 = vmatprep.subr.mxu0 0.0
        %4228 = vmatpush1.msra.mxu0 0.0
        %4229 = vmatprep.subr.mxu0 0.0
        %4230 = vmatpush1.msra.mxu0 0.0
        %4231 = vmatprep.subr.mxu0 0.0
        %4232 = vmatpush1.msra.mxu0 0.0
        %4233 = vmatprep.subr.mxu0 0.0
        %4234 = vmatpush1.msra.mxu0 0.0
        %4235 = vmatprep.subr.mxu0 0.0
        %4236 = vmatpush1.msra.mxu0 0.0
        %4237 = vmatprep.subr.mxu0 0.0
        %4238 = vmatpush1.msra.mxu0 0.0
        %4239 = vmatprep.subr.mxu0 0.0
        %4240 = vmatpush1.msra.mxu0 0.0
        %4241 = vmatprep.subr.mxu0 0.0
        %4242 = vmatpush1.msra.mxu0 0.0
        %4243 = vmatprep.subr.mxu0 0.0
        %4244 = vmatpush1.msra.mxu0 0.0
        %4245 = vmatprep.subr.mxu0 0.0
        %4246 = vmatpush1.msra.mxu0 0.0
        %4247 = vmatprep.subr.mxu0 0.0
        %4248 = vmatpush1.msra.mxu0 0.0
        %4249 = vmatprep.mubr.f32.mxu0 0.0
        %v4250 = vand.u32 %v4119, 4294901760
        %v4251 = vsub.f32 %v4119, %v4250
        %v4252 = vand.u32 %v4251, 4294901760
        %v4253 = vsub.f32 %v4251, %v4252
        %v4254 = vand.u32 %v4253, 4294901760
        %4255 = vmatmul.mubr.f32.gmra.mrb[0].mxu0 %v4254
        %v4256 = vpop.f32.mrb[0].mxu0
        %v4257 = vadd.f32 0.0, %v4256
        %v4258 = vpop.f32.mrb[0].mxu0
        %v4259 = vadd.f32 0.0, %v4258
        %4260 = vdwg.mxu0
        %v4261 = vand.u32 %v4122, 4294901760
        %v4262 = vsub.f32 %v4122, %v4261
        %v4263 = vand.u32 %v4262, 4294901760
        %v4264 = vsub.f32 %v4262, %v4263
        %v4265 = vand.u32 %v4264, 4294901760
        %4266 = vmatprep.subr.mxu0 %v4265
        %v4267 = vand.u32 %v4121, 4294901760
        %v4268 = vsub.f32 %v4121, %v4267
        %v4269 = vand.u32 %v4268, 4294901760
        %v4270 = vsub.f32 %v4268, %v4269
        %v4271 = vand.u32 %v4270, 4294901760
        %4272 = vmatpush1.msra.mxu0 %v4271
        %v4273 = vand.u32 %v4124, 4294901760
        %v4274 = vsub.f32 %v4124, %v4273
        %v4275 = vand.u32 %v4274, 4294901760
        %v4276 = vsub.f32 %v4274, %v4275
        %v4277 = vand.u32 %v4276, 4294901760
        %4278 = vmatprep.subr.mxu0 %v4277
        %v4279 = vand.u32 %v4123, 4294901760
        %v4280 = vsub.f32 %v4123, %v4279
        %v4281 = vand.u32 %v4280, 4294901760
        %v4282 = vsub.f32 %v4280, %v4281
        %v4283 = vand.u32 %v4282, 4294901760
        %4284 = vmatpush1.msra.mxu0 %v4283
        %v4285 = vand.u32 %v4126, 4294901760
        %v4286 = vsub.f32 %v4126, %v4285
        %v4287 = vand.u32 %v4286, 4294901760
        %v4288 = vsub.f32 %v4286, %v4287
        %v4289 = vand.u32 %v4288, 4294901760
        %4290 = vmatprep.subr.mxu0 %v4289
        %v4291 = vand.u32 %v4125, 4294901760
        %v4292 = vsub.f32 %v4125, %v4291
        %v4293 = vand.u32 %v4292, 4294901760
        %v4294 = vsub.f32 %v4292, %v4293
        %v4295 = vand.u32 %v4294, 4294901760
        %4296 = vmatpush1.msra.mxu0 %v4295
        %v4297 = vand.u32 %v4128, 4294901760
        %v4298 = vsub.f32 %v4128, %v4297
        %v4299 = vand.u32 %v4298, 4294901760
        %v4300 = vsub.f32 %v4298, %v4299
        %v4301 = vand.u32 %v4300, 4294901760
        %4302 = vmatprep.subr.mxu0 %v4301
        %v4303 = vand.u32 %v4127, 4294901760
        %v4304 = vsub.f32 %v4127, %v4303
        %v4305 = vand.u32 %v4304, 4294901760
        %v4306 = vsub.f32 %v4304, %v4305
        %v4307 = vand.u32 %v4306, 4294901760
        %4308 = vmatpush1.msra.mxu0 %v4307
        %v4309 = vand.u32 %v4130, 4294901760
        %v4310 = vsub.f32 %v4130, %v4309
        %v4311 = vand.u32 %v4310, 4294901760
        %v4312 = vsub.f32 %v4310, %v4311
        %v4313 = vand.u32 %v4312, 4294901760
        %4314 = vmatprep.subr.mxu0 %v4313
        %v4315 = vand.u32 %v4129, 4294901760
        %v4316 = vsub.f32 %v4129, %v4315
        %v4317 = vand.u32 %v4316, 4294901760
        %v4318 = vsub.f32 %v4316, %v4317
        %v4319 = vand.u32 %v4318, 4294901760
        %4320 = vmatpush1.msra.mxu0 %v4319
        %v4321 = vand.u32 %v4132, 4294901760
        %v4322 = vsub.f32 %v4132, %v4321
        %v4323 = vand.u32 %v4322, 4294901760
        %v4324 = vsub.f32 %v4322, %v4323
        %v4325 = vand.u32 %v4324, 4294901760
        %4326 = vmatprep.subr.mxu0 %v4325
        %v4327 = vand.u32 %v4131, 4294901760
        %v4328 = vsub.f32 %v4131, %v4327
        %v4329 = vand.u32 %v4328, 4294901760
        %v4330 = vsub.f32 %v4328, %v4329
        %v4331 = vand.u32 %v4330, 4294901760
        %4332 = vmatpush1.msra.mxu0 %v4331
        %v4333 = vand.u32 %v4134, 4294901760
        %v4334 = vsub.f32 %v4134, %v4333
        %v4335 = vand.u32 %v4334, 4294901760
        %v4336 = vsub.f32 %v4334, %v4335
        %v4337 = vand.u32 %v4336, 4294901760
        %4338 = vmatprep.subr.mxu0 %v4337
        %v4339 = vand.u32 %v4133, 4294901760
        %v4340 = vsub.f32 %v4133, %v4339
        %v4341 = vand.u32 %v4340, 4294901760
        %v4342 = vsub.f32 %v4340, %v4341
        %v4343 = vand.u32 %v4342, 4294901760
        %4344 = vmatpush1.msra.mxu0 %v4343
        %v4345 = vand.u32 %v4136, 4294901760
        %v4346 = vsub.f32 %v4136, %v4345
        %v4347 = vand.u32 %v4346, 4294901760
        %v4348 = vsub.f32 %v4346, %v4347
        %v4349 = vand.u32 %v4348, 4294901760
        %4350 = vmatprep.subr.mxu0 %v4349
        %v4351 = vand.u32 %v4135, 4294901760
        %v4352 = vsub.f32 %v4135, %v4351
        %v4353 = vand.u32 %v4352, 4294901760
        %v4354 = vsub.f32 %v4352, %v4353
        %v4355 = vand.u32 %v4354, 4294901760
        %4356 = vmatpush1.msra.mxu0 %v4355
        %v4357 = vand.u32 %v4138, 4294901760
        %v4358 = vsub.f32 %v4138, %v4357
        %v4359 = vand.u32 %v4358, 4294901760
        %v4360 = vsub.f32 %v4358, %v4359
        %v4361 = vand.u32 %v4360, 4294901760
        %4362 = vmatprep.subr.mxu0 %v4361
        %v4363 = vand.u32 %v4137, 4294901760
        %v4364 = vsub.f32 %v4137, %v4363
        %v4365 = vand.u32 %v4364, 4294901760
        %v4366 = vsub.f32 %v4364, %v4365
        %v4367 = vand.u32 %v4366, 4294901760
        %4368 = vmatpush1.msra.mxu0 %v4367
        %v4369 = vand.u32 %v4140, 4294901760
        %v4370 = vsub.f32 %v4140, %v4369
        %v4371 = vand.u32 %v4370, 4294901760
        %v4372 = vsub.f32 %v4370, %v4371
        %v4373 = vand.u32 %v4372, 4294901760
        %4374 = vmatprep.subr.mxu0 %v4373
        %v4375 = vand.u32 %v4139, 4294901760
        %v4376 = vsub.f32 %v4139, %v4375
        %v4377 = vand.u32 %v4376, 4294901760
        %v4378 = vsub.f32 %v4376, %v4377
        %v4379 = vand.u32 %v4378, 4294901760
        %4380 = vmatpush1.msra.mxu0 %v4379
        %v4381 = vand.u32 %v4142, 4294901760
        %v4382 = vsub.f32 %v4142, %v4381
        %v4383 = vand.u32 %v4382, 4294901760
        %v4384 = vsub.f32 %v4382, %v4383
        %v4385 = vand.u32 %v4384, 4294901760
        %4386 = vmatprep.subr.mxu0 %v4385
        %v4387 = vand.u32 %v4141, 4294901760
        %v4388 = vsub.f32 %v4141, %v4387
        %v4389 = vand.u32 %v4388, 4294901760
        %v4390 = vsub.f32 %v4388, %v4389
        %v4391 = vand.u32 %v4390, 4294901760
        %4392 = vmatpush1.msra.mxu0 %v4391
        %v4393 = vand.u32 %v4144, 4294901760
        %v4394 = vsub.f32 %v4144, %v4393
        %v4395 = vand.u32 %v4394, 4294901760
        %v4396 = vsub.f32 %v4394, %v4395
        %v4397 = vand.u32 %v4396, 4294901760
        %4398 = vmatprep.subr.mxu0 %v4397
        %v4399 = vand.u32 %v4143, 4294901760
        %v4400 = vsub.f32 %v4143, %v4399
        %v4401 = vand.u32 %v4400, 4294901760
        %v4402 = vsub.f32 %v4400, %v4401
        %v4403 = vand.u32 %v4402, 4294901760
        %4404 = vmatpush1.msra.mxu0 %v4403
        %v4405 = vand.u32 %v4146, 4294901760
        %v4406 = vsub.f32 %v4146, %v4405
        %v4407 = vand.u32 %v4406, 4294901760
        %v4408 = vsub.f32 %v4406, %v4407
        %v4409 = vand.u32 %v4408, 4294901760
        %4410 = vmatprep.subr.mxu0 %v4409
        %v4411 = vand.u32 %v4145, 4294901760
        %v4412 = vsub.f32 %v4145, %v4411
        %v4413 = vand.u32 %v4412, 4294901760
        %v4414 = vsub.f32 %v4412, %v4413
        %v4415 = vand.u32 %v4414, 4294901760
        %4416 = vmatpush1.msra.mxu0 %v4415
        %v4417 = vand.u32 %v4148, 4294901760
        %v4418 = vsub.f32 %v4148, %v4417
        %v4419 = vand.u32 %v4418, 4294901760
        %v4420 = vsub.f32 %v4418, %v4419
        %v4421 = vand.u32 %v4420, 4294901760
        %4422 = vmatprep.subr.mxu0 %v4421
        %v4423 = vand.u32 %v4147, 4294901760
        %v4424 = vsub.f32 %v4147, %v4423
        %v4425 = vand.u32 %v4424, 4294901760
        %v4426 = vsub.f32 %v4424, %v4425
        %v4427 = vand.u32 %v4426, 4294901760
        %4428 = vmatpush1.msra.mxu0 %v4427
        %v4429 = vand.u32 %v4150, 4294901760
        %v4430 = vsub.f32 %v4150, %v4429
        %v4431 = vand.u32 %v4430, 4294901760
        %v4432 = vsub.f32 %v4430, %v4431
        %v4433 = vand.u32 %v4432, 4294901760
        %4434 = vmatprep.subr.mxu0 %v4433
        %v4435 = vand.u32 %v4149, 4294901760
        %v4436 = vsub.f32 %v4149, %v4435
        %v4437 = vand.u32 %v4436, 4294901760
        %v4438 = vsub.f32 %v4436, %v4437
        %v4439 = vand.u32 %v4438, 4294901760
        %4440 = vmatpush1.msra.mxu0 %v4439
        %v4441 = vand.u32 %v4152, 4294901760
        %v4442 = vsub.f32 %v4152, %v4441
        %v4443 = vand.u32 %v4442, 4294901760
        %v4444 = vsub.f32 %v4442, %v4443
        %v4445 = vand.u32 %v4444, 4294901760
        %4446 = vmatprep.subr.mxu0 %v4445
        %v4447 = vand.u32 %v4151, 4294901760
        %v4448 = vsub.f32 %v4151, %v4447
        %v4449 = vand.u32 %v4448, 4294901760
        %v4450 = vsub.f32 %v4448, %v4449
        %v4451 = vand.u32 %v4450, 4294901760
        %4452 = vmatpush1.msra.mxu0 %v4451
        %4453 = vmatprep.subr.mxu0 0.0
        %4454 = vmatpush1.msra.mxu0 0.0
        %4455 = vmatprep.subr.mxu0 0.0
        %4456 = vmatpush1.msra.mxu0 0.0
        %4457 = vmatprep.subr.mxu0 0.0
        %4458 = vmatpush1.msra.mxu0 0.0
        %4459 = vmatprep.subr.mxu0 0.0
        %4460 = vmatpush1.msra.mxu0 0.0
        %4461 = vmatprep.subr.mxu0 0.0
        %4462 = vmatpush1.msra.mxu0 0.0
        %4463 = vmatprep.subr.mxu0 0.0
        %4464 = vmatpush1.msra.mxu0 0.0
        %4465 = vmatprep.subr.mxu0 0.0
        %4466 = vmatpush1.msra.mxu0 0.0
        %4467 = vmatprep.subr.mxu0 0.0
        %4468 = vmatpush1.msra.mxu0 0.0
        %4469 = vmatprep.subr.mxu0 0.0
        %4470 = vmatpush1.msra.mxu0 0.0
        %4471 = vmatprep.subr.mxu0 0.0
        %4472 = vmatpush1.msra.mxu0 0.0
        %4473 = vmatprep.subr.mxu0 0.0
        %4474 = vmatpush1.msra.mxu0 0.0
        %4475 = vmatprep.subr.mxu0 0.0
        %4476 = vmatpush1.msra.mxu0 0.0
        %4477 = vmatprep.subr.mxu0 0.0
        %4478 = vmatpush1.msra.mxu0 0.0
        %4479 = vmatprep.subr.mxu0 0.0
        %4480 = vmatpush1.msra.mxu0 0.0
        %4481 = vmatprep.subr.mxu0 0.0
        %4482 = vmatpush1.msra.mxu0 0.0
        %4483 = vmatprep.subr.mxu0 0.0
        %4484 = vmatpush1.msra.mxu0 0.0
        %4485 = vmatprep.mubr.f32.mxu0 0.0
        %v4486 = vand.u32 %v4119, 4294901760
        %4487 = vmatmul.mubr.f32.gmra.mrb[0].mxu0 %v4486
        %v4488 = vpop.f32.mrb[0].mxu0
        %v4489 = vadd.f32 %v4257, %v4488
        %v4490 = vpop.f32.mrb[0].mxu0
        %v4491 = vadd.f32 %v4259, %v4490
        %4492 = vdwg.mxu0
        %v4493 = vand.u32 %v4122, 4294901760
        %v4494 = vsub.f32 %v4122, %v4493
        %4495 = vmatprep.subr.mxu0 %v4494
        %v4496 = vand.u32 %v4121, 4294901760
        %v4497 = vsub.f32 %v4121, %v4496
        %4498 = vmatpush1.msra.mxu0 %v4497
        %v4499 = vand.u32 %v4124, 4294901760
        %v4500 = vsub.f32 %v4124, %v4499
        %4501 = vmatprep.subr.mxu0 %v4500
        %v4502 = vand.u32 %v4123, 4294901760
        %v4503 = vsub.f32 %v4123, %v4502
        %4504 = vmatpush1.msra.mxu0 %v4503
        %v4505 = vand.u32 %v4126, 4294901760
        %v4506 = vsub.f32 %v4126, %v4505
        %4507 = vmatprep.subr.mxu0 %v4506
        %v4508 = vand.u32 %v4125, 4294901760
        %v4509 = vsub.f32 %v4125, %v4508
        %4510 = vmatpush1.msra.mxu0 %v4509
        %v4511 = vand.u32 %v4128, 4294901760
        %v4512 = vsub.f32 %v4128, %v4511
        %4513 = vmatprep.subr.mxu0 %v4512
        %v4514 = vand.u32 %v4127, 4294901760
        %v4515 = vsub.f32 %v4127, %v4514
        %4516 = vmatpush1.msra.mxu0 %v4515
        %v4517 = vand.u32 %v4130, 4294901760
        %v4518 = vsub.f32 %v4130, %v4517
        %4519 = vmatprep.subr.mxu0 %v4518
        %v4520 = vand.u32 %v4129, 4294901760
        %v4521 = vsub.f32 %v4129, %v4520
        %4522 = vmatpush1.msra.mxu0 %v4521
        %v4523 = vand.u32 %v4132, 4294901760
        %v4524 = vsub.f32 %v4132, %v4523
        %4525 = vmatprep.subr.mxu0 %v4524
        %v4526 = vand.u32 %v4131, 4294901760
        %v4527 = vsub.f32 %v4131, %v4526
        %4528 = vmatpush1.msra.mxu0 %v4527
        %v4529 = vand.u32 %v4134, 4294901760
        %v4530 = vsub.f32 %v4134, %v4529
        %4531 = vmatprep.subr.mxu0 %v4530
        %v4532 = vand.u32 %v4133, 4294901760
        %v4533 = vsub.f32 %v4133, %v4532
        %4534 = vmatpush1.msra.mxu0 %v4533
        %v4535 = vand.u32 %v4136, 4294901760
        %v4536 = vsub.f32 %v4136, %v4535
        %4537 = vmatprep.subr.mxu0 %v4536
        %v4538 = vand.u32 %v4135, 4294901760
        %v4539 = vsub.f32 %v4135, %v4538
        %4540 = vmatpush1.msra.mxu0 %v4539
        %v4541 = vand.u32 %v4138, 4294901760
        %v4542 = vsub.f32 %v4138, %v4541
        %4543 = vmatprep.subr.mxu0 %v4542
        %v4544 = vand.u32 %v4137, 4294901760
        %v4545 = vsub.f32 %v4137, %v4544
        %4546 = vmatpush1.msra.mxu0 %v4545
        %v4547 = vand.u32 %v4140, 4294901760
        %v4548 = vsub.f32 %v4140, %v4547
        %4549 = vmatprep.subr.mxu0 %v4548
        %v4550 = vand.u32 %v4139, 4294901760
        %v4551 = vsub.f32 %v4139, %v4550
        %4552 = vmatpush1.msra.mxu0 %v4551
        %v4553 = vand.u32 %v4142, 4294901760
        %v4554 = vsub.f32 %v4142, %v4553
        %4555 = vmatprep.subr.mxu0 %v4554
        %v4556 = vand.u32 %v4141, 4294901760
        %v4557 = vsub.f32 %v4141, %v4556
        %4558 = vmatpush1.msra.mxu0 %v4557
        %v4559 = vand.u32 %v4144, 4294901760
        %v4560 = vsub.f32 %v4144, %v4559
        %4561 = vmatprep.subr.mxu0 %v4560
        %v4562 = vand.u32 %v4143, 4294901760
        %v4563 = vsub.f32 %v4143, %v4562
        %4564 = vmatpush1.msra.mxu0 %v4563
        %v4565 = vand.u32 %v4146, 4294901760
        %v4566 = vsub.f32 %v4146, %v4565
        %4567 = vmatprep.subr.mxu0 %v4566
        %v4568 = vand.u32 %v4145, 4294901760
        %v4569 = vsub.f32 %v4145, %v4568
        %4570 = vmatpush1.msra.mxu0 %v4569
        %v4571 = vand.u32 %v4148, 4294901760
        %v4572 = vsub.f32 %v4148, %v4571
        %4573 = vmatprep.subr.mxu0 %v4572
        %v4574 = vand.u32 %v4147, 4294901760
        %v4575 = vsub.f32 %v4147, %v4574
        %4576 = vmatpush1.msra.mxu0 %v4575
        %v4577 = vand.u32 %v4150, 4294901760
        %v4578 = vsub.f32 %v4150, %v4577
        %4579 = vmatprep.subr.mxu0 %v4578
        %v4580 = vand.u32 %v4149, 4294901760
        %v4581 = vsub.f32 %v4149, %v4580
        %4582 = vmatpush1.msra.mxu0 %v4581
        %v4583 = vand.u32 %v4152, 4294901760
        %v4584 = vsub.f32 %v4152, %v4583
        %4585 = vmatprep.subr.mxu0 %v4584
        %v4586 = vand.u32 %v4151, 4294901760
        %v4587 = vsub.f32 %v4151, %v4586
        %4588 = vmatpush1.msra.mxu0 %v4587
        %4589 = vmatprep.subr.mxu0 0.0
        %4590 = vmatpush1.msra.mxu0 0.0
        %4591 = vmatprep.subr.mxu0 0.0
        %4592 = vmatpush1.msra.mxu0 0.0
        %4593 = vmatprep.subr.mxu0 0.0
        %4594 = vmatpush1.msra.mxu0 0.0
        %4595 = vmatprep.subr.mxu0 0.0
        %4596 = vmatpush1.msra.mxu0 0.0
        %4597 = vmatprep.subr.mxu0 0.0
        %4598 = vmatpush1.msra.mxu0 0.0
        %4599 = vmatprep.subr.mxu0 0.0
        %4600 = vmatpush1.msra.mxu0 0.0
        %4601 = vmatprep.subr.mxu0 0.0
        %4602 = vmatpush1.msra.mxu0 0.0
        %4603 = vmatprep.subr.mxu0 0.0
        %4604 = vmatpush1.msra.mxu0 0.0
        %4605 = vmatprep.subr.mxu0 0.0
        %4606 = vmatpush1.msra.mxu0 0.0
        %4607 = vmatprep.subr.mxu0 0.0
        %4608 = vmatpush1.msra.mxu0 0.0
        %4609 = vmatprep.subr.mxu0 0.0
        %4610 = vmatpush1.msra.mxu0 0.0
        %4611 = vmatprep.subr.mxu0 0.0
        %4612 = vmatpush1.msra.mxu0 0.0
        %4613 = vmatprep.subr.mxu0 0.0
        %4614 = vmatpush1.msra.mxu0 0.0
        %4615 = vmatprep.subr.mxu0 0.0
        %4616 = vmatpush1.msra.mxu0 0.0
        %4617 = vmatprep.subr.mxu0 0.0
        %4618 = vmatpush1.msra.mxu0 0.0
        %4619 = vmatprep.subr.mxu0 0.0
        %4620 = vmatpush1.msra.mxu0 0.0
        %4621 = vmatprep.mubr.f32.mxu0 0.0
        %v4622 = vand.u32 %v4119, 4294901760
        %v4623 = vsub.f32 %v4119, %v4622
        %4624 = vmatmul.mubr.f32.gmra.mrb[0].mxu0 %v4623
        %v4625 = vpop.f32.mrb[0].mxu0
        %v4626 = vadd.f32 %v4489, %v4625
        %v4627 = vpop.f32.mrb[0].mxu0
        %v4628 = vadd.f32 %v4491, %v4627
        %4629 = vdwg.mxu0
        %v4630 = vand.u32 %v4122, 4294901760
        %4631 = vmatprep.subr.mxu0 %v4630
        %v4632 = vand.u32 %v4121, 4294901760
        %4633 = vmatpush1.msra.mxu0 %v4632
        %v4634 = vand.u32 %v4124, 4294901760
        %4635 = vmatprep.subr.mxu0 %v4634
        %v4636 = vand.u32 %v4123, 4294901760
        %4637 = vmatpush1.msra.mxu0 %v4636
        %v4638 = vand.u32 %v4126, 4294901760
        %4639 = vmatprep.subr.mxu0 %v4638
        %v4640 = vand.u32 %v4125, 4294901760
        %4641 = vmatpush1.msra.mxu0 %v4640
        %v4642 = vand.u32 %v4128, 4294901760
        %4643 = vmatprep.subr.mxu0 %v4642
        %v4644 = vand.u32 %v4127, 4294901760
        %4645 = vmatpush1.msra.mxu0 %v4644
        %v4646 = vand.u32 %v4130, 4294901760
        %4647 = vmatprep.subr.mxu0 %v4646
        %v4648 = vand.u32 %v4129, 4294901760
        %4649 = vmatpush1.msra.mxu0 %v4648
        %v4650 = vand.u32 %v4132, 4294901760
        %4651 = vmatprep.subr.mxu0 %v4650
        %v4652 = vand.u32 %v4131, 4294901760
        %4653 = vmatpush1.msra.mxu0 %v4652
        %v4654 = vand.u32 %v4134, 4294901760
        %4655 = vmatprep.subr.mxu0 %v4654
        %v4656 = vand.u32 %v4133, 4294901760
        %4657 = vmatpush1.msra.mxu0 %v4656
        %v4658 = vand.u32 %v4136, 4294901760
        %4659 = vmatprep.subr.mxu0 %v4658
        %v4660 = vand.u32 %v4135, 4294901760
        %4661 = vmatpush1.msra.mxu0 %v4660
        %v4662 = vand.u32 %v4138, 4294901760
        %4663 = vmatprep.subr.mxu0 %v4662
        %v4664 = vand.u32 %v4137, 4294901760
        %4665 = vmatpush1.msra.mxu0 %v4664
        %v4666 = vand.u32 %v4140, 4294901760
        %4667 = vmatprep.subr.mxu0 %v4666
        %v4668 = vand.u32 %v4139, 4294901760
        %4669 = vmatpush1.msra.mxu0 %v4668
        %v4670 = vand.u32 %v4142, 4294901760
        %4671 = vmatprep.subr.mxu0 %v4670
        %v4672 = vand.u32 %v4141, 4294901760
        %4673 = vmatpush1.msra.mxu0 %v4672
        %v4674 = vand.u32 %v4144, 4294901760
        %4675 = vmatprep.subr.mxu0 %v4674
        %v4676 = vand.u32 %v4143, 4294901760
        %4677 = vmatpush1.msra.mxu0 %v4676
        %v4678 = vand.u32 %v4146, 4294901760
        %4679 = vmatprep.subr.mxu0 %v4678
        %v4680 = vand.u32 %v4145, 4294901760
        %4681 = vmatpush1.msra.mxu0 %v4680
        %v4682 = vand.u32 %v4148, 4294901760
        %4683 = vmatprep.subr.mxu0 %v4682
        %v4684 = vand.u32 %v4147, 4294901760
        %4685 = vmatpush1.msra.mxu0 %v4684
        %v4686 = vand.u32 %v4150, 4294901760
        %4687 = vmatprep.subr.mxu0 %v4686
        %v4688 = vand.u32 %v4149, 4294901760
        %4689 = vmatpush1.msra.mxu0 %v4688
        %v4690 = vand.u32 %v4152, 4294901760
        %4691 = vmatprep.subr.mxu0 %v4690
        %v4692 = vand.u32 %v4151, 4294901760
        %4693 = vmatpush1.msra.mxu0 %v4692
        %4694 = vmatprep.subr.mxu0 0.0
        %4695 = vmatpush1.msra.mxu0 0.0
        %4696 = vmatprep.subr.mxu0 0.0
        %4697 = vmatpush1.msra.mxu0 0.0
        %4698 = vmatprep.subr.mxu0 0.0
        %4699 = vmatpush1.msra.mxu0 0.0
        %4700 = vmatprep.subr.mxu0 0.0
        %4701 = vmatpush1.msra.mxu0 0.0
        %4702 = vmatprep.subr.mxu0 0.0
        %4703 = vmatpush1.msra.mxu0 0.0
        %4704 = vmatprep.subr.mxu0 0.0
        %4705 = vmatpush1.msra.mxu0 0.0
        %4706 = vmatprep.subr.mxu0 0.0
        %4707 = vmatpush1.msra.mxu0 0.0
        %4708 = vmatprep.subr.mxu0 0.0
        %4709 = vmatpush1.msra.mxu0 0.0
        %4710 = vmatprep.subr.mxu0 0.0
        %4711 = vmatpush1.msra.mxu0 0.0
        %4712 = vmatprep.subr.mxu0 0.0
        %4713 = vmatpush1.msra.mxu0 0.0
        %4714 = vmatprep.subr.mxu0 0.0
        %4715 = vmatpush1.msra.mxu0 0.0
        %4716 = vmatprep.subr.mxu0 0.0
        %4717 = vmatpush1.msra.mxu0 0.0
        %4718 = vmatprep.subr.mxu0 0.0
        %4719 = vmatpush1.msra.mxu0 0.0
        %4720 = vmatprep.subr.mxu0 0.0
        %4721 = vmatpush1.msra.mxu0 0.0
        %4722 = vmatprep.subr.mxu0 0.0
        %4723 = vmatpush1.msra.mxu0 0.0
        %4724 = vmatprep.subr.mxu0 0.0
        %4725 = vmatpush1.msra.mxu0 0.0
        %4726 = vmatprep.mubr.f32.mxu0 0.0
        %v4727 = vand.u32 %v4119, 4294901760
        %v4728 = vsub.f32 %v4119, %v4727
        %v4729 = vand.u32 %v4728, 4294901760
        %4730 = vmatmul.mubr.f32.gmra.mrb[0].mxu0 %v4729
        %v4731 = vpop.f32.mrb[0].mxu0
        %v4732 = vadd.f32 %v4626, %v4731
        %v4733 = vpop.f32.mrb[0].mxu0
        %v4734 = vadd.f32 %v4628, %v4733
        %4735 = vdwg.mxu0
        %v4736 = vand.u32 %v4122, 4294901760
        %v4737 = vsub.f32 %v4122, %v4736
        %v4738 = vand.u32 %v4737, 4294901760
        %4739 = vmatprep.subr.mxu0 %v4738
        %v4740 = vand.u32 %v4121, 4294901760
        %v4741 = vsub.f32 %v4121, %v4740
        %v4742 = vand.u32 %v4741, 4294901760
        %4743 = vmatpush1.msra.mxu0 %v4742
        %v4744 = vand.u32 %v4124, 4294901760
        %v4745 = vsub.f32 %v4124, %v4744
        %v4746 = vand.u32 %v4745, 4294901760
        %4747 = vmatprep.subr.mxu0 %v4746
        %v4748 = vand.u32 %v4123, 4294901760
        %v4749 = vsub.f32 %v4123, %v4748
        %v4750 = vand.u32 %v4749, 4294901760
        %4751 = vmatpush1.msra.mxu0 %v4750
        %v4752 = vand.u32 %v4126, 4294901760
        %v4753 = vsub.f32 %v4126, %v4752
        %v4754 = vand.u32 %v4753, 4294901760
        %4755 = vmatprep.subr.mxu0 %v4754
        %v4756 = vand.u32 %v4125, 4294901760
        %v4757 = vsub.f32 %v4125, %v4756
        %v4758 = vand.u32 %v4757, 4294901760
        %4759 = vmatpush1.msra.mxu0 %v4758
        %v4760 = vand.u32 %v4128, 4294901760
        %v4761 = vsub.f32 %v4128, %v4760
        %v4762 = vand.u32 %v4761, 4294901760
        %4763 = vmatprep.subr.mxu0 %v4762
        %v4764 = vand.u32 %v4127, 4294901760
        %v4765 = vsub.f32 %v4127, %v4764
        %v4766 = vand.u32 %v4765, 4294901760
        %4767 = vmatpush1.msra.mxu0 %v4766
        %v4768 = vand.u32 %v4130, 4294901760
        %v4769 = vsub.f32 %v4130, %v4768
        %v4770 = vand.u32 %v4769, 4294901760
        %4771 = vmatprep.subr.mxu0 %v4770
        %v4772 = vand.u32 %v4129, 4294901760
        %v4773 = vsub.f32 %v4129, %v4772
        %v4774 = vand.u32 %v4773, 4294901760
        %4775 = vmatpush1.msra.mxu0 %v4774
        %v4776 = vand.u32 %v4132, 4294901760
        %v4777 = vsub.f32 %v4132, %v4776
        %v4778 = vand.u32 %v4777, 4294901760
        %4779 = vmatprep.subr.mxu0 %v4778
        %v4780 = vand.u32 %v4131, 4294901760
        %v4781 = vsub.f32 %v4131, %v4780
        %v4782 = vand.u32 %v4781, 4294901760
        %4783 = vmatpush1.msra.mxu0 %v4782
        %v4784 = vand.u32 %v4134, 4294901760
        %v4785 = vsub.f32 %v4134, %v4784
        %v4786 = vand.u32 %v4785, 4294901760
        %4787 = vmatprep.subr.mxu0 %v4786
        %v4788 = vand.u32 %v4133, 4294901760
        %v4789 = vsub.f32 %v4133, %v4788
        %v4790 = vand.u32 %v4789, 4294901760
        %4791 = vmatpush1.msra.mxu0 %v4790
        %v4792 = vand.u32 %v4136, 4294901760
        %v4793 = vsub.f32 %v4136, %v4792
        %v4794 = vand.u32 %v4793, 4294901760
        %4795 = vmatprep.subr.mxu0 %v4794
        %v4796 = vand.u32 %v4135, 4294901760
        %v4797 = vsub.f32 %v4135, %v4796
        %v4798 = vand.u32 %v4797, 4294901760
        %4799 = vmatpush1.msra.mxu0 %v4798
        %v4800 = vand.u32 %v4138, 4294901760
        %v4801 = vsub.f32 %v4138, %v4800
        %v4802 = vand.u32 %v4801, 4294901760
        %4803 = vmatprep.subr.mxu0 %v4802
        %v4804 = vand.u32 %v4137, 4294901760
        %v4805 = vsub.f32 %v4137, %v4804
        %v4806 = vand.u32 %v4805, 4294901760
        %4807 = vmatpush1.msra.mxu0 %v4806
        %v4808 = vand.u32 %v4140, 4294901760
        %v4809 = vsub.f32 %v4140, %v4808
        %v4810 = vand.u32 %v4809, 4294901760
        %4811 = vmatprep.subr.mxu0 %v4810
        %v4812 = vand.u32 %v4139, 4294901760
        %v4813 = vsub.f32 %v4139, %v4812
        %v4814 = vand.u32 %v4813, 4294901760
        %4815 = vmatpush1.msra.mxu0 %v4814
        %v4816 = vand.u32 %v4142, 4294901760
        %v4817 = vsub.f32 %v4142, %v4816
        %v4818 = vand.u32 %v4817, 4294901760
        %4819 = vmatprep.subr.mxu0 %v4818
        %v4820 = vand.u32 %v4141, 4294901760
        %v4821 = vsub.f32 %v4141, %v4820
        %v4822 = vand.u32 %v4821, 4294901760
        %4823 = vmatpush1.msra.mxu0 %v4822
        %v4824 = vand.u32 %v4144, 4294901760
        %v4825 = vsub.f32 %v4144, %v4824
        %v4826 = vand.u32 %v4825, 4294901760
        %4827 = vmatprep.subr.mxu0 %v4826
        %v4828 = vand.u32 %v4143, 4294901760
        %v4829 = vsub.f32 %v4143, %v4828
        %v4830 = vand.u32 %v4829, 4294901760
        %4831 = vmatpush1.msra.mxu0 %v4830
        %v4832 = vand.u32 %v4146, 4294901760
        %v4833 = vsub.f32 %v4146, %v4832
        %v4834 = vand.u32 %v4833, 4294901760
        %4835 = vmatprep.subr.mxu0 %v4834
        %v4836 = vand.u32 %v4145, 4294901760
        %v4837 = vsub.f32 %v4145, %v4836
        %v4838 = vand.u32 %v4837, 4294901760
        %4839 = vmatpush1.msra.mxu0 %v4838
        %v4840 = vand.u32 %v4148, 4294901760
        %v4841 = vsub.f32 %v4148, %v4840
        %v4842 = vand.u32 %v4841, 4294901760
        %4843 = vmatprep.subr.mxu0 %v4842
        %v4844 = vand.u32 %v4147, 4294901760
        %v4845 = vsub.f32 %v4147, %v4844
        %v4846 = vand.u32 %v4845, 4294901760
        %4847 = vmatpush1.msra.mxu0 %v4846
        %v4848 = vand.u32 %v4150, 4294901760
        %v4849 = vsub.f32 %v4150, %v4848
        %v4850 = vand.u32 %v4849, 4294901760
        %4851 = vmatprep.subr.mxu0 %v4850
        %v4852 = vand.u32 %v4149, 4294901760
        %v4853 = vsub.f32 %v4149, %v4852
        %v4854 = vand.u32 %v4853, 4294901760
        %4855 = vmatpush1.msra.mxu0 %v4854
        %v4856 = vand.u32 %v4152, 4294901760
        %v4857 = vsub.f32 %v4152, %v4856
        %v4858 = vand.u32 %v4857, 4294901760
        %4859 = vmatprep.subr.mxu0 %v4858
        %v4860 = vand.u32 %v4151, 4294901760
        %v4861 = vsub.f32 %v4151, %v4860
        %v4862 = vand.u32 %v4861, 4294901760
        %4863 = vmatpush1.msra.mxu0 %v4862
        %4864 = vmatprep.subr.mxu0 0.0
        %4865 = vmatpush1.msra.mxu0 0.0
        %4866 = vmatprep.subr.mxu0 0.0
        %4867 = vmatpush1.msra.mxu0 0.0
        %4868 = vmatprep.subr.mxu0 0.0
        %4869 = vmatpush1.msra.mxu0 0.0
        %4870 = vmatprep.subr.mxu0 0.0
        %4871 = vmatpush1.msra.mxu0 0.0
        %4872 = vmatprep.subr.mxu0 0.0
        %4873 = vmatpush1.msra.mxu0 0.0
        %4874 = vmatprep.subr.mxu0 0.0
        %4875 = vmatpush1.msra.mxu0 0.0
        %4876 = vmatprep.subr.mxu0 0.0
        %4877 = vmatpush1.msra.mxu0 0.0
        %4878 = vmatprep.subr.mxu0 0.0
        %4879 = vmatpush1.msra.mxu0 0.0
        %4880 = vmatprep.subr.mxu0 0.0
        %4881 = vmatpush1.msra.mxu0 0.0
        %4882 = vmatprep.subr.mxu0 0.0
        %4883 = vmatpush1.msra.mxu0 0.0
        %4884 = vmatprep.subr.mxu0 0.0
        %4885 = vmatpush1.msra.mxu0 0.0
        %4886 = vmatprep.subr.mxu0 0.0
        %4887 = vmatpush1.msra.mxu0 0.0
        %4888 = vmatprep.subr.mxu0 0.0
        %4889 = vmatpush1.msra.mxu0 0.0
        %4890 = vmatprep.subr.mxu0 0.0
        %4891 = vmatpush1.msra.mxu0 0.0
        %4892 = vmatprep.subr.mxu0 0.0
        %4893 = vmatpush1.msra.mxu0 0.0
        %4894 = vmatprep.subr.mxu0 0.0
        %4895 = vmatpush1.msra.mxu0 0.0
        %4896 = vmatprep.mubr.f32.mxu0 0.0
        %v4897 = vand.u32 %v4119, 4294901760
        %4898 = vmatmul.mubr.f32.gmra.mrb[0].mxu0 %v4897
        %v4899 = vpop.f32.mrb[0].mxu0
        %v4900 = vadd.f32 %v4732, %v4899
        %v4901 = vpop.f32.mrb[0].mxu0
        %v4902 = vadd.f32 %v4734, %v4901
        %4903 = vdwg.mxu0
        %v4904 = vand.u32 %v4122, 4294901760
        %4905 = vmatprep.subr.mxu0 %v4904
        %v4906 = vand.u32 %v4121, 4294901760
        %4907 = vmatpush1.msra.mxu0 %v4906
        %v4908 = vand.u32 %v4124, 4294901760
        %4909 = vmatprep.subr.mxu0 %v4908
        %v4910 = vand.u32 %v4123, 4294901760
        %4911 = vmatpush1.msra.mxu0 %v4910
        %v4912 = vand.u32 %v4126, 4294901760
        %4913 = vmatprep.subr.mxu0 %v4912
        %v4914 = vand.u32 %v4125, 4294901760
        %4915 = vmatpush1.msra.mxu0 %v4914
        %v4916 = vand.u32 %v4128, 4294901760
        %4917 = vmatprep.subr.mxu0 %v4916
        %v4918 = vand.u32 %v4127, 4294901760
        %4919 = vmatpush1.msra.mxu0 %v4918
        %v4920 = vand.u32 %v4130, 4294901760
        %4921 = vmatprep.subr.mxu0 %v4920
        %v4922 = vand.u32 %v4129, 4294901760
        %4923 = vmatpush1.msra.mxu0 %v4922
        %v4924 = vand.u32 %v4132, 4294901760
        %4925 = vmatprep.subr.mxu0 %v4924
        %v4926 = vand.u32 %v4131, 4294901760
        %4927 = vmatpush1.msra.mxu0 %v4926
        %v4928 = vand.u32 %v4134, 4294901760
        %4929 = vmatprep.subr.mxu0 %v4928
        %v4930 = vand.u32 %v4133, 4294901760
        %4931 = vmatpush1.msra.mxu0 %v4930
        %v4932 = vand.u32 %v4136, 4294901760
        %4933 = vmatprep.subr.mxu0 %v4932
        %v4934 = vand.u32 %v4135, 4294901760
        %4935 = vmatpush1.msra.mxu0 %v4934
        %v4936 = vand.u32 %v4138, 4294901760
        %4937 = vmatprep.subr.mxu0 %v4936
        %v4938 = vand.u32 %v4137, 4294901760
        %4939 = vmatpush1.msra.mxu0 %v4938
        %v4940 = vand.u32 %v4140, 4294901760
        %4941 = vmatprep.subr.mxu0 %v4940
        %v4942 = vand.u32 %v4139, 4294901760
        %4943 = vmatpush1.msra.mxu0 %v4942
        %v4944 = vand.u32 %v4142, 4294901760
        %4945 = vmatprep.subr.mxu0 %v4944
        %v4946 = vand.u32 %v4141, 4294901760
        %4947 = vmatpush1.msra.mxu0 %v4946
        %v4948 = vand.u32 %v4144, 4294901760
        %4949 = vmatprep.subr.mxu0 %v4948
        %v4950 = vand.u32 %v4143, 4294901760
        %4951 = vmatpush1.msra.mxu0 %v4950
        %v4952 = vand.u32 %v4146, 4294901760
        %4953 = vmatprep.subr.mxu0 %v4952
        %v4954 = vand.u32 %v4145, 4294901760
        %4955 = vmatpush1.msra.mxu0 %v4954
        %v4956 = vand.u32 %v4148, 4294901760
        %4957 = vmatprep.subr.mxu0 %v4956
        %v4958 = vand.u32 %v4147, 4294901760
        %4959 = vmatpush1.msra.mxu0 %v4958
        %v4960 = vand.u32 %v4150, 4294901760
        %4961 = vmatprep.subr.mxu0 %v4960
        %v4962 = vand.u32 %v4149, 4294901760
        %4963 = vmatpush1.msra.mxu0 %v4962
        %v4964 = vand.u32 %v4152, 4294901760
        %4965 = vmatprep.subr.mxu0 %v4964
        %v4966 = vand.u32 %v4151, 4294901760
        %4967 = vmatpush1.msra.mxu0 %v4966
        %4968 = vmatprep.subr.mxu0 0.0
        %4969 = vmatpush1.msra.mxu0 0.0
        %4970 = vmatprep.subr.mxu0 0.0
        %4971 = vmatpush1.msra.mxu0 0.0
        %4972 = vmatprep.subr.mxu0 0.0
        %4973 = vmatpush1.msra.mxu0 0.0
        %4974 = vmatprep.subr.mxu0 0.0
        %4975 = vmatpush1.msra.mxu0 0.0
        %4976 = vmatprep.subr.mxu0 0.0
        %4977 = vmatpush1.msra.mxu0 0.0
        %4978 = vmatprep.subr.mxu0 0.0
        %4979 = vmatpush1.msra.mxu0 0.0
        %4980 = vmatprep.subr.mxu0 0.0
        %4981 = vmatpush1.msra.mxu0 0.0
        %4982 = vmatprep.subr.mxu0 0.0
        %4983 = vmatpush1.msra.mxu0 0.0
        %4984 = vmatprep.subr.mxu0 0.0
        %4985 = vmatpush1.msra.mxu0 0.0
        %4986 = vmatprep.subr.mxu0 0.0
        %4987 = vmatpush1.msra.mxu0 0.0
        %4988 = vmatprep.subr.mxu0 0.0
        %4989 = vmatpush1.msra.mxu0 0.0
        %4990 = vmatprep.subr.mxu0 0.0
        %4991 = vmatpush1.msra.mxu0 0.0
        %4992 = vmatprep.subr.mxu0 0.0
        %4993 = vmatpush1.msra.mxu0 0.0
        %4994 = vmatprep.subr.mxu0 0.0
        %4995 = vmatpush1.msra.mxu0 0.0
        %4996 = vmatprep.subr.mxu0 0.0
        %4997 = vmatpush1.msra.mxu0 0.0
        %4998 = vmatprep.subr.mxu0 0.0
        %4999 = vmatpush1.msra.mxu0 0.0
        %5000 = vmatprep.mubr.f32.mxu0 0.0
        %v5001 = vand.u32 %v4119, 4294901760
        %5002 = vmatmul.mubr.f32.gmra.mrb[0].mxu0 %v5001
        %v5003 = vpop.f32.mrb[0].mxu0
        %v5004 = vadd.f32 %v4900, %v5003
        %v5005 = vpop.f32.mrb[0].mxu0
        %v5006 = vadd.f32 %v4902, %v5005
        %5007 = vdwg.mxu0
        %v5008 = vand.u32 %v4088, 4294901760
        %5009 = vmatprep.subr.mxu0 %v5008
        %v5010 = vand.u32 %v4087, 4294901760
        %5011 = vmatpush1.msra.mxu0 %v5010
        %v5012 = vand.u32 %v4090, 4294901760
        %5013 = vmatprep.subr.mxu0 %v5012
        %v5014 = vand.u32 %v4089, 4294901760
        %5015 = vmatpush1.msra.mxu0 %v5014
        %v5016 = vand.u32 %v4092, 4294901760
        %5017 = vmatprep.subr.mxu0 %v5016
        %v5018 = vand.u32 %v4091, 4294901760
        %5019 = vmatpush1.msra.mxu0 %v5018
        %v5020 = vand.u32 %v4094, 4294901760
        %5021 = vmatprep.subr.mxu0 %v5020
        %v5022 = vand.u32 %v4093, 4294901760
        %5023 = vmatpush1.msra.mxu0 %v5022
        %v5024 = vand.u32 %v4096, 4294901760
        %5025 = vmatprep.subr.mxu0 %v5024
        %v5026 = vand.u32 %v4095, 4294901760
        %5027 = vmatpush1.msra.mxu0 %v5026
        %v5028 = vand.u32 %v4098, 4294901760
        %5029 = vmatprep.subr.mxu0 %v5028
        %v5030 = vand.u32 %v4097, 4294901760
        %5031 = vmatpush1.msra.mxu0 %v5030
        %v5032 = vand.u32 %v4100, 4294901760
        %5033 = vmatprep.subr.mxu0 %v5032
        %v5034 = vand.u32 %v4099, 4294901760
        %5035 = vmatpush1.msra.mxu0 %v5034
        %v5036 = vand.u32 %v4102, 4294901760
        %5037 = vmatprep.subr.mxu0 %v5036
        %v5038 = vand.u32 %v4101, 4294901760
        %5039 = vmatpush1.msra.mxu0 %v5038
        %v5040 = vand.u32 %v4104, 4294901760
        %5041 = vmatprep.subr.mxu0 %v5040
        %v5042 = vand.u32 %v4103, 4294901760
        %5043 = vmatpush1.msra.mxu0 %v5042
        %v5044 = vand.u32 %v4106, 4294901760
        %5045 = vmatprep.subr.mxu0 %v5044
        %v5046 = vand.u32 %v4105, 4294901760
        %5047 = vmatpush1.msra.mxu0 %v5046
        %v5048 = vand.u32 %v4108, 4294901760
        %5049 = vmatprep.subr.mxu0 %v5048
        %v5050 = vand.u32 %v4107, 4294901760
        %5051 = vmatpush1.msra.mxu0 %v5050
        %v5052 = vand.u32 %v4110, 4294901760
        %5053 = vmatprep.subr.mxu0 %v5052
        %v5054 = vand.u32 %v4109, 4294901760
        %5055 = vmatpush1.msra.mxu0 %v5054
        %v5056 = vand.u32 %v4112, 4294901760
        %5057 = vmatprep.subr.mxu0 %v5056
        %v5058 = vand.u32 %v4111, 4294901760
        %5059 = vmatpush1.msra.mxu0 %v5058
        %v5060 = vand.u32 %v4114, 4294901760
        %5061 = vmatprep.subr.mxu0 %v5060
        %v5062 = vand.u32 %v4113, 4294901760
        %5063 = vmatpush1.msra.mxu0 %v5062
        %v5064 = vand.u32 %v4116, 4294901760
        %5065 = vmatprep.subr.mxu0 %v5064
        %v5066 = vand.u32 %v4115, 4294901760
        %5067 = vmatpush1.msra.mxu0 %v5066
        %v5068 = vand.u32 %v4118, 4294901760
        %5069 = vmatprep.subr.mxu0 %v5068
        %v5070 = vand.u32 %v4117, 4294901760
        %5071 = vmatpush1.msra.mxu0 %v5070
        %5072 = vmatprep.subr.mxu0 0.0
        %5073 = vmatpush1.msra.mxu0 0.0
        %5074 = vmatprep.subr.mxu0 0.0
        %5075 = vmatpush1.msra.mxu0 0.0
        %5076 = vmatprep.subr.mxu0 0.0
        %5077 = vmatpush1.msra.mxu0 0.0
        %5078 = vmatprep.subr.mxu0 0.0
        %5079 = vmatpush1.msra.mxu0 0.0
        %5080 = vmatprep.subr.mxu0 0.0
        %5081 = vmatpush1.msra.mxu0 0.0
        %5082 = vmatprep.subr.mxu0 0.0
        %5083 = vmatpush1.msra.mxu0 0.0
        %5084 = vmatprep.subr.mxu0 0.0
        %5085 = vmatpush1.msra.mxu0 0.0
        %5086 = vmatprep.subr.mxu0 0.0
        %5087 = vmatpush1.msra.mxu0 0.0
        %5088 = vmatprep.subr.mxu0 0.0
        %5089 = vmatpush1.msra.mxu0 0.0
        %5090 = vmatprep.subr.mxu0 0.0
        %5091 = vmatpush1.msra.mxu0 0.0
        %5092 = vmatprep.subr.mxu0 0.0
        %5093 = vmatpush1.msra.mxu0 0.0
        %5094 = vmatprep.subr.mxu0 0.0
        %5095 = vmatpush1.msra.mxu0 0.0
        %5096 = vmatprep.subr.mxu0 0.0
        %5097 = vmatpush1.msra.mxu0 0.0
        %5098 = vmatprep.subr.mxu0 0.0
        %5099 = vmatpush1.msra.mxu0 0.0
        %5100 = vmatprep.subr.mxu0 0.0
        %5101 = vmatpush1.msra.mxu0 0.0
        %5102 = vmatprep.subr.mxu0 0.0
        %5103 = vmatpush1.msra.mxu0 0.0
        %5104 = vmatprep.mubr.f32.mxu0 0.0
        %v5105 = vand.u32 %v4085, 4294901760
        %v5106 = vsub.f32 %v4085, %v5105
        %v5107 = vand.u32 %v5106, 4294901760
        %v5108 = vsub.f32 %v5106, %v5107
        %v5109 = vand.u32 %v5108, 4294901760
        %5110 = vmatmul.mubr.f32.gmra.mrb[0].mxu0 %v5109
        %v5111 = vpop.f32.mrb[0].mxu0
        %v5112 = vadd.f32 %v5004, %v5111
        %v5113 = vpop.f32.mrb[0].mxu0
        %v5114 = vadd.f32 %v5006, %v5113
        %5115 = vdwg.mxu0
        %v5116 = vand.u32 %v4088, 4294901760
        %v5117 = vsub.f32 %v4088, %v5116
        %v5118 = vand.u32 %v5117, 4294901760
        %v5119 = vsub.f32 %v5117, %v5118
        %v5120 = vand.u32 %v5119, 4294901760
        %5121 = vmatprep.subr.mxu0 %v5120
        %v5122 = vand.u32 %v4087, 4294901760
        %v5123 = vsub.f32 %v4087, %v5122
        %v5124 = vand.u32 %v5123, 4294901760
        %v5125 = vsub.f32 %v5123, %v5124
        %v5126 = vand.u32 %v5125, 4294901760
        %5127 = vmatpush1.msra.mxu0 %v5126
        %v5128 = vand.u32 %v4090, 4294901760
        %v5129 = vsub.f32 %v4090, %v5128
        %v5130 = vand.u32 %v5129, 4294901760
        %v5131 = vsub.f32 %v5129, %v5130
        %v5132 = vand.u32 %v5131, 4294901760
        %5133 = vmatprep.subr.mxu0 %v5132
        %v5134 = vand.u32 %v4089, 4294901760
        %v5135 = vsub.f32 %v4089, %v5134
        %v5136 = vand.u32 %v5135, 4294901760
        %v5137 = vsub.f32 %v5135, %v5136
        %v5138 = vand.u32 %v5137, 4294901760
        %5139 = vmatpush1.msra.mxu0 %v5138
        %v5140 = vand.u32 %v4092, 4294901760
        %v5141 = vsub.f32 %v4092, %v5140
        %v5142 = vand.u32 %v5141, 4294901760
        %v5143 = vsub.f32 %v5141, %v5142
        %v5144 = vand.u32 %v5143, 4294901760
        %5145 = vmatprep.subr.mxu0 %v5144
        %v5146 = vand.u32 %v4091, 4294901760
        %v5147 = vsub.f32 %v4091, %v5146
        %v5148 = vand.u32 %v5147, 4294901760
        %v5149 = vsub.f32 %v5147, %v5148
        %v5150 = vand.u32 %v5149, 4294901760
        %5151 = vmatpush1.msra.mxu0 %v5150
        %v5152 = vand.u32 %v4094, 4294901760
        %v5153 = vsub.f32 %v4094, %v5152
        %v5154 = vand.u32 %v5153, 4294901760
        %v5155 = vsub.f32 %v5153, %v5154
        %v5156 = vand.u32 %v5155, 4294901760
        %5157 = vmatprep.subr.mxu0 %v5156
        %v5158 = vand.u32 %v4093, 4294901760
        %v5159 = vsub.f32 %v4093, %v5158
        %v5160 = vand.u32 %v5159, 4294901760
        %v5161 = vsub.f32 %v5159, %v5160
        %v5162 = vand.u32 %v5161, 4294901760
        %5163 = vmatpush1.msra.mxu0 %v5162
        %v5164 = vand.u32 %v4096, 4294901760
        %v5165 = vsub.f32 %v4096, %v5164
        %v5166 = vand.u32 %v5165, 4294901760
        %v5167 = vsub.f32 %v5165, %v5166
        %v5168 = vand.u32 %v5167, 4294901760
        %5169 = vmatprep.subr.mxu0 %v5168
        %v5170 = vand.u32 %v4095, 4294901760
        %v5171 = vsub.f32 %v4095, %v5170
        %v5172 = vand.u32 %v5171, 4294901760
        %v5173 = vsub.f32 %v5171, %v5172
        %v5174 = vand.u32 %v5173, 4294901760
        %5175 = vmatpush1.msra.mxu0 %v5174
        %v5176 = vand.u32 %v4098, 4294901760
        %v5177 = vsub.f32 %v4098, %v5176
        %v5178 = vand.u32 %v5177, 4294901760
        %v5179 = vsub.f32 %v5177, %v5178
        %v5180 = vand.u32 %v5179, 4294901760
        %5181 = vmatprep.subr.mxu0 %v5180
        %v5182 = vand.u32 %v4097, 4294901760
        %v5183 = vsub.f32 %v4097, %v5182
        %v5184 = vand.u32 %v5183, 4294901760
        %v5185 = vsub.f32 %v5183, %v5184
        %v5186 = vand.u32 %v5185, 4294901760
        %5187 = vmatpush1.msra.mxu0 %v5186
        %v5188 = vand.u32 %v4100, 4294901760
        %v5189 = vsub.f32 %v4100, %v5188
        %v5190 = vand.u32 %v5189, 4294901760
        %v5191 = vsub.f32 %v5189, %v5190
        %v5192 = vand.u32 %v5191, 4294901760
        %5193 = vmatprep.subr.mxu0 %v5192
        %v5194 = vand.u32 %v4099, 4294901760
        %v5195 = vsub.f32 %v4099, %v5194
        %v5196 = vand.u32 %v5195, 4294901760
        %v5197 = vsub.f32 %v5195, %v5196
        %v5198 = vand.u32 %v5197, 4294901760
        %5199 = vmatpush1.msra.mxu0 %v5198
        %v5200 = vand.u32 %v4102, 4294901760
        %v5201 = vsub.f32 %v4102, %v5200
        %v5202 = vand.u32 %v5201, 4294901760
        %v5203 = vsub.f32 %v5201, %v5202
        %v5204 = vand.u32 %v5203, 4294901760
        %5205 = vmatprep.subr.mxu0 %v5204
        %v5206 = vand.u32 %v4101, 4294901760
        %v5207 = vsub.f32 %v4101, %v5206
        %v5208 = vand.u32 %v5207, 4294901760
        %v5209 = vsub.f32 %v5207, %v5208
        %v5210 = vand.u32 %v5209, 4294901760
        %5211 = vmatpush1.msra.mxu0 %v5210
        %v5212 = vand.u32 %v4104, 4294901760
        %v5213 = vsub.f32 %v4104, %v5212
        %v5214 = vand.u32 %v5213, 4294901760
        %v5215 = vsub.f32 %v5213, %v5214
        %v5216 = vand.u32 %v5215, 4294901760
        %5217 = vmatprep.subr.mxu0 %v5216
        %v5218 = vand.u32 %v4103, 4294901760
        %v5219 = vsub.f32 %v4103, %v5218
        %v5220 = vand.u32 %v5219, 4294901760
        %v5221 = vsub.f32 %v5219, %v5220
        %v5222 = vand.u32 %v5221, 4294901760
        %5223 = vmatpush1.msra.mxu0 %v5222
        %v5224 = vand.u32 %v4106, 4294901760
        %v5225 = vsub.f32 %v4106, %v5224
        %v5226 = vand.u32 %v5225, 4294901760
        %v5227 = vsub.f32 %v5225, %v5226
        %v5228 = vand.u32 %v5227, 4294901760
        %5229 = vmatprep.subr.mxu0 %v5228
        %v5230 = vand.u32 %v4105, 4294901760
        %v5231 = vsub.f32 %v4105, %v5230
        %v5232 = vand.u32 %v5231, 4294901760
        %v5233 = vsub.f32 %v5231, %v5232
        %v5234 = vand.u32 %v5233, 4294901760
        %5235 = vmatpush1.msra.mxu0 %v5234
        %v5236 = vand.u32 %v4108, 4294901760
        %v5237 = vsub.f32 %v4108, %v5236
        %v5238 = vand.u32 %v5237, 4294901760
        %v5239 = vsub.f32 %v5237, %v5238
        %v5240 = vand.u32 %v5239, 4294901760
        %5241 = vmatprep.subr.mxu0 %v5240
        %v5242 = vand.u32 %v4107, 4294901760
        %v5243 = vsub.f32 %v4107, %v5242
        %v5244 = vand.u32 %v5243, 4294901760
        %v5245 = vsub.f32 %v5243, %v5244
        %v5246 = vand.u32 %v5245, 4294901760
        %5247 = vmatpush1.msra.mxu0 %v5246
        %v5248 = vand.u32 %v4110, 4294901760
        %v5249 = vsub.f32 %v4110, %v5248
        %v5250 = vand.u32 %v5249, 4294901760
        %v5251 = vsub.f32 %v5249, %v5250
        %v5252 = vand.u32 %v5251, 4294901760
        %5253 = vmatprep.subr.mxu0 %v5252
        %v5254 = vand.u32 %v4109, 4294901760
        %v5255 = vsub.f32 %v4109, %v5254
        %v5256 = vand.u32 %v5255, 4294901760
        %v5257 = vsub.f32 %v5255, %v5256
        %v5258 = vand.u32 %v5257, 4294901760
        %5259 = vmatpush1.msra.mxu0 %v5258
        %v5260 = vand.u32 %v4112, 4294901760
        %v5261 = vsub.f32 %v4112, %v5260
        %v5262 = vand.u32 %v5261, 4294901760
        %v5263 = vsub.f32 %v5261, %v5262
        %v5264 = vand.u32 %v5263, 4294901760
        %5265 = vmatprep.subr.mxu0 %v5264
        %v5266 = vand.u32 %v4111, 4294901760
        %v5267 = vsub.f32 %v4111, %v5266
        %v5268 = vand.u32 %v5267, 4294901760
        %v5269 = vsub.f32 %v5267, %v5268
        %v5270 = vand.u32 %v5269, 4294901760
        %5271 = vmatpush1.msra.mxu0 %v5270
        %v5272 = vand.u32 %v4114, 4294901760
        %v5273 = vsub.f32 %v4114, %v5272
        %v5274 = vand.u32 %v5273, 4294901760
        %v5275 = vsub.f32 %v5273, %v5274
        %v5276 = vand.u32 %v5275, 4294901760
        %5277 = vmatprep.subr.mxu0 %v5276
        %v5278 = vand.u32 %v4113, 4294901760
        %v5279 = vsub.f32 %v4113, %v5278
        %v5280 = vand.u32 %v5279, 4294901760
        %v5281 = vsub.f32 %v5279, %v5280
        %v5282 = vand.u32 %v5281, 4294901760
        %5283 = vmatpush1.msra.mxu0 %v5282
        %v5284 = vand.u32 %v4116, 4294901760
        %v5285 = vsub.f32 %v4116, %v5284
        %v5286 = vand.u32 %v5285, 4294901760
        %v5287 = vsub.f32 %v5285, %v5286
        %v5288 = vand.u32 %v5287, 4294901760
        %5289 = vmatprep.subr.mxu0 %v5288
        %v5290 = vand.u32 %v4115, 4294901760
        %v5291 = vsub.f32 %v4115, %v5290
        %v5292 = vand.u32 %v5291, 4294901760
        %v5293 = vsub.f32 %v5291, %v5292
        %v5294 = vand.u32 %v5293, 4294901760
        %5295 = vmatpush1.msra.mxu0 %v5294
        %v5296 = vand.u32 %v4118, 4294901760
        %v5297 = vsub.f32 %v4118, %v5296
        %v5298 = vand.u32 %v5297, 4294901760
        %v5299 = vsub.f32 %v5297, %v5298
        %v5300 = vand.u32 %v5299, 4294901760
        %5301 = vmatprep.subr.mxu0 %v5300
        %v5302 = vand.u32 %v4117, 4294901760
        %v5303 = vsub.f32 %v4117, %v5302
        %v5304 = vand.u32 %v5303, 4294901760
        %v5305 = vsub.f32 %v5303, %v5304
        %v5306 = vand.u32 %v5305, 4294901760
        %5307 = vmatpush1.msra.mxu0 %v5306
        %5308 = vmatprep.subr.mxu0 0.0
        %5309 = vmatpush1.msra.mxu0 0.0
        %5310 = vmatprep.subr.mxu0 0.0
        %5311 = vmatpush1.msra.mxu0 0.0
        %5312 = vmatprep.subr.mxu0 0.0
        %5313 = vmatpush1.msra.mxu0 0.0
        %5314 = vmatprep.subr.mxu0 0.0
        %5315 = vmatpush1.msra.mxu0 0.0
        %5316 = vmatprep.subr.mxu0 0.0
        %5317 = vmatpush1.msra.mxu0 0.0
        %5318 = vmatprep.subr.mxu0 0.0
        %5319 = vmatpush1.msra.mxu0 0.0
        %5320 = vmatprep.subr.mxu0 0.0
        %5321 = vmatpush1.msra.mxu0 0.0
        %5322 = vmatprep.subr.mxu0 0.0
        %5323 = vmatpush1.msra.mxu0 0.0
        %5324 = vmatprep.subr.mxu0 0.0
        %5325 = vmatpush1.msra.mxu0 0.0
        %5326 = vmatprep.subr.mxu0 0.0
        %5327 = vmatpush1.msra.mxu0 0.0
        %5328 = vmatprep.subr.mxu0 0.0
        %5329 = vmatpush1.msra.mxu0 0.0
        %5330 = vmatprep.subr.mxu0 0.0
        %5331 = vmatpush1.msra.mxu0 0.0
        %5332 = vmatprep.subr.mxu0 0.0
        %5333 = vmatpush1.msra.mxu0 0.0
        %5334 = vmatprep.subr.mxu0 0.0
        %5335 = vmatpush1.msra.mxu0 0.0
        %5336 = vmatprep.subr.mxu0 0.0
        %5337 = vmatpush1.msra.mxu0 0.0
        %5338 = vmatprep.subr.mxu0 0.0
        %5339 = vmatpush1.msra.mxu0 0.0
        %5340 = vmatprep.mubr.f32.mxu0 0.0
        %v5341 = vand.u32 %v4085, 4294901760
        %5342 = vmatmul.mubr.f32.gmra.mrb[0].mxu0 %v5341
        %v5343 = vpop.f32.mrb[0].mxu0
        %v5344 = vadd.f32 %v5112, %v5343
        %v5345 = vpop.f32.mrb[0].mxu0
        %v5346 = vadd.f32 %v5114, %v5345
        %5347 = vdwg.mxu0
        %v5348 = vand.u32 %v4088, 4294901760
        %v5349 = vsub.f32 %v4088, %v5348
        %5350 = vmatprep.subr.mxu0 %v5349
        %v5351 = vand.u32 %v4087, 4294901760
        %v5352 = vsub.f32 %v4087, %v5351
        %5353 = vmatpush1.msra.mxu0 %v5352
        %v5354 = vand.u32 %v4090, 4294901760
        %v5355 = vsub.f32 %v4090, %v5354
        %5356 = vmatprep.subr.mxu0 %v5355
        %v5357 = vand.u32 %v4089, 4294901760
        %v5358 = vsub.f32 %v4089, %v5357
        %5359 = vmatpush1.msra.mxu0 %v5358
        %v5360 = vand.u32 %v4092, 4294901760
        %v5361 = vsub.f32 %v4092, %v5360
        %5362 = vmatprep.subr.mxu0 %v5361
        %v5363 = vand.u32 %v4091, 4294901760
        %v5364 = vsub.f32 %v4091, %v5363
        %5365 = vmatpush1.msra.mxu0 %v5364
        %v5366 = vand.u32 %v4094, 4294901760
        %v5367 = vsub.f32 %v4094, %v5366
        %5368 = vmatprep.subr.mxu0 %v5367
        %v5369 = vand.u32 %v4093, 4294901760
        %v5370 = vsub.f32 %v4093, %v5369
        %5371 = vmatpush1.msra.mxu0 %v5370
        %v5372 = vand.u32 %v4096, 4294901760
        %v5373 = vsub.f32 %v4096, %v5372
        %5374 = vmatprep.subr.mxu0 %v5373
        %v5375 = vand.u32 %v4095, 4294901760
        %v5376 = vsub.f32 %v4095, %v5375
        %5377 = vmatpush1.msra.mxu0 %v5376
        %v5378 = vand.u32 %v4098, 4294901760
        %v5379 = vsub.f32 %v4098, %v5378
        %5380 = vmatprep.subr.mxu0 %v5379
        %v5381 = vand.u32 %v4097, 4294901760
        %v5382 = vsub.f32 %v4097, %v5381
        %5383 = vmatpush1.msra.mxu0 %v5382
        %v5384 = vand.u32 %v4100, 4294901760
        %v5385 = vsub.f32 %v4100, %v5384
        %5386 = vmatprep.subr.mxu0 %v5385
        %v5387 = vand.u32 %v4099, 4294901760
        %v5388 = vsub.f32 %v4099, %v5387
        %5389 = vmatpush1.msra.mxu0 %v5388
        %v5390 = vand.u32 %v4102, 4294901760
        %v5391 = vsub.f32 %v4102, %v5390
        %5392 = vmatprep.subr.mxu0 %v5391
        %v5393 = vand.u32 %v4101, 4294901760
        %v5394 = vsub.f32 %v4101, %v5393
        %5395 = vmatpush1.msra.mxu0 %v5394
        %v5396 = vand.u32 %v4104, 4294901760
        %v5397 = vsub.f32 %v4104, %v5396
        %5398 = vmatprep.subr.mxu0 %v5397
        %v5399 = vand.u32 %v4103, 4294901760
        %v5400 = vsub.f32 %v4103, %v5399
        %5401 = vmatpush1.msra.mxu0 %v5400
        %v5402 = vand.u32 %v4106, 4294901760
        %v5403 = vsub.f32 %v4106, %v5402
        %5404 = vmatprep.subr.mxu0 %v5403
        %v5405 = vand.u32 %v4105, 4294901760
        %v5406 = vsub.f32 %v4105, %v5405
        %5407 = vmatpush1.msra.mxu0 %v5406
        %v5408 = vand.u32 %v4108, 4294901760
        %v5409 = vsub.f32 %v4108, %v5408
        %5410 = vmatprep.subr.mxu0 %v5409
        %v5411 = vand.u32 %v4107, 4294901760
        %v5412 = vsub.f32 %v4107, %v5411
        %5413 = vmatpush1.msra.mxu0 %v5412
        %v5414 = vand.u32 %v4110, 4294901760
        %v5415 = vsub.f32 %v4110, %v5414
        %5416 = vmatprep.subr.mxu0 %v5415
        %v5417 = vand.u32 %v4109, 4294901760
        %v5418 = vsub.f32 %v4109, %v5417
        %5419 = vmatpush1.msra.mxu0 %v5418
        %v5420 = vand.u32 %v4112, 4294901760
        %v5421 = vsub.f32 %v4112, %v5420
        %5422 = vmatprep.subr.mxu0 %v5421
        %v5423 = vand.u32 %v4111, 4294901760
        %v5424 = vsub.f32 %v4111, %v5423
        %5425 = vmatpush1.msra.mxu0 %v5424
        %v5426 = vand.u32 %v4114, 4294901760
        %v5427 = vsub.f32 %v4114, %v5426
        %5428 = vmatprep.subr.mxu0 %v5427
        %v5429 = vand.u32 %v4113, 4294901760
        %v5430 = vsub.f32 %v4113, %v5429
        %5431 = vmatpush1.msra.mxu0 %v5430
        %v5432 = vand.u32 %v4116, 4294901760
        %v5433 = vsub.f32 %v4116, %v5432
        %5434 = vmatprep.subr.mxu0 %v5433
        %v5435 = vand.u32 %v4115, 4294901760
        %v5436 = vsub.f32 %v4115, %v5435
        %5437 = vmatpush1.msra.mxu0 %v5436
        %v5438 = vand.u32 %v4118, 4294901760
        %v5439 = vsub.f32 %v4118, %v5438
        %5440 = vmatprep.subr.mxu0 %v5439
        %v5441 = vand.u32 %v4117, 4294901760
        %v5442 = vsub.f32 %v4117, %v5441
        %5443 = vmatpush1.msra.mxu0 %v5442
        %5444 = vmatprep.subr.mxu0 0.0
        %5445 = vmatpush1.msra.mxu0 0.0
        %5446 = vmatprep.subr.mxu0 0.0
        %5447 = vmatpush1.msra.mxu0 0.0
        %5448 = vmatprep.subr.mxu0 0.0
        %5449 = vmatpush1.msra.mxu0 0.0
        %5450 = vmatprep.subr.mxu0 0.0
        %5451 = vmatpush1.msra.mxu0 0.0
        %5452 = vmatprep.subr.mxu0 0.0
        %5453 = vmatpush1.msra.mxu0 0.0
        %5454 = vmatprep.subr.mxu0 0.0
        %5455 = vmatpush1.msra.mxu0 0.0
        %5456 = vmatprep.subr.mxu0 0.0
        %5457 = vmatpush1.msra.mxu0 0.0
        %5458 = vmatprep.subr.mxu0 0.0
        %5459 = vmatpush1.msra.mxu0 0.0
        %5460 = vmatprep.subr.mxu0 0.0
        %5461 = vmatpush1.msra.mxu0 0.0
        %5462 = vmatprep.subr.mxu0 0.0
        %5463 = vmatpush1.msra.mxu0 0.0
        %5464 = vmatprep.subr.mxu0 0.0
        %5465 = vmatpush1.msra.mxu0 0.0
        %5466 = vmatprep.subr.mxu0 0.0
        %5467 = vmatpush1.msra.mxu0 0.0
        %5468 = vmatprep.subr.mxu0 0.0
        %5469 = vmatpush1.msra.mxu0 0.0
        %5470 = vmatprep.subr.mxu0 0.0
        %5471 = vmatpush1.msra.mxu0 0.0
        %5472 = vmatprep.subr.mxu0 0.0
        %5473 = vmatpush1.msra.mxu0 0.0
        %5474 = vmatprep.subr.mxu0 0.0
        %5475 = vmatpush1.msra.mxu0 0.0
        %5476 = vmatprep.mubr.f32.mxu0 0.0
        %v5477 = vand.u32 %v4085, 4294901760
        %v5478 = vsub.f32 %v4085, %v5477
        %5479 = vmatmul.mubr.f32.gmra.mrb[0].mxu0 %v5478
        %v5480 = vpop.f32.mrb[0].mxu0
        %v5481 = vadd.f32 %v5344, %v5480
        %v5482 = vpop.f32.mrb[0].mxu0
        %v5483 = vadd.f32 %v5346, %v5482
        %5484 = vdwg.mxu0
        %v5485 = vand.u32 %v4088, 4294901760
        %5486 = vmatprep.subr.mxu0 %v5485
        %v5487 = vand.u32 %v4087, 4294901760
        %5488 = vmatpush1.msra.mxu0 %v5487
        %v5489 = vand.u32 %v4090, 4294901760
        %5490 = vmatprep.subr.mxu0 %v5489
        %v5491 = vand.u32 %v4089, 4294901760
        %5492 = vmatpush1.msra.mxu0 %v5491
        %v5493 = vand.u32 %v4092, 4294901760
        %5494 = vmatprep.subr.mxu0 %v5493
        %v5495 = vand.u32 %v4091, 4294901760
        %5496 = vmatpush1.msra.mxu0 %v5495
        %v5497 = vand.u32 %v4094, 4294901760
        %5498 = vmatprep.subr.mxu0 %v5497
        %v5499 = vand.u32 %v4093, 4294901760
        %5500 = vmatpush1.msra.mxu0 %v5499
        %v5501 = vand.u32 %v4096, 4294901760
        %5502 = vmatprep.subr.mxu0 %v5501
        %v5503 = vand.u32 %v4095, 4294901760
        %5504 = vmatpush1.msra.mxu0 %v5503
        %v5505 = vand.u32 %v4098, 4294901760
        %5506 = vmatprep.subr.mxu0 %v5505
        %v5507 = vand.u32 %v4097, 4294901760
        %5508 = vmatpush1.msra.mxu0 %v5507
        %v5509 = vand.u32 %v4100, 4294901760
        %5510 = vmatprep.subr.mxu0 %v5509
        %v5511 = vand.u32 %v4099, 4294901760
        %5512 = vmatpush1.msra.mxu0 %v5511
        %v5513 = vand.u32 %v4102, 4294901760
        %5514 = vmatprep.subr.mxu0 %v5513
        %v5515 = vand.u32 %v4101, 4294901760
        %5516 = vmatpush1.msra.mxu0 %v5515
        %v5517 = vand.u32 %v4104, 4294901760
        %5518 = vmatprep.subr.mxu0 %v5517
        %v5519 = vand.u32 %v4103, 4294901760
        %5520 = vmatpush1.msra.mxu0 %v5519
        %v5521 = vand.u32 %v4106, 4294901760
        %5522 = vmatprep.subr.mxu0 %v5521
        %v5523 = vand.u32 %v4105, 4294901760
        %5524 = vmatpush1.msra.mxu0 %v5523
        %v5525 = vand.u32 %v4108, 4294901760
        %5526 = vmatprep.subr.mxu0 %v5525
        %v5527 = vand.u32 %v4107, 4294901760
        %5528 = vmatpush1.msra.mxu0 %v5527
        %v5529 = vand.u32 %v4110, 4294901760
        %5530 = vmatprep.subr.mxu0 %v5529
        %v5531 = vand.u32 %v4109, 4294901760
        %5532 = vmatpush1.msra.mxu0 %v5531
        %v5533 = vand.u32 %v4112, 4294901760
        %5534 = vmatprep.subr.mxu0 %v5533
        %v5535 = vand.u32 %v4111, 4294901760
        %5536 = vmatpush1.msra.mxu0 %v5535
        %v5537 = vand.u32 %v4114, 4294901760
        %5538 = vmatprep.subr.mxu0 %v5537
        %v5539 = vand.u32 %v4113, 4294901760
        %5540 = vmatpush1.msra.mxu0 %v5539
        %v5541 = vand.u32 %v4116, 4294901760
        %5542 = vmatprep.subr.mxu0 %v5541
        %v5543 = vand.u32 %v4115, 4294901760
        %5544 = vmatpush1.msra.mxu0 %v5543
        %v5545 = vand.u32 %v4118, 4294901760
        %5546 = vmatprep.subr.mxu0 %v5545
        %v5547 = vand.u32 %v4117, 4294901760
        %5548 = vmatpush1.msra.mxu0 %v5547
        %5549 = vmatprep.subr.mxu0 0.0
        %5550 = vmatpush1.msra.mxu0 0.0
        %5551 = vmatprep.subr.mxu0 0.0
        %5552 = vmatpush1.msra.mxu0 0.0
        %5553 = vmatprep.subr.mxu0 0.0
        %5554 = vmatpush1.msra.mxu0 0.0
        %5555 = vmatprep.subr.mxu0 0.0
        %5556 = vmatpush1.msra.mxu0 0.0
        %5557 = vmatprep.subr.mxu0 0.0
        %5558 = vmatpush1.msra.mxu0 0.0
        %5559 = vmatprep.subr.mxu0 0.0
        %5560 = vmatpush1.msra.mxu0 0.0
        %5561 = vmatprep.subr.mxu0 0.0
        %5562 = vmatpush1.msra.mxu0 0.0
        %5563 = vmatprep.subr.mxu0 0.0
        %5564 = vmatpush1.msra.mxu0 0.0
        %5565 = vmatprep.subr.mxu0 0.0
        %5566 = vmatpush1.msra.mxu0 0.0
        %5567 = vmatprep.subr.mxu0 0.0
        %5568 = vmatpush1.msra.mxu0 0.0
        %5569 = vmatprep.subr.mxu0 0.0
        %5570 = vmatpush1.msra.mxu0 0.0
        %5571 = vmatprep.subr.mxu0 0.0
        %5572 = vmatpush1.msra.mxu0 0.0
        %5573 = vmatprep.subr.mxu0 0.0
        %5574 = vmatpush1.msra.mxu0 0.0
        %5575 = vmatprep.subr.mxu0 0.0
        %5576 = vmatpush1.msra.mxu0 0.0
        %5577 = vmatprep.subr.mxu0 0.0
        %5578 = vmatpush1.msra.mxu0 0.0
        %5579 = vmatprep.subr.mxu0 0.0
        %5580 = vmatpush1.msra.mxu0 0.0
        %5581 = vmatprep.mubr.f32.mxu0 0.0
        %v5582 = vand.u32 %v4085, 4294901760
        %v5583 = vsub.f32 %v4085, %v5582
        %v5584 = vand.u32 %v5583, 4294901760
        %5585 = vmatmul.mubr.f32.gmra.mrb[0].mxu0 %v5584
        %v5586 = vpop.f32.mrb[0].mxu0
        %v5587 = vadd.f32 %v5481, %v5586
        %v5588 = vpop.f32.mrb[0].mxu0
        %v5589 = vadd.f32 %v5483, %v5588
        %5590 = vdwg.mxu0
        %v5591 = vand.u32 %v4088, 4294901760
        %v5592 = vsub.f32 %v4088, %v5591
        %v5593 = vand.u32 %v5592, 4294901760
        %5594 = vmatprep.subr.mxu0 %v5593
        %v5595 = vand.u32 %v4087, 4294901760
        %v5596 = vsub.f32 %v4087, %v5595
        %v5597 = vand.u32 %v5596, 4294901760
        %5598 = vmatpush1.msra.mxu0 %v5597
        %v5599 = vand.u32 %v4090, 4294901760
        %v5600 = vsub.f32 %v4090, %v5599
        %v5601 = vand.u32 %v5600, 4294901760
        %5602 = vmatprep.subr.mxu0 %v5601
        %v5603 = vand.u32 %v4089, 4294901760
        %v5604 = vsub.f32 %v4089, %v5603
        %v5605 = vand.u32 %v5604, 4294901760
        %5606 = vmatpush1.msra.mxu0 %v5605
        %v5607 = vand.u32 %v4092, 4294901760
        %v5608 = vsub.f32 %v4092, %v5607
        %v5609 = vand.u32 %v5608, 4294901760
        %5610 = vmatprep.subr.mxu0 %v5609
        %v5611 = vand.u32 %v4091, 4294901760
        %v5612 = vsub.f32 %v4091, %v5611
        %v5613 = vand.u32 %v5612, 4294901760
        %5614 = vmatpush1.msra.mxu0 %v5613
        %v5615 = vand.u32 %v4094, 4294901760
        %v5616 = vsub.f32 %v4094, %v5615
        %v5617 = vand.u32 %v5616, 4294901760
        %5618 = vmatprep.subr.mxu0 %v5617
        %v5619 = vand.u32 %v4093, 4294901760
        %v5620 = vsub.f32 %v4093, %v5619
        %v5621 = vand.u32 %v5620, 4294901760
        %5622 = vmatpush1.msra.mxu0 %v5621
        %v5623 = vand.u32 %v4096, 4294901760
        %v5624 = vsub.f32 %v4096, %v5623
        %v5625 = vand.u32 %v5624, 4294901760
        %5626 = vmatprep.subr.mxu0 %v5625
        %v5627 = vand.u32 %v4095, 4294901760
        %v5628 = vsub.f32 %v4095, %v5627
        %v5629 = vand.u32 %v5628, 4294901760
        %5630 = vmatpush1.msra.mxu0 %v5629
        %v5631 = vand.u32 %v4098, 4294901760
        %v5632 = vsub.f32 %v4098, %v5631
        %v5633 = vand.u32 %v5632, 4294901760
        %5634 = vmatprep.subr.mxu0 %v5633
        %v5635 = vand.u32 %v4097, 4294901760
        %v5636 = vsub.f32 %v4097, %v5635
        %v5637 = vand.u32 %v5636, 4294901760
        %5638 = vmatpush1.msra.mxu0 %v5637
        %v5639 = vand.u32 %v4100, 4294901760
        %v5640 = vsub.f32 %v4100, %v5639
        %v5641 = vand.u32 %v5640, 4294901760
        %5642 = vmatprep.subr.mxu0 %v5641
        %v5643 = vand.u32 %v4099, 4294901760
        %v5644 = vsub.f32 %v4099, %v5643
        %v5645 = vand.u32 %v5644, 4294901760
        %5646 = vmatpush1.msra.mxu0 %v5645
        %v5647 = vand.u32 %v4102, 4294901760
        %v5648 = vsub.f32 %v4102, %v5647
        %v5649 = vand.u32 %v5648, 4294901760
        %5650 = vmatprep.subr.mxu0 %v5649
        %v5651 = vand.u32 %v4101, 4294901760
        %v5652 = vsub.f32 %v4101, %v5651
        %v5653 = vand.u32 %v5652, 4294901760
        %5654 = vmatpush1.msra.mxu0 %v5653
        %v5655 = vand.u32 %v4104, 4294901760
        %v5656 = vsub.f32 %v4104, %v5655
        %v5657 = vand.u32 %v5656, 4294901760
        %5658 = vmatprep.subr.mxu0 %v5657
        %v5659 = vand.u32 %v4103, 4294901760
        %v5660 = vsub.f32 %v4103, %v5659
        %v5661 = vand.u32 %v5660, 4294901760
        %5662 = vmatpush1.msra.mxu0 %v5661
        %v5663 = vand.u32 %v4106, 4294901760
        %v5664 = vsub.f32 %v4106, %v5663
        %v5665 = vand.u32 %v5664, 4294901760
        %5666 = vmatprep.subr.mxu0 %v5665
        %v5667 = vand.u32 %v4105, 4294901760
        %v5668 = vsub.f32 %v4105, %v5667
        %v5669 = vand.u32 %v5668, 4294901760
        %5670 = vmatpush1.msra.mxu0 %v5669
        %v5671 = vand.u32 %v4108, 4294901760
        %v5672 = vsub.f32 %v4108, %v5671
        %v5673 = vand.u32 %v5672, 4294901760
        %5674 = vmatprep.subr.mxu0 %v5673
        %v5675 = vand.u32 %v4107, 4294901760
        %v5676 = vsub.f32 %v4107, %v5675
        %v5677 = vand.u32 %v5676, 4294901760
        %5678 = vmatpush1.msra.mxu0 %v5677
        %v5679 = vand.u32 %v4110, 4294901760
        %v5680 = vsub.f32 %v4110, %v5679
        %v5681 = vand.u32 %v5680, 4294901760
        %5682 = vmatprep.subr.mxu0 %v5681
        %v5683 = vand.u32 %v4109, 4294901760
        %v5684 = vsub.f32 %v4109, %v5683
        %v5685 = vand.u32 %v5684, 4294901760
        %5686 = vmatpush1.msra.mxu0 %v5685
        %v5687 = vand.u32 %v4112, 4294901760
        %v5688 = vsub.f32 %v4112, %v5687
        %v5689 = vand.u32 %v5688, 4294901760
        %5690 = vmatprep.subr.mxu0 %v5689
        %v5691 = vand.u32 %v4111, 4294901760
        %v5692 = vsub.f32 %v4111, %v5691
        %v5693 = vand.u32 %v5692, 4294901760
        %5694 = vmatpush1.msra.mxu0 %v5693
        %v5695 = vand.u32 %v4114, 4294901760
        %v5696 = vsub.f32 %v4114, %v5695
        %v5697 = vand.u32 %v5696, 4294901760
        %5698 = vmatprep.subr.mxu0 %v5697
        %v5699 = vand.u32 %v4113, 4294901760
        %v5700 = vsub.f32 %v4113, %v5699
        %v5701 = vand.u32 %v5700, 4294901760
        %5702 = vmatpush1.msra.mxu0 %v5701
        %v5703 = vand.u32 %v4116, 4294901760
        %v5704 = vsub.f32 %v4116, %v5703
        %v5705 = vand.u32 %v5704, 4294901760
        %5706 = vmatprep.subr.mxu0 %v5705
        %v5707 = vand.u32 %v4115, 4294901760
        %v5708 = vsub.f32 %v4115, %v5707
        %v5709 = vand.u32 %v5708, 4294901760
        %5710 = vmatpush1.msra.mxu0 %v5709
        %v5711 = vand.u32 %v4118, 4294901760
        %v5712 = vsub.f32 %v4118, %v5711
        %v5713 = vand.u32 %v5712, 4294901760
        %5714 = vmatprep.subr.mxu0 %v5713
        %v5715 = vand.u32 %v4117, 4294901760
        %v5716 = vsub.f32 %v4117, %v5715
        %v5717 = vand.u32 %v5716, 4294901760
        %5718 = vmatpush1.msra.mxu0 %v5717
        %5719 = vmatprep.subr.mxu0 0.0
        %5720 = vmatpush1.msra.mxu0 0.0
        %5721 = vmatprep.subr.mxu0 0.0
        %5722 = vmatpush1.msra.mxu0 0.0
        %5723 = vmatprep.subr.mxu0 0.0
        %5724 = vmatpush1.msra.mxu0 0.0
        %5725 = vmatprep.subr.mxu0 0.0
        %5726 = vmatpush1.msra.mxu0 0.0
        %5727 = vmatprep.subr.mxu0 0.0
        %5728 = vmatpush1.msra.mxu0 0.0
        %5729 = vmatprep.subr.mxu0 0.0
        %5730 = vmatpush1.msra.mxu0 0.0
        %5731 = vmatprep.subr.mxu0 0.0
        %5732 = vmatpush1.msra.mxu0 0.0
        %5733 = vmatprep.subr.mxu0 0.0
        %5734 = vmatpush1.msra.mxu0 0.0
        %5735 = vmatprep.subr.mxu0 0.0
        %5736 = vmatpush1.msra.mxu0 0.0
        %5737 = vmatprep.subr.mxu0 0.0
        %5738 = vmatpush1.msra.mxu0 0.0
        %5739 = vmatprep.subr.mxu0 0.0
        %5740 = vmatpush1.msra.mxu0 0.0
        %5741 = vmatprep.subr.mxu0 0.0
        %5742 = vmatpush1.msra.mxu0 0.0
        %5743 = vmatprep.subr.mxu0 0.0
        %5744 = vmatpush1.msra.mxu0 0.0
        %5745 = vmatprep.subr.mxu0 0.0
        %5746 = vmatpush1.msra.mxu0 0.0
        %5747 = vmatprep.subr.mxu0 0.0
        %5748 = vmatpush1.msra.mxu0 0.0
        %5749 = vmatprep.subr.mxu0 0.0
        %5750 = vmatpush1.msra.mxu0 0.0
        %5751 = vmatprep.mubr.f32.mxu0 0.0
        %v5752 = vand.u32 %v4085, 4294901760
        %5753 = vmatmul.mubr.f32.gmra.mrb[0].mxu0 %v5752
        %v5754 = vpop.f32.mrb[0].mxu0
        %v5755 = vadd.f32 %v5587, %v5754
        %v5756 = vpop.f32.mrb[0].mxu0
        %v5757 = vadd.f32 %v5589, %v5756
        %5758 = vdwg.mxu0
        %v5759 = vand.u32 %v4088, 4294901760
        %5760 = vmatprep.subr.mxu0 %v5759
        %v5761 = vand.u32 %v4087, 4294901760
        %5762 = vmatpush1.msra.mxu0 %v5761
        %v5763 = vand.u32 %v4090, 4294901760
        %5764 = vmatprep.subr.mxu0 %v5763
        %v5765 = vand.u32 %v4089, 4294901760
        %5766 = vmatpush1.msra.mxu0 %v5765
        %v5767 = vand.u32 %v4092, 4294901760
        %5768 = vmatprep.subr.mxu0 %v5767
        %v5769 = vand.u32 %v4091, 4294901760
        %5770 = vmatpush1.msra.mxu0 %v5769
        %v5771 = vand.u32 %v4094, 4294901760
        %5772 = vmatprep.subr.mxu0 %v5771
        %v5773 = vand.u32 %v4093, 4294901760
        %5774 = vmatpush1.msra.mxu0 %v5773
        %v5775 = vand.u32 %v4096, 4294901760
        %5776 = vmatprep.subr.mxu0 %v5775
        %v5777 = vand.u32 %v4095, 4294901760
        %5778 = vmatpush1.msra.mxu0 %v5777
        %v5779 = vand.u32 %v4098, 4294901760
        %5780 = vmatprep.subr.mxu0 %v5779
        %v5781 = vand.u32 %v4097, 4294901760
        %5782 = vmatpush1.msra.mxu0 %v5781
        %v5783 = vand.u32 %v4100, 4294901760
        %5784 = vmatprep.subr.mxu0 %v5783
        %v5785 = vand.u32 %v4099, 4294901760
        %5786 = vmatpush1.msra.mxu0 %v5785
        %v5787 = vand.u32 %v4102, 4294901760
        %5788 = vmatprep.subr.mxu0 %v5787
        %v5789 = vand.u32 %v4101, 4294901760
        %5790 = vmatpush1.msra.mxu0 %v5789
        %v5791 = vand.u32 %v4104, 4294901760
        %5792 = vmatprep.subr.mxu0 %v5791
        %v5793 = vand.u32 %v4103, 4294901760
        %5794 = vmatpush1.msra.mxu0 %v5793
        %v5795 = vand.u32 %v4106, 4294901760
        %5796 = vmatprep.subr.mxu0 %v5795
        %v5797 = vand.u32 %v4105, 4294901760
        %5798 = vmatpush1.msra.mxu0 %v5797
        %v5799 = vand.u32 %v4108, 4294901760
        %5800 = vmatprep.subr.mxu0 %v5799
        %v5801 = vand.u32 %v4107, 4294901760
        %5802 = vmatpush1.msra.mxu0 %v5801
        %v5803 = vand.u32 %v4110, 4294901760
        %5804 = vmatprep.subr.mxu0 %v5803
        %v5805 = vand.u32 %v4109, 4294901760
        %5806 = vmatpush1.msra.mxu0 %v5805
        %v5807 = vand.u32 %v4112, 4294901760
        %5808 = vmatprep.subr.mxu0 %v5807
        %v5809 = vand.u32 %v4111, 4294901760
        %5810 = vmatpush1.msra.mxu0 %v5809
        %v5811 = vand.u32 %v4114, 4294901760
        %5812 = vmatprep.subr.mxu0 %v5811
        %v5813 = vand.u32 %v4113, 4294901760
        %5814 = vmatpush1.msra.mxu0 %v5813
        %v5815 = vand.u32 %v4116, 4294901760
        %5816 = vmatprep.subr.mxu0 %v5815
        %v5817 = vand.u32 %v4115, 4294901760
        %5818 = vmatpush1.msra.mxu0 %v5817
        %v5819 = vand.u32 %v4118, 4294901760
        %5820 = vmatprep.subr.mxu0 %v5819
        %v5821 = vand.u32 %v4117, 4294901760
        %5822 = vmatpush1.msra.mxu0 %v5821
        %5823 = vmatprep.subr.mxu0 0.0
        %5824 = vmatpush1.msra.mxu0 0.0
        %5825 = vmatprep.subr.mxu0 0.0
        %5826 = vmatpush1.msra.mxu0 0.0
        %5827 = vmatprep.subr.mxu0 0.0
        %5828 = vmatpush1.msra.mxu0 0.0
        %5829 = vmatprep.subr.mxu0 0.0
        %5830 = vmatpush1.msra.mxu0 0.0
        %5831 = vmatprep.subr.mxu0 0.0
        %5832 = vmatpush1.msra.mxu0 0.0
        %5833 = vmatprep.subr.mxu0 0.0
        %5834 = vmatpush1.msra.mxu0 0.0
        %5835 = vmatprep.subr.mxu0 0.0
        %5836 = vmatpush1.msra.mxu0 0.0
        %5837 = vmatprep.subr.mxu0 0.0
        %5838 = vmatpush1.msra.mxu0 0.0
        %5839 = vmatprep.subr.mxu0 0.0
        %5840 = vmatpush1.msra.mxu0 0.0
        %5841 = vmatprep.subr.mxu0 0.0
        %5842 = vmatpush1.msra.mxu0 0.0
        %5843 = vmatprep.subr.mxu0 0.0
        %5844 = vmatpush1.msra.mxu0 0.0
        %5845 = vmatprep.subr.mxu0 0.0
        %5846 = vmatpush1.msra.mxu0 0.0
        %5847 = vmatprep.subr.mxu0 0.0
        %5848 = vmatpush1.msra.mxu0 0.0
        %5849 = vmatprep.subr.mxu0 0.0
        %5850 = vmatpush1.msra.mxu0 0.0
        %5851 = vmatprep.subr.mxu0 0.0
        %5852 = vmatpush1.msra.mxu0 0.0
        %5853 = vmatprep.subr.mxu0 0.0
        %5854 = vmatpush1.msra.mxu0 0.0
        %5855 = vmatprep.mubr.f32.mxu0 0.0
        %v5856 = vand.u32 %v4085, 4294901760
        %5857 = vmatmul.mubr.f32.gmra.mrb[0].mxu0 %v5856
        %v5858 = vpop.f32.mrb[0].mxu0
        %v5859 = vadd.f32 %v5755, %v5858
        %v5860 = vpop.f32.mrb[0].mxu0
        %v5861 = vadd.f32 %v5757, %v5860
        %5862 = vdwg.mxu0
        %v5863 = vld [vmem:[#allocation2 + $0x8] sm:$0xff]
        %s5864 = scalar_lea.vmem [#allocation6], 1280
        %v5865 = vld [vmem:[%s5864] sm:$0xff]
        %v5866 = vld [vmem:[%s5864 + $0x8] sm:$0xff]
        %v5867 = vld [vmem:[%s5864 + $0x10] sm:$0xff]
        %v5868 = vld [vmem:[%s5864 + $0x18] sm:$0xff]
        %v5869 = vld [vmem:[%s5864 + $0x20] sm:$0xff]
        %v5870 = vld [vmem:[%s5864 + $0x28] sm:$0xff]
        %v5871 = vld [vmem:[%s5864 + $0x30] sm:$0xff]
        %v5872 = vld [vmem:[%s5864 + $0x38] sm:$0xff]
        %v5873 = vld [vmem:[%s5864 + $0x40] sm:$0xff]
        %v5874 = vld [vmem:[%s5864 + $0x48] sm:$0xff]
        %v5875 = vld [vmem:[%s5864 + $0x50] sm:$0xff]
        %v5876 = vld [vmem:[%s5864 + $0x58] sm:$0xff]
        %v5877 = vld [vmem:[%s5864 + $0x60] sm:$0xff]
        %v5878 = vld [vmem:[%s5864 + $0x68] sm:$0xff]
        %v5879 = vld [vmem:[%s5864 + $0x70] sm:$0xff]
        %v5880 = vld [vmem:[%s5864 + $0x78] sm:$0xff]
        %v5881 = vld [vmem:[%s5864 + $0x80] sm:$0xff]
        %v5882 = vld [vmem:[%s5864 + $0x88] sm:$0xff]
        %v5883 = vld [vmem:[%s5864 + $0x90] sm:$0xff]
        %v5884 = vld [vmem:[%s5864 + $0x98] sm:$0xff]
        %v5885 = vld [vmem:[%s5864 + $0xa0] sm:$0xff]
        %v5886 = vld [vmem:[%s5864 + $0xa8] sm:$0xff]
        %v5887 = vld [vmem:[%s5864 + $0xb0] sm:$0xff]
        %v5888 = vld [vmem:[%s5864 + $0xb8] sm:$0xff]
        %v5889 = vld [vmem:[%s5864 + $0xc0] sm:$0xff]
        %v5890 = vld [vmem:[%s5864 + $0xc8] sm:$0xff]
        %v5891 = vld [vmem:[%s5864 + $0xd0] sm:$0xff]
        %v5892 = vld [vmem:[%s5864 + $0xd8] sm:$0xff]
        %v5893 = vld [vmem:[%s5864 + $0xe0] sm:$0xff]
        %v5894 = vld [vmem:[%s5864 + $0xe8] sm:$0xff]
        %v5895 = vld [vmem:[%s5864 + $0xf0] sm:$0xff]
        %v5896 = vld [vmem:[%s5864 + $0xf8] sm:$0xff]
        %v5897 = vand.u32 %v5866, 4294901760
        %5898 = vmatprep.subr.mxu0 %v5897
        %v5899 = vand.u32 %v5865, 4294901760
        %5900 = vmatpush1.msra.mxu0 %v5899
        %v5901 = vand.u32 %v5868, 4294901760
        %5902 = vmatprep.subr.mxu0 %v5901
        %v5903 = vand.u32 %v5867, 4294901760
        %5904 = vmatpush1.msra.mxu0 %v5903
        %v5905 = vand.u32 %v5870, 4294901760
        %5906 = vmatprep.subr.mxu0 %v5905
        %v5907 = vand.u32 %v5869, 4294901760
        %5908 = vmatpush1.msra.mxu0 %v5907
        %v5909 = vand.u32 %v5872, 4294901760
        %5910 = vmatprep.subr.mxu0 %v5909
        %v5911 = vand.u32 %v5871, 4294901760
        %5912 = vmatpush1.msra.mxu0 %v5911
        %v5913 = vand.u32 %v5874, 4294901760
        %5914 = vmatprep.subr.mxu0 %v5913
        %v5915 = vand.u32 %v5873, 4294901760
        %5916 = vmatpush1.msra.mxu0 %v5915
        %v5917 = vand.u32 %v5876, 4294901760
        %5918 = vmatprep.subr.mxu0 %v5917
        %v5919 = vand.u32 %v5875, 4294901760
        %5920 = vmatpush1.msra.mxu0 %v5919
        %v5921 = vand.u32 %v5878, 4294901760
        %5922 = vmatprep.subr.mxu0 %v5921
        %v5923 = vand.u32 %v5877, 4294901760
        %5924 = vmatpush1.msra.mxu0 %v5923
        %v5925 = vand.u32 %v5880, 4294901760
        %5926 = vmatprep.subr.mxu0 %v5925
        %v5927 = vand.u32 %v5879, 4294901760
        %5928 = vmatpush1.msra.mxu0 %v5927
        %v5929 = vand.u32 %v5882, 4294901760
        %5930 = vmatprep.subr.mxu0 %v5929
        %v5931 = vand.u32 %v5881, 4294901760
        %5932 = vmatpush1.msra.mxu0 %v5931
        %v5933 = vand.u32 %v5884, 4294901760
        %5934 = vmatprep.subr.mxu0 %v5933
        %v5935 = vand.u32 %v5883, 4294901760
        %5936 = vmatpush1.msra.mxu0 %v5935
        %v5937 = vand.u32 %v5886, 4294901760
        %5938 = vmatprep.subr.mxu0 %v5937
        %v5939 = vand.u32 %v5885, 4294901760
        %5940 = vmatpush1.msra.mxu0 %v5939
        %v5941 = vand.u32 %v5888, 4294901760
        %5942 = vmatprep.subr.mxu0 %v5941
        %v5943 = vand.u32 %v5887, 4294901760
        %5944 = vmatpush1.msra.mxu0 %v5943
        %v5945 = vand.u32 %v5890, 4294901760
        %5946 = vmatprep.subr.mxu0 %v5945
        %v5947 = vand.u32 %v5889, 4294901760
        %5948 = vmatpush1.msra.mxu0 %v5947
        %v5949 = vand.u32 %v5892, 4294901760
        %5950 = vmatprep.subr.mxu0 %v5949
        %v5951 = vand.u32 %v5891, 4294901760
        %5952 = vmatpush1.msra.mxu0 %v5951
        %v5953 = vand.u32 %v5894, 4294901760
        %5954 = vmatprep.subr.mxu0 %v5953
        %v5955 = vand.u32 %v5893, 4294901760
        %5956 = vmatpush1.msra.mxu0 %v5955
        %v5957 = vand.u32 %v5896, 4294901760
        %5958 = vmatprep.subr.mxu0 %v5957
        %v5959 = vand.u32 %v5895, 4294901760
        %5960 = vmatpush1.msra.mxu0 %v5959
        %5961 = vmatprep.subr.mxu0 0.0
        %5962 = vmatpush1.msra.mxu0 0.0
        %5963 = vmatprep.subr.mxu0 0.0
        %5964 = vmatpush1.msra.mxu0 0.0
        %5965 = vmatprep.subr.mxu0 0.0
        %5966 = vmatpush1.msra.mxu0 0.0
        %5967 = vmatprep.subr.mxu0 0.0
        %5968 = vmatpush1.msra.mxu0 0.0
        %5969 = vmatprep.subr.mxu0 0.0
        %5970 = vmatpush1.msra.mxu0 0.0
        %5971 = vmatprep.subr.mxu0 0.0
        %5972 = vmatpush1.msra.mxu0 0.0
        %5973 = vmatprep.subr.mxu0 0.0
        %5974 = vmatpush1.msra.mxu0 0.0
        %5975 = vmatprep.subr.mxu0 0.0
        %5976 = vmatpush1.msra.mxu0 0.0
        %5977 = vmatprep.subr.mxu0 0.0
        %5978 = vmatpush1.msra.mxu0 0.0
        %5979 = vmatprep.subr.mxu0 0.0
        %5980 = vmatpush1.msra.mxu0 0.0
        %5981 = vmatprep.subr.mxu0 0.0
        %5982 = vmatpush1.msra.mxu0 0.0
        %5983 = vmatprep.subr.mxu0 0.0
        %5984 = vmatpush1.msra.mxu0 0.0
        %5985 = vmatprep.subr.mxu0 0.0
        %5986 = vmatpush1.msra.mxu0 0.0
        %5987 = vmatprep.subr.mxu0 0.0
        %5988 = vmatpush1.msra.mxu0 0.0
        %5989 = vmatprep.subr.mxu0 0.0
        %5990 = vmatpush1.msra.mxu0 0.0
        %5991 = vmatprep.subr.mxu0 0.0
        %5992 = vmatpush1.msra.mxu0 0.0
        %5993 = vmatprep.mubr.f32.mxu0 0.0
        %v5994 = vand.u32 %v5863, 4294901760
        %v5995 = vsub.f32 %v5863, %v5994
        %v5996 = vand.u32 %v5995, 4294901760
        %v5997 = vsub.f32 %v5995, %v5996
        %v5998 = vand.u32 %v5997, 4294901760
        %5999 = vmatmul.mubr.f32.gmra.mrb[0].mxu0 %v5998
        %v6000 = vpop.f32.mrb[0].mxu0
        %v6001 = vadd.f32 0.0, %v6000
        %v6002 = vpop.f32.mrb[0].mxu0
        %v6003 = vadd.f32 0.0, %v6002
        %6004 = vdwg.mxu0
        %v6005 = vand.u32 %v5866, 4294901760
        %v6006 = vsub.f32 %v5866, %v6005
        %v6007 = vand.u32 %v6006, 4294901760
        %v6008 = vsub.f32 %v6006, %v6007
        %v6009 = vand.u32 %v6008, 4294901760
        %6010 = vmatprep.subr.mxu0 %v6009
        %v6011 = vand.u32 %v5865, 4294901760
        %v6012 = vsub.f32 %v5865, %v6011
        %v6013 = vand.u32 %v6012, 4294901760
        %v6014 = vsub.f32 %v6012, %v6013
        %v6015 = vand.u32 %v6014, 4294901760
        %6016 = vmatpush1.msra.mxu0 %v6015
        %v6017 = vand.u32 %v5868, 4294901760
        %v6018 = vsub.f32 %v5868, %v6017
        %v6019 = vand.u32 %v6018, 4294901760
        %v6020 = vsub.f32 %v6018, %v6019
        %v6021 = vand.u32 %v6020, 4294901760
        %6022 = vmatprep.subr.mxu0 %v6021
        %v6023 = vand.u32 %v5867, 4294901760
        %v6024 = vsub.f32 %v5867, %v6023
        %v6025 = vand.u32 %v6024, 4294901760
        %v6026 = vsub.f32 %v6024, %v6025
        %v6027 = vand.u32 %v6026, 4294901760
        %6028 = vmatpush1.msra.mxu0 %v6027
        %v6029 = vand.u32 %v5870, 4294901760
        %v6030 = vsub.f32 %v5870, %v6029
        %v6031 = vand.u32 %v6030, 4294901760
        %v6032 = vsub.f32 %v6030, %v6031
        %v6033 = vand.u32 %v6032, 4294901760
        %6034 = vmatprep.subr.mxu0 %v6033
        %v6035 = vand.u32 %v5869, 4294901760
        %v6036 = vsub.f32 %v5869, %v6035
        %v6037 = vand.u32 %v6036, 4294901760
        %v6038 = vsub.f32 %v6036, %v6037
        %v6039 = vand.u32 %v6038, 4294901760
        %6040 = vmatpush1.msra.mxu0 %v6039
        %v6041 = vand.u32 %v5872, 4294901760
        %v6042 = vsub.f32 %v5872, %v6041
        %v6043 = vand.u32 %v6042, 4294901760
        %v6044 = vsub.f32 %v6042, %v6043
        %v6045 = vand.u32 %v6044, 4294901760
        %6046 = vmatprep.subr.mxu0 %v6045
        %v6047 = vand.u32 %v5871, 4294901760
        %v6048 = vsub.f32 %v5871, %v6047
        %v6049 = vand.u32 %v6048, 4294901760
        %v6050 = vsub.f32 %v6048, %v6049
        %v6051 = vand.u32 %v6050, 4294901760
        %6052 = vmatpush1.msra.mxu0 %v6051
        %v6053 = vand.u32 %v5874, 4294901760
        %v6054 = vsub.f32 %v5874, %v6053
        %v6055 = vand.u32 %v6054, 4294901760
        %v6056 = vsub.f32 %v6054, %v6055
        %v6057 = vand.u32 %v6056, 4294901760
        %6058 = vmatprep.subr.mxu0 %v6057
        %v6059 = vand.u32 %v5873, 4294901760
        %v6060 = vsub.f32 %v5873, %v6059
        %v6061 = vand.u32 %v6060, 4294901760
        %v6062 = vsub.f32 %v6060, %v6061
        %v6063 = vand.u32 %v6062, 4294901760
        %6064 = vmatpush1.msra.mxu0 %v6063
        %v6065 = vand.u32 %v5876, 4294901760
        %v6066 = vsub.f32 %v5876, %v6065
        %v6067 = vand.u32 %v6066, 4294901760
        %v6068 = vsub.f32 %v6066, %v6067
        %v6069 = vand.u32 %v6068, 4294901760
        %6070 = vmatprep.subr.mxu0 %v6069
        %v6071 = vand.u32 %v5875, 4294901760
        %v6072 = vsub.f32 %v5875, %v6071
        %v6073 = vand.u32 %v6072, 4294901760
        %v6074 = vsub.f32 %v6072, %v6073
        %v6075 = vand.u32 %v6074, 4294901760
        %6076 = vmatpush1.msra.mxu0 %v6075
        %v6077 = vand.u32 %v5878, 4294901760
        %v6078 = vsub.f32 %v5878, %v6077
        %v6079 = vand.u32 %v6078, 4294901760
        %v6080 = vsub.f32 %v6078, %v6079
        %v6081 = vand.u32 %v6080, 4294901760
        %6082 = vmatprep.subr.mxu0 %v6081
        %v6083 = vand.u32 %v5877, 4294901760
        %v6084 = vsub.f32 %v5877, %v6083
        %v6085 = vand.u32 %v6084, 4294901760
        %v6086 = vsub.f32 %v6084, %v6085
        %v6087 = vand.u32 %v6086, 4294901760
        %6088 = vmatpush1.msra.mxu0 %v6087
        %v6089 = vand.u32 %v5880, 4294901760
        %v6090 = vsub.f32 %v5880, %v6089
        %v6091 = vand.u32 %v6090, 4294901760
        %v6092 = vsub.f32 %v6090, %v6091
        %v6093 = vand.u32 %v6092, 4294901760
        %6094 = vmatprep.subr.mxu0 %v6093
        %v6095 = vand.u32 %v5879, 4294901760
        %v6096 = vsub.f32 %v5879, %v6095
        %v6097 = vand.u32 %v6096, 4294901760
        %v6098 = vsub.f32 %v6096, %v6097
        %v6099 = vand.u32 %v6098, 4294901760
        %6100 = vmatpush1.msra.mxu0 %v6099
        %v6101 = vand.u32 %v5882, 4294901760
        %v6102 = vsub.f32 %v5882, %v6101
        %v6103 = vand.u32 %v6102, 4294901760
        %v6104 = vsub.f32 %v6102, %v6103
        %v6105 = vand.u32 %v6104, 4294901760
        %6106 = vmatprep.subr.mxu0 %v6105
        %v6107 = vand.u32 %v5881, 4294901760
        %v6108 = vsub.f32 %v5881, %v6107
        %v6109 = vand.u32 %v6108, 4294901760
        %v6110 = vsub.f32 %v6108, %v6109
        %v6111 = vand.u32 %v6110, 4294901760
        %6112 = vmatpush1.msra.mxu0 %v6111
        %v6113 = vand.u32 %v5884, 4294901760
        %v6114 = vsub.f32 %v5884, %v6113
        %v6115 = vand.u32 %v6114, 4294901760
        %v6116 = vsub.f32 %v6114, %v6115
        %v6117 = vand.u32 %v6116, 4294901760
        %6118 = vmatprep.subr.mxu0 %v6117
        %v6119 = vand.u32 %v5883, 4294901760
        %v6120 = vsub.f32 %v5883, %v6119
        %v6121 = vand.u32 %v6120, 4294901760
        %v6122 = vsub.f32 %v6120, %v6121
        %v6123 = vand.u32 %v6122, 4294901760
        %6124 = vmatpush1.msra.mxu0 %v6123
        %v6125 = vand.u32 %v5886, 4294901760
        %v6126 = vsub.f32 %v5886, %v6125
        %v6127 = vand.u32 %v6126, 4294901760
        %v6128 = vsub.f32 %v6126, %v6127
        %v6129 = vand.u32 %v6128, 4294901760
        %6130 = vmatprep.subr.mxu0 %v6129
        %v6131 = vand.u32 %v5885, 4294901760
        %v6132 = vsub.f32 %v5885, %v6131
        %v6133 = vand.u32 %v6132, 4294901760
        %v6134 = vsub.f32 %v6132, %v6133
        %v6135 = vand.u32 %v6134, 4294901760
        %6136 = vmatpush1.msra.mxu0 %v6135
        %v6137 = vand.u32 %v5888, 4294901760
        %v6138 = vsub.f32 %v5888, %v6137
        %v6139 = vand.u32 %v6138, 4294901760
        %v6140 = vsub.f32 %v6138, %v6139
        %v6141 = vand.u32 %v6140, 4294901760
        %6142 = vmatprep.subr.mxu0 %v6141
        %v6143 = vand.u32 %v5887, 4294901760
        %v6144 = vsub.f32 %v5887, %v6143
        %v6145 = vand.u32 %v6144, 4294901760
        %v6146 = vsub.f32 %v6144, %v6145
        %v6147 = vand.u32 %v6146, 4294901760
        %6148 = vmatpush1.msra.mxu0 %v6147
        %v6149 = vand.u32 %v5890, 4294901760
        %v6150 = vsub.f32 %v5890, %v6149
        %v6151 = vand.u32 %v6150, 4294901760
        %v6152 = vsub.f32 %v6150, %v6151
        %v6153 = vand.u32 %v6152, 4294901760
        %6154 = vmatprep.subr.mxu0 %v6153
        %v6155 = vand.u32 %v5889, 4294901760
        %v6156 = vsub.f32 %v5889, %v6155
        %v6157 = vand.u32 %v6156, 4294901760
        %v6158 = vsub.f32 %v6156, %v6157
        %v6159 = vand.u32 %v6158, 4294901760
        %6160 = vmatpush1.msra.mxu0 %v6159
        %v6161 = vand.u32 %v5892, 4294901760
        %v6162 = vsub.f32 %v5892, %v6161
        %v6163 = vand.u32 %v6162, 4294901760
        %v6164 = vsub.f32 %v6162, %v6163
        %v6165 = vand.u32 %v6164, 4294901760
        %6166 = vmatprep.subr.mxu0 %v6165
        %v6167 = vand.u32 %v5891, 4294901760
        %v6168 = vsub.f32 %v5891, %v6167
        %v6169 = vand.u32 %v6168, 4294901760
        %v6170 = vsub.f32 %v6168, %v6169
        %v6171 = vand.u32 %v6170, 4294901760
        %6172 = vmatpush1.msra.mxu0 %v6171
        %v6173 = vand.u32 %v5894, 4294901760
        %v6174 = vsub.f32 %v5894, %v6173
        %v6175 = vand.u32 %v6174, 4294901760
        %v6176 = vsub.f32 %v6174, %v6175
        %v6177 = vand.u32 %v6176, 4294901760
        %6178 = vmatprep.subr.mxu0 %v6177
        %v6179 = vand.u32 %v5893, 4294901760
        %v6180 = vsub.f32 %v5893, %v6179
        %v6181 = vand.u32 %v6180, 4294901760
        %v6182 = vsub.f32 %v6180, %v6181
        %v6183 = vand.u32 %v6182, 4294901760
        %6184 = vmatpush1.msra.mxu0 %v6183
        %v6185 = vand.u32 %v5896, 4294901760
        %v6186 = vsub.f32 %v5896, %v6185
        %v6187 = vand.u32 %v6186, 4294901760
        %v6188 = vsub.f32 %v6186, %v6187
        %v6189 = vand.u32 %v6188, 4294901760
        %6190 = vmatprep.subr.mxu0 %v6189
        %v6191 = vand.u32 %v5895, 4294901760
        %v6192 = vsub.f32 %v5895, %v6191
        %v6193 = vand.u32 %v6192, 4294901760
        %v6194 = vsub.f32 %v6192, %v6193
        %v6195 = vand.u32 %v6194, 4294901760
        %6196 = vmatpush1.msra.mxu0 %v6195
        %6197 = vmatprep.subr.mxu0 0.0
        %6198 = vmatpush1.msra.mxu0 0.0
        %6199 = vmatprep.subr.mxu0 0.0
        %6200 = vmatpush1.msra.mxu0 0.0
        %6201 = vmatprep.subr.mxu0 0.0
        %6202 = vmatpush1.msra.mxu0 0.0
        %6203 = vmatprep.subr.mxu0 0.0
        %6204 = vmatpush1.msra.mxu0 0.0
        %6205 = vmatprep.subr.mxu0 0.0
        %6206 = vmatpush1.msra.mxu0 0.0
        %6207 = vmatprep.subr.mxu0 0.0
        %6208 = vmatpush1.msra.mxu0 0.0
        %6209 = vmatprep.subr.mxu0 0.0
        %6210 = vmatpush1.msra.mxu0 0.0
        %6211 = vmatprep.subr.mxu0 0.0
        %6212 = vmatpush1.msra.mxu0 0.0
        %6213 = vmatprep.subr.mxu0 0.0
        %6214 = vmatpush1.msra.mxu0 0.0
        %6215 = vmatprep.subr.mxu0 0.0
        %6216 = vmatpush1.msra.mxu0 0.0
        %6217 = vmatprep.subr.mxu0 0.0
        %6218 = vmatpush1.msra.mxu0 0.0
        %6219 = vmatprep.subr.mxu0 0.0
        %6220 = vmatpush1.msra.mxu0 0.0
        %6221 = vmatprep.subr.mxu0 0.0
        %6222 = vmatpush1.msra.mxu0 0.0
        %6223 = vmatprep.subr.mxu0 0.0
        %6224 = vmatpush1.msra.mxu0 0.0
        %6225 = vmatprep.subr.mxu0 0.0
        %6226 = vmatpush1.msra.mxu0 0.0
        %6227 = vmatprep.subr.mxu0 0.0
        %6228 = vmatpush1.msra.mxu0 0.0
        %6229 = vmatprep.mubr.f32.mxu0 0.0
        %v6230 = vand.u32 %v5863, 4294901760
        %6231 = vmatmul.mubr.f32.gmra.mrb[0].mxu0 %v6230
        %v6232 = vpop.f32.mrb[0].mxu0
        %v6233 = vadd.f32 %v6001, %v6232
        %v6234 = vpop.f32.mrb[0].mxu0
        %v6235 = vadd.f32 %v6003, %v6234
        %6236 = vdwg.mxu0
        %v6237 = vand.u32 %v5866, 4294901760
        %v6238 = vsub.f32 %v5866, %v6237
        %6239 = vmatprep.subr.mxu0 %v6238
        %v6240 = vand.u32 %v5865, 4294901760
        %v6241 = vsub.f32 %v5865, %v6240
        %6242 = vmatpush1.msra.mxu0 %v6241
        %v6243 = vand.u32 %v5868, 4294901760
        %v6244 = vsub.f32 %v5868, %v6243
        %6245 = vmatprep.subr.mxu0 %v6244
        %v6246 = vand.u32 %v5867, 4294901760
        %v6247 = vsub.f32 %v5867, %v6246
        %6248 = vmatpush1.msra.mxu0 %v6247
        %v6249 = vand.u32 %v5870, 4294901760
        %v6250 = vsub.f32 %v5870, %v6249
        %6251 = vmatprep.subr.mxu0 %v6250
        %v6252 = vand.u32 %v5869, 4294901760
        %v6253 = vsub.f32 %v5869, %v6252
        %6254 = vmatpush1.msra.mxu0 %v6253
        %v6255 = vand.u32 %v5872, 4294901760
        %v6256 = vsub.f32 %v5872, %v6255
        %6257 = vmatprep.subr.mxu0 %v6256
        %v6258 = vand.u32 %v5871, 4294901760
        %v6259 = vsub.f32 %v5871, %v6258
        %6260 = vmatpush1.msra.mxu0 %v6259
        %v6261 = vand.u32 %v5874, 4294901760
        %v6262 = vsub.f32 %v5874, %v6261
        %6263 = vmatprep.subr.mxu0 %v6262
        %v6264 = vand.u32 %v5873, 4294901760
        %v6265 = vsub.f32 %v5873, %v6264
        %6266 = vmatpush1.msra.mxu0 %v6265
        %v6267 = vand.u32 %v5876, 4294901760
        %v6268 = vsub.f32 %v5876, %v6267
        %6269 = vmatprep.subr.mxu0 %v6268
        %v6270 = vand.u32 %v5875, 4294901760
        %v6271 = vsub.f32 %v5875, %v6270
        %6272 = vmatpush1.msra.mxu0 %v6271
        %v6273 = vand.u32 %v5878, 4294901760
        %v6274 = vsub.f32 %v5878, %v6273
        %6275 = vmatprep.subr.mxu0 %v6274
        %v6276 = vand.u32 %v5877, 4294901760
        %v6277 = vsub.f32 %v5877, %v6276
        %6278 = vmatpush1.msra.mxu0 %v6277
        %v6279 = vand.u32 %v5880, 4294901760
        %v6280 = vsub.f32 %v5880, %v6279
        %6281 = vmatprep.subr.mxu0 %v6280
        %v6282 = vand.u32 %v5879, 4294901760
        %v6283 = vsub.f32 %v5879, %v6282
        %6284 = vmatpush1.msra.mxu0 %v6283
        %v6285 = vand.u32 %v5882, 4294901760
        %v6286 = vsub.f32 %v5882, %v6285
        %6287 = vmatprep.subr.mxu0 %v6286
        %v6288 = vand.u32 %v5881, 4294901760
        %v6289 = vsub.f32 %v5881, %v6288
        %6290 = vmatpush1.msra.mxu0 %v6289
        %v6291 = vand.u32 %v5884, 4294901760
        %v6292 = vsub.f32 %v5884, %v6291
        %6293 = vmatprep.subr.mxu0 %v6292
        %v6294 = vand.u32 %v5883, 4294901760
        %v6295 = vsub.f32 %v5883, %v6294
        %6296 = vmatpush1.msra.mxu0 %v6295
        %v6297 = vand.u32 %v5886, 4294901760
        %v6298 = vsub.f32 %v5886, %v6297
        %6299 = vmatprep.subr.mxu0 %v6298
        %v6300 = vand.u32 %v5885, 4294901760
        %v6301 = vsub.f32 %v5885, %v6300
        %6302 = vmatpush1.msra.mxu0 %v6301
        %v6303 = vand.u32 %v5888, 4294901760
        %v6304 = vsub.f32 %v5888, %v6303
        %6305 = vmatprep.subr.mxu0 %v6304
        %v6306 = vand.u32 %v5887, 4294901760
        %v6307 = vsub.f32 %v5887, %v6306
        %6308 = vmatpush1.msra.mxu0 %v6307
        %v6309 = vand.u32 %v5890, 4294901760
        %v6310 = vsub.f32 %v5890, %v6309
        %6311 = vmatprep.subr.mxu0 %v6310
        %v6312 = vand.u32 %v5889, 4294901760
        %v6313 = vsub.f32 %v5889, %v6312
        %6314 = vmatpush1.msra.mxu0 %v6313
        %v6315 = vand.u32 %v5892, 4294901760
        %v6316 = vsub.f32 %v5892, %v6315
        %6317 = vmatprep.subr.mxu0 %v6316
        %v6318 = vand.u32 %v5891, 4294901760
        %v6319 = vsub.f32 %v5891, %v6318
        %6320 = vmatpush1.msra.mxu0 %v6319
        %v6321 = vand.u32 %v5894, 4294901760
        %v6322 = vsub.f32 %v5894, %v6321
        %6323 = vmatprep.subr.mxu0 %v6322
        %v6324 = vand.u32 %v5893, 4294901760
        %v6325 = vsub.f32 %v5893, %v6324
        %6326 = vmatpush1.msra.mxu0 %v6325
        %v6327 = vand.u32 %v5896, 4294901760
        %v6328 = vsub.f32 %v5896, %v6327
        %6329 = vmatprep.subr.mxu0 %v6328
        %v6330 = vand.u32 %v5895, 4294901760
        %v6331 = vsub.f32 %v5895, %v6330
        %6332 = vmatpush1.msra.mxu0 %v6331
        %6333 = vmatprep.subr.mxu0 0.0
        %6334 = vmatpush1.msra.mxu0 0.0
        %6335 = vmatprep.subr.mxu0 0.0
        %6336 = vmatpush1.msra.mxu0 0.0
        %6337 = vmatprep.subr.mxu0 0.0
        %6338 = vmatpush1.msra.mxu0 0.0
        %6339 = vmatprep.subr.mxu0 0.0
        %6340 = vmatpush1.msra.mxu0 0.0
        %6341 = vmatprep.subr.mxu0 0.0
        %6342 = vmatpush1.msra.mxu0 0.0
        %6343 = vmatprep.subr.mxu0 0.0
        %6344 = vmatpush1.msra.mxu0 0.0
        %6345 = vmatprep.subr.mxu0 0.0
        %6346 = vmatpush1.msra.mxu0 0.0
        %6347 = vmatprep.subr.mxu0 0.0
        %6348 = vmatpush1.msra.mxu0 0.0
        %6349 = vmatprep.subr.mxu0 0.0
        %6350 = vmatpush1.msra.mxu0 0.0
        %6351 = vmatprep.subr.mxu0 0.0
        %6352 = vmatpush1.msra.mxu0 0.0
        %6353 = vmatprep.subr.mxu0 0.0
        %6354 = vmatpush1.msra.mxu0 0.0
        %6355 = vmatprep.subr.mxu0 0.0
        %6356 = vmatpush1.msra.mxu0 0.0
        %6357 = vmatprep.subr.mxu0 0.0
        %6358 = vmatpush1.msra.mxu0 0.0
        %6359 = vmatprep.subr.mxu0 0.0
        %6360 = vmatpush1.msra.mxu0 0.0
        %6361 = vmatprep.subr.mxu0 0.0
        %6362 = vmatpush1.msra.mxu0 0.0
        %6363 = vmatprep.subr.mxu0 0.0
        %6364 = vmatpush1.msra.mxu0 0.0
        %6365 = vmatprep.mubr.f32.mxu0 0.0
        %v6366 = vand.u32 %v5863, 4294901760
        %v6367 = vsub.f32 %v5863, %v6366
        %6368 = vmatmul.mubr.f32.gmra.mrb[0].mxu0 %v6367
        %v6369 = vpop.f32.mrb[0].mxu0
        %v6370 = vadd.f32 %v6233, %v6369
        %v6371 = vpop.f32.mrb[0].mxu0
        %v6372 = vadd.f32 %v6235, %v6371
        %6373 = vdwg.mxu0
        %v6374 = vand.u32 %v5866, 4294901760
        %6375 = vmatprep.subr.mxu0 %v6374
        %v6376 = vand.u32 %v5865, 4294901760
        %6377 = vmatpush1.msra.mxu0 %v6376
        %v6378 = vand.u32 %v5868, 4294901760
        %6379 = vmatprep.subr.mxu0 %v6378
        %v6380 = vand.u32 %v5867, 4294901760
        %6381 = vmatpush1.msra.mxu0 %v6380
        %v6382 = vand.u32 %v5870, 4294901760
        %6383 = vmatprep.subr.mxu0 %v6382
        %v6384 = vand.u32 %v5869, 4294901760
        %6385 = vmatpush1.msra.mxu0 %v6384
        %v6386 = vand.u32 %v5872, 4294901760
        %6387 = vmatprep.subr.mxu0 %v6386
        %v6388 = vand.u32 %v5871, 4294901760
        %6389 = vmatpush1.msra.mxu0 %v6388
        %v6390 = vand.u32 %v5874, 4294901760
        %6391 = vmatprep.subr.mxu0 %v6390
        %v6392 = vand.u32 %v5873, 4294901760
        %6393 = vmatpush1.msra.mxu0 %v6392
        %v6394 = vand.u32 %v5876, 4294901760
        %6395 = vmatprep.subr.mxu0 %v6394
        %v6396 = vand.u32 %v5875, 4294901760
        %6397 = vmatpush1.msra.mxu0 %v6396
        %v6398 = vand.u32 %v5878, 4294901760
        %6399 = vmatprep.subr.mxu0 %v6398
        %v6400 = vand.u32 %v5877, 4294901760
        %6401 = vmatpush1.msra.mxu0 %v6400
        %v6402 = vand.u32 %v5880, 4294901760
        %6403 = vmatprep.subr.mxu0 %v6402
        %v6404 = vand.u32 %v5879, 4294901760
        %6405 = vmatpush1.msra.mxu0 %v6404
        %v6406 = vand.u32 %v5882, 4294901760
        %6407 = vmatprep.subr.mxu0 %v6406
        %v6408 = vand.u32 %v5881, 4294901760
        %6409 = vmatpush1.msra.mxu0 %v6408
        %v6410 = vand.u32 %v5884, 4294901760
        %6411 = vmatprep.subr.mxu0 %v6410
        %v6412 = vand.u32 %v5883, 4294901760
        %6413 = vmatpush1.msra.mxu0 %v6412
        %v6414 = vand.u32 %v5886, 4294901760
        %6415 = vmatprep.subr.mxu0 %v6414
        %v6416 = vand.u32 %v5885, 4294901760
        %6417 = vmatpush1.msra.mxu0 %v6416
        %v6418 = vand.u32 %v5888, 4294901760
        %6419 = vmatprep.subr.mxu0 %v6418
        %v6420 = vand.u32 %v5887, 4294901760
        %6421 = vmatpush1.msra.mxu0 %v6420
        %v6422 = vand.u32 %v5890, 4294901760
        %6423 = vmatprep.subr.mxu0 %v6422
        %v6424 = vand.u32 %v5889, 4294901760
        %6425 = vmatpush1.msra.mxu0 %v6424
        %v6426 = vand.u32 %v5892, 4294901760
        %6427 = vmatprep.subr.mxu0 %v6426
        %v6428 = vand.u32 %v5891, 4294901760
        %6429 = vmatpush1.msra.mxu0 %v6428
        %v6430 = vand.u32 %v5894, 4294901760
        %6431 = vmatprep.subr.mxu0 %v6430
        %v6432 = vand.u32 %v5893, 4294901760
        %6433 = vmatpush1.msra.mxu0 %v6432
        %v6434 = vand.u32 %v5896, 4294901760
        %6435 = vmatprep.subr.mxu0 %v6434
        %v6436 = vand.u32 %v5895, 4294901760
        %6437 = vmatpush1.msra.mxu0 %v6436
        %6438 = vmatprep.subr.mxu0 0.0
        %6439 = vmatpush1.msra.mxu0 0.0
        %6440 = vmatprep.subr.mxu0 0.0
        %6441 = vmatpush1.msra.mxu0 0.0
        %6442 = vmatprep.subr.mxu0 0.0
        %6443 = vmatpush1.msra.mxu0 0.0
        %6444 = vmatprep.subr.mxu0 0.0
        %6445 = vmatpush1.msra.mxu0 0.0
        %6446 = vmatprep.subr.mxu0 0.0
        %6447 = vmatpush1.msra.mxu0 0.0
        %6448 = vmatprep.subr.mxu0 0.0
        %6449 = vmatpush1.msra.mxu0 0.0
        %6450 = vmatprep.subr.mxu0 0.0
        %6451 = vmatpush1.msra.mxu0 0.0
        %6452 = vmatprep.subr.mxu0 0.0
        %6453 = vmatpush1.msra.mxu0 0.0
        %6454 = vmatprep.subr.mxu0 0.0
        %6455 = vmatpush1.msra.mxu0 0.0
        %6456 = vmatprep.subr.mxu0 0.0
        %6457 = vmatpush1.msra.mxu0 0.0
        %6458 = vmatprep.subr.mxu0 0.0
        %6459 = vmatpush1.msra.mxu0 0.0
        %6460 = vmatprep.subr.mxu0 0.0
        %6461 = vmatpush1.msra.mxu0 0.0
        %6462 = vmatprep.subr.mxu0 0.0
        %6463 = vmatpush1.msra.mxu0 0.0
        %6464 = vmatprep.subr.mxu0 0.0
        %6465 = vmatpush1.msra.mxu0 0.0
        %6466 = vmatprep.subr.mxu0 0.0
        %6467 = vmatpush1.msra.mxu0 0.0
        %6468 = vmatprep.subr.mxu0 0.0
        %6469 = vmatpush1.msra.mxu0 0.0
        %6470 = vmatprep.mubr.f32.mxu0 0.0
        %v6471 = vand.u32 %v5863, 4294901760
        %v6472 = vsub.f32 %v5863, %v6471
        %v6473 = vand.u32 %v6472, 4294901760
        %6474 = vmatmul.mubr.f32.gmra.mrb[0].mxu0 %v6473
        %v6475 = vpop.f32.mrb[0].mxu0
        %v6476 = vadd.f32 %v6370, %v6475
        %v6477 = vpop.f32.mrb[0].mxu0
        %v6478 = vadd.f32 %v6372, %v6477
        %6479 = vdwg.mxu0
        %v6480 = vand.u32 %v5866, 4294901760
        %v6481 = vsub.f32 %v5866, %v6480
        %v6482 = vand.u32 %v6481, 4294901760
        %6483 = vmatprep.subr.mxu0 %v6482
        %v6484 = vand.u32 %v5865, 4294901760
        %v6485 = vsub.f32 %v5865, %v6484
        %v6486 = vand.u32 %v6485, 4294901760
        %6487 = vmatpush1.msra.mxu0 %v6486
        %v6488 = vand.u32 %v5868, 4294901760
        %v6489 = vsub.f32 %v5868, %v6488
        %v6490 = vand.u32 %v6489, 4294901760
        %6491 = vmatprep.subr.mxu0 %v6490
        %v6492 = vand.u32 %v5867, 4294901760
        %v6493 = vsub.f32 %v5867, %v6492
        %v6494 = vand.u32 %v6493, 4294901760
        %6495 = vmatpush1.msra.mxu0 %v6494
        %v6496 = vand.u32 %v5870, 4294901760
        %v6497 = vsub.f32 %v5870, %v6496
        %v6498 = vand.u32 %v6497, 4294901760
        %6499 = vmatprep.subr.mxu0 %v6498
        %v6500 = vand.u32 %v5869, 4294901760
        %v6501 = vsub.f32 %v5869, %v6500
        %v6502 = vand.u32 %v6501, 4294901760
        %6503 = vmatpush1.msra.mxu0 %v6502
        %v6504 = vand.u32 %v5872, 4294901760
        %v6505 = vsub.f32 %v5872, %v6504
        %v6506 = vand.u32 %v6505, 4294901760
        %6507 = vmatprep.subr.mxu0 %v6506
        %v6508 = vand.u32 %v5871, 4294901760
        %v6509 = vsub.f32 %v5871, %v6508
        %v6510 = vand.u32 %v6509, 4294901760
        %6511 = vmatpush1.msra.mxu0 %v6510
        %v6512 = vand.u32 %v5874, 4294901760
        %v6513 = vsub.f32 %v5874, %v6512
        %v6514 = vand.u32 %v6513, 4294901760
        %6515 = vmatprep.subr.mxu0 %v6514
        %v6516 = vand.u32 %v5873, 4294901760
        %v6517 = vsub.f32 %v5873, %v6516
        %v6518 = vand.u32 %v6517, 4294901760
        %6519 = vmatpush1.msra.mxu0 %v6518
        %v6520 = vand.u32 %v5876, 4294901760
        %v6521 = vsub.f32 %v5876, %v6520
        %v6522 = vand.u32 %v6521, 4294901760
        %6523 = vmatprep.subr.mxu0 %v6522
        %v6524 = vand.u32 %v5875, 4294901760
        %v6525 = vsub.f32 %v5875, %v6524
        %v6526 = vand.u32 %v6525, 4294901760
        %6527 = vmatpush1.msra.mxu0 %v6526
        %v6528 = vand.u32 %v5878, 4294901760
        %v6529 = vsub.f32 %v5878, %v6528
        %v6530 = vand.u32 %v6529, 4294901760
        %6531 = vmatprep.subr.mxu0 %v6530
        %v6532 = vand.u32 %v5877, 4294901760
        %v6533 = vsub.f32 %v5877, %v6532
        %v6534 = vand.u32 %v6533, 4294901760
        %6535 = vmatpush1.msra.mxu0 %v6534
        %v6536 = vand.u32 %v5880, 4294901760
        %v6537 = vsub.f32 %v5880, %v6536
        %v6538 = vand.u32 %v6537, 4294901760
        %6539 = vmatprep.subr.mxu0 %v6538
        %v6540 = vand.u32 %v5879, 4294901760
        %v6541 = vsub.f32 %v5879, %v6540
        %v6542 = vand.u32 %v6541, 4294901760
        %6543 = vmatpush1.msra.mxu0 %v6542
        %v6544 = vand.u32 %v5882, 4294901760
        %v6545 = vsub.f32 %v5882, %v6544
        %v6546 = vand.u32 %v6545, 4294901760
        %6547 = vmatprep.subr.mxu0 %v6546
        %v6548 = vand.u32 %v5881, 4294901760
        %v6549 = vsub.f32 %v5881, %v6548
        %v6550 = vand.u32 %v6549, 4294901760
        %6551 = vmatpush1.msra.mxu0 %v6550
        %v6552 = vand.u32 %v5884, 4294901760
        %v6553 = vsub.f32 %v5884, %v6552
        %v6554 = vand.u32 %v6553, 4294901760
        %6555 = vmatprep.subr.mxu0 %v6554
        %v6556 = vand.u32 %v5883, 4294901760
        %v6557 = vsub.f32 %v5883, %v6556
        %v6558 = vand.u32 %v6557, 4294901760
        %6559 = vmatpush1.msra.mxu0 %v6558
        %v6560 = vand.u32 %v5886, 4294901760
        %v6561 = vsub.f32 %v5886, %v6560
        %v6562 = vand.u32 %v6561, 4294901760
        %6563 = vmatprep.subr.mxu0 %v6562
        %v6564 = vand.u32 %v5885, 4294901760
        %v6565 = vsub.f32 %v5885, %v6564
        %v6566 = vand.u32 %v6565, 4294901760
        %6567 = vmatpush1.msra.mxu0 %v6566
        %v6568 = vand.u32 %v5888, 4294901760
        %v6569 = vsub.f32 %v5888, %v6568
        %v6570 = vand.u32 %v6569, 4294901760
        %6571 = vmatprep.subr.mxu0 %v6570
        %v6572 = vand.u32 %v5887, 4294901760
        %v6573 = vsub.f32 %v5887, %v6572
        %v6574 = vand.u32 %v6573, 4294901760
        %6575 = vmatpush1.msra.mxu0 %v6574
        %v6576 = vand.u32 %v5890, 4294901760
        %v6577 = vsub.f32 %v5890, %v6576
        %v6578 = vand.u32 %v6577, 4294901760
        %6579 = vmatprep.subr.mxu0 %v6578
        %v6580 = vand.u32 %v5889, 4294901760
        %v6581 = vsub.f32 %v5889, %v6580
        %v6582 = vand.u32 %v6581, 4294901760
        %6583 = vmatpush1.msra.mxu0 %v6582
        %v6584 = vand.u32 %v5892, 4294901760
        %v6585 = vsub.f32 %v5892, %v6584
        %v6586 = vand.u32 %v6585, 4294901760
        %6587 = vmatprep.subr.mxu0 %v6586
        %v6588 = vand.u32 %v5891, 4294901760
        %v6589 = vsub.f32 %v5891, %v6588
        %v6590 = vand.u32 %v6589, 4294901760
        %6591 = vmatpush1.msra.mxu0 %v6590
        %v6592 = vand.u32 %v5894, 4294901760
        %v6593 = vsub.f32 %v5894, %v6592
        %v6594 = vand.u32 %v6593, 4294901760
        %6595 = vmatprep.subr.mxu0 %v6594
        %v6596 = vand.u32 %v5893, 4294901760
        %v6597 = vsub.f32 %v5893, %v6596
        %v6598 = vand.u32 %v6597, 4294901760
        %6599 = vmatpush1.msra.mxu0 %v6598
        %v6600 = vand.u32 %v5896, 4294901760
        %v6601 = vsub.f32 %v5896, %v6600
        %v6602 = vand.u32 %v6601, 4294901760
        %6603 = vmatprep.subr.mxu0 %v6602
        %v6604 = vand.u32 %v5895, 4294901760
        %v6605 = vsub.f32 %v5895, %v6604
        %v6606 = vand.u32 %v6605, 4294901760
        %6607 = vmatpush1.msra.mxu0 %v6606
        %6608 = vmatprep.subr.mxu0 0.0
        %6609 = vmatpush1.msra.mxu0 0.0
        %6610 = vmatprep.subr.mxu0 0.0
        %6611 = vmatpush1.msra.mxu0 0.0
        %6612 = vmatprep.subr.mxu0 0.0
        %6613 = vmatpush1.msra.mxu0 0.0
        %6614 = vmatprep.subr.mxu0 0.0
        %6615 = vmatpush1.msra.mxu0 0.0
        %6616 = vmatprep.subr.mxu0 0.0
        %6617 = vmatpush1.msra.mxu0 0.0
        %6618 = vmatprep.subr.mxu0 0.0
        %6619 = vmatpush1.msra.mxu0 0.0
        %6620 = vmatprep.subr.mxu0 0.0
        %6621 = vmatpush1.msra.mxu0 0.0
        %6622 = vmatprep.subr.mxu0 0.0
        %6623 = vmatpush1.msra.mxu0 0.0
        %6624 = vmatprep.subr.mxu0 0.0
        %6625 = vmatpush1.msra.mxu0 0.0
        %6626 = vmatprep.subr.mxu0 0.0
        %6627 = vmatpush1.msra.mxu0 0.0
        %6628 = vmatprep.subr.mxu0 0.0
        %6629 = vmatpush1.msra.mxu0 0.0
        %6630 = vmatprep.subr.mxu0 0.0
        %6631 = vmatpush1.msra.mxu0 0.0
        %6632 = vmatprep.subr.mxu0 0.0
        %6633 = vmatpush1.msra.mxu0 0.0
        %6634 = vmatprep.subr.mxu0 0.0
        %6635 = vmatpush1.msra.mxu0 0.0
        %6636 = vmatprep.subr.mxu0 0.0
        %6637 = vmatpush1.msra.mxu0 0.0
        %6638 = vmatprep.subr.mxu0 0.0
        %6639 = vmatpush1.msra.mxu0 0.0
        %6640 = vmatprep.mubr.f32.mxu0 0.0
        %v6641 = vand.u32 %v5863, 4294901760
        %6642 = vmatmul.mubr.f32.gmra.mrb[0].mxu0 %v6641
        %v6643 = vpop.f32.mrb[0].mxu0
        %v6644 = vadd.f32 %v6476, %v6643
        %v6645 = vpop.f32.mrb[0].mxu0
        %v6646 = vadd.f32 %v6478, %v6645
        %6647 = vdwg.mxu0
        %v6648 = vand.u32 %v5866, 4294901760
        %6649 = vmatprep.subr.mxu0 %v6648
        %v6650 = vand.u32 %v5865, 4294901760
        %6651 = vmatpush1.msra.mxu0 %v6650
        %v6652 = vand.u32 %v5868, 4294901760
        %6653 = vmatprep.subr.mxu0 %v6652
        %v6654 = vand.u32 %v5867, 4294901760
        %6655 = vmatpush1.msra.mxu0 %v6654
        %v6656 = vand.u32 %v5870, 4294901760
        %6657 = vmatprep.subr.mxu0 %v6656
        %v6658 = vand.u32 %v5869, 4294901760
        %6659 = vmatpush1.msra.mxu0 %v6658
        %v6660 = vand.u32 %v5872, 4294901760
        %6661 = vmatprep.subr.mxu0 %v6660
        %v6662 = vand.u32 %v5871, 4294901760
        %6663 = vmatpush1.msra.mxu0 %v6662
        %v6664 = vand.u32 %v5874, 4294901760
        %6665 = vmatprep.subr.mxu0 %v6664
        %v6666 = vand.u32 %v5873, 4294901760
        %6667 = vmatpush1.msra.mxu0 %v6666
        %v6668 = vand.u32 %v5876, 4294901760
        %6669 = vmatprep.subr.mxu0 %v6668
        %v6670 = vand.u32 %v5875, 4294901760
        %6671 = vmatpush1.msra.mxu0 %v6670
        %v6672 = vand.u32 %v5878, 4294901760
        %6673 = vmatprep.subr.mxu0 %v6672
        %v6674 = vand.u32 %v5877, 4294901760
        %6675 = vmatpush1.msra.mxu0 %v6674
        %v6676 = vand.u32 %v5880, 4294901760
        %6677 = vmatprep.subr.mxu0 %v6676
        %v6678 = vand.u32 %v5879, 4294901760
        %6679 = vmatpush1.msra.mxu0 %v6678
        %v6680 = vand.u32 %v5882, 4294901760
        %6681 = vmatprep.subr.mxu0 %v6680
        %v6682 = vand.u32 %v5881, 4294901760
        %6683 = vmatpush1.msra.mxu0 %v6682
        %v6684 = vand.u32 %v5884, 4294901760
        %6685 = vmatprep.subr.mxu0 %v6684
        %v6686 = vand.u32 %v5883, 4294901760
        %6687 = vmatpush1.msra.mxu0 %v6686
        %v6688 = vand.u32 %v5886, 4294901760
        %6689 = vmatprep.subr.mxu0 %v6688
        %v6690 = vand.u32 %v5885, 4294901760
        %6691 = vmatpush1.msra.mxu0 %v6690
        %v6692 = vand.u32 %v5888, 4294901760
        %6693 = vmatprep.subr.mxu0 %v6692
        %v6694 = vand.u32 %v5887, 4294901760
        %6695 = vmatpush1.msra.mxu0 %v6694
        %v6696 = vand.u32 %v5890, 4294901760
        %6697 = vmatprep.subr.mxu0 %v6696
        %v6698 = vand.u32 %v5889, 4294901760
        %6699 = vmatpush1.msra.mxu0 %v6698
        %v6700 = vand.u32 %v5892, 4294901760
        %6701 = vmatprep.subr.mxu0 %v6700
        %v6702 = vand.u32 %v5891, 4294901760
        %6703 = vmatpush1.msra.mxu0 %v6702
        %v6704 = vand.u32 %v5894, 4294901760
        %6705 = vmatprep.subr.mxu0 %v6704
        %v6706 = vand.u32 %v5893, 4294901760
        %6707 = vmatpush1.msra.mxu0 %v6706
        %v6708 = vand.u32 %v5896, 4294901760
        %6709 = vmatprep.subr.mxu0 %v6708
        %v6710 = vand.u32 %v5895, 4294901760
        %6711 = vmatpush1.msra.mxu0 %v6710
        %6712 = vmatprep.subr.mxu0 0.0
        %6713 = vmatpush1.msra.mxu0 0.0
        %6714 = vmatprep.subr.mxu0 0.0
        %6715 = vmatpush1.msra.mxu0 0.0
        %6716 = vmatprep.subr.mxu0 0.0
        %6717 = vmatpush1.msra.mxu0 0.0
        %6718 = vmatprep.subr.mxu0 0.0
        %6719 = vmatpush1.msra.mxu0 0.0
        %6720 = vmatprep.subr.mxu0 0.0
        %6721 = vmatpush1.msra.mxu0 0.0
        %6722 = vmatprep.subr.mxu0 0.0
        %6723 = vmatpush1.msra.mxu0 0.0
        %6724 = vmatprep.subr.mxu0 0.0
        %6725 = vmatpush1.msra.mxu0 0.0
        %6726 = vmatprep.subr.mxu0 0.0
        %6727 = vmatpush1.msra.mxu0 0.0
        %6728 = vmatprep.subr.mxu0 0.0
        %6729 = vmatpush1.msra.mxu0 0.0
        %6730 = vmatprep.subr.mxu0 0.0
        %6731 = vmatpush1.msra.mxu0 0.0
        %6732 = vmatprep.subr.mxu0 0.0
        %6733 = vmatpush1.msra.mxu0 0.0
        %6734 = vmatprep.subr.mxu0 0.0
        %6735 = vmatpush1.msra.mxu0 0.0
        %6736 = vmatprep.subr.mxu0 0.0
        %6737 = vmatpush1.msra.mxu0 0.0
        %6738 = vmatprep.subr.mxu0 0.0
        %6739 = vmatpush1.msra.mxu0 0.0
        %6740 = vmatprep.subr.mxu0 0.0
        %6741 = vmatpush1.msra.mxu0 0.0
        %6742 = vmatprep.subr.mxu0 0.0
        %6743 = vmatpush1.msra.mxu0 0.0
        %6744 = vmatprep.mubr.f32.mxu0 0.0
        %v6745 = vand.u32 %v5863, 4294901760
        %6746 = vmatmul.mubr.f32.gmra.mrb[0].mxu0 %v6745
        %v6747 = vpop.f32.mrb[0].mxu0
        %v6748 = vadd.f32 %v6644, %v6747
        %v6749 = vpop.f32.mrb[0].mxu0
        %v6750 = vadd.f32 %v6646, %v6749
        %6751 = vdwg.mxu0
        %v6752 = vadd.f32 %v5859, %v6748
        %v6753 = vadd.f32 %v5861, %v6750
        %s6754 = scalar_lea.vmem %s2, 2
        %v6755 = vld [vmem:[%s6754] sm:$0x3]
        %v6757 = vlaneseq
        %v6758 = vshrl.u32 %v6757, 7
        %v6759 = vsub.s32 0, %v6758
        %v6760 = vrot.slane %v6755, %v6759
        %v6761 = vlaneseq
        %v6762 = vshrl.u32 %v6761, 7
        %v6763 = vsub.s32 1, %v6762
        %v6764 = vrot.slane %v6755, %v6763
        %v6767 = vadd.f32 %v6752, %v6760
        %v6768 = vadd.f32 %v6753, %v6764
        %v6769 = vtanh.pop %v6767
        %v6770 = vxor.u32 %v6768, 2147483648
        %v6771 = vmul.f32 %v6770, 1.442695
        %v6772 = vpow.pop %v6771
        %v6773 = vadd.f32 %v6772, 1.0
        %v6774 = vrcp.pop %v6773
        %v6775 = vmul.f32 1.0, %v6774
        %v6776 = vmul.f32 %v6769, %v6775
        %s6777 = scalar_lea.vmem [#allocation8], 256
        %v6778 = vld [vmem:[%s6777] sm:$0xff]
        %v6779 = vld [vmem:[%s6777 + $0x8] sm:$0xff]
        %v6780 = vld [vmem:[%s6777 + $0x10] sm:$0xff]
        %v6781 = vld [vmem:[%s6777 + $0x18] sm:$0xff]
        %v6782 = vld [vmem:[%s6777 + $0x20] sm:$0xff]
        %v6783 = vld [vmem:[%s6777 + $0x28] sm:$0xff]
        %v6784 = vld [vmem:[%s6777 + $0x30] sm:$0xff]
        %v6785 = vld [vmem:[%s6777 + $0x38] sm:$0xff]
        %v6786 = vld [vmem:[%s6777 + $0x40] sm:$0xff]
        %v6787 = vld [vmem:[%s6777 + $0x48] sm:$0xff]
        %v6788 = vld [vmem:[%s6777 + $0x50] sm:$0xff]
        %v6789 = vld [vmem:[%s6777 + $0x58] sm:$0xff]
        %v6790 = vld [vmem:[%s6777 + $0x60] sm:$0xff]
        %v6791 = vld [vmem:[%s6777 + $0x68] sm:$0xff]
        %v6792 = vld [vmem:[%s6777 + $0x70] sm:$0xff]
        %v6793 = vld [vmem:[%s6777 + $0x78] sm:$0xff]
        %v6794 = vld [vmem:[%s6777 + $0x80] sm:$0xff]
        %v6795 = vld [vmem:[%s6777 + $0x88] sm:$0xff]
        %v6796 = vld [vmem:[%s6777 + $0x90] sm:$0xff]
        %v6797 = vld [vmem:[%s6777 + $0x98] sm:$0xff]
        %v6798 = vld [vmem:[%s6777 + $0xa0] sm:$0xff]
        %v6799 = vld [vmem:[%s6777 + $0xa8] sm:$0xff]
        %v6800 = vld [vmem:[%s6777 + $0xb0] sm:$0xff]
        %v6801 = vld [vmem:[%s6777 + $0xb8] sm:$0xff]
        %v6802 = vld [vmem:[%s6777 + $0xc0] sm:$0xff]
        %v6803 = vld [vmem:[%s6777 + $0xc8] sm:$0xff]
        %v6804 = vld [vmem:[%s6777 + $0xd0] sm:$0xff]
        %v6805 = vld [vmem:[%s6777 + $0xd8] sm:$0xff]
        %v6806 = vld [vmem:[%s6777 + $0xe0] sm:$0xff]
        %v6807 = vld [vmem:[%s6777 + $0xe8] sm:$0xff]
        %v6808 = vld [vmem:[%s6777 + $0xf0] sm:$0xff]
        %v6809 = vld [vmem:[%s6777 + $0xf8] sm:$0xff]
        %s6810 = scalar_lea.vmem %s4, 2
        %v6811 = vld [vmem:[%s6810] sm:$0x3]
        %v6813 = vlaneseq
        %v6814 = vshrl.u32 %v6813, 7
        %v6815 = vsub.s32 1, %v6814
        %v6816 = vrot.slane %v6811, %v6815
        %v6818 = vand.u32 %v6779, 4294901760
        %6819 = vmatprep.subr.mxu0 %v6818
        %v6820 = vand.u32 %v6778, 4294901760
        %6821 = vmatpush1.msra.mxu0 %v6820
        %v6822 = vand.u32 %v6781, 4294901760
        %6823 = vmatprep.subr.mxu0 %v6822
        %v6824 = vand.u32 %v6780, 4294901760
        %6825 = vmatpush1.msra.mxu0 %v6824
        %v6826 = vand.u32 %v6783, 4294901760
        %6827 = vmatprep.subr.mxu0 %v6826
        %v6828 = vand.u32 %v6782, 4294901760
        %6829 = vmatpush1.msra.mxu0 %v6828
        %v6830 = vand.u32 %v6785, 4294901760
        %6831 = vmatprep.subr.mxu0 %v6830
        %v6832 = vand.u32 %v6784, 4294901760
        %6833 = vmatpush1.msra.mxu0 %v6832
        %v6834 = vand.u32 %v6787, 4294901760
        %6835 = vmatprep.subr.mxu0 %v6834
        %v6836 = vand.u32 %v6786, 4294901760
        %6837 = vmatpush1.msra.mxu0 %v6836
        %v6838 = vand.u32 %v6789, 4294901760
        %6839 = vmatprep.subr.mxu0 %v6838
        %v6840 = vand.u32 %v6788, 4294901760
        %6841 = vmatpush1.msra.mxu0 %v6840
        %v6842 = vand.u32 %v6791, 4294901760
        %6843 = vmatprep.subr.mxu0 %v6842
        %v6844 = vand.u32 %v6790, 4294901760
        %6845 = vmatpush1.msra.mxu0 %v6844
        %v6846 = vand.u32 %v6793, 4294901760
        %6847 = vmatprep.subr.mxu0 %v6846
        %v6848 = vand.u32 %v6792, 4294901760
        %6849 = vmatpush1.msra.mxu0 %v6848
        %v6850 = vand.u32 %v6795, 4294901760
        %6851 = vmatprep.subr.mxu0 %v6850
        %v6852 = vand.u32 %v6794, 4294901760
        %6853 = vmatpush1.msra.mxu0 %v6852
        %v6854 = vand.u32 %v6797, 4294901760
        %6855 = vmatprep.subr.mxu0 %v6854
        %v6856 = vand.u32 %v6796, 4294901760
        %6857 = vmatpush1.msra.mxu0 %v6856
        %v6858 = vand.u32 %v6799, 4294901760
        %6859 = vmatprep.subr.mxu0 %v6858
        %v6860 = vand.u32 %v6798, 4294901760
        %6861 = vmatpush1.msra.mxu0 %v6860
        %v6862 = vand.u32 %v6801, 4294901760
        %6863 = vmatprep.subr.mxu0 %v6862
        %v6864 = vand.u32 %v6800, 4294901760
        %6865 = vmatpush1.msra.mxu0 %v6864
        %v6866 = vand.u32 %v6803, 4294901760
        %6867 = vmatprep.subr.mxu0 %v6866
        %v6868 = vand.u32 %v6802, 4294901760
        %6869 = vmatpush1.msra.mxu0 %v6868
        %v6870 = vand.u32 %v6805, 4294901760
        %6871 = vmatprep.subr.mxu0 %v6870
        %v6872 = vand.u32 %v6804, 4294901760
        %6873 = vmatpush1.msra.mxu0 %v6872
        %v6874 = vand.u32 %v6807, 4294901760
        %6875 = vmatprep.subr.mxu0 %v6874
        %v6876 = vand.u32 %v6806, 4294901760
        %6877 = vmatpush1.msra.mxu0 %v6876
        %v6878 = vand.u32 %v6809, 4294901760
        %6879 = vmatprep.subr.mxu0 %v6878
        %v6880 = vand.u32 %v6808, 4294901760
        %6881 = vmatpush1.msra.mxu0 %v6880
        %6882 = vmatprep.subr.mxu0 0.0
        %6883 = vmatpush1.msra.mxu0 0.0
        %6884 = vmatprep.subr.mxu0 0.0
        %6885 = vmatpush1.msra.mxu0 0.0
        %6886 = vmatprep.subr.mxu0 0.0
        %6887 = vmatpush1.msra.mxu0 0.0
        %6888 = vmatprep.subr.mxu0 0.0
        %6889 = vmatpush1.msra.mxu0 0.0
        %6890 = vmatprep.subr.mxu0 0.0
        %6891 = vmatpush1.msra.mxu0 0.0
        %6892 = vmatprep.subr.mxu0 0.0
        %6893 = vmatpush1.msra.mxu0 0.0
        %6894 = vmatprep.subr.mxu0 0.0
        %6895 = vmatpush1.msra.mxu0 0.0
        %6896 = vmatprep.subr.mxu0 0.0
        %6897 = vmatpush1.msra.mxu0 0.0
        %6898 = vmatprep.subr.mxu0 0.0
        %6899 = vmatpush1.msra.mxu0 0.0
        %6900 = vmatprep.subr.mxu0 0.0
        %6901 = vmatpush1.msra.mxu0 0.0
        %6902 = vmatprep.subr.mxu0 0.0
        %6903 = vmatpush1.msra.mxu0 0.0
        %6904 = vmatprep.subr.mxu0 0.0
        %6905 = vmatpush1.msra.mxu0 0.0
        %6906 = vmatprep.subr.mxu0 0.0
        %6907 = vmatpush1.msra.mxu0 0.0
        %6908 = vmatprep.subr.mxu0 0.0
        %6909 = vmatpush1.msra.mxu0 0.0
        %6910 = vmatprep.subr.mxu0 0.0
        %6911 = vmatpush1.msra.mxu0 0.0
        %6912 = vmatprep.subr.mxu0 0.0
        %6913 = vmatpush1.msra.mxu0 0.0
        %6914 = vmatprep.mubr.f32.mxu0 0.0
        %v6915 = vand.u32 %v6776, 4294901760
        %v6916 = vsub.f32 %v6776, %v6915
        %v6917 = vand.u32 %v6916, 4294901760
        %v6918 = vsub.f32 %v6916, %v6917
        %v6919 = vand.u32 %v6918, 4294901760
        %6920 = vmatmul.mubr.f32.gmra.mrb[0].mxu0 %v6919
        %v6921 = vpop.f32.mrb[0].mxu0
        %v6922 = vpop.f32.mrb[0].mxu0
        %v6923 = vadd.f32 %v6816, %v6922
        %6924 = vdwg.mxu0
        %v6925 = vand.u32 %v6779, 4294901760
        %v6926 = vsub.f32 %v6779, %v6925
        %v6927 = vand.u32 %v6926, 4294901760
        %v6928 = vsub.f32 %v6926, %v6927
        %v6929 = vand.u32 %v6928, 4294901760
        %6930 = vmatprep.subr.mxu0 %v6929
        %v6931 = vand.u32 %v6778, 4294901760
        %v6932 = vsub.f32 %v6778, %v6931
        %v6933 = vand.u32 %v6932, 4294901760
        %v6934 = vsub.f32 %v6932, %v6933
        %v6935 = vand.u32 %v6934, 4294901760
        %6936 = vmatpush1.msra.mxu0 %v6935
        %v6937 = vand.u32 %v6781, 4294901760
        %v6938 = vsub.f32 %v6781, %v6937
        %v6939 = vand.u32 %v6938, 4294901760
        %v6940 = vsub.f32 %v6938, %v6939
        %v6941 = vand.u32 %v6940, 4294901760
        %6942 = vmatprep.subr.mxu0 %v6941
        %v6943 = vand.u32 %v6780, 4294901760
        %v6944 = vsub.f32 %v6780, %v6943
        %v6945 = vand.u32 %v6944, 4294901760
        %v6946 = vsub.f32 %v6944, %v6945
        %v6947 = vand.u32 %v6946, 4294901760
        %6948 = vmatpush1.msra.mxu0 %v6947
        %v6949 = vand.u32 %v6783, 4294901760
        %v6950 = vsub.f32 %v6783, %v6949
        %v6951 = vand.u32 %v6950, 4294901760
        %v6952 = vsub.f32 %v6950, %v6951
        %v6953 = vand.u32 %v6952, 4294901760
        %6954 = vmatprep.subr.mxu0 %v6953
        %v6955 = vand.u32 %v6782, 4294901760
        %v6956 = vsub.f32 %v6782, %v6955
        %v6957 = vand.u32 %v6956, 4294901760
        %v6958 = vsub.f32 %v6956, %v6957
        %v6959 = vand.u32 %v6958, 4294901760
        %6960 = vmatpush1.msra.mxu0 %v6959
        %v6961 = vand.u32 %v6785, 4294901760
        %v6962 = vsub.f32 %v6785, %v6961
        %v6963 = vand.u32 %v6962, 4294901760
        %v6964 = vsub.f32 %v6962, %v6963
        %v6965 = vand.u32 %v6964, 4294901760
        %6966 = vmatprep.subr.mxu0 %v6965
        %v6967 = vand.u32 %v6784, 4294901760
        %v6968 = vsub.f32 %v6784, %v6967
        %v6969 = vand.u32 %v6968, 4294901760
        %v6970 = vsub.f32 %v6968, %v6969
        %v6971 = vand.u32 %v6970, 4294901760
        %6972 = vmatpush1.msra.mxu0 %v6971
        %v6973 = vand.u32 %v6787, 4294901760
        %v6974 = vsub.f32 %v6787, %v6973
        %v6975 = vand.u32 %v6974, 4294901760
        %v6976 = vsub.f32 %v6974, %v6975
        %v6977 = vand.u32 %v6976, 4294901760
        %6978 = vmatprep.subr.mxu0 %v6977
        %v6979 = vand.u32 %v6786, 4294901760
        %v6980 = vsub.f32 %v6786, %v6979
        %v6981 = vand.u32 %v6980, 4294901760
        %v6982 = vsub.f32 %v6980, %v6981
        %v6983 = vand.u32 %v6982, 4294901760
        %6984 = vmatpush1.msra.mxu0 %v6983
        %v6985 = vand.u32 %v6789, 4294901760
        %v6986 = vsub.f32 %v6789, %v6985
        %v6987 = vand.u32 %v6986, 4294901760
        %v6988 = vsub.f32 %v6986, %v6987
        %v6989 = vand.u32 %v6988, 4294901760
        %6990 = vmatprep.subr.mxu0 %v6989
        %v6991 = vand.u32 %v6788, 4294901760
        %v6992 = vsub.f32 %v6788, %v6991
        %v6993 = vand.u32 %v6992, 4294901760
        %v6994 = vsub.f32 %v6992, %v6993
        %v6995 = vand.u32 %v6994, 4294901760
        %6996 = vmatpush1.msra.mxu0 %v6995
        %v6997 = vand.u32 %v6791, 4294901760
        %v6998 = vsub.f32 %v6791, %v6997
        %v6999 = vand.u32 %v6998, 4294901760
        %v7000 = vsub.f32 %v6998, %v6999
        %v7001 = vand.u32 %v7000, 4294901760
        %7002 = vmatprep.subr.mxu0 %v7001
        %v7003 = vand.u32 %v6790, 4294901760
        %v7004 = vsub.f32 %v6790, %v7003
        %v7005 = vand.u32 %v7004, 4294901760
        %v7006 = vsub.f32 %v7004, %v7005
        %v7007 = vand.u32 %v7006, 4294901760
        %7008 = vmatpush1.msra.mxu0 %v7007
        %v7009 = vand.u32 %v6793, 4294901760
        %v7010 = vsub.f32 %v6793, %v7009
        %v7011 = vand.u32 %v7010, 4294901760
        %v7012 = vsub.f32 %v7010, %v7011
        %v7013 = vand.u32 %v7012, 4294901760
        %7014 = vmatprep.subr.mxu0 %v7013
        %v7015 = vand.u32 %v6792, 4294901760
        %v7016 = vsub.f32 %v6792, %v7015
        %v7017 = vand.u32 %v7016, 4294901760
        %v7018 = vsub.f32 %v7016, %v7017
        %v7019 = vand.u32 %v7018, 4294901760
        %7020 = vmatpush1.msra.mxu0 %v7019
        %v7021 = vand.u32 %v6795, 4294901760
        %v7022 = vsub.f32 %v6795, %v7021
        %v7023 = vand.u32 %v7022, 4294901760
        %v7024 = vsub.f32 %v7022, %v7023
        %v7025 = vand.u32 %v7024, 4294901760
        %7026 = vmatprep.subr.mxu0 %v7025
        %v7027 = vand.u32 %v6794, 4294901760
        %v7028 = vsub.f32 %v6794, %v7027
        %v7029 = vand.u32 %v7028, 4294901760
        %v7030 = vsub.f32 %v7028, %v7029
        %v7031 = vand.u32 %v7030, 4294901760
        %7032 = vmatpush1.msra.mxu0 %v7031
        %v7033 = vand.u32 %v6797, 4294901760
        %v7034 = vsub.f32 %v6797, %v7033
        %v7035 = vand.u32 %v7034, 4294901760
        %v7036 = vsub.f32 %v7034, %v7035
        %v7037 = vand.u32 %v7036, 4294901760
        %7038 = vmatprep.subr.mxu0 %v7037
        %v7039 = vand.u32 %v6796, 4294901760
        %v7040 = vsub.f32 %v6796, %v7039
        %v7041 = vand.u32 %v7040, 4294901760
        %v7042 = vsub.f32 %v7040, %v7041
        %v7043 = vand.u32 %v7042, 4294901760
        %7044 = vmatpush1.msra.mxu0 %v7043
        %v7045 = vand.u32 %v6799, 4294901760
        %v7046 = vsub.f32 %v6799, %v7045
        %v7047 = vand.u32 %v7046, 4294901760
        %v7048 = vsub.f32 %v7046, %v7047
        %v7049 = vand.u32 %v7048, 4294901760
        %7050 = vmatprep.subr.mxu0 %v7049
        %v7051 = vand.u32 %v6798, 4294901760
        %v7052 = vsub.f32 %v6798, %v7051
        %v7053 = vand.u32 %v7052, 4294901760
        %v7054 = vsub.f32 %v7052, %v7053
        %v7055 = vand.u32 %v7054, 4294901760
        %7056 = vmatpush1.msra.mxu0 %v7055
        %v7057 = vand.u32 %v6801, 4294901760
        %v7058 = vsub.f32 %v6801, %v7057
        %v7059 = vand.u32 %v7058, 4294901760
        %v7060 = vsub.f32 %v7058, %v7059
        %v7061 = vand.u32 %v7060, 4294901760
        %7062 = vmatprep.subr.mxu0 %v7061
        %v7063 = vand.u32 %v6800, 4294901760
        %v7064 = vsub.f32 %v6800, %v7063
        %v7065 = vand.u32 %v7064, 4294901760
        %v7066 = vsub.f32 %v7064, %v7065
        %v7067 = vand.u32 %v7066, 4294901760
        %7068 = vmatpush1.msra.mxu0 %v7067
        %v7069 = vand.u32 %v6803, 4294901760
        %v7070 = vsub.f32 %v6803, %v7069
        %v7071 = vand.u32 %v7070, 4294901760
        %v7072 = vsub.f32 %v7070, %v7071
        %v7073 = vand.u32 %v7072, 4294901760
        %7074 = vmatprep.subr.mxu0 %v7073
        %v7075 = vand.u32 %v6802, 4294901760
        %v7076 = vsub.f32 %v6802, %v7075
        %v7077 = vand.u32 %v7076, 4294901760
        %v7078 = vsub.f32 %v7076, %v7077
        %v7079 = vand.u32 %v7078, 4294901760
        %7080 = vmatpush1.msra.mxu0 %v7079
        %v7081 = vand.u32 %v6805, 4294901760
        %v7082 = vsub.f32 %v6805, %v7081
        %v7083 = vand.u32 %v7082, 4294901760
        %v7084 = vsub.f32 %v7082, %v7083
        %v7085 = vand.u32 %v7084, 4294901760
        %7086 = vmatprep.subr.mxu0 %v7085
        %v7087 = vand.u32 %v6804, 4294901760
        %v7088 = vsub.f32 %v6804, %v7087
        %v7089 = vand.u32 %v7088, 4294901760
        %v7090 = vsub.f32 %v7088, %v7089
        %v7091 = vand.u32 %v7090, 4294901760
        %7092 = vmatpush1.msra.mxu0 %v7091
        %v7093 = vand.u32 %v6807, 4294901760
        %v7094 = vsub.f32 %v6807, %v7093
        %v7095 = vand.u32 %v7094, 4294901760
        %v7096 = vsub.f32 %v7094, %v7095
        %v7097 = vand.u32 %v7096, 4294901760
        %7098 = vmatprep.subr.mxu0 %v7097
        %v7099 = vand.u32 %v6806, 4294901760
        %v7100 = vsub.f32 %v6806, %v7099
        %v7101 = vand.u32 %v7100, 4294901760
        %v7102 = vsub.f32 %v7100, %v7101
        %v7103 = vand.u32 %v7102, 4294901760
        %7104 = vmatpush1.msra.mxu0 %v7103
        %v7105 = vand.u32 %v6809, 4294901760
        %v7106 = vsub.f32 %v6809, %v7105
        %v7107 = vand.u32 %v7106, 4294901760
        %v7108 = vsub.f32 %v7106, %v7107
        %v7109 = vand.u32 %v7108, 4294901760
        %7110 = vmatprep.subr.mxu0 %v7109
        %v7111 = vand.u32 %v6808, 4294901760
        %v7112 = vsub.f32 %v6808, %v7111
        %v7113 = vand.u32 %v7112, 4294901760
        %v7114 = vsub.f32 %v7112, %v7113
        %v7115 = vand.u32 %v7114, 4294901760
        %7116 = vmatpush1.msra.mxu0 %v7115
        %7117 = vmatprep.subr.mxu0 0.0
        %7118 = vmatpush1.msra.mxu0 0.0
        %7119 = vmatprep.subr.mxu0 0.0
        %7120 = vmatpush1.msra.mxu0 0.0
        %7121 = vmatprep.subr.mxu0 0.0
        %7122 = vmatpush1.msra.mxu0 0.0
        %7123 = vmatprep.subr.mxu0 0.0
        %7124 = vmatpush1.msra.mxu0 0.0
        %7125 = vmatprep.subr.mxu0 0.0
        %7126 = vmatpush1.msra.mxu0 0.0
        %7127 = vmatprep.subr.mxu0 0.0
        %7128 = vmatpush1.msra.mxu0 0.0
        %7129 = vmatprep.subr.mxu0 0.0
        %7130 = vmatpush1.msra.mxu0 0.0
        %7131 = vmatprep.subr.mxu0 0.0
        %7132 = vmatpush1.msra.mxu0 0.0
        %7133 = vmatprep.subr.mxu0 0.0
        %7134 = vmatpush1.msra.mxu0 0.0
        %7135 = vmatprep.subr.mxu0 0.0
        %7136 = vmatpush1.msra.mxu0 0.0
        %7137 = vmatprep.subr.mxu0 0.0
        %7138 = vmatpush1.msra.mxu0 0.0
        %7139 = vmatprep.subr.mxu0 0.0
        %7140 = vmatpush1.msra.mxu0 0.0
        %7141 = vmatprep.subr.mxu0 0.0
        %7142 = vmatpush1.msra.mxu0 0.0
        %7143 = vmatprep.subr.mxu0 0.0
        %7144 = vmatpush1.msra.mxu0 0.0
        %7145 = vmatprep.subr.mxu0 0.0
        %7146 = vmatpush1.msra.mxu0 0.0
        %7147 = vmatprep.subr.mxu0 0.0
        %7148 = vmatpush1.msra.mxu0 0.0
        %7149 = vmatprep.mubr.f32.mxu0 0.0
        %v7150 = vand.u32 %v6776, 4294901760
        %7151 = vmatmul.mubr.f32.gmra.mrb[0].mxu0 %v7150
        %v7152 = vpop.f32.mrb[0].mxu0
        %v7153 = vpop.f32.mrb[0].mxu0
        %v7154 = vadd.f32 %v6923, %v7153
        %7155 = vdwg.mxu0
        %v7156 = vand.u32 %v6779, 4294901760
        %v7157 = vsub.f32 %v6779, %v7156
        %7158 = vmatprep.subr.mxu0 %v7157
        %v7159 = vand.u32 %v6778, 4294901760
        %v7160 = vsub.f32 %v6778, %v7159
        %7161 = vmatpush1.msra.mxu0 %v7160
        %v7162 = vand.u32 %v6781, 4294901760
        %v7163 = vsub.f32 %v6781, %v7162
        %7164 = vmatprep.subr.mxu0 %v7163
        %v7165 = vand.u32 %v6780, 4294901760
        %v7166 = vsub.f32 %v6780, %v7165
        %7167 = vmatpush1.msra.mxu0 %v7166
        %v7168 = vand.u32 %v6783, 4294901760
        %v7169 = vsub.f32 %v6783, %v7168
        %7170 = vmatprep.subr.mxu0 %v7169
        %v7171 = vand.u32 %v6782, 4294901760
        %v7172 = vsub.f32 %v6782, %v7171
        %7173 = vmatpush1.msra.mxu0 %v7172
        %v7174 = vand.u32 %v6785, 4294901760
        %v7175 = vsub.f32 %v6785, %v7174
        %7176 = vmatprep.subr.mxu0 %v7175
        %v7177 = vand.u32 %v6784, 4294901760
        %v7178 = vsub.f32 %v6784, %v7177
        %7179 = vmatpush1.msra.mxu0 %v7178
        %v7180 = vand.u32 %v6787, 4294901760
        %v7181 = vsub.f32 %v6787, %v7180
        %7182 = vmatprep.subr.mxu0 %v7181
        %v7183 = vand.u32 %v6786, 4294901760
        %v7184 = vsub.f32 %v6786, %v7183
        %7185 = vmatpush1.msra.mxu0 %v7184
        %v7186 = vand.u32 %v6789, 4294901760
        %v7187 = vsub.f32 %v6789, %v7186
        %7188 = vmatprep.subr.mxu0 %v7187
        %v7189 = vand.u32 %v6788, 4294901760
        %v7190 = vsub.f32 %v6788, %v7189
        %7191 = vmatpush1.msra.mxu0 %v7190
        %v7192 = vand.u32 %v6791, 4294901760
        %v7193 = vsub.f32 %v6791, %v7192
        %7194 = vmatprep.subr.mxu0 %v7193
        %v7195 = vand.u32 %v6790, 4294901760
        %v7196 = vsub.f32 %v6790, %v7195
        %7197 = vmatpush1.msra.mxu0 %v7196
        %v7198 = vand.u32 %v6793, 4294901760
        %v7199 = vsub.f32 %v6793, %v7198
        %7200 = vmatprep.subr.mxu0 %v7199
        %v7201 = vand.u32 %v6792, 4294901760
        %v7202 = vsub.f32 %v6792, %v7201
        %7203 = vmatpush1.msra.mxu0 %v7202
        %v7204 = vand.u32 %v6795, 4294901760
        %v7205 = vsub.f32 %v6795, %v7204
        %7206 = vmatprep.subr.mxu0 %v7205
        %v7207 = vand.u32 %v6794, 4294901760
        %v7208 = vsub.f32 %v6794, %v7207
        %7209 = vmatpush1.msra.mxu0 %v7208
        %v7210 = vand.u32 %v6797, 4294901760
        %v7211 = vsub.f32 %v6797, %v7210
        %7212 = vmatprep.subr.mxu0 %v7211
        %v7213 = vand.u32 %v6796, 4294901760
        %v7214 = vsub.f32 %v6796, %v7213
        %7215 = vmatpush1.msra.mxu0 %v7214
        %v7216 = vand.u32 %v6799, 4294901760
        %v7217 = vsub.f32 %v6799, %v7216
        %7218 = vmatprep.subr.mxu0 %v7217
        %v7219 = vand.u32 %v6798, 4294901760
        %v7220 = vsub.f32 %v6798, %v7219
        %7221 = vmatpush1.msra.mxu0 %v7220
        %v7222 = vand.u32 %v6801, 4294901760
        %v7223 = vsub.f32 %v6801, %v7222
        %7224 = vmatprep.subr.mxu0 %v7223
        %v7225 = vand.u32 %v6800, 4294901760
        %v7226 = vsub.f32 %v6800, %v7225
        %7227 = vmatpush1.msra.mxu0 %v7226
        %v7228 = vand.u32 %v6803, 4294901760
        %v7229 = vsub.f32 %v6803, %v7228
        %7230 = vmatprep.subr.mxu0 %v7229
        %v7231 = vand.u32 %v6802, 4294901760
        %v7232 = vsub.f32 %v6802, %v7231
        %7233 = vmatpush1.msra.mxu0 %v7232
        %v7234 = vand.u32 %v6805, 4294901760
        %v7235 = vsub.f32 %v6805, %v7234
        %7236 = vmatprep.subr.mxu0 %v7235
        %v7237 = vand.u32 %v6804, 4294901760
        %v7238 = vsub.f32 %v6804, %v7237
        %7239 = vmatpush1.msra.mxu0 %v7238
        %v7240 = vand.u32 %v6807, 4294901760
        %v7241 = vsub.f32 %v6807, %v7240
        %7242 = vmatprep.subr.mxu0 %v7241
        %v7243 = vand.u32 %v6806, 4294901760
        %v7244 = vsub.f32 %v6806, %v7243
        %7245 = vmatpush1.msra.mxu0 %v7244
        %v7246 = vand.u32 %v6809, 4294901760
        %v7247 = vsub.f32 %v6809, %v7246
        %7248 = vmatprep.subr.mxu0 %v7247
        %v7249 = vand.u32 %v6808, 4294901760
        %v7250 = vsub.f32 %v6808, %v7249
        %7251 = vmatpush1.msra.mxu0 %v7250
        %7252 = vmatprep.subr.mxu0 0.0
        %7253 = vmatpush1.msra.mxu0 0.0
        %7254 = vmatprep.subr.mxu0 0.0
        %7255 = vmatpush1.msra.mxu0 0.0
        %7256 = vmatprep.subr.mxu0 0.0
        %7257 = vmatpush1.msra.mxu0 0.0
        %7258 = vmatprep.subr.mxu0 0.0
        %7259 = vmatpush1.msra.mxu0 0.0
        %7260 = vmatprep.subr.mxu0 0.0
        %7261 = vmatpush1.msra.mxu0 0.0
        %7262 = vmatprep.subr.mxu0 0.0
        %7263 = vmatpush1.msra.mxu0 0.0
        %7264 = vmatprep.subr.mxu0 0.0
        %7265 = vmatpush1.msra.mxu0 0.0
        %7266 = vmatprep.subr.mxu0 0.0
        %7267 = vmatpush1.msra.mxu0 0.0
        %7268 = vmatprep.subr.mxu0 0.0
        %7269 = vmatpush1.msra.mxu0 0.0
        %7270 = vmatprep.subr.mxu0 0.0
        %7271 = vmatpush1.msra.mxu0 0.0
        %7272 = vmatprep.subr.mxu0 0.0
        %7273 = vmatpush1.msra.mxu0 0.0
        %7274 = vmatprep.subr.mxu0 0.0
        %7275 = vmatpush1.msra.mxu0 0.0
        %7276 = vmatprep.subr.mxu0 0.0
        %7277 = vmatpush1.msra.mxu0 0.0
        %7278 = vmatprep.subr.mxu0 0.0
        %7279 = vmatpush1.msra.mxu0 0.0
        %7280 = vmatprep.subr.mxu0 0.0
        %7281 = vmatpush1.msra.mxu0 0.0
        %7282 = vmatprep.subr.mxu0 0.0
        %7283 = vmatpush1.msra.mxu0 0.0
        %7284 = vmatprep.mubr.f32.mxu0 0.0
        %v7285 = vand.u32 %v6776, 4294901760
        %v7286 = vsub.f32 %v6776, %v7285
        %7287 = vmatmul.mubr.f32.gmra.mrb[0].mxu0 %v7286
        %v7288 = vpop.f32.mrb[0].mxu0
        %v7289 = vpop.f32.mrb[0].mxu0
        %v7290 = vadd.f32 %v7154, %v7289
        %7291 = vdwg.mxu0
        %v7292 = vand.u32 %v6779, 4294901760
        %7293 = vmatprep.subr.mxu0 %v7292
        %v7294 = vand.u32 %v6778, 4294901760
        %7295 = vmatpush1.msra.mxu0 %v7294
        %v7296 = vand.u32 %v6781, 4294901760
        %7297 = vmatprep.subr.mxu0 %v7296
        %v7298 = vand.u32 %v6780, 4294901760
        %7299 = vmatpush1.msra.mxu0 %v7298
        %v7300 = vand.u32 %v6783, 4294901760
        %7301 = vmatprep.subr.mxu0 %v7300
        %v7302 = vand.u32 %v6782, 4294901760
        %7303 = vmatpush1.msra.mxu0 %v7302
        %v7304 = vand.u32 %v6785, 4294901760
        %7305 = vmatprep.subr.mxu0 %v7304
        %v7306 = vand.u32 %v6784, 4294901760
        %7307 = vmatpush1.msra.mxu0 %v7306
        %v7308 = vand.u32 %v6787, 4294901760
        %7309 = vmatprep.subr.mxu0 %v7308
        %v7310 = vand.u32 %v6786, 4294901760
        %7311 = vmatpush1.msra.mxu0 %v7310
        %v7312 = vand.u32 %v6789, 4294901760
        %7313 = vmatprep.subr.mxu0 %v7312
        %v7314 = vand.u32 %v6788, 4294901760
        %7315 = vmatpush1.msra.mxu0 %v7314
        %v7316 = vand.u32 %v6791, 4294901760
        %7317 = vmatprep.subr.mxu0 %v7316
        %v7318 = vand.u32 %v6790, 4294901760
        %7319 = vmatpush1.msra.mxu0 %v7318
        %v7320 = vand.u32 %v6793, 4294901760
        %7321 = vmatprep.subr.mxu0 %v7320
        %v7322 = vand.u32 %v6792, 4294901760
        %7323 = vmatpush1.msra.mxu0 %v7322
        %v7324 = vand.u32 %v6795, 4294901760
        %7325 = vmatprep.subr.mxu0 %v7324
        %v7326 = vand.u32 %v6794, 4294901760
        %7327 = vmatpush1.msra.mxu0 %v7326
        %v7328 = vand.u32 %v6797, 4294901760
        %7329 = vmatprep.subr.mxu0 %v7328
        %v7330 = vand.u32 %v6796, 4294901760
        %7331 = vmatpush1.msra.mxu0 %v7330
        %v7332 = vand.u32 %v6799, 4294901760
        %7333 = vmatprep.subr.mxu0 %v7332
        %v7334 = vand.u32 %v6798, 4294901760
        %7335 = vmatpush1.msra.mxu0 %v7334
        %v7336 = vand.u32 %v6801, 4294901760
        %7337 = vmatprep.subr.mxu0 %v7336
        %v7338 = vand.u32 %v6800, 4294901760
        %7339 = vmatpush1.msra.mxu0 %v7338
        %v7340 = vand.u32 %v6803, 4294901760
        %7341 = vmatprep.subr.mxu0 %v7340
        %v7342 = vand.u32 %v6802, 4294901760
        %7343 = vmatpush1.msra.mxu0 %v7342
        %v7344 = vand.u32 %v6805, 4294901760
        %7345 = vmatprep.subr.mxu0 %v7344
        %v7346 = vand.u32 %v6804, 4294901760
        %7347 = vmatpush1.msra.mxu0 %v7346
        %v7348 = vand.u32 %v6807, 4294901760
        %7349 = vmatprep.subr.mxu0 %v7348
        %v7350 = vand.u32 %v6806, 4294901760
        %7351 = vmatpush1.msra.mxu0 %v7350
        %v7352 = vand.u32 %v6809, 4294901760
        %7353 = vmatprep.subr.mxu0 %v7352
        %v7354 = vand.u32 %v6808, 4294901760
        %7355 = vmatpush1.msra.mxu0 %v7354
        %7356 = vmatprep.subr.mxu0 0.0
        %7357 = vmatpush1.msra.mxu0 0.0
        %7358 = vmatprep.subr.mxu0 0.0
        %7359 = vmatpush1.msra.mxu0 0.0
        %7360 = vmatprep.subr.mxu0 0.0
        %7361 = vmatpush1.msra.mxu0 0.0
        %7362 = vmatprep.subr.mxu0 0.0
        %7363 = vmatpush1.msra.mxu0 0.0
        %7364 = vmatprep.subr.mxu0 0.0
        %7365 = vmatpush1.msra.mxu0 0.0
        %7366 = vmatprep.subr.mxu0 0.0
        %7367 = vmatpush1.msra.mxu0 0.0
        %7368 = vmatprep.subr.mxu0 0.0
        %7369 = vmatpush1.msra.mxu0 0.0
        %7370 = vmatprep.subr.mxu0 0.0
        %7371 = vmatpush1.msra.mxu0 0.0
        %7372 = vmatprep.subr.mxu0 0.0
        %7373 = vmatpush1.msra.mxu0 0.0
        %7374 = vmatprep.subr.mxu0 0.0
        %7375 = vmatpush1.msra.mxu0 0.0
        %7376 = vmatprep.subr.mxu0 0.0
        %7377 = vmatpush1.msra.mxu0 0.0
        %7378 = vmatprep.subr.mxu0 0.0
        %7379 = vmatpush1.msra.mxu0 0.0
        %7380 = vmatprep.subr.mxu0 0.0
        %7381 = vmatpush1.msra.mxu0 0.0
        %7382 = vmatprep.subr.mxu0 0.0
        %7383 = vmatpush1.msra.mxu0 0.0
        %7384 = vmatprep.subr.mxu0 0.0
        %7385 = vmatpush1.msra.mxu0 0.0
        %7386 = vmatprep.subr.mxu0 0.0
        %7387 = vmatpush1.msra.mxu0 0.0
        %7388 = vmatprep.mubr.f32.mxu0 0.0
        %v7389 = vand.u32 %v6776, 4294901760
        %v7390 = vsub.f32 %v6776, %v7389
        %v7391 = vand.u32 %v7390, 4294901760
        %7392 = vmatmul.mubr.f32.gmra.mrb[0].mxu0 %v7391
        %v7393 = vpop.f32.mrb[0].mxu0
        %v7394 = vpop.f32.mrb[0].mxu0
        %v7395 = vadd.f32 %v7290, %v7394
        %7396 = vdwg.mxu0
        %v7397 = vand.u32 %v6779, 4294901760
        %v7398 = vsub.f32 %v6779, %v7397
        %v7399 = vand.u32 %v7398, 4294901760
        %7400 = vmatprep.subr.mxu0 %v7399
        %v7401 = vand.u32 %v6778, 4294901760
        %v7402 = vsub.f32 %v6778, %v7401
        %v7403 = vand.u32 %v7402, 4294901760
        %7404 = vmatpush1.msra.mxu0 %v7403
        %v7405 = vand.u32 %v6781, 4294901760
        %v7406 = vsub.f32 %v6781, %v7405
        %v7407 = vand.u32 %v7406, 4294901760
        %7408 = vmatprep.subr.mxu0 %v7407
        %v7409 = vand.u32 %v6780, 4294901760
        %v7410 = vsub.f32 %v6780, %v7409
        %v7411 = vand.u32 %v7410, 4294901760
        %7412 = vmatpush1.msra.mxu0 %v7411
        %v7413 = vand.u32 %v6783, 4294901760
        %v7414 = vsub.f32 %v6783, %v7413
        %v7415 = vand.u32 %v7414, 4294901760
        %7416 = vmatprep.subr.mxu0 %v7415
        %v7417 = vand.u32 %v6782, 4294901760
        %v7418 = vsub.f32 %v6782, %v7417
        %v7419 = vand.u32 %v7418, 4294901760
        %7420 = vmatpush1.msra.mxu0 %v7419
        %v7421 = vand.u32 %v6785, 4294901760
        %v7422 = vsub.f32 %v6785, %v7421
        %v7423 = vand.u32 %v7422, 4294901760
        %7424 = vmatprep.subr.mxu0 %v7423
        %v7425 = vand.u32 %v6784, 4294901760
        %v7426 = vsub.f32 %v6784, %v7425
        %v7427 = vand.u32 %v7426, 4294901760
        %7428 = vmatpush1.msra.mxu0 %v7427
        %v7429 = vand.u32 %v6787, 4294901760
        %v7430 = vsub.f32 %v6787, %v7429
        %v7431 = vand.u32 %v7430, 4294901760
        %7432 = vmatprep.subr.mxu0 %v7431
        %v7433 = vand.u32 %v6786, 4294901760
        %v7434 = vsub.f32 %v6786, %v7433
        %v7435 = vand.u32 %v7434, 4294901760
        %7436 = vmatpush1.msra.mxu0 %v7435
        %v7437 = vand.u32 %v6789, 4294901760
        %v7438 = vsub.f32 %v6789, %v7437
        %v7439 = vand.u32 %v7438, 4294901760
        %7440 = vmatprep.subr.mxu0 %v7439
        %v7441 = vand.u32 %v6788, 4294901760
        %v7442 = vsub.f32 %v6788, %v7441
        %v7443 = vand.u32 %v7442, 4294901760
        %7444 = vmatpush1.msra.mxu0 %v7443
        %v7445 = vand.u32 %v6791, 4294901760
        %v7446 = vsub.f32 %v6791, %v7445
        %v7447 = vand.u32 %v7446, 4294901760
        %7448 = vmatprep.subr.mxu0 %v7447
        %v7449 = vand.u32 %v6790, 4294901760
        %v7450 = vsub.f32 %v6790, %v7449
        %v7451 = vand.u32 %v7450, 4294901760
        %7452 = vmatpush1.msra.mxu0 %v7451
        %v7453 = vand.u32 %v6793, 4294901760
        %v7454 = vsub.f32 %v6793, %v7453
        %v7455 = vand.u32 %v7454, 4294901760
        %7456 = vmatprep.subr.mxu0 %v7455
        %v7457 = vand.u32 %v6792, 4294901760
        %v7458 = vsub.f32 %v6792, %v7457
        %v7459 = vand.u32 %v7458, 4294901760
        %7460 = vmatpush1.msra.mxu0 %v7459
        %v7461 = vand.u32 %v6795, 4294901760
        %v7462 = vsub.f32 %v6795, %v7461
        %v7463 = vand.u32 %v7462, 4294901760
        %7464 = vmatprep.subr.mxu0 %v7463
        %v7465 = vand.u32 %v6794, 4294901760
        %v7466 = vsub.f32 %v6794, %v7465
        %v7467 = vand.u32 %v7466, 4294901760
        %7468 = vmatpush1.msra.mxu0 %v7467
        %v7469 = vand.u32 %v6797, 4294901760
        %v7470 = vsub.f32 %v6797, %v7469
        %v7471 = vand.u32 %v7470, 4294901760
        %7472 = vmatprep.subr.mxu0 %v7471
        %v7473 = vand.u32 %v6796, 4294901760
        %v7474 = vsub.f32 %v6796, %v7473
        %v7475 = vand.u32 %v7474, 4294901760
        %7476 = vmatpush1.msra.mxu0 %v7475
        %v7477 = vand.u32 %v6799, 4294901760
        %v7478 = vsub.f32 %v6799, %v7477
        %v7479 = vand.u32 %v7478, 4294901760
        %7480 = vmatprep.subr.mxu0 %v7479
        %v7481 = vand.u32 %v6798, 4294901760
        %v7482 = vsub.f32 %v6798, %v7481
        %v7483 = vand.u32 %v7482, 4294901760
        %7484 = vmatpush1.msra.mxu0 %v7483
        %v7485 = vand.u32 %v6801, 4294901760
        %v7486 = vsub.f32 %v6801, %v7485
        %v7487 = vand.u32 %v7486, 4294901760
        %7488 = vmatprep.subr.mxu0 %v7487
        %v7489 = vand.u32 %v6800, 4294901760
        %v7490 = vsub.f32 %v6800, %v7489
        %v7491 = vand.u32 %v7490, 4294901760
        %7492 = vmatpush1.msra.mxu0 %v7491
        %v7493 = vand.u32 %v6803, 4294901760
        %v7494 = vsub.f32 %v6803, %v7493
        %v7495 = vand.u32 %v7494, 4294901760
        %7496 = vmatprep.subr.mxu0 %v7495
        %v7497 = vand.u32 %v6802, 4294901760
        %v7498 = vsub.f32 %v6802, %v7497
        %v7499 = vand.u32 %v7498, 4294901760
        %7500 = vmatpush1.msra.mxu0 %v7499
        %v7501 = vand.u32 %v6805, 4294901760
        %v7502 = vsub.f32 %v6805, %v7501
        %v7503 = vand.u32 %v7502, 4294901760
        %7504 = vmatprep.subr.mxu0 %v7503
        %v7505 = vand.u32 %v6804, 4294901760
        %v7506 = vsub.f32 %v6804, %v7505
        %v7507 = vand.u32 %v7506, 4294901760
        %7508 = vmatpush1.msra.mxu0 %v7507
        %v7509 = vand.u32 %v6807, 4294901760
        %v7510 = vsub.f32 %v6807, %v7509
        %v7511 = vand.u32 %v7510, 4294901760
        %7512 = vmatprep.subr.mxu0 %v7511
        %v7513 = vand.u32 %v6806, 4294901760
        %v7514 = vsub.f32 %v6806, %v7513
        %v7515 = vand.u32 %v7514, 4294901760
        %7516 = vmatpush1.msra.mxu0 %v7515
        %v7517 = vand.u32 %v6809, 4294901760
        %v7518 = vsub.f32 %v6809, %v7517
        %v7519 = vand.u32 %v7518, 4294901760
        %7520 = vmatprep.subr.mxu0 %v7519
        %v7521 = vand.u32 %v6808, 4294901760
        %v7522 = vsub.f32 %v6808, %v7521
        %v7523 = vand.u32 %v7522, 4294901760
        %7524 = vmatpush1.msra.mxu0 %v7523
        %7525 = vmatprep.subr.mxu0 0.0
        %7526 = vmatpush1.msra.mxu0 0.0
        %7527 = vmatprep.subr.mxu0 0.0
        %7528 = vmatpush1.msra.mxu0 0.0
        %7529 = vmatprep.subr.mxu0 0.0
        %7530 = vmatpush1.msra.mxu0 0.0
        %7531 = vmatprep.subr.mxu0 0.0
        %7532 = vmatpush1.msra.mxu0 0.0
        %7533 = vmatprep.subr.mxu0 0.0
        %7534 = vmatpush1.msra.mxu0 0.0
        %7535 = vmatprep.subr.mxu0 0.0
        %7536 = vmatpush1.msra.mxu0 0.0
        %7537 = vmatprep.subr.mxu0 0.0
        %7538 = vmatpush1.msra.mxu0 0.0
        %7539 = vmatprep.subr.mxu0 0.0
        %7540 = vmatpush1.msra.mxu0 0.0
        %7541 = vmatprep.subr.mxu0 0.0
        %7542 = vmatpush1.msra.mxu0 0.0
        %7543 = vmatprep.subr.mxu0 0.0
        %7544 = vmatpush1.msra.mxu0 0.0
        %7545 = vmatprep.subr.mxu0 0.0
        %7546 = vmatpush1.msra.mxu0 0.0
        %7547 = vmatprep.subr.mxu0 0.0
        %7548 = vmatpush1.msra.mxu0 0.0
        %7549 = vmatprep.subr.mxu0 0.0
        %7550 = vmatpush1.msra.mxu0 0.0
        %7551 = vmatprep.subr.mxu0 0.0
        %7552 = vmatpush1.msra.mxu0 0.0
        %7553 = vmatprep.subr.mxu0 0.0
        %7554 = vmatpush1.msra.mxu0 0.0
        %7555 = vmatprep.subr.mxu0 0.0
        %7556 = vmatpush1.msra.mxu0 0.0
        %7557 = vmatprep.mubr.f32.mxu0 0.0
        %v7558 = vand.u32 %v6776, 4294901760
        %7559 = vmatmul.mubr.f32.gmra.mrb[0].mxu0 %v7558
        %v7560 = vpop.f32.mrb[0].mxu0
        %v7561 = vpop.f32.mrb[0].mxu0
        %v7562 = vadd.f32 %v7395, %v7561
        %7563 = vdwg.mxu0
        %v7564 = vand.u32 %v6779, 4294901760
        %7565 = vmatprep.subr.mxu0 %v7564
        %v7566 = vand.u32 %v6778, 4294901760
        %7567 = vmatpush1.msra.mxu0 %v7566
        %v7568 = vand.u32 %v6781, 4294901760
        %7569 = vmatprep.subr.mxu0 %v7568
        %v7570 = vand.u32 %v6780, 4294901760
        %7571 = vmatpush1.msra.mxu0 %v7570
        %v7572 = vand.u32 %v6783, 4294901760
        %7573 = vmatprep.subr.mxu0 %v7572
        %v7574 = vand.u32 %v6782, 4294901760
        %7575 = vmatpush1.msra.mxu0 %v7574
        %v7576 = vand.u32 %v6785, 4294901760
        %7577 = vmatprep.subr.mxu0 %v7576
        %v7578 = vand.u32 %v6784, 4294901760
        %7579 = vmatpush1.msra.mxu0 %v7578
        %v7580 = vand.u32 %v6787, 4294901760
        %7581 = vmatprep.subr.mxu0 %v7580
        %v7582 = vand.u32 %v6786, 4294901760
        %7583 = vmatpush1.msra.mxu0 %v7582
        %v7584 = vand.u32 %v6789, 4294901760
        %7585 = vmatprep.subr.mxu0 %v7584
        %v7586 = vand.u32 %v6788, 4294901760
        %7587 = vmatpush1.msra.mxu0 %v7586
        %v7588 = vand.u32 %v6791, 4294901760
        %7589 = vmatprep.subr.mxu0 %v7588
        %v7590 = vand.u32 %v6790, 4294901760
        %7591 = vmatpush1.msra.mxu0 %v7590
        %v7592 = vand.u32 %v6793, 4294901760
        %7593 = vmatprep.subr.mxu0 %v7592
        %v7594 = vand.u32 %v6792, 4294901760
        %7595 = vmatpush1.msra.mxu0 %v7594
        %v7596 = vand.u32 %v6795, 4294901760
        %7597 = vmatprep.subr.mxu0 %v7596
        %v7598 = vand.u32 %v6794, 4294901760
        %7599 = vmatpush1.msra.mxu0 %v7598
        %v7600 = vand.u32 %v6797, 4294901760
        %7601 = vmatprep.subr.mxu0 %v7600
        %v7602 = vand.u32 %v6796, 4294901760
        %7603 = vmatpush1.msra.mxu0 %v7602
        %v7604 = vand.u32 %v6799, 4294901760
        %7605 = vmatprep.subr.mxu0 %v7604
        %v7606 = vand.u32 %v6798, 4294901760
        %7607 = vmatpush1.msra.mxu0 %v7606
        %v7608 = vand.u32 %v6801, 4294901760
        %7609 = vmatprep.subr.mxu0 %v7608
        %v7610 = vand.u32 %v6800, 4294901760
        %7611 = vmatpush1.msra.mxu0 %v7610
        %v7612 = vand.u32 %v6803, 4294901760
        %7613 = vmatprep.subr.mxu0 %v7612
        %v7614 = vand.u32 %v6802, 4294901760
        %7615 = vmatpush1.msra.mxu0 %v7614
        %v7616 = vand.u32 %v6805, 4294901760
        %7617 = vmatprep.subr.mxu0 %v7616
        %v7618 = vand.u32 %v6804, 4294901760
        %7619 = vmatpush1.msra.mxu0 %v7618
        %v7620 = vand.u32 %v6807, 4294901760
        %7621 = vmatprep.subr.mxu0 %v7620
        %v7622 = vand.u32 %v6806, 4294901760
        %7623 = vmatpush1.msra.mxu0 %v7622
        %v7624 = vand.u32 %v6809, 4294901760
        %7625 = vmatprep.subr.mxu0 %v7624
        %v7626 = vand.u32 %v6808, 4294901760
        %7627 = vmatpush1.msra.mxu0 %v7626
        %7628 = vmatprep.subr.mxu0 0.0
        %7629 = vmatpush1.msra.mxu0 0.0
        %7630 = vmatprep.subr.mxu0 0.0
        %7631 = vmatpush1.msra.mxu0 0.0
        %7632 = vmatprep.subr.mxu0 0.0
        %7633 = vmatpush1.msra.mxu0 0.0
        %7634 = vmatprep.subr.mxu0 0.0
        %7635 = vmatpush1.msra.mxu0 0.0
        %7636 = vmatprep.subr.mxu0 0.0
        %7637 = vmatpush1.msra.mxu0 0.0
        %7638 = vmatprep.subr.mxu0 0.0
        %7639 = vmatpush1.msra.mxu0 0.0
        %7640 = vmatprep.subr.mxu0 0.0
        %7641 = vmatpush1.msra.mxu0 0.0
        %7642 = vmatprep.subr.mxu0 0.0
        %7643 = vmatpush1.msra.mxu0 0.0
        %7644 = vmatprep.subr.mxu0 0.0
        %7645 = vmatpush1.msra.mxu0 0.0
        %7646 = vmatprep.subr.mxu0 0.0
        %7647 = vmatpush1.msra.mxu0 0.0
        %7648 = vmatprep.subr.mxu0 0.0
        %7649 = vmatpush1.msra.mxu0 0.0
        %7650 = vmatprep.subr.mxu0 0.0
        %7651 = vmatpush1.msra.mxu0 0.0
        %7652 = vmatprep.subr.mxu0 0.0
        %7653 = vmatpush1.msra.mxu0 0.0
        %7654 = vmatprep.subr.mxu0 0.0
        %7655 = vmatpush1.msra.mxu0 0.0
        %7656 = vmatprep.subr.mxu0 0.0
        %7657 = vmatpush1.msra.mxu0 0.0
        %7658 = vmatprep.subr.mxu0 0.0
        %7659 = vmatpush1.msra.mxu0 0.0
        %7660 = vmatprep.mubr.f32.mxu0 0.0
        %v7661 = vand.u32 %v6776, 4294901760
        %7662 = vmatmul.mubr.f32.gmra.mrb[0].mxu0 %v7661
        %v7663 = vpop.f32.mrb[0].mxu0
        %v7664 = vpop.f32.mrb[0].mxu0
        %v7665 = vadd.f32 %v7562, %v7664
        %7666 = vdwg.mxu0
        %v7667 = vadd.f32 %v4066, %v7665
        %v7668 = vmul.f32 %v7667, 0.5
        %7669 = vst [vmem:[%s271] sm:$0xff] %v7668
        %s7670 = sand.u32 %s141, 1
        %s7671 = scalar_lea.sflag [#allocation5], %s7670
        %s7672 = sand.u32 %s141, 1
        %s7673 = smul.addr %s7672, 8
        %s7674 = scalar_lea.vmem [#allocation9], %s7673
        // Predicated region
        $region53: #{tpu_custom_call.1} parent=39 // pred_check
          %p7675 = pneg %p151
        $region54: #{tpu_custom_call.1} parent=39 // pred_check_branch
          %7677 = sbr.rel (%p7675) target = $region56
        $region55: #{tpu_custom_call.1} parent=39 // pred_region
          %s7679 = ssub.s32 128, 128
          %7680 = vsyncadd %s7671, %s7679
          %s7681 = smul.addr %s23, 128
          %s7682 = scalar_lea.hbm %s5, %s7681
          %s7684 = sshll.u32 %s7674, 4
          %s7685 = int_to_ptr.vmem [resolvable:$true] %s7684
          %7687 = dma.vmem_to_hbm [thread:$0]  %s7685, 128, %s7682, %s7671
        $region56: #{tpu_custom_call.1} parent=39 // pred_fallthru
          _
      $region40: #{tpu_custom_call.1} parent=5 // pred_fallthru
        _
      %p7688 = scmp.le.s32.totalorder 2, %s18
      // Predicated region
      $region57: #{tpu_custom_call.1} parent=5 // pred_check
        %p7689 = pneg %p7688
      $region58: #{tpu_custom_call.1} parent=5 // pred_check_branch
        %7691 = sbr.rel (%p7689) target = $region60
      $region59: #{tpu_custom_call.1} parent=5 // pred_region
        %s7692 = ssub.s32 %s18, 2
        // Predicated region
        $region61: #{tpu_custom_call.1} parent=59 // pred_check
          %p7693 = pneg %p157
        $region62: #{tpu_custom_call.1} parent=59 // pred_check_branch
          %7695 = sbr.rel (%p7693) target = $region64
        $region63: #{tpu_custom_call.1} parent=59 // pred_region
          %s7696 = sand.u32 %s142, 1
          %s7697 = scalar_lea.sflag [#allocation5], %s7696
          %s7698 = sand.u32 %s142, 1
          %s7699 = smul.addr %s7698, 8
          %s7700 = scalar_lea.vmem [#allocation9], %s7699
          %7701 = dma.done %s7697, 128
        $region64: #{tpu_custom_call.1} parent=59 // pred_fallthru
          _
      $region60: #{tpu_custom_call.1} parent=5 // pred_fallthru
        _
    $region6: #{tpu_custom_call.1} parent=1 // loop_footer
      %s22 = sadd.s32 1, %s18
    $region7: #{tpu_custom_call.1} parent=1 // loop_footer_branch
      %17 = sbr.rel target = $region3
    $region8: #{tpu_custom_call.1} parent=1 // loop_exit
      _
    %7702 = vsyncpa [#allocation4], 1
    %s7703 = scalar_lea.sflag [#allocation4], 1
    %7704 = vsyncpa %s7703, 1
    %7705 = vsyncpa [#allocation7], 1
    %7706 = vsyncpa [#allocation5], 1
    %s7707 = scalar_lea.sflag [#allocation5], 1
    %7708 = vsyncpa %s7707, 1

</llo_original>
